<compile_context>
chip_gen: v7x
topology: tpu7x:2x2x1
jax: 0.10.0
libtpu: 0.0.40
codegen_flags: <defaults>
</compile_context>

<pallas_src>
from functools import partial

import numpy as np
import jax
import jax.numpy as jnp
from jax.experimental import pallas as pl
from jax.experimental.pallas import tpu as pltpu


# ----------------------------------------------------------------------------
# Layout helpers.
# ----------------------------------------------------------------------------
def _round_up(n, m=128):
    return ((n + m - 1) // m) * m


# ----------------------------------------------------------------------------
# One-time parameter packing (host side, NOT in the per-call path).
# Lowers every conv on the fixed 3x3 grid to dense blocks of three big matrices:
#   W1  : (in_w, hid_w)          z1 = lhs @ W1            (bias b1 folded via 1-lane)
#   W2  : (hid_w + in_w, y_w)    z2 = [h | lhs] @ W2      (hidden + 1x1 skip + b2/bs)
#   cmb : (y_w, out_w)  bf16     o  = y @ cmb             (util + ec*ext + g*val - center)
# ----------------------------------------------------------------------------
def pack_cnndis_params(raw, *, feature_num, context_num, image_feature_num,
                       output_channel, gamma, ext_coeff):
    total_feature = feature_num + context_num + image_feature_num
    ext_cin = feature_num + image_feature_num + output_channel
    hu, he, hv = 2 * total_feature, 2 * ext_cin, 2 * total_feature
    co = output_channel

    n_x, n_pi = 9 * total_feature, 9 * co
    bias_row = n_x + n_pi                               # constant-1.0 lane appended by wrapper
    in_w = _round_up(bias_row + 1)                      # packed LHS = [x_flat | pi_flat | 1 | 0]
    hid_u0, hid_e0, hid_v0 = 0, 9 * hu, 9 * hu + 9 * he
    hid_w = _round_up(9 * (hu + he + hv))
    n_out = 9 * co
    y_u0, y_e0, y_v0 = 0, n_out, 2 * n_out
    y_w = _round_up(3 * n_out)
    out_w = _round_up(n_out)

    g = lambda a: np.asarray(jax.device_get(a), np.float32)   # host copy: once, here only

    # Row maps into the packed LHS.
    xrow = lambda q, c: q * total_feature + c
    pirow = lambda q, c: n_x + q * co + c

    def erow(q, e):  # ext input channel e -> packed LHS row (folds the channel selection)
        if e < feature_num:
            return xrow(q, e)
        if e < feature_num + image_feature_num:
            return xrow(q, e + context_num)
        return pirow(q, e - feature_num - image_feature_num)

    W1 = np.zeros((in_w, hid_w), np.float32)
    W2 = np.zeros((hid_w + in_w, y_w), np.float32)      # rows [0,hid_w): h path; rest: lhs path

    def add3(A, W, row_of, col_of):                     # 3x3 SAME conv on the 3x3 grid
        W = g(W)
        Cout, Cin = W.shape[0], W.shape[1]
        for py in range(3):
            for px in range(3):
                p = py * 3 + px
                cols = [col_of(p, c) for c in range(Cout)]
                for ky in range(3):
                    for kx in range(3):
                        qy, qx = py + ky - 1, px + kx - 1
                        if 0 <= qy < 3 and 0 <= qx < 3:
                            q = qy * 3 + qx
                            rows = [row_of(q, c) for c in range(Cin)]
                            A[np.ix_(rows, cols)] += W[:, :, ky, kx].T

    def add1(A, W, row_of, col_of):                     # 1x1 conv (block diagonal over p)
        W = g(W)
        Cout, Cin = W.shape[0], W.shape[1]
        for p in range(9):
            rows = [row_of(p, c) for c in range(Cin)]
            cols = [col_of(p, c) for c in range(Cout)]
            A[np.ix_(rows, cols)] += W[:, :, 0, 0].T

    def addb(A, row, b, col_of):                        # fold bias into the '1.0' lane's row
        b = g(b)
        for p in range(9):
            for c in range(b.shape[0]):
                A[row, col_of(p, c)] += b[c]

    branches = [
        (raw["util"], xrow, hu, hid_u0, y_u0, 3),
        (raw["ext"],  erow, he, hid_e0, y_e0, 3),
        (raw["val"],  xrow, hv, hid_v0, y_v0, 1),
    ]
    for pr, in_row, ch, h0, y0, ksize in branches:
        hcol = lambda p, c, h0=h0, ch=ch: h0 + p * ch + c
        ycol = lambda p, c, y0=y0: y0 + p * co + c
        addW = add3 if ksize == 3 else add1
        addW(W1, pr["W1"], in_row, hcol)                                # layer 1
        addb(W1, bias_row, pr["b1"], hcol)
        addW(W2, pr["W2"], hcol, ycol)                                  # layer 2 (hidden path)
        addb(W2, hid_w + bias_row, pr["b2"], ycol)
        add1(W2, pr["Ws"], lambda q, c: hid_w + in_row(q, c), ycol)     # layer 2 (1x1 skip)
        addb(W2, hid_w + bias_row, pr["bs"], ycol)

    # Final combine: o = util + ext_coeff*ext + gamma*val - val_center, as ONE matrix.
    # NOTE: padded hidden/y lanes evaluate to -softplus(0) != 0; the corresponding rows of
    # W2 / cmb are exact zeros, which keeps the padding inert — preserve that invariant.
    C = np.zeros((y_w, out_w), np.float32)
    for j in range(n_out):
        C[y_u0 + j, j] += 1.0
        C[y_e0 + j, j] += ext_coeff
        C[y_v0 + j, j] += gamma
    for p in range(9):
        for c in range(co):
            C[y_v0 + 4 * co + c, p * co + c] += -1.0    # subtract grid-center value

    return dict(
        w1=jnp.asarray(W1, jnp.bfloat16),
        w2=jnp.asarray(W2, jnp.bfloat16),
        cmb=jnp.asarray(C, jnp.bfloat16),               # bf16 combine (per perf review)
    )


# ----------------------------------------------------------------------------
# Pallas kernel: whole fused forward (per batch tile).  3 MXU pushes total.
# ----------------------------------------------------------------------------
def _neg_softplus(z):
    # -softplus(z), numerically stable, f32 (kept f32: safe on v5e VPU/EUP).
    return -(jnp.maximum(z, 0.0) + jnp.log1p(jnp.exp(-jnp.abs(z))))


def _cnndis_kernel(lhs_ref, w1_ref, w2_ref, cmb_ref, o_ref):
    lhs = lhs_ref[...]                                                    # (Bt, 128) bf16
    z1 = jnp.dot(lhs, w1_ref[...], preferred_element_type=jnp.float32)   # bias folded in
    h = _neg_softplus(z1).astype(jnp.bfloat16)                            # (Bt, 384)
    hx = jnp.concatenate([h, lhs], axis=-1)                               # (Bt, 512), K=512 push
    z2 = jnp.dot(hx, w2_ref[...], preferred_element_type=jnp.float32)    # hidden + skip + bias
    y = _neg_softplus(z2).astype(jnp.bfloat16)                            # (Bt, 128)
    # Fused bf16 combine: util + ext_coeff*ext + gamma*val - val_center (padded cols -> 0).
    o_ref[...] = jnp.dot(y, cmb_ref[...], preferred_element_type=jnp.float32)


@partial(jax.jit, static_argnames=("output_channel", "b_tile"))
def cnndis_forward_pallas(x_nchw, pi_nchw, packed, *, output_channel, b_tile=512):
    B = x_nchw.shape[0]
    # Minimal pre-processing: NHWC-flatten x and pi, append the constant-1.0 bias lane,
    # then one pad + cast to the packed bf16 LHS layout.
    x_flat = jnp.transpose(x_nchw, (0, 2, 3, 1)).reshape(B, -1)           # (B, 9*Cx)
    pi_flat = jnp.transpose(pi_nchw, (0, 2, 3, 1)).reshape(B, -1)         # (B, 9*Cpi)
    lhs = jnp.concatenate([x_flat, pi_flat, jnp.ones((B, 1), x_nchw.dtype)], axis=1)

    in_w, hid_w = packed["w1"].shape
    y_w, out_w = packed["cmb"].shape

    b_tile = min(b_tile, _round_up(B, 256))             # multiple of 256 (MXU rows), >=2 tiles
    b_pad = _round_up(B, b_tile)                        # when B is large enough
    lhs = jnp.pad(lhs, ((0, b_pad - B), (0, in_w - lhs.shape[1]))).astype(jnp.bfloat16)

    flops = 2 * b_pad * (in_w * hid_w + (hid_w + in_w) * y_w + y_w * out_w)
    transcendentals = 2 * b_pad * (hid_w + y_w)         # exp + log1p per hidden/y element
    bytes_accessed = (lhs.size * 2 + packed["w1"].size * 2 + packed["w2"].size * 2
                      + packed["cmb"].size * 2 + b_pad * out_w * 4)

    resident = lambda shape: pl.BlockSpec(shape, lambda i: (0, 0))        # weights stay in VMEM

    out_flat = pl.pallas_call(
        _cnndis_kernel,
        out_shape=jax.ShapeDtypeStruct((b_pad, out_w), jnp.float32),
        grid_spec=pltpu.PrefetchScalarGridSpec(
            num_scalar_prefetch=0,
            grid=(b_pad // b_tile,),
            in_specs=[
                pl.BlockSpec((b_tile, in_w), lambda i: (i, 0)),           # activations, pipelined
                resident(packed["w1"].shape),
                resident(packed["w2"].shape),
                resident(packed["cmb"].shape),
            ],
            out_specs=pl.BlockSpec((b_tile, out_w), lambda i: (i, 0)),    # lane-dense (128) stores
        ),
        compiler_params=pltpu.CompilerParams(
            dimension_semantics=("parallel",),          # shard batch tiles across TCs on v7x
            vmem_limit_bytes=48 * 1024 * 1024,          # ample; fits v7x's 64 MiB with headroom
        ),
        cost_estimate=pl.CostEstimate(
            flops=flops, transcendentals=transcendentals, bytes_accessed=bytes_accessed),
    )(lhs, packed["w1"], packed["w2"], packed["cmb"])

    out = out_flat[:B, :9 * output_channel]             # strip batch + lane padding
    return jnp.transpose(out.reshape(B, 3, 3, output_channel), (0, 3, 1, 2))


# ----------------------------------------------------------------------------
# Plain-JAX reference (NCHW, lax.conv, f32) for verification.
# ----------------------------------------------------------------------------
def _conv_nchw(x, W, b):
    y = jax.lax.conv_general_dilated(
        x, W, window_strides=(1, 1), padding="SAME",
        dimension_numbers=("NCHW", "OIHW", "NCHW"))
    return y + b[None, :, None, None]


def _cnn_block_ref(x, raw):
    nsp = lambda z: -jax.nn.softplus(z)
    h = nsp(_conv_nchw(x, raw["W1"], raw["b1"]))
    return nsp(_conv_nchw(h, raw["W2"], raw["b2"]) + _conv_nchw(x, raw["Ws"], raw["bs"]))


def cnndis_forward_ref(x, pi, raw_params, *, feature_num, context_num,
                       output_channel, gamma, ext_coeff):
    ext_in = jnp.concatenate(
        [x[:, :feature_num], x[:, feature_num + context_num:], pi], axis=1)
    util = _cnn_block_ref(x, raw_params["util"])
    ext = _cnn_block_ref(ext_in, raw_params["ext"])
    val = _cnn_block_ref(x, raw_params["val"])
    return util + ext_coeff * ext + gamma * val - val[:, :, 1:2, 1:2]


# ----------------------------------------------------------------------------
# Deterministic parameter setup.
# ----------------------------------------------------------------------------
def init_cnn_raw(key, cin, chid, cout, ksize):
    ks = jax.random.split(key, 6)
    return dict(
        W1=0.3 * jax.random.normal(ks[0], (chid, cin, ksize, ksize), jnp.float32),
        b1=0.1 * jax.random.normal(ks[1], (chid,), jnp.float32),
        W2=0.3 * jax.random.normal(ks[2], (cout, chid, ksize, ksize), jnp.float32),
        b2=0.1 * jax.random.normal(ks[3], (cout,), jnp.float32),
        Ws=0.3 * jax.random.normal(ks[4], (cout, cin, 1, 1), jnp.float32),
        bs=0.1 * jax.random.normal(ks[5], (cout,), jnp.float32),
    )


if __name__ == "__main__":
    # CNNDis config (small, consistent with the module).
    feature_num = 4
    context_num = 2
    image_feature_num = 0
    output_channel = 3
    gamma = 0.9
    ext_coeff = 1.0
    total_feature = feature_num + context_num + image_feature_num      # 6
    ext_cin = feature_num + image_feature_num + output_channel         # 7

    B = 1000           # pads to 1024 -> two 512-row tiles (exercises pipeline + v7x 2-TC split)
    B_TILE = 512       # multiple of 256 (MXU rows on v6e/v7x)

    key = jax.random.PRNGKey(0)
    k_x, k_pi, k_u, k_e, k_v = jax.random.split(key, 5)

    x = jax.random.normal(k_x, (B, total_feature, 3, 3), jnp.float32)
    pi = jax.random.normal(k_pi, (B, output_channel, 3, 3), jnp.float32)

    raw_params = dict(
        util=init_cnn_raw(k_u, total_feature, total_feature * 2, output_channel, 3),
        ext=init_cnn_raw(k_e, ext_cin, ext_cin * 2, output_channel, 3),
        val=init_cnn_raw(k_v, total_feature, total_feature * 2, output_channel, 1),
    )

    # One-time packing (param-load time), NOT in the per-forward hot path.
    packed = pack_cnndis_params(
        raw_params, feature_num=feature_num, context_num=context_num,
        image_feature_num=image_feature_num, output_channel=output_channel,
        gamma=gamma, ext_coeff=ext_coeff)

    f_val = cnndis_forward_pallas(x, pi, packed, output_channel=output_channel,
                                  b_tile=B_TILE)
    f_val = jax.block_until_ready(f_val)

    f_ref = cnndis_forward_ref(
        x, pi, raw_params, feature_num=feature_num, context_num=context_num,
        output_channel=output_channel, gamma=gamma, ext_coeff=ext_coeff)
    f_ref = jax.block_until_ready(f_ref)

    assert f_val.shape == (B, output_channel, 3, 3)
    # bf16 MXU inputs + bf16 combine (per perf guidance) vs f32 conv reference.
    np.testing.assert_allclose(np.asarray(f_val), np.asarray(f_ref),
                               rtol=5e-2, atol=2e-1)
    print("KERNEL_OK")
</pallas_src>

<mosaic_0001>
module attributes {stable_mosaic.version = 11 : i64} {
  func.func @_cnndis_kernel(%arg0: i32, %arg1: memref<512x128xbf16, #tpu.memory_space<vmem>>, %arg2: memref<128x384xbf16, #tpu.memory_space<vmem>>, %arg3: memref<512x128xbf16, #tpu.memory_space<vmem>>, %arg4: memref<128x128xbf16, #tpu.memory_space<vmem>>, %arg5: memref<512x128xf32, #tpu.memory_space<vmem>>) attributes {dimension_semantics = [#tpu.dimension_semantics<parallel>], iteration_bounds = array<i64: 2>, scalar_prefetch = 0 : i64, scratch_operands = 0 : i64, tpu.core_type = #tpu.core_type<tc>, window_params = [{transform_indices = @transform_0, window_bounds = array<i64: 512, 128>}, {pipeline_mode = #tpu.pipeline_mode<synchronous>, transform_indices = @transform_1, window_bounds = array<i64: 128, 384>}, {pipeline_mode = #tpu.pipeline_mode<synchronous>, transform_indices = @transform_2, window_bounds = array<i64: 512, 128>}, {pipeline_mode = #tpu.pipeline_mode<synchronous>, transform_indices = @transform_3, window_bounds = array<i64: 128, 128>}, {transform_indices = @transform_4, window_bounds = array<i64: 512, 128>}]} {
    %c0 = arith.constant 0 : index
    %c0_0 = arith.constant 0 : index
    %0 = vector.load %arg1[%c0, %c0_0] : memref<512x128xbf16, #tpu.memory_space<vmem>>, vector<512x128xbf16>
    %c0_1 = arith.constant 0 : index
    %c0_2 = arith.constant 0 : index
    %1 = vector.load %arg2[%c0_1, %c0_2] : memref<128x384xbf16, #tpu.memory_space<vmem>>, vector<128x384xbf16>
    %cst = arith.constant dense<0.000000e+00> : vector<512x384xf32>
    %2 = tpu.matmul %0, %1, %cst {dimension_numbers = #tpu.dot_dimension_numbers<[1], [0], [0], [1], [0, 0, 1, 1], [], []>} : vector<512x128xbf16>, vector<128x384xbf16>, vector<512x384xf32> -> vector<512x384xf32>
    %cst_3 = arith.constant 0.000000e+00 : f32
    %3 = vector.broadcast %cst_3 : f32 to vector<512x384xf32>
    %4 = arith.maximumf %2, %3 : vector<512x384xf32>
    %5 = math.absf %2 : vector<512x384xf32>
    %cst_4 = arith.constant 0.000000e+00 : f32
    %6 = vector.broadcast %cst_4 : f32 to vector<512x384xf32>
    %7 = arith.subf %6, %5 : vector<512x384xf32>
    %8 = math.exp %7 : vector<512x384xf32>
    %9 = math.log1p %8 : vector<512x384xf32>
    %10 = arith.addf %4, %9 : vector<512x384xf32>
    %cst_5 = arith.constant 0.000000e+00 : f32
    %11 = vector.broadcast %cst_5 : f32 to vector<512x384xf32>
    %12 = arith.subf %11, %10 : vector<512x384xf32>
    %13 = arith.truncf %12 : vector<512x384xf32> to vector<512x384xbf16>
    %14 = tpu.concatenate %13, %0 in 1 : vector<512x384xbf16>, vector<512x128xbf16> -> vector<512x512xbf16>
    %c0_6 = arith.constant 0 : index
    %c0_7 = arith.constant 0 : index
    %15 = vector.load %arg3[%c0_6, %c0_7] : memref<512x128xbf16, #tpu.memory_space<vmem>>, vector<512x128xbf16>
    %cst_8 = arith.constant dense<0.000000e+00> : vector<512x128xf32>
    %16 = tpu.matmul %14, %15, %cst_8 {dimension_numbers = #tpu.dot_dimension_numbers<[1], [0], [0], [1], [0, 0, 1, 1], [], []>} : vector<512x512xbf16>, vector<512x128xbf16>, vector<512x128xf32> -> vector<512x128xf32>
    %cst_9 = arith.constant 0.000000e+00 : f32
    %17 = vector.broadcast %cst_9 : f32 to vector<512x128xf32>
    %18 = arith.maximumf %16, %17 : vector<512x128xf32>
    %19 = math.absf %16 : vector<512x128xf32>
    %cst_10 = arith.constant 0.000000e+00 : f32
    %20 = vector.broadcast %cst_10 : f32 to vector<512x128xf32>
    %21 = arith.subf %20, %19 : vector<512x128xf32>
    %22 = math.exp %21 : vector<512x128xf32>
    %23 = math.log1p %22 : vector<512x128xf32>
    %24 = arith.addf %18, %23 : vector<512x128xf32>
    %cst_11 = arith.constant 0.000000e+00 : f32
    %25 = vector.broadcast %cst_11 : f32 to vector<512x128xf32>
    %26 = arith.subf %25, %24 : vector<512x128xf32>
    %27 = arith.truncf %26 : vector<512x128xf32> to vector<512x128xbf16>
    %c0_12 = arith.constant 0 : index
    %c0_13 = arith.constant 0 : index
    %28 = vector.load %arg4[%c0_12, %c0_13] : memref<128x128xbf16, #tpu.memory_space<vmem>>, vector<128x128xbf16>
    %cst_14 = arith.constant dense<0.000000e+00> : vector<512x128xf32>
    %29 = tpu.matmul %27, %28, %cst_14 {dimension_numbers = #tpu.dot_dimension_numbers<[1], [0], [0], [1], [0, 0, 1, 1], [], []>} : vector<512x128xbf16>, vector<128x128xbf16>, vector<512x128xf32> -> vector<512x128xf32>
    %c0_15 = arith.constant 0 : index
    %c0_16 = arith.constant 0 : index
    %30 = vector.load %arg5[%c0_15, %c0_16] : memref<512x128xf32, #tpu.memory_space<vmem>>, vector<512x128xf32>
    tpu.vector_store %arg5[%c0_15, %c0_16], %29 {strides = array<i32>} : memref<512x128xf32, #tpu.memory_space<vmem>>, vector<512x128xf32>,
    return
  }
  func.func @transform_0(%arg0: i32) -> (i32, i32) {
    %c0_i32 = arith.constant 0 : i32
    %c0_i32_0 = arith.constant 0 : i32
    return %arg0, %c0_i32 : i32, i32
  }
  func.func @transform_1(%arg0: i32) -> (i32, i32) {
    %c0_i32 = arith.constant 0 : i32
    %c0_i32_0 = arith.constant 0 : i32
    %c0_i32_1 = arith.constant 0 : i32
    return %c0_i32, %c0_i32_0 : i32, i32
  }
  func.func @transform_2(%arg0: i32) -> (i32, i32) {
    %c0_i32 = arith.constant 0 : i32
    %c0_i32_0 = arith.constant 0 : i32
    %c0_i32_1 = arith.constant 0 : i32
    return %c0_i32, %c0_i32_0 : i32, i32
  }
  func.func @transform_3(%arg0: i32) -> (i32, i32) {
    %c0_i32 = arith.constant 0 : i32
    %c0_i32_0 = arith.constant 0 : i32
    %c0_i32_1 = arith.constant 0 : i32
    return %c0_i32, %c0_i32_0 : i32, i32
  }
  func.func @transform_4(%arg0: i32) -> (i32, i32) {
    %c0_i32 = arith.constant 0 : i32
    %c0_i32_0 = arith.constant 0 : i32
    return %arg0, %c0_i32 : i32, i32
  }
}

</mosaic_0001>

<llo_original>
// kernel: cnndis_forward_pallas.1
$region0: #{cnndis_forward_pallas.1}
  #allocation0 [shape = 'u32[]', space=smem, size = 0x4, offset = 0x4, fixed_abs, tag = 'smem constant byte address 0x4 - core index']
  #allocation1 [shape = 'u32[144,128]{1,0:T(1,128)}', space=vmem, size = 0x12000, scoped, tag = 'internal scratch']
  %s0 = inlined_call_operand.vmem [shape: bf16[1024,128], index: 0, kind: input, shape index: {}]
  %s1 = inlined_call_operand.vmem [shape: bf16[128,384], index: 1, kind: input, shape index: {}]
  %s2 = inlined_call_operand.vmem [shape: bf16[512,128], index: 2, kind: input, shape index: {}]
  %s3 = inlined_call_operand.vmem [shape: bf16[128,128], index: 3, kind: input, shape index: {}]
  %s4 = inlined_call_operand.vmem [shape: f32[1024,128], index: 4, kind: output, shape index: {}]
  %s5 = sld [smem:[#allocation0]]
  $region49: #{cnndis_forward_pallas.1} parent=0
    _
  %s7 = ssub.s32 1, %s5
  %s8 = scalar_select 0, %s7, %s5
  loop: start=0, step=1, limit=4
  $region2: #{cnndis_forward_pallas.1} parent=0 // loop_pre_header
    _
  $region3: #{cnndis_forward_pallas.1} parent=0 // loop_header
    %s10 = sphi 0, %s14
    %p11 = scmp.ge.s32.totalorder %s10, 4
    %s20 = sphi 0, %s22
    %s23 = sphi 0, %s20
    %s24 = sphi 0, %s23
    %s40 = sphi 0, %s24
    %s44 = sphi 0, %s44
    %s46 = sphi 0, %s44
    %s47 = sphi 0, %s46
    %s61 = sphi 0, %s47
    %s65 = sphi 0, %s65
    %s67 = sphi 0, %s65
    %s68 = sphi 0, %s67
    %s82 = sphi 0, %s68
    %s86 = sphi 0, %s86
    %s88 = sphi 0, %s86
    %s89 = sphi 0, %s88
    %s103 = sphi 0, %s89
    %s109 = sphi 0, %s111
    %s112 = sphi 0, %s109
    %s113 = sphi 0, %s112
    %s129 = sphi 0, %s113
  $region4: #{cnndis_forward_pallas.1} parent=0 // loop_header_branch
    %13 = sbr.rel (%p11) target = $region8
  $region5: #{cnndis_forward_pallas.1} parent=0 // loop_body
    %s15 = ssub.s32 %s10, 1
    %s16 = ssub.s32 %s10, 2
    %s17 = sadd.s32 %s10, 1
    %s18 = ssub.s32 %s10, %s17
    %p19 = scmp.eq.s32.totalorder %s18, 0
    %s21 = sadd.s32 %s20, 1
    %s22 = scalar_select %p19, %s20, %s21
    %p25 = pneg %p19
    %p26 = scmp.eq.s32.totalorder %s10, 1
    %p27 = por %p25, %p26
    %p28 = scmp.ne.s32.totalorder %s20, %s23
    %p29 = scmp.eq.s32.totalorder %s10, 0
    %p30 = por %p28, %p29
    %p31 = scmp.ne.s32.totalorder %s20, %s23
    %p32 = scmp.eq.s32.totalorder %s15, 1
    %p33 = por %p31, %p32
    %p34 = scmp.ne.s32.totalorder %s23, %s24
    %p35 = scmp.eq.s32.totalorder %s15, 0
    %p36 = por %p34, %p35
    %p37 = scmp.ne.s32.totalorder %s23, %s24
    %p38 = scmp.eq.s32.totalorder %s16, 1
    %p39 = por %p37, %p38
    %p41 = scmp.ne.s32.totalorder %s24, %s40
    %p42 = scmp.eq.s32.totalorder %s16, 0
    %p43 = por %p41, %p42
    %s45 = sadd.s32 %s44, 1
    %p48 = scmp.eq.s32.totalorder %s10, 1
    %p49 = scmp.ne.s32.totalorder %s44, %s46
    %p50 = scmp.eq.s32.totalorder %s10, 0
    %p51 = por %p49, %p50
    %p52 = scmp.ne.s32.totalorder %s44, %s46
    %p53 = scmp.eq.s32.totalorder %s15, 1
    %p54 = por %p52, %p53
    %p55 = scmp.ne.s32.totalorder %s46, %s47
    %p56 = scmp.eq.s32.totalorder %s15, 0
    %p57 = por %p55, %p56
    %p58 = scmp.ne.s32.totalorder %s46, %s47
    %p59 = scmp.eq.s32.totalorder %s16, 1
    %p60 = por %p58, %p59
    %p62 = scmp.ne.s32.totalorder %s47, %s61
    %p63 = scmp.eq.s32.totalorder %s16, 0
    %p64 = por %p62, %p63
    %s66 = sadd.s32 %s65, 1
    %p69 = scmp.eq.s32.totalorder %s10, 1
    %p70 = scmp.ne.s32.totalorder %s65, %s67
    %p71 = scmp.eq.s32.totalorder %s10, 0
    %p72 = por %p70, %p71
    %p73 = scmp.ne.s32.totalorder %s65, %s67
    %p74 = scmp.eq.s32.totalorder %s15, 1
    %p75 = por %p73, %p74
    %p76 = scmp.ne.s32.totalorder %s67, %s68
    %p77 = scmp.eq.s32.totalorder %s15, 0
    %p78 = por %p76, %p77
    %p79 = scmp.ne.s32.totalorder %s67, %s68
    %p80 = scmp.eq.s32.totalorder %s16, 1
    %p81 = por %p79, %p80
    %p83 = scmp.ne.s32.totalorder %s68, %s82
    %p84 = scmp.eq.s32.totalorder %s16, 0
    %p85 = por %p83, %p84
    %s87 = sadd.s32 %s86, 1
    %p90 = scmp.eq.s32.totalorder %s10, 1
    %p91 = scmp.ne.s32.totalorder %s86, %s88
    %p92 = scmp.eq.s32.totalorder %s10, 0
    %p93 = por %p91, %p92
    %p94 = scmp.ne.s32.totalorder %s86, %s88
    %p95 = scmp.eq.s32.totalorder %s15, 1
    %p96 = por %p94, %p95
    %p97 = scmp.ne.s32.totalorder %s88, %s89
    %p98 = scmp.eq.s32.totalorder %s15, 0
    %p99 = por %p97, %p98
    %p100 = scmp.ne.s32.totalorder %s88, %s89
    %p101 = scmp.eq.s32.totalorder %s16, 1
    %p102 = por %p100, %p101
    %p104 = scmp.ne.s32.totalorder %s89, %s103
    %p105 = scmp.eq.s32.totalorder %s16, 0
    %p106 = por %p104, %p105
    %s107 = ssub.s32 %s10, %s17
    %p108 = scmp.eq.s32.totalorder %s107, 0
    %s110 = sadd.s32 %s109, 1
    %s111 = scalar_select %p108, %s109, %s110
    %p114 = pneg %p108
    %p115 = scmp.eq.s32.totalorder %s10, 1
    %p116 = por %p114, %p115
    %p117 = scmp.ne.s32.totalorder %s109, %s112
    %p118 = scmp.eq.s32.totalorder %s10, 0
    %p119 = por %p117, %p118
    %p120 = scmp.ne.s32.totalorder %s109, %s112
    %p121 = scmp.eq.s32.totalorder %s15, 1
    %p122 = por %p120, %p121
    %p123 = scmp.ne.s32.totalorder %s112, %s113
    %p124 = scmp.eq.s32.totalorder %s15, 0
    %p125 = por %p123, %p124
    %p126 = scmp.ne.s32.totalorder %s112, %s113
    %p127 = scmp.eq.s32.totalorder %s16, 1
    %p128 = por %p126, %p127
    %p130 = scmp.ne.s32.totalorder %s113, %s129
    %p131 = scmp.eq.s32.totalorder %s16, 0
    %p132 = por %p130, %p131
    %p133 = scmp.le.s32.totalorder 1, %s10
    %p134 = scmp.lt.s32.totalorder %s10, 3
    %p135 = pnand %p133, %p134
    %p136 = pneg %p135
    // Predicated region
    $region9: #{cnndis_forward_pallas.1} parent=5 // pred_check
      _
    $region10: #{cnndis_forward_pallas.1} parent=5 // pred_check_branch
      %138 = sbr.rel (%p135) target = $region12
    $region11: #{cnndis_forward_pallas.1} parent=5 // pred_region
      %s139 = ssub.s32 %s10, 1
      // Predicated region
      $region13: #{cnndis_forward_pallas.1} parent=11 // pred_check
        %p140 = pneg %p57
      $region14: #{cnndis_forward_pallas.1} parent=11 // pred_check_branch
        %142 = sbr.rel (%p140) target = $region16
      $region15: #{cnndis_forward_pallas.1} parent=11 // pred_region
        _
      $region16: #{cnndis_forward_pallas.1} parent=11 // pred_fallthru
        _
      // Predicated region
      $region17: #{cnndis_forward_pallas.1} parent=11 // pred_check
        %p143 = pneg %p78
      $region18: #{cnndis_forward_pallas.1} parent=11 // pred_check_branch
        %145 = sbr.rel (%p143) target = $region20
      $region19: #{cnndis_forward_pallas.1} parent=11 // pred_region
        _
      $region20: #{cnndis_forward_pallas.1} parent=11 // pred_fallthru
        _
      // Predicated region
      $region21: #{cnndis_forward_pallas.1} parent=11 // pred_check
        %p146 = pneg %p99
      $region22: #{cnndis_forward_pallas.1} parent=11 // pred_check_branch
        %148 = sbr.rel (%p146) target = $region24
      $region23: #{cnndis_forward_pallas.1} parent=11 // pred_region
        _
      $region24: #{cnndis_forward_pallas.1} parent=11 // pred_fallthru
        _
    $region12: #{cnndis_forward_pallas.1} parent=5 // pred_fallthru
      _
    %p149 = scmp.lt.s32.totalorder %s10, 2
    // Predicated region
    $region25: #{cnndis_forward_pallas.1} parent=5 // pred_check
      %p150 = pneg %p149
    $region26: #{cnndis_forward_pallas.1} parent=5 // pred_check_branch
      %152 = sbr.rel (%p150) target = $region28
    $region27: #{cnndis_forward_pallas.1} parent=5 // pred_region
      // Predicated region
      $region29: #{cnndis_forward_pallas.1} parent=27 // pred_check
        %p153 = pneg %p30
      $region30: #{cnndis_forward_pallas.1} parent=27 // pred_check_branch
        %155 = sbr.rel (%p153) target = $region32
      $region31: #{cnndis_forward_pallas.1} parent=27 // pred_region
        %s156 = smul.u32 64, %s10
        %p157 = scmp.lt.s32.totalorder %s156, 127
        %s158 = scalar_select %p157, %s156, 127
        %s159 = smul.addr %s158, 4
        %s160 = scalar_lea.vmem %s0, %s159
        %s161 = smul.u32 64, %s10
      $region32: #{cnndis_forward_pallas.1} parent=27 // pred_fallthru
        _
    $region28: #{cnndis_forward_pallas.1} parent=5 // pred_fallthru
      _
    %p162 = scmp.le.s32.totalorder 1, %s10
    %p163 = scmp.lt.s32.totalorder %s10, 3
    %p164 = pnand %p162, %p163
    %p165 = pneg %p164
    // Predicated region
    $region33: #{cnndis_forward_pallas.1} parent=5 // pred_check
      _
    $region34: #{cnndis_forward_pallas.1} parent=5 // pred_check_branch
      %167 = sbr.rel (%p164) target = $region36
    $region35: #{cnndis_forward_pallas.1} parent=5 // pred_region
      %s168 = ssub.s32 %s10, 1
      %s169 = smul.u32 64, %s15
      %p170 = scmp.lt.s32.totalorder %s169, 127
      %s171 = scalar_select %p170, %s169, 127
      %s172 = smul.addr %s171, 4
      %s173 = scalar_lea.vmem %s0, %s172
      %p174 = pneg %p36
      %p175 = pneg %p33
      %p176 = pneg %p57
      %p177 = pneg %p54
      %p178 = pneg %p78
      %p179 = pneg %p75
      %p180 = pneg %p99
      %p181 = pneg %p96
      %p182 = pneg %p125
      %p183 = pneg %p122
      %s184 = smul.u32 64, %s15
      %p185 = scmp.lt.s32.totalorder %s184, 127
      %s186 = scalar_select %p185, %s184, 127
      %s187 = smul.addr %s186, 8
      %s188 = scalar_lea.vmem %s4, %s187
      %s189 = smul.u32 64, %s15
      %p190 = scmp.lt.s32.totalorder %s189, 127
      %s191 = scalar_select %p190, %s189, 127
      %s192 = smul.addr %s191, 4
      %s193 = scalar_lea.vmem %s0, %s192
      %s194 = smul.u32 64, %s15
      %s195 = smul.u32 64, %s15
      %p196 = scmp.lt.s32.totalorder %s195, 127
      %s197 = scalar_select %p196, %s195, 127
      %s198 = smul.addr %s197, 8
      %s199 = scalar_lea.vmem %s4, %s198
      %s200 = smul.u32 64, %s15
      %v202 = vld [vmem:[%s193] sm:$0xf]
      %v203 = vld [vmem:[%s193 + $0x4] sm:$0xf]
      %v204 = vld [vmem:[%s193 + $0x8] sm:$0xf]
      %v205 = vld [vmem:[%s193 + $0xc] sm:$0xf]
      %v206 = vld [vmem:[%s193 + $0x10] sm:$0xf]
      %v207 = vld [vmem:[%s193 + $0x14] sm:$0xf]
      %v208 = vld [vmem:[%s193 + $0x18] sm:$0xf]
      %v209 = vld [vmem:[%s193 + $0x1c] sm:$0xf]
      %v210 = vld [vmem:[%s193 + $0x20] sm:$0xf]
      %v211 = vld [vmem:[%s193 + $0x24] sm:$0xf]
      %v212 = vld [vmem:[%s193 + $0x28] sm:$0xf]
      %v213 = vld [vmem:[%s193 + $0x2c] sm:$0xf]
      %v214 = vld [vmem:[%s193 + $0x30] sm:$0xf]
      %v215 = vld [vmem:[%s193 + $0x34] sm:$0xf]
      %v216 = vld [vmem:[%s193 + $0x38] sm:$0xf]
      %v217 = vld [vmem:[%s193 + $0x3c] sm:$0xf]
      %v218 = vld [vmem:[%s193 + $0x40] sm:$0xf]
      %v219 = vld [vmem:[%s193 + $0x44] sm:$0xf]
      %v220 = vld [vmem:[%s193 + $0x48] sm:$0xf]
      %v221 = vld [vmem:[%s193 + $0x4c] sm:$0xf]
      %v222 = vld [vmem:[%s193 + $0x50] sm:$0xf]
      %v223 = vld [vmem:[%s193 + $0x54] sm:$0xf]
      %v224 = vld [vmem:[%s193 + $0x58] sm:$0xf]
      %v225 = vld [vmem:[%s193 + $0x5c] sm:$0xf]
      %v226 = vld [vmem:[%s193 + $0x60] sm:$0xf]
      %v227 = vld [vmem:[%s193 + $0x64] sm:$0xf]
      %v228 = vld [vmem:[%s193 + $0x68] sm:$0xf]
      %v229 = vld [vmem:[%s193 + $0x6c] sm:$0xf]
      %v230 = vld [vmem:[%s193 + $0x70] sm:$0xf]
      %v231 = vld [vmem:[%s193 + $0x74] sm:$0xf]
      %v232 = vld [vmem:[%s193 + $0x78] sm:$0xf]
      %v233 = vld [vmem:[%s193 + $0x7c] sm:$0xf]
      %v234 = vld [vmem:[%s193 + $0x80] sm:$0xf]
      %v235 = vld [vmem:[%s193 + $0x84] sm:$0xf]
      %v236 = vld [vmem:[%s193 + $0x88] sm:$0xf]
      %v237 = vld [vmem:[%s193 + $0x8c] sm:$0xf]
      %v238 = vld [vmem:[%s193 + $0x90] sm:$0xf]
      %v239 = vld [vmem:[%s193 + $0x94] sm:$0xf]
      %v240 = vld [vmem:[%s193 + $0x98] sm:$0xf]
      %v241 = vld [vmem:[%s193 + $0x9c] sm:$0xf]
      %v242 = vld [vmem:[%s193 + $0xa0] sm:$0xf]
      %v243 = vld [vmem:[%s193 + $0xa4] sm:$0xf]
      %v244 = vld [vmem:[%s193 + $0xa8] sm:$0xf]
      %v245 = vld [vmem:[%s193 + $0xac] sm:$0xf]
      %v246 = vld [vmem:[%s193 + $0xb0] sm:$0xf]
      %v247 = vld [vmem:[%s193 + $0xb4] sm:$0xf]
      %v248 = vld [vmem:[%s193 + $0xb8] sm:$0xf]
      %v249 = vld [vmem:[%s193 + $0xbc] sm:$0xf]
      %v250 = vld [vmem:[%s193 + $0xc0] sm:$0xf]
      %v251 = vld [vmem:[%s193 + $0xc4] sm:$0xf]
      %v252 = vld [vmem:[%s193 + $0xc8] sm:$0xf]
      %v253 = vld [vmem:[%s193 + $0xcc] sm:$0xf]
      %v254 = vld [vmem:[%s193 + $0xd0] sm:$0xf]
      %v255 = vld [vmem:[%s193 + $0xd4] sm:$0xf]
      %v256 = vld [vmem:[%s193 + $0xd8] sm:$0xf]
      %v257 = vld [vmem:[%s193 + $0xdc] sm:$0xf]
      %v258 = vld [vmem:[%s193 + $0xe0] sm:$0xf]
      %v259 = vld [vmem:[%s193 + $0xe4] sm:$0xf]
      %v260 = vld [vmem:[%s193 + $0xe8] sm:$0xf]
      %v261 = vld [vmem:[%s193 + $0xec] sm:$0xf]
      %v262 = vld [vmem:[%s193 + $0xf0] sm:$0xf]
      %v263 = vld [vmem:[%s193 + $0xf4] sm:$0xf]
      %v264 = vld [vmem:[%s193 + $0xf8] sm:$0xf]
      %v265 = vld [vmem:[%s193 + $0xfc] sm:$0xf]
      %v266 = vld [vmem:[%s1] sm:$0xff]
      %v267 = vld [vmem:[%s1 + $0x8] sm:$0xf]
      %v268 = vld [vmem:[%s1 + $0xc] sm:$0xff]
      %v269 = vld [vmem:[%s1 + $0x14] sm:$0xf]
      %v270 = vld [vmem:[%s1 + $0x18] sm:$0xff]
      %v271 = vld [vmem:[%s1 + $0x20] sm:$0xf]
      %v272 = vld [vmem:[%s1 + $0x24] sm:$0xff]
      %v273 = vld [vmem:[%s1 + $0x2c] sm:$0xf]
      %v274 = vld [vmem:[%s1 + $0x30] sm:$0xff]
      %v275 = vld [vmem:[%s1 + $0x38] sm:$0xf]
      %v276 = vld [vmem:[%s1 + $0x3c] sm:$0xff]
      %v277 = vld [vmem:[%s1 + $0x44] sm:$0xf]
      %v278 = vld [vmem:[%s1 + $0x48] sm:$0xff]
      %v279 = vld [vmem:[%s1 + $0x50] sm:$0xf]
      %v280 = vld [vmem:[%s1 + $0x54] sm:$0xff]
      %v281 = vld [vmem:[%s1 + $0x5c] sm:$0xf]
      %v282 = vld [vmem:[%s1 + $0x60] sm:$0xff]
      %v283 = vld [vmem:[%s1 + $0x68] sm:$0xf]
      %v284 = vld [vmem:[%s1 + $0x6c] sm:$0xff]
      %v285 = vld [vmem:[%s1 + $0x74] sm:$0xf]
      %v286 = vld [vmem:[%s1 + $0x78] sm:$0xff]
      %v287 = vld [vmem:[%s1 + $0x80] sm:$0xf]
      %v288 = vld [vmem:[%s1 + $0x84] sm:$0xff]
      %v289 = vld [vmem:[%s1 + $0x8c] sm:$0xf]
      %v290 = vld [vmem:[%s1 + $0x90] sm:$0xff]
      %v291 = vld [vmem:[%s1 + $0x98] sm:$0xf]
      %v292 = vld [vmem:[%s1 + $0x9c] sm:$0xff]
      %v293 = vld [vmem:[%s1 + $0xa4] sm:$0xf]
      %v294 = vld [vmem:[%s1 + $0xa8] sm:$0xff]
      %v295 = vld [vmem:[%s1 + $0xb0] sm:$0xf]
      %v296 = vld [vmem:[%s1 + $0xb4] sm:$0xff]
      %v297 = vld [vmem:[%s1 + $0xbc] sm:$0xf]
      %v362 = vunpack.c.l.b16 %v202
      %v363 = vunpack.c.l.b16 %v203
      %v364 = vunpack.c.l.b16 %v204
      %v365 = vunpack.c.l.b16 %v205
      %v366 = vunpack.c.l.b16 %v206
      %v367 = vunpack.c.l.b16 %v207
      %v368 = vunpack.c.l.b16 %v208
      %v369 = vunpack.c.l.b16 %v209
      %v370 = vunpack.c.l.b16 %v210
      %v371 = vunpack.c.l.b16 %v211
      %v372 = vunpack.c.l.b16 %v212
      %v373 = vunpack.c.l.b16 %v213
      %v374 = vunpack.c.l.b16 %v214
      %v375 = vunpack.c.l.b16 %v215
      %v376 = vunpack.c.l.b16 %v216
      %v377 = vunpack.c.l.b16 %v217
      %v378 = vunpack.c.l.b16 %v218
      %v379 = vunpack.c.l.b16 %v219
      %v380 = vunpack.c.l.b16 %v220
      %v381 = vunpack.c.l.b16 %v221
      %v382 = vunpack.c.l.b16 %v222
      %v383 = vunpack.c.l.b16 %v223
      %v384 = vunpack.c.l.b16 %v224
      %v385 = vunpack.c.l.b16 %v225
      %v386 = vunpack.c.l.b16 %v226
      %v387 = vunpack.c.l.b16 %v227
      %v388 = vunpack.c.l.b16 %v228
      %v389 = vunpack.c.l.b16 %v229
      %v390 = vunpack.c.l.b16 %v230
      %v391 = vunpack.c.l.b16 %v231
      %v392 = vunpack.c.l.b16 %v232
      %v393 = vunpack.c.l.b16 %v233
      %v394 = vunpack.c.l.b16 %v234
      %v395 = vunpack.c.l.b16 %v235
      %v396 = vunpack.c.l.b16 %v236
      %v397 = vunpack.c.l.b16 %v237
      %v398 = vunpack.c.l.b16 %v238
      %v399 = vunpack.c.l.b16 %v239
      %v400 = vunpack.c.l.b16 %v240
      %v401 = vunpack.c.l.b16 %v241
      %v402 = vunpack.c.l.b16 %v242
      %v403 = vunpack.c.l.b16 %v243
      %v404 = vunpack.c.l.b16 %v244
      %v405 = vunpack.c.l.b16 %v245
      %v406 = vunpack.c.l.b16 %v246
      %v407 = vunpack.c.l.b16 %v247
      %v408 = vunpack.c.l.b16 %v248
      %v409 = vunpack.c.l.b16 %v249
      %v410 = vunpack.c.l.b16 %v250
      %v411 = vunpack.c.l.b16 %v251
      %v412 = vunpack.c.l.b16 %v252
      %v413 = vunpack.c.l.b16 %v253
      %v414 = vunpack.c.l.b16 %v254
      %v415 = vunpack.c.l.b16 %v255
      %v416 = vunpack.c.l.b16 %v256
      %v417 = vunpack.c.l.b16 %v257
      %v418 = vunpack.c.l.b16 %v258
      %v419 = vunpack.c.l.b16 %v259
      %v420 = vunpack.c.l.b16 %v260
      %v421 = vunpack.c.l.b16 %v261
      %v422 = vunpack.c.l.b16 %v262
      %v423 = vunpack.c.l.b16 %v263
      %v424 = vunpack.c.l.b16 %v264
      %v425 = vunpack.c.l.b16 %v265
      %v426 = vpack.c.b16 %v363, %v362
      %v427 = vpack.c.b16 %v365, %v364
      %v428 = vpack.c.b16 %v367, %v366
      %v429 = vpack.c.b16 %v369, %v368
      %v430 = vpack.c.b16 %v371, %v370
      %v431 = vpack.c.b16 %v373, %v372
      %v432 = vpack.c.b16 %v375, %v374
      %v433 = vpack.c.b16 %v377, %v376
      %v434 = vpack.c.b16 %v379, %v378
      %v435 = vpack.c.b16 %v381, %v380
      %v436 = vpack.c.b16 %v383, %v382
      %v437 = vpack.c.b16 %v385, %v384
      %v438 = vpack.c.b16 %v387, %v386
      %v439 = vpack.c.b16 %v389, %v388
      %v440 = vpack.c.b16 %v391, %v390
      %v441 = vpack.c.b16 %v393, %v392
      %v442 = vpack.c.b16 %v395, %v394
      %v443 = vpack.c.b16 %v397, %v396
      %v444 = vpack.c.b16 %v399, %v398
      %v445 = vpack.c.b16 %v401, %v400
      %v446 = vpack.c.b16 %v403, %v402
      %v447 = vpack.c.b16 %v405, %v404
      %v448 = vpack.c.b16 %v407, %v406
      %v449 = vpack.c.b16 %v409, %v408
      %v450 = vpack.c.b16 %v411, %v410
      %v451 = vpack.c.b16 %v413, %v412
      %v452 = vpack.c.b16 %v415, %v414
      %v453 = vpack.c.b16 %v417, %v416
      %v454 = vpack.c.b16 %v419, %v418
      %v455 = vpack.c.b16 %v421, %v420
      %v456 = vpack.c.b16 %v423, %v422
      %v457 = vpack.c.b16 %v425, %v424
      %v522 = vunpack.c.l.b16 %v266
      %v523 = vunpack.c.h.b16 %v266
      %v524 = vunpack.c.l.b16 %v267
      %v525 = vunpack.c.l.b16 %v268
      %v526 = vunpack.c.h.b16 %v268
      %v527 = vunpack.c.l.b16 %v269
      %v528 = vunpack.c.l.b16 %v270
      %v529 = vunpack.c.h.b16 %v270
      %v530 = vunpack.c.l.b16 %v271
      %v531 = vunpack.c.l.b16 %v272
      %v532 = vunpack.c.h.b16 %v272
      %v533 = vunpack.c.l.b16 %v273
      %v534 = vunpack.c.l.b16 %v274
      %v535 = vunpack.c.h.b16 %v274
      %v536 = vunpack.c.l.b16 %v275
      %v537 = vunpack.c.l.b16 %v276
      %v538 = vunpack.c.h.b16 %v276
      %v539 = vunpack.c.l.b16 %v277
      %v540 = vunpack.c.l.b16 %v278
      %v541 = vunpack.c.h.b16 %v278
      %v542 = vunpack.c.l.b16 %v279
      %v543 = vunpack.c.l.b16 %v280
      %v544 = vunpack.c.h.b16 %v280
      %v545 = vunpack.c.l.b16 %v281
      %v546 = vunpack.c.l.b16 %v282
      %v547 = vunpack.c.h.b16 %v282
      %v548 = vunpack.c.l.b16 %v283
      %v549 = vunpack.c.l.b16 %v284
      %v550 = vunpack.c.h.b16 %v284
      %v551 = vunpack.c.l.b16 %v285
      %v552 = vunpack.c.l.b16 %v286
      %v553 = vunpack.c.h.b16 %v286
      %v554 = vunpack.c.l.b16 %v287
      %v555 = vunpack.c.l.b16 %v288
      %v556 = vunpack.c.h.b16 %v288
      %v557 = vunpack.c.l.b16 %v289
      %v558 = vunpack.c.l.b16 %v290
      %v559 = vunpack.c.h.b16 %v290
      %v560 = vunpack.c.l.b16 %v291
      %v561 = vunpack.c.l.b16 %v292
      %v562 = vunpack.c.h.b16 %v292
      %v563 = vunpack.c.l.b16 %v293
      %v564 = vunpack.c.l.b16 %v294
      %v565 = vunpack.c.h.b16 %v294
      %v566 = vunpack.c.l.b16 %v295
      %v567 = vunpack.c.l.b16 %v296
      %v568 = vunpack.c.h.b16 %v296
      %v569 = vunpack.c.l.b16 %v297
      %v570 = vpack.c.b16 %v525, %v522
      %v571 = vpack.c.b16 %v526, %v523
      %v572 = vpack.c.b16 %v527, %v524
      %v573 = vpack.c.b16 %v531, %v528
      %v574 = vpack.c.b16 %v532, %v529
      %v575 = vpack.c.b16 %v533, %v530
      %v576 = vpack.c.b16 %v537, %v534
      %v577 = vpack.c.b16 %v538, %v535
      %v578 = vpack.c.b16 %v539, %v536
      %v579 = vpack.c.b16 %v543, %v540
      %v580 = vpack.c.b16 %v544, %v541
      %v581 = vpack.c.b16 %v545, %v542
      %v582 = vpack.c.b16 %v549, %v546
      %v583 = vpack.c.b16 %v550, %v547
      %v584 = vpack.c.b16 %v551, %v548
      %v585 = vpack.c.b16 %v555, %v552
      %v586 = vpack.c.b16 %v556, %v553
      %v587 = vpack.c.b16 %v557, %v554
      %v588 = vpack.c.b16 %v561, %v558
      %v589 = vpack.c.b16 %v562, %v559
      %v590 = vpack.c.b16 %v563, %v560
      %v591 = vpack.c.b16 %v567, %v564
      %v592 = vpack.c.b16 %v568, %v565
      %v593 = vpack.c.b16 %v569, %v566
      %618 = vmatprep.subr.bf16.mxu0 %v571
      %619 = vmatpush1.bf16.msra.mxu0 %v570
      %620 = vmatprep.subr.bf16.mxu0 %v574
      %621 = vmatpush1.bf16.msra.mxu0 %v573
      %622 = vmatprep.subr.bf16.mxu0 %v577
      %623 = vmatpush1.bf16.msra.mxu0 %v576
      %624 = vmatprep.subr.bf16.mxu0 %v580
      %625 = vmatpush1.bf16.msra.mxu0 %v579
      %626 = vmatprep.subr.bf16.mxu0 %v583
      %627 = vmatpush1.bf16.msra.mxu0 %v582
      %628 = vmatprep.subr.bf16.mxu0 %v586
      %629 = vmatpush1.bf16.msra.mxu0 %v585
      %630 = vmatprep.subr.bf16.mxu0 %v589
      %631 = vmatpush1.bf16.msra.mxu0 %v588
      %632 = vmatprep.subr.bf16.mxu0 %v592
      %633 = vmatpush1.bf16.msra.mxu0 %v591
      %634 = vmatprep.subr.bf16.mxu0 0
      %635 = vmatpush1.bf16.msra.mxu0 0
      %636 = vmatprep.subr.bf16.mxu0 0
      %637 = vmatpush1.bf16.msra.mxu0 0
      %638 = vmatprep.subr.bf16.mxu0 0
      %639 = vmatpush1.bf16.msra.mxu0 0
      %640 = vmatprep.subr.bf16.mxu0 0
      %641 = vmatpush1.bf16.msra.mxu0 0
      %642 = vmatprep.subr.bf16.mxu0 0
      %643 = vmatpush1.bf16.msra.mxu0 0
      %644 = vmatprep.subr.bf16.mxu0 0
      %645 = vmatpush1.bf16.msra.mxu0 0
      %646 = vmatprep.subr.bf16.mxu0 0
      %647 = vmatpush1.bf16.msra.mxu0 0
      %648 = vmatprep.subr.bf16.mxu0 0
      %649 = vmatpush1.bf16.msra.mxu0 0
      %650 = vmatprep.mubr.bf16.mxu0 0
      %651 = vmatmul.mubr.bf16.gmra.mrb[0].mxu0 %v426
      %v652 = vpop.f32.mrb[0].mxu0
      %v653 = vadd.f32 0.0, %v652
      %v654 = vpop.f32.mrb[0].mxu0
      %v655 = vadd.f32 0.0, %v654
      %v656 = vpop.f32.mrb[0].mxu0
      %v657 = vadd.f32 0.0, %v656
      %v658 = vpop.f32.mrb[0].mxu0
      %v659 = vadd.f32 0.0, %v658
      %660 = vmatprep.mubr.bf16.mxu0 0
      %661 = vmatmul.mubr.bf16.gmra.mrb[0].mxu0 %v427
      %v662 = vpop.f32.mrb[0].mxu0
      %v663 = vadd.f32 0.0, %v662
      %v664 = vpop.f32.mrb[0].mxu0
      %v665 = vadd.f32 0.0, %v664
      %v666 = vpop.f32.mrb[0].mxu0
      %v667 = vadd.f32 0.0, %v666
      %v668 = vpop.f32.mrb[0].mxu0
      %v669 = vadd.f32 0.0, %v668
      %670 = vmatprep.mubr.bf16.mxu0 0
      %671 = vmatmul.mubr.bf16.gmra.mrb[0].mxu0 %v428
      %v672 = vpop.f32.mrb[0].mxu0
      %v673 = vadd.f32 0.0, %v672
      %v674 = vpop.f32.mrb[0].mxu0
      %v675 = vadd.f32 0.0, %v674
      %v676 = vpop.f32.mrb[0].mxu0
      %v677 = vadd.f32 0.0, %v676
      %v678 = vpop.f32.mrb[0].mxu0
      %v679 = vadd.f32 0.0, %v678
      %680 = vmatprep.mubr.bf16.mxu0 0
      %681 = vmatmul.mubr.bf16.gmra.mrb[0].mxu0 %v429
      %v682 = vpop.f32.mrb[0].mxu0
      %v683 = vadd.f32 0.0, %v682
      %v684 = vpop.f32.mrb[0].mxu0
      %v685 = vadd.f32 0.0, %v684
      %v686 = vpop.f32.mrb[0].mxu0
      %v687 = vadd.f32 0.0, %v686
      %v688 = vpop.f32.mrb[0].mxu0
      %v689 = vadd.f32 0.0, %v688
      %690 = vmatprep.mubr.bf16.mxu0 0
      %691 = vmatmul.mubr.bf16.gmra.mrb[0].mxu0 %v430
      %v692 = vpop.f32.mrb[0].mxu0
      %v693 = vadd.f32 0.0, %v692
      %v694 = vpop.f32.mrb[0].mxu0
      %v695 = vadd.f32 0.0, %v694
      %v696 = vpop.f32.mrb[0].mxu0
      %v697 = vadd.f32 0.0, %v696
      %v698 = vpop.f32.mrb[0].mxu0
      %v699 = vadd.f32 0.0, %v698
      %700 = vmatprep.mubr.bf16.mxu0 0
      %701 = vmatmul.mubr.bf16.gmra.mrb[0].mxu0 %v431
      %v702 = vpop.f32.mrb[0].mxu0
      %v703 = vadd.f32 0.0, %v702
      %v704 = vpop.f32.mrb[0].mxu0
      %v705 = vadd.f32 0.0, %v704
      %v706 = vpop.f32.mrb[0].mxu0
      %v707 = vadd.f32 0.0, %v706
      %v708 = vpop.f32.mrb[0].mxu0
      %v709 = vadd.f32 0.0, %v708
      %710 = vmatprep.mubr.bf16.mxu0 0
      %711 = vmatmul.mubr.bf16.gmra.mrb[0].mxu0 %v432
      %v712 = vpop.f32.mrb[0].mxu0
      %v713 = vadd.f32 0.0, %v712
      %v714 = vpop.f32.mrb[0].mxu0
      %v715 = vadd.f32 0.0, %v714
      %v716 = vpop.f32.mrb[0].mxu0
      %v717 = vadd.f32 0.0, %v716
      %v718 = vpop.f32.mrb[0].mxu0
      %v719 = vadd.f32 0.0, %v718
      %720 = vmatprep.mubr.bf16.mxu0 0
      %721 = vmatmul.mubr.bf16.gmra.mrb[0].mxu0 %v433
      %v722 = vpop.f32.mrb[0].mxu0
      %v723 = vadd.f32 0.0, %v722
      %v724 = vpop.f32.mrb[0].mxu0
      %v725 = vadd.f32 0.0, %v724
      %v726 = vpop.f32.mrb[0].mxu0
      %v727 = vadd.f32 0.0, %v726
      %v728 = vpop.f32.mrb[0].mxu0
      %v729 = vadd.f32 0.0, %v728
      %730 = vmatprep.mubr.bf16.mxu0 0
      %731 = vmatmul.mubr.bf16.gmra.mrb[0].mxu0 %v434
      %v732 = vpop.f32.mrb[0].mxu0
      %v733 = vadd.f32 0.0, %v732
      %v734 = vpop.f32.mrb[0].mxu0
      %v735 = vadd.f32 0.0, %v734
      %v736 = vpop.f32.mrb[0].mxu0
      %v737 = vadd.f32 0.0, %v736
      %v738 = vpop.f32.mrb[0].mxu0
      %v739 = vadd.f32 0.0, %v738
      %740 = vmatprep.mubr.bf16.mxu0 0
      %741 = vmatmul.mubr.bf16.gmra.mrb[0].mxu0 %v435
      %v742 = vpop.f32.mrb[0].mxu0
      %v743 = vadd.f32 0.0, %v742
      %v744 = vpop.f32.mrb[0].mxu0
      %v745 = vadd.f32 0.0, %v744
      %v746 = vpop.f32.mrb[0].mxu0
      %v747 = vadd.f32 0.0, %v746
      %v748 = vpop.f32.mrb[0].mxu0
      %v749 = vadd.f32 0.0, %v748
      %750 = vmatprep.mubr.bf16.mxu0 0
      %751 = vmatmul.mubr.bf16.gmra.mrb[0].mxu0 %v436
      %v752 = vpop.f32.mrb[0].mxu0
      %v753 = vadd.f32 0.0, %v752
      %v754 = vpop.f32.mrb[0].mxu0
      %v755 = vadd.f32 0.0, %v754
      %v756 = vpop.f32.mrb[0].mxu0
      %v757 = vadd.f32 0.0, %v756
      %v758 = vpop.f32.mrb[0].mxu0
      %v759 = vadd.f32 0.0, %v758
      %760 = vmatprep.mubr.bf16.mxu0 0
      %761 = vmatmul.mubr.bf16.gmra.mrb[0].mxu0 %v437
      %v762 = vpop.f32.mrb[0].mxu0
      %v763 = vadd.f32 0.0, %v762
      %v764 = vpop.f32.mrb[0].mxu0
      %v765 = vadd.f32 0.0, %v764
      %v766 = vpop.f32.mrb[0].mxu0
      %v767 = vadd.f32 0.0, %v766
      %v768 = vpop.f32.mrb[0].mxu0
      %v769 = vadd.f32 0.0, %v768
      %770 = vmatprep.mubr.bf16.mxu0 0
      %771 = vmatmul.mubr.bf16.gmra.mrb[0].mxu0 %v438
      %v772 = vpop.f32.mrb[0].mxu0
      %v773 = vadd.f32 0.0, %v772
      %v774 = vpop.f32.mrb[0].mxu0
      %v775 = vadd.f32 0.0, %v774
      %v776 = vpop.f32.mrb[0].mxu0
      %v777 = vadd.f32 0.0, %v776
      %v778 = vpop.f32.mrb[0].mxu0
      %v779 = vadd.f32 0.0, %v778
      %780 = vmatprep.mubr.bf16.mxu0 0
      %781 = vmatmul.mubr.bf16.gmra.mrb[0].mxu0 %v439
      %v782 = vpop.f32.mrb[0].mxu0
      %v783 = vadd.f32 0.0, %v782
      %v784 = vpop.f32.mrb[0].mxu0
      %v785 = vadd.f32 0.0, %v784
      %v786 = vpop.f32.mrb[0].mxu0
      %v787 = vadd.f32 0.0, %v786
      %v788 = vpop.f32.mrb[0].mxu0
      %v789 = vadd.f32 0.0, %v788
      %790 = vmatprep.mubr.bf16.mxu0 0
      %791 = vmatmul.mubr.bf16.gmra.mrb[0].mxu0 %v440
      %v792 = vpop.f32.mrb[0].mxu0
      %v793 = vadd.f32 0.0, %v792
      %v794 = vpop.f32.mrb[0].mxu0
      %v795 = vadd.f32 0.0, %v794
      %v796 = vpop.f32.mrb[0].mxu0
      %v797 = vadd.f32 0.0, %v796
      %v798 = vpop.f32.mrb[0].mxu0
      %v799 = vadd.f32 0.0, %v798
      %800 = vmatprep.mubr.bf16.mxu0 0
      %801 = vmatmul.mubr.bf16.gmra.mrb[0].mxu0 %v441
      %v802 = vpop.f32.mrb[0].mxu0
      %v803 = vadd.f32 0.0, %v802
      %v804 = vpop.f32.mrb[0].mxu0
      %v805 = vadd.f32 0.0, %v804
      %v806 = vpop.f32.mrb[0].mxu0
      %v807 = vadd.f32 0.0, %v806
      %v808 = vpop.f32.mrb[0].mxu0
      %v809 = vadd.f32 0.0, %v808
      %810 = vmatprep.mubr.bf16.mxu0 0
      %811 = vmatmul.mubr.bf16.gmra.mrb[0].mxu0 %v442
      %v812 = vpop.f32.mrb[0].mxu0
      %v813 = vadd.f32 0.0, %v812
      %v814 = vpop.f32.mrb[0].mxu0
      %v815 = vadd.f32 0.0, %v814
      %v816 = vpop.f32.mrb[0].mxu0
      %v817 = vadd.f32 0.0, %v816
      %v818 = vpop.f32.mrb[0].mxu0
      %v819 = vadd.f32 0.0, %v818
      %820 = vmatprep.mubr.bf16.mxu0 0
      %821 = vmatmul.mubr.bf16.gmra.mrb[0].mxu0 %v443
      %v822 = vpop.f32.mrb[0].mxu0
      %v823 = vadd.f32 0.0, %v822
      %v824 = vpop.f32.mrb[0].mxu0
      %v825 = vadd.f32 0.0, %v824
      %v826 = vpop.f32.mrb[0].mxu0
      %v827 = vadd.f32 0.0, %v826
      %v828 = vpop.f32.mrb[0].mxu0
      %v829 = vadd.f32 0.0, %v828
      %830 = vmatprep.mubr.bf16.mxu0 0
      %831 = vmatmul.mubr.bf16.gmra.mrb[0].mxu0 %v444
      %v832 = vpop.f32.mrb[0].mxu0
      %v833 = vadd.f32 0.0, %v832
      %v834 = vpop.f32.mrb[0].mxu0
      %v835 = vadd.f32 0.0, %v834
      %v836 = vpop.f32.mrb[0].mxu0
      %v837 = vadd.f32 0.0, %v836
      %v838 = vpop.f32.mrb[0].mxu0
      %v839 = vadd.f32 0.0, %v838
      %840 = vmatprep.mubr.bf16.mxu0 0
      %841 = vmatmul.mubr.bf16.gmra.mrb[0].mxu0 %v445
      %v842 = vpop.f32.mrb[0].mxu0
      %v843 = vadd.f32 0.0, %v842
      %v844 = vpop.f32.mrb[0].mxu0
      %v845 = vadd.f32 0.0, %v844
      %v846 = vpop.f32.mrb[0].mxu0
      %v847 = vadd.f32 0.0, %v846
      %v848 = vpop.f32.mrb[0].mxu0
      %v849 = vadd.f32 0.0, %v848
      %850 = vmatprep.mubr.bf16.mxu0 0
      %851 = vmatmul.mubr.bf16.gmra.mrb[0].mxu0 %v446
      %v852 = vpop.f32.mrb[0].mxu0
      %v853 = vadd.f32 0.0, %v852
      %v854 = vpop.f32.mrb[0].mxu0
      %v855 = vadd.f32 0.0, %v854
      %v856 = vpop.f32.mrb[0].mxu0
      %v857 = vadd.f32 0.0, %v856
      %v858 = vpop.f32.mrb[0].mxu0
      %v859 = vadd.f32 0.0, %v858
      %860 = vmatprep.mubr.bf16.mxu0 0
      %861 = vmatmul.mubr.bf16.gmra.mrb[0].mxu0 %v447
      %v862 = vpop.f32.mrb[0].mxu0
      %v863 = vadd.f32 0.0, %v862
      %v864 = vpop.f32.mrb[0].mxu0
      %v865 = vadd.f32 0.0, %v864
      %v866 = vpop.f32.mrb[0].mxu0
      %v867 = vadd.f32 0.0, %v866
      %v868 = vpop.f32.mrb[0].mxu0
      %v869 = vadd.f32 0.0, %v868
      %870 = vmatprep.mubr.bf16.mxu0 0
      %871 = vmatmul.mubr.bf16.gmra.mrb[0].mxu0 %v448
      %v872 = vpop.f32.mrb[0].mxu0
      %v873 = vadd.f32 0.0, %v872
      %v874 = vpop.f32.mrb[0].mxu0
      %v875 = vadd.f32 0.0, %v874
      %v876 = vpop.f32.mrb[0].mxu0
      %v877 = vadd.f32 0.0, %v876
      %v878 = vpop.f32.mrb[0].mxu0
      %v879 = vadd.f32 0.0, %v878
      %880 = vmatprep.mubr.bf16.mxu0 0
      %881 = vmatmul.mubr.bf16.gmra.mrb[0].mxu0 %v449
      %v882 = vpop.f32.mrb[0].mxu0
      %v883 = vadd.f32 0.0, %v882
      %v884 = vpop.f32.mrb[0].mxu0
      %v885 = vadd.f32 0.0, %v884
      %v886 = vpop.f32.mrb[0].mxu0
      %v887 = vadd.f32 0.0, %v886
      %v888 = vpop.f32.mrb[0].mxu0
      %v889 = vadd.f32 0.0, %v888
      %890 = vmatprep.mubr.bf16.mxu0 0
      %891 = vmatmul.mubr.bf16.gmra.mrb[0].mxu0 %v450
      %v892 = vpop.f32.mrb[0].mxu0
      %v893 = vadd.f32 0.0, %v892
      %v894 = vpop.f32.mrb[0].mxu0
      %v895 = vadd.f32 0.0, %v894
      %v896 = vpop.f32.mrb[0].mxu0
      %v897 = vadd.f32 0.0, %v896
      %v898 = vpop.f32.mrb[0].mxu0
      %v899 = vadd.f32 0.0, %v898
      %900 = vmatprep.mubr.bf16.mxu0 0
      %901 = vmatmul.mubr.bf16.gmra.mrb[0].mxu0 %v451
      %v902 = vpop.f32.mrb[0].mxu0
      %v903 = vadd.f32 0.0, %v902
      %v904 = vpop.f32.mrb[0].mxu0
      %v905 = vadd.f32 0.0, %v904
      %v906 = vpop.f32.mrb[0].mxu0
      %v907 = vadd.f32 0.0, %v906
      %v908 = vpop.f32.mrb[0].mxu0
      %v909 = vadd.f32 0.0, %v908
      %910 = vmatprep.mubr.bf16.mxu0 0
      %911 = vmatmul.mubr.bf16.gmra.mrb[0].mxu0 %v452
      %v912 = vpop.f32.mrb[0].mxu0
      %v913 = vadd.f32 0.0, %v912
      %v914 = vpop.f32.mrb[0].mxu0
      %v915 = vadd.f32 0.0, %v914
      %v916 = vpop.f32.mrb[0].mxu0
      %v917 = vadd.f32 0.0, %v916
      %v918 = vpop.f32.mrb[0].mxu0
      %v919 = vadd.f32 0.0, %v918
      %920 = vmatprep.mubr.bf16.mxu0 0
      %921 = vmatmul.mubr.bf16.gmra.mrb[0].mxu0 %v453
      %v922 = vpop.f32.mrb[0].mxu0
      %v923 = vadd.f32 0.0, %v922
      %v924 = vpop.f32.mrb[0].mxu0
      %v925 = vadd.f32 0.0, %v924
      %v926 = vpop.f32.mrb[0].mxu0
      %v927 = vadd.f32 0.0, %v926
      %v928 = vpop.f32.mrb[0].mxu0
      %v929 = vadd.f32 0.0, %v928
      %930 = vmatprep.mubr.bf16.mxu0 0
      %931 = vmatmul.mubr.bf16.gmra.mrb[0].mxu0 %v454
      %v932 = vpop.f32.mrb[0].mxu0
      %v933 = vadd.f32 0.0, %v932
      %v934 = vpop.f32.mrb[0].mxu0
      %v935 = vadd.f32 0.0, %v934
      %v936 = vpop.f32.mrb[0].mxu0
      %v937 = vadd.f32 0.0, %v936
      %v938 = vpop.f32.mrb[0].mxu0
      %v939 = vadd.f32 0.0, %v938
      %940 = vmatprep.mubr.bf16.mxu0 0
      %941 = vmatmul.mubr.bf16.gmra.mrb[0].mxu0 %v455
      %v942 = vpop.f32.mrb[0].mxu0
      %v943 = vadd.f32 0.0, %v942
      %v944 = vpop.f32.mrb[0].mxu0
      %v945 = vadd.f32 0.0, %v944
      %v946 = vpop.f32.mrb[0].mxu0
      %v947 = vadd.f32 0.0, %v946
      %v948 = vpop.f32.mrb[0].mxu0
      %v949 = vadd.f32 0.0, %v948
      %950 = vmatprep.mubr.bf16.mxu0 0
      %951 = vmatmul.mubr.bf16.gmra.mrb[0].mxu0 %v456
      %v952 = vpop.f32.mrb[0].mxu0
      %v953 = vadd.f32 0.0, %v952
      %v954 = vpop.f32.mrb[0].mxu0
      %v955 = vadd.f32 0.0, %v954
      %v956 = vpop.f32.mrb[0].mxu0
      %v957 = vadd.f32 0.0, %v956
      %v958 = vpop.f32.mrb[0].mxu0
      %v959 = vadd.f32 0.0, %v958
      %960 = vmatprep.mubr.bf16.mxu0 0
      %961 = vmatmul.mubr.bf16.gmra.mrb[0].mxu0 %v457
      %v962 = vpop.f32.mrb[0].mxu0
      %v963 = vadd.f32 0.0, %v962
      %v964 = vpop.f32.mrb[0].mxu0
      %v965 = vadd.f32 0.0, %v964
      %v966 = vpop.f32.mrb[0].mxu0
      %v967 = vadd.f32 0.0, %v966
      %v968 = vpop.f32.mrb[0].mxu0
      %v969 = vadd.f32 0.0, %v968
      %970 = vdwg.mxu0
      %971 = vmatprep.subr.bf16.mxu0 0
      %972 = vmatpush1.bf16.msra.mxu0 %v572
      %973 = vmatprep.subr.bf16.mxu0 0
      %974 = vmatpush1.bf16.msra.mxu0 %v575
      %975 = vmatprep.subr.bf16.mxu0 0
      %976 = vmatpush1.bf16.msra.mxu0 %v578
      %977 = vmatprep.subr.bf16.mxu0 0
      %978 = vmatpush1.bf16.msra.mxu0 %v581
      %979 = vmatprep.subr.bf16.mxu0 0
      %980 = vmatpush1.bf16.msra.mxu0 %v584
      %981 = vmatprep.subr.bf16.mxu0 0
      %982 = vmatpush1.bf16.msra.mxu0 %v587
      %983 = vmatprep.subr.bf16.mxu0 0
      %984 = vmatpush1.bf16.msra.mxu0 %v590
      %985 = vmatprep.subr.bf16.mxu0 0
      %986 = vmatpush1.bf16.msra.mxu0 %v593
      %987 = vmatprep.subr.bf16.mxu0 0
      %988 = vmatpush1.bf16.msra.mxu0 0
      %989 = vmatprep.subr.bf16.mxu0 0
      %990 = vmatpush1.bf16.msra.mxu0 0
      %991 = vmatprep.subr.bf16.mxu0 0
      %992 = vmatpush1.bf16.msra.mxu0 0
      %993 = vmatprep.subr.bf16.mxu0 0
      %994 = vmatpush1.bf16.msra.mxu0 0
      %995 = vmatprep.subr.bf16.mxu0 0
      %996 = vmatpush1.bf16.msra.mxu0 0
      %997 = vmatprep.subr.bf16.mxu0 0
      %998 = vmatpush1.bf16.msra.mxu0 0
      %999 = vmatprep.subr.bf16.mxu0 0
      %1000 = vmatpush1.bf16.msra.mxu0 0
      %1001 = vmatprep.subr.bf16.mxu0 0
      %1002 = vmatpush1.bf16.msra.mxu0 0
      %1003 = vmatprep.mubr.bf16.mxu0 0
      %1004 = vmatmul.mubr.bf16.gmra.mrb[0].mxu0 %v426
      %v1005 = vpop.f32.mrb[0].mxu0
      %v1006 = vadd.f32 0.0, %v1005
      %v1007 = vpop.f32.mrb[0].mxu0
      %v1008 = vpop.f32.mrb[0].mxu0
      %v1009 = vadd.f32 0.0, %v1008
      %v1010 = vpop.f32.mrb[0].mxu0
      %1011 = vmatprep.mubr.bf16.mxu0 0
      %1012 = vmatmul.mubr.bf16.gmra.mrb[0].mxu0 %v427
      %v1013 = vpop.f32.mrb[0].mxu0
      %v1014 = vadd.f32 0.0, %v1013
      %v1015 = vpop.f32.mrb[0].mxu0
      %v1016 = vpop.f32.mrb[0].mxu0
      %v1017 = vadd.f32 0.0, %v1016
      %v1018 = vpop.f32.mrb[0].mxu0
      %1019 = vmatprep.mubr.bf16.mxu0 0
      %1020 = vmatmul.mubr.bf16.gmra.mrb[0].mxu0 %v428
      %v1021 = vpop.f32.mrb[0].mxu0
      %v1022 = vadd.f32 0.0, %v1021
      %v1023 = vpop.f32.mrb[0].mxu0
      %v1024 = vpop.f32.mrb[0].mxu0
      %v1025 = vadd.f32 0.0, %v1024
      %v1026 = vpop.f32.mrb[0].mxu0
      %1027 = vmatprep.mubr.bf16.mxu0 0
      %1028 = vmatmul.mubr.bf16.gmra.mrb[0].mxu0 %v429
      %v1029 = vpop.f32.mrb[0].mxu0
      %v1030 = vadd.f32 0.0, %v1029
      %v1031 = vpop.f32.mrb[0].mxu0
      %v1032 = vpop.f32.mrb[0].mxu0
      %v1033 = vadd.f32 0.0, %v1032
      %v1034 = vpop.f32.mrb[0].mxu0
      %1035 = vmatprep.mubr.bf16.mxu0 0
      %1036 = vmatmul.mubr.bf16.gmra.mrb[0].mxu0 %v430
      %v1037 = vpop.f32.mrb[0].mxu0
      %v1038 = vadd.f32 0.0, %v1037
      %v1039 = vpop.f32.mrb[0].mxu0
      %v1040 = vpop.f32.mrb[0].mxu0
      %v1041 = vadd.f32 0.0, %v1040
      %v1042 = vpop.f32.mrb[0].mxu0
      %1043 = vmatprep.mubr.bf16.mxu0 0
      %1044 = vmatmul.mubr.bf16.gmra.mrb[0].mxu0 %v431
      %v1045 = vpop.f32.mrb[0].mxu0
      %v1046 = vadd.f32 0.0, %v1045
      %v1047 = vpop.f32.mrb[0].mxu0
      %v1048 = vpop.f32.mrb[0].mxu0
      %v1049 = vadd.f32 0.0, %v1048
      %v1050 = vpop.f32.mrb[0].mxu0
      %1051 = vmatprep.mubr.bf16.mxu0 0
      %1052 = vmatmul.mubr.bf16.gmra.mrb[0].mxu0 %v432
      %v1053 = vpop.f32.mrb[0].mxu0
      %v1054 = vadd.f32 0.0, %v1053
      %v1055 = vpop.f32.mrb[0].mxu0
      %v1056 = vpop.f32.mrb[0].mxu0
      %v1057 = vadd.f32 0.0, %v1056
      %v1058 = vpop.f32.mrb[0].mxu0
      %1059 = vmatprep.mubr.bf16.mxu0 0
      %1060 = vmatmul.mubr.bf16.gmra.mrb[0].mxu0 %v433
      %v1061 = vpop.f32.mrb[0].mxu0
      %v1062 = vadd.f32 0.0, %v1061
      %v1063 = vpop.f32.mrb[0].mxu0
      %v1064 = vpop.f32.mrb[0].mxu0
      %v1065 = vadd.f32 0.0, %v1064
      %v1066 = vpop.f32.mrb[0].mxu0
      %1067 = vmatprep.mubr.bf16.mxu0 0
      %1068 = vmatmul.mubr.bf16.gmra.mrb[0].mxu0 %v434
      %v1069 = vpop.f32.mrb[0].mxu0
      %v1070 = vadd.f32 0.0, %v1069
      %v1071 = vpop.f32.mrb[0].mxu0
      %v1072 = vpop.f32.mrb[0].mxu0
      %v1073 = vadd.f32 0.0, %v1072
      %v1074 = vpop.f32.mrb[0].mxu0
      %1075 = vmatprep.mubr.bf16.mxu0 0
      %1076 = vmatmul.mubr.bf16.gmra.mrb[0].mxu0 %v435
      %v1077 = vpop.f32.mrb[0].mxu0
      %v1078 = vadd.f32 0.0, %v1077
      %v1079 = vpop.f32.mrb[0].mxu0
      %v1080 = vpop.f32.mrb[0].mxu0
      %v1081 = vadd.f32 0.0, %v1080
      %v1082 = vpop.f32.mrb[0].mxu0
      %1083 = vmatprep.mubr.bf16.mxu0 0
      %1084 = vmatmul.mubr.bf16.gmra.mrb[0].mxu0 %v436
      %v1085 = vpop.f32.mrb[0].mxu0
      %v1086 = vadd.f32 0.0, %v1085
      %v1087 = vpop.f32.mrb[0].mxu0
      %v1088 = vpop.f32.mrb[0].mxu0
      %v1089 = vadd.f32 0.0, %v1088
      %v1090 = vpop.f32.mrb[0].mxu0
      %1091 = vmatprep.mubr.bf16.mxu0 0
      %1092 = vmatmul.mubr.bf16.gmra.mrb[0].mxu0 %v437
      %v1093 = vpop.f32.mrb[0].mxu0
      %v1094 = vadd.f32 0.0, %v1093
      %v1095 = vpop.f32.mrb[0].mxu0
      %v1096 = vpop.f32.mrb[0].mxu0
      %v1097 = vadd.f32 0.0, %v1096
      %v1098 = vpop.f32.mrb[0].mxu0
      %1099 = vmatprep.mubr.bf16.mxu0 0
      %1100 = vmatmul.mubr.bf16.gmra.mrb[0].mxu0 %v438
      %v1101 = vpop.f32.mrb[0].mxu0
      %v1102 = vadd.f32 0.0, %v1101
      %v1103 = vpop.f32.mrb[0].mxu0
      %v1104 = vpop.f32.mrb[0].mxu0
      %v1105 = vadd.f32 0.0, %v1104
      %v1106 = vpop.f32.mrb[0].mxu0
      %1107 = vmatprep.mubr.bf16.mxu0 0
      %1108 = vmatmul.mubr.bf16.gmra.mrb[0].mxu0 %v439
      %v1109 = vpop.f32.mrb[0].mxu0
      %v1110 = vadd.f32 0.0, %v1109
      %v1111 = vpop.f32.mrb[0].mxu0
      %v1112 = vpop.f32.mrb[0].mxu0
      %v1113 = vadd.f32 0.0, %v1112
      %v1114 = vpop.f32.mrb[0].mxu0
      %1115 = vmatprep.mubr.bf16.mxu0 0
      %1116 = vmatmul.mubr.bf16.gmra.mrb[0].mxu0 %v440
      %v1117 = vpop.f32.mrb[0].mxu0
      %v1118 = vadd.f32 0.0, %v1117
      %v1119 = vpop.f32.mrb[0].mxu0
      %v1120 = vpop.f32.mrb[0].mxu0
      %v1121 = vadd.f32 0.0, %v1120
      %v1122 = vpop.f32.mrb[0].mxu0
      %1123 = vmatprep.mubr.bf16.mxu0 0
      %1124 = vmatmul.mubr.bf16.gmra.mrb[0].mxu0 %v441
      %v1125 = vpop.f32.mrb[0].mxu0
      %v1126 = vadd.f32 0.0, %v1125
      %v1127 = vpop.f32.mrb[0].mxu0
      %v1128 = vpop.f32.mrb[0].mxu0
      %v1129 = vadd.f32 0.0, %v1128
      %v1130 = vpop.f32.mrb[0].mxu0
      %1131 = vmatprep.mubr.bf16.mxu0 0
      %1132 = vmatmul.mubr.bf16.gmra.mrb[0].mxu0 %v442
      %v1133 = vpop.f32.mrb[0].mxu0
      %v1134 = vadd.f32 0.0, %v1133
      %v1135 = vpop.f32.mrb[0].mxu0
      %v1136 = vpop.f32.mrb[0].mxu0
      %v1137 = vadd.f32 0.0, %v1136
      %v1138 = vpop.f32.mrb[0].mxu0
      %1139 = vmatprep.mubr.bf16.mxu0 0
      %1140 = vmatmul.mubr.bf16.gmra.mrb[0].mxu0 %v443
      %v1141 = vpop.f32.mrb[0].mxu0
      %v1142 = vadd.f32 0.0, %v1141
      %v1143 = vpop.f32.mrb[0].mxu0
      %v1144 = vpop.f32.mrb[0].mxu0
      %v1145 = vadd.f32 0.0, %v1144
      %v1146 = vpop.f32.mrb[0].mxu0
      %1147 = vmatprep.mubr.bf16.mxu0 0
      %1148 = vmatmul.mubr.bf16.gmra.mrb[0].mxu0 %v444
      %v1149 = vpop.f32.mrb[0].mxu0
      %v1150 = vadd.f32 0.0, %v1149
      %v1151 = vpop.f32.mrb[0].mxu0
      %v1152 = vpop.f32.mrb[0].mxu0
      %v1153 = vadd.f32 0.0, %v1152
      %v1154 = vpop.f32.mrb[0].mxu0
      %1155 = vmatprep.mubr.bf16.mxu0 0
      %1156 = vmatmul.mubr.bf16.gmra.mrb[0].mxu0 %v445
      %v1157 = vpop.f32.mrb[0].mxu0
      %v1158 = vadd.f32 0.0, %v1157
      %v1159 = vpop.f32.mrb[0].mxu0
      %v1160 = vpop.f32.mrb[0].mxu0
      %v1161 = vadd.f32 0.0, %v1160
      %v1162 = vpop.f32.mrb[0].mxu0
      %1163 = vmatprep.mubr.bf16.mxu0 0
      %1164 = vmatmul.mubr.bf16.gmra.mrb[0].mxu0 %v446
      %v1165 = vpop.f32.mrb[0].mxu0
      %v1166 = vadd.f32 0.0, %v1165
      %v1167 = vpop.f32.mrb[0].mxu0
      %v1168 = vpop.f32.mrb[0].mxu0
      %v1169 = vadd.f32 0.0, %v1168
      %v1170 = vpop.f32.mrb[0].mxu0
      %1171 = vmatprep.mubr.bf16.mxu0 0
      %1172 = vmatmul.mubr.bf16.gmra.mrb[0].mxu0 %v447
      %v1173 = vpop.f32.mrb[0].mxu0
      %v1174 = vadd.f32 0.0, %v1173
      %v1175 = vpop.f32.mrb[0].mxu0
      %v1176 = vpop.f32.mrb[0].mxu0
      %v1177 = vadd.f32 0.0, %v1176
      %v1178 = vpop.f32.mrb[0].mxu0
      %1179 = vmatprep.mubr.bf16.mxu0 0
      %1180 = vmatmul.mubr.bf16.gmra.mrb[0].mxu0 %v448
      %v1181 = vpop.f32.mrb[0].mxu0
      %v1182 = vadd.f32 0.0, %v1181
      %v1183 = vpop.f32.mrb[0].mxu0
      %v1184 = vpop.f32.mrb[0].mxu0
      %v1185 = vadd.f32 0.0, %v1184
      %v1186 = vpop.f32.mrb[0].mxu0
      %1187 = vmatprep.mubr.bf16.mxu0 0
      %1188 = vmatmul.mubr.bf16.gmra.mrb[0].mxu0 %v449
      %v1189 = vpop.f32.mrb[0].mxu0
      %v1190 = vadd.f32 0.0, %v1189
      %v1191 = vpop.f32.mrb[0].mxu0
      %v1192 = vpop.f32.mrb[0].mxu0
      %v1193 = vadd.f32 0.0, %v1192
      %v1194 = vpop.f32.mrb[0].mxu0
      %1195 = vmatprep.mubr.bf16.mxu0 0
      %1196 = vmatmul.mubr.bf16.gmra.mrb[0].mxu0 %v450
      %v1197 = vpop.f32.mrb[0].mxu0
      %v1198 = vadd.f32 0.0, %v1197
      %v1199 = vpop.f32.mrb[0].mxu0
      %v1200 = vpop.f32.mrb[0].mxu0
      %v1201 = vadd.f32 0.0, %v1200
      %v1202 = vpop.f32.mrb[0].mxu0
      %1203 = vmatprep.mubr.bf16.mxu0 0
      %1204 = vmatmul.mubr.bf16.gmra.mrb[0].mxu0 %v451
      %v1205 = vpop.f32.mrb[0].mxu0
      %v1206 = vadd.f32 0.0, %v1205
      %v1207 = vpop.f32.mrb[0].mxu0
      %v1208 = vpop.f32.mrb[0].mxu0
      %v1209 = vadd.f32 0.0, %v1208
      %v1210 = vpop.f32.mrb[0].mxu0
      %1211 = vmatprep.mubr.bf16.mxu0 0
      %1212 = vmatmul.mubr.bf16.gmra.mrb[0].mxu0 %v452
      %v1213 = vpop.f32.mrb[0].mxu0
      %v1214 = vadd.f32 0.0, %v1213
      %v1215 = vpop.f32.mrb[0].mxu0
      %v1216 = vpop.f32.mrb[0].mxu0
      %v1217 = vadd.f32 0.0, %v1216
      %v1218 = vpop.f32.mrb[0].mxu0
      %1219 = vmatprep.mubr.bf16.mxu0 0
      %1220 = vmatmul.mubr.bf16.gmra.mrb[0].mxu0 %v453
      %v1221 = vpop.f32.mrb[0].mxu0
      %v1222 = vadd.f32 0.0, %v1221
      %v1223 = vpop.f32.mrb[0].mxu0
      %v1224 = vpop.f32.mrb[0].mxu0
      %v1225 = vadd.f32 0.0, %v1224
      %v1226 = vpop.f32.mrb[0].mxu0
      %1227 = vmatprep.mubr.bf16.mxu0 0
      %1228 = vmatmul.mubr.bf16.gmra.mrb[0].mxu0 %v454
      %v1229 = vpop.f32.mrb[0].mxu0
      %v1230 = vadd.f32 0.0, %v1229
      %v1231 = vpop.f32.mrb[0].mxu0
      %v1232 = vpop.f32.mrb[0].mxu0
      %v1233 = vadd.f32 0.0, %v1232
      %v1234 = vpop.f32.mrb[0].mxu0
      %1235 = vmatprep.mubr.bf16.mxu0 0
      %1236 = vmatmul.mubr.bf16.gmra.mrb[0].mxu0 %v455
      %v1237 = vpop.f32.mrb[0].mxu0
      %v1238 = vadd.f32 0.0, %v1237
      %v1239 = vpop.f32.mrb[0].mxu0
      %v1240 = vpop.f32.mrb[0].mxu0
      %v1241 = vadd.f32 0.0, %v1240
      %v1242 = vpop.f32.mrb[0].mxu0
      %1243 = vmatprep.mubr.bf16.mxu0 0
      %1244 = vmatmul.mubr.bf16.gmra.mrb[0].mxu0 %v456
      %v1245 = vpop.f32.mrb[0].mxu0
      %v1246 = vadd.f32 0.0, %v1245
      %v1247 = vpop.f32.mrb[0].mxu0
      %v1248 = vpop.f32.mrb[0].mxu0
      %v1249 = vadd.f32 0.0, %v1248
      %v1250 = vpop.f32.mrb[0].mxu0
      %1251 = vmatprep.mubr.bf16.mxu0 0
      %1252 = vmatmul.mubr.bf16.gmra.mrb[0].mxu0 %v457
      %v1253 = vpop.f32.mrb[0].mxu0
      %v1254 = vadd.f32 0.0, %v1253
      %v1255 = vpop.f32.mrb[0].mxu0
      %v1256 = vpop.f32.mrb[0].mxu0
      %v1257 = vadd.f32 0.0, %v1256
      %v1258 = vpop.f32.mrb[0].mxu0
      %1259 = vdwg.mxu0
      %v1260 = vmax.f32 %v653, 0.0
      %v1261 = vmax.f32 %v655, 0.0
      %v1262 = vmax.f32 %v1006, 0.0
      %v1263 = vmax.f32 %v657, 0.0
      %v1264 = vmax.f32 %v659, 0.0
      %v1265 = vmax.f32 %v1009, 0.0
      %v1266 = vmax.f32 %v663, 0.0
      %v1267 = vmax.f32 %v665, 0.0
      %v1268 = vmax.f32 %v1014, 0.0
      %v1269 = vmax.f32 %v667, 0.0
      %v1270 = vmax.f32 %v669, 0.0
      %v1271 = vmax.f32 %v1017, 0.0
      %v1272 = vmax.f32 %v673, 0.0
      %v1273 = vmax.f32 %v675, 0.0
      %v1274 = vmax.f32 %v1022, 0.0
      %v1275 = vmax.f32 %v677, 0.0
      %v1276 = vmax.f32 %v679, 0.0
      %v1277 = vmax.f32 %v1025, 0.0
      %v1278 = vmax.f32 %v683, 0.0
      %v1279 = vmax.f32 %v685, 0.0
      %v1280 = vmax.f32 %v1030, 0.0
      %v1281 = vmax.f32 %v687, 0.0
      %v1282 = vmax.f32 %v689, 0.0
      %v1283 = vmax.f32 %v1033, 0.0
      %v1284 = vmax.f32 %v693, 0.0
      %v1285 = vmax.f32 %v695, 0.0
      %v1286 = vmax.f32 %v1038, 0.0
      %v1287 = vmax.f32 %v697, 0.0
      %v1288 = vmax.f32 %v699, 0.0
      %v1289 = vmax.f32 %v1041, 0.0
      %v1290 = vmax.f32 %v703, 0.0
      %v1291 = vmax.f32 %v705, 0.0
      %v1292 = vmax.f32 %v1046, 0.0
      %v1293 = vmax.f32 %v707, 0.0
      %v1294 = vmax.f32 %v709, 0.0
      %v1295 = vmax.f32 %v1049, 0.0
      %v1296 = vmax.f32 %v713, 0.0
      %v1297 = vmax.f32 %v715, 0.0
      %v1298 = vmax.f32 %v1054, 0.0
      %v1299 = vmax.f32 %v717, 0.0
      %v1300 = vmax.f32 %v719, 0.0
      %v1301 = vmax.f32 %v1057, 0.0
      %v1302 = vmax.f32 %v723, 0.0
      %v1303 = vmax.f32 %v725, 0.0
      %v1304 = vmax.f32 %v1062, 0.0
      %v1305 = vmax.f32 %v727, 0.0
      %v1306 = vmax.f32 %v729, 0.0
      %v1307 = vmax.f32 %v1065, 0.0
      %v1308 = vmax.f32 %v733, 0.0
      %v1309 = vmax.f32 %v735, 0.0
      %v1310 = vmax.f32 %v1070, 0.0
      %v1311 = vmax.f32 %v737, 0.0
      %v1312 = vmax.f32 %v739, 0.0
      %v1313 = vmax.f32 %v1073, 0.0
      %v1314 = vmax.f32 %v743, 0.0
      %v1315 = vmax.f32 %v745, 0.0
      %v1316 = vmax.f32 %v1078, 0.0
      %v1317 = vmax.f32 %v747, 0.0
      %v1318 = vmax.f32 %v749, 0.0
      %v1319 = vmax.f32 %v1081, 0.0
      %v1320 = vmax.f32 %v753, 0.0
      %v1321 = vmax.f32 %v755, 0.0
      %v1322 = vmax.f32 %v1086, 0.0
      %v1323 = vmax.f32 %v757, 0.0
      %v1324 = vmax.f32 %v759, 0.0
      %v1325 = vmax.f32 %v1089, 0.0
      %v1326 = vmax.f32 %v763, 0.0
      %v1327 = vmax.f32 %v765, 0.0
      %v1328 = vmax.f32 %v1094, 0.0
      %v1329 = vmax.f32 %v767, 0.0
      %v1330 = vmax.f32 %v769, 0.0
      %v1331 = vmax.f32 %v1097, 0.0
      %v1332 = vmax.f32 %v773, 0.0
      %v1333 = vmax.f32 %v775, 0.0
      %v1334 = vmax.f32 %v1102, 0.0
      %v1335 = vmax.f32 %v777, 0.0
      %v1336 = vmax.f32 %v779, 0.0
      %v1337 = vmax.f32 %v1105, 0.0
      %v1338 = vmax.f32 %v783, 0.0
      %v1339 = vmax.f32 %v785, 0.0
      %v1340 = vmax.f32 %v1110, 0.0
      %v1341 = vmax.f32 %v787, 0.0
      %v1342 = vmax.f32 %v789, 0.0
      %v1343 = vmax.f32 %v1113, 0.0
      %v1344 = vmax.f32 %v793, 0.0
      %v1345 = vmax.f32 %v795, 0.0
      %v1346 = vmax.f32 %v1118, 0.0
      %v1347 = vmax.f32 %v797, 0.0
      %v1348 = vmax.f32 %v799, 0.0
      %v1349 = vmax.f32 %v1121, 0.0
      %v1350 = vmax.f32 %v803, 0.0
      %v1351 = vmax.f32 %v805, 0.0
      %v1352 = vmax.f32 %v1126, 0.0
      %v1353 = vmax.f32 %v807, 0.0
      %v1354 = vmax.f32 %v809, 0.0
      %v1355 = vmax.f32 %v1129, 0.0
      %v1356 = vmax.f32 %v813, 0.0
      %v1357 = vmax.f32 %v815, 0.0
      %v1358 = vmax.f32 %v1134, 0.0
      %v1359 = vmax.f32 %v817, 0.0
      %v1360 = vmax.f32 %v819, 0.0
      %v1361 = vmax.f32 %v1137, 0.0
      %v1362 = vmax.f32 %v823, 0.0
      %v1363 = vmax.f32 %v825, 0.0
      %v1364 = vmax.f32 %v1142, 0.0
      %v1365 = vmax.f32 %v827, 0.0
      %v1366 = vmax.f32 %v829, 0.0
      %v1367 = vmax.f32 %v1145, 0.0
      %v1368 = vmax.f32 %v833, 0.0
      %v1369 = vmax.f32 %v835, 0.0
      %v1370 = vmax.f32 %v1150, 0.0
      %v1371 = vmax.f32 %v837, 0.0
      %v1372 = vmax.f32 %v839, 0.0
      %v1373 = vmax.f32 %v1153, 0.0
      %v1374 = vmax.f32 %v843, 0.0
      %v1375 = vmax.f32 %v845, 0.0
      %v1376 = vmax.f32 %v1158, 0.0
      %v1377 = vmax.f32 %v847, 0.0
      %v1378 = vmax.f32 %v849, 0.0
      %v1379 = vmax.f32 %v1161, 0.0
      %v1380 = vmax.f32 %v853, 0.0
      %v1381 = vmax.f32 %v855, 0.0
      %v1382 = vmax.f32 %v1166, 0.0
      %v1383 = vmax.f32 %v857, 0.0
      %v1384 = vmax.f32 %v859, 0.0
      %v1385 = vmax.f32 %v1169, 0.0
      %v1386 = vmax.f32 %v863, 0.0
      %v1387 = vmax.f32 %v865, 0.0
      %v1388 = vmax.f32 %v1174, 0.0
      %v1389 = vmax.f32 %v867, 0.0
      %v1390 = vmax.f32 %v869, 0.0
      %v1391 = vmax.f32 %v1177, 0.0
      %v1392 = vmax.f32 %v873, 0.0
      %v1393 = vmax.f32 %v875, 0.0
      %v1394 = vmax.f32 %v1182, 0.0
      %v1395 = vmax.f32 %v877, 0.0
      %v1396 = vmax.f32 %v879, 0.0
      %v1397 = vmax.f32 %v1185, 0.0
      %v1398 = vmax.f32 %v883, 0.0
      %v1399 = vmax.f32 %v885, 0.0
      %v1400 = vmax.f32 %v1190, 0.0
      %v1401 = vmax.f32 %v887, 0.0
      %v1402 = vmax.f32 %v889, 0.0
      %v1403 = vmax.f32 %v1193, 0.0
      %v1404 = vmax.f32 %v893, 0.0
      %v1405 = vmax.f32 %v895, 0.0
      %v1406 = vmax.f32 %v1198, 0.0
      %v1407 = vmax.f32 %v897, 0.0
      %v1408 = vmax.f32 %v899, 0.0
      %v1409 = vmax.f32 %v1201, 0.0
      %v1410 = vmax.f32 %v903, 0.0
      %v1411 = vmax.f32 %v905, 0.0
      %v1412 = vmax.f32 %v1206, 0.0
      %v1413 = vmax.f32 %v907, 0.0
      %v1414 = vmax.f32 %v909, 0.0
      %v1415 = vmax.f32 %v1209, 0.0
      %v1416 = vmax.f32 %v913, 0.0
      %v1417 = vmax.f32 %v915, 0.0
      %v1418 = vmax.f32 %v1214, 0.0
      %v1419 = vmax.f32 %v917, 0.0
      %v1420 = vmax.f32 %v919, 0.0
      %v1421 = vmax.f32 %v1217, 0.0
      %v1422 = vmax.f32 %v923, 0.0
      %v1423 = vmax.f32 %v925, 0.0
      %v1424 = vmax.f32 %v1222, 0.0
      %v1425 = vmax.f32 %v927, 0.0
      %v1426 = vmax.f32 %v929, 0.0
      %v1427 = vmax.f32 %v1225, 0.0
      %v1428 = vmax.f32 %v933, 0.0
      %v1429 = vmax.f32 %v935, 0.0
      %v1430 = vmax.f32 %v1230, 0.0
      %v1431 = vmax.f32 %v937, 0.0
      %v1432 = vmax.f32 %v939, 0.0
      %v1433 = vmax.f32 %v1233, 0.0
      %v1434 = vmax.f32 %v943, 0.0
      %v1435 = vmax.f32 %v945, 0.0
      %v1436 = vmax.f32 %v1238, 0.0
      %v1437 = vmax.f32 %v947, 0.0
      %v1438 = vmax.f32 %v949, 0.0
      %v1439 = vmax.f32 %v1241, 0.0
      %v1440 = vmax.f32 %v953, 0.0
      %v1441 = vmax.f32 %v955, 0.0
      %v1442 = vmax.f32 %v1246, 0.0
      %v1443 = vmax.f32 %v957, 0.0
      %v1444 = vmax.f32 %v959, 0.0
      %v1445 = vmax.f32 %v1249, 0.0
      %v1446 = vmax.f32 %v963, 0.0
      %v1447 = vmax.f32 %v965, 0.0
      %v1448 = vmax.f32 %v1254, 0.0
      %v1449 = vmax.f32 %v967, 0.0
      %v1450 = vmax.f32 %v969, 0.0
      %v1451 = vmax.f32 %v1257, 0.0
      %v1452 = vand.u32 2147483647, %v653
      %v1453 = vand.u32 2147483647, %v655
      %v1454 = vand.u32 2147483647, %v1006
      %v1455 = vand.u32 2147483647, %v657
      %v1456 = vand.u32 2147483647, %v659
      %v1457 = vand.u32 2147483647, %v1009
      %v1458 = vand.u32 2147483647, %v663
      %v1459 = vand.u32 2147483647, %v665
      %v1460 = vand.u32 2147483647, %v1014
      %v1461 = vand.u32 2147483647, %v667
      %v1462 = vand.u32 2147483647, %v669
      %v1463 = vand.u32 2147483647, %v1017
      %v1464 = vand.u32 2147483647, %v673
      %v1465 = vand.u32 2147483647, %v675
      %v1466 = vand.u32 2147483647, %v1022
      %v1467 = vand.u32 2147483647, %v677
      %v1468 = vand.u32 2147483647, %v679
      %v1469 = vand.u32 2147483647, %v1025
      %v1470 = vand.u32 2147483647, %v683
      %v1471 = vand.u32 2147483647, %v685
      %v1472 = vand.u32 2147483647, %v1030
      %v1473 = vand.u32 2147483647, %v687
      %v1474 = vand.u32 2147483647, %v689
      %v1475 = vand.u32 2147483647, %v1033
      %v1476 = vand.u32 2147483647, %v693
      %v1477 = vand.u32 2147483647, %v695
      %v1478 = vand.u32 2147483647, %v1038
      %v1479 = vand.u32 2147483647, %v697
      %v1480 = vand.u32 2147483647, %v699
      %v1481 = vand.u32 2147483647, %v1041
      %v1482 = vand.u32 2147483647, %v703
      %v1483 = vand.u32 2147483647, %v705
      %v1484 = vand.u32 2147483647, %v1046
      %v1485 = vand.u32 2147483647, %v707
      %v1486 = vand.u32 2147483647, %v709
      %v1487 = vand.u32 2147483647, %v1049
      %v1488 = vand.u32 2147483647, %v713
      %v1489 = vand.u32 2147483647, %v715
      %v1490 = vand.u32 2147483647, %v1054
      %v1491 = vand.u32 2147483647, %v717
      %v1492 = vand.u32 2147483647, %v719
      %v1493 = vand.u32 2147483647, %v1057
      %v1494 = vand.u32 2147483647, %v723
      %v1495 = vand.u32 2147483647, %v725
      %v1496 = vand.u32 2147483647, %v1062
      %v1497 = vand.u32 2147483647, %v727
      %v1498 = vand.u32 2147483647, %v729
      %v1499 = vand.u32 2147483647, %v1065
      %v1500 = vand.u32 2147483647, %v733
      %v1501 = vand.u32 2147483647, %v735
      %v1502 = vand.u32 2147483647, %v1070
      %v1503 = vand.u32 2147483647, %v737
      %v1504 = vand.u32 2147483647, %v739
      %v1505 = vand.u32 2147483647, %v1073
      %v1506 = vand.u32 2147483647, %v743
      %v1507 = vand.u32 2147483647, %v745
      %v1508 = vand.u32 2147483647, %v1078
      %v1509 = vand.u32 2147483647, %v747
      %v1510 = vand.u32 2147483647, %v749
      %v1511 = vand.u32 2147483647, %v1081
      %v1512 = vand.u32 2147483647, %v753
      %v1513 = vand.u32 2147483647, %v755
      %v1514 = vand.u32 2147483647, %v1086
      %v1515 = vand.u32 2147483647, %v757
      %v1516 = vand.u32 2147483647, %v759
      %v1517 = vand.u32 2147483647, %v1089
      %v1518 = vand.u32 2147483647, %v763
      %v1519 = vand.u32 2147483647, %v765
      %v1520 = vand.u32 2147483647, %v1094
      %v1521 = vand.u32 2147483647, %v767
      %v1522 = vand.u32 2147483647, %v769
      %v1523 = vand.u32 2147483647, %v1097
      %v1524 = vand.u32 2147483647, %v773
      %v1525 = vand.u32 2147483647, %v775
      %v1526 = vand.u32 2147483647, %v1102
      %v1527 = vand.u32 2147483647, %v777
      %v1528 = vand.u32 2147483647, %v779
      %v1529 = vand.u32 2147483647, %v1105
      %v1530 = vand.u32 2147483647, %v783
      %v1531 = vand.u32 2147483647, %v785
      %v1532 = vand.u32 2147483647, %v1110
      %v1533 = vand.u32 2147483647, %v787
      %v1534 = vand.u32 2147483647, %v789
      %v1535 = vand.u32 2147483647, %v1113
      %v1536 = vand.u32 2147483647, %v793
      %v1537 = vand.u32 2147483647, %v795
      %v1538 = vand.u32 2147483647, %v1118
      %v1539 = vand.u32 2147483647, %v797
      %v1540 = vand.u32 2147483647, %v799
      %v1541 = vand.u32 2147483647, %v1121
      %v1542 = vand.u32 2147483647, %v803
      %v1543 = vand.u32 2147483647, %v805
      %v1544 = vand.u32 2147483647, %v1126
      %v1545 = vand.u32 2147483647, %v807
      %v1546 = vand.u32 2147483647, %v809
      %v1547 = vand.u32 2147483647, %v1129
      %v1548 = vand.u32 2147483647, %v813
      %v1549 = vand.u32 2147483647, %v815
      %v1550 = vand.u32 2147483647, %v1134
      %v1551 = vand.u32 2147483647, %v817
      %v1552 = vand.u32 2147483647, %v819
      %v1553 = vand.u32 2147483647, %v1137
      %v1554 = vand.u32 2147483647, %v823
      %v1555 = vand.u32 2147483647, %v825
      %v1556 = vand.u32 2147483647, %v1142
      %v1557 = vand.u32 2147483647, %v827
      %v1558 = vand.u32 2147483647, %v829
      %v1559 = vand.u32 2147483647, %v1145
      %v1560 = vand.u32 2147483647, %v833
      %v1561 = vand.u32 2147483647, %v835
      %v1562 = vand.u32 2147483647, %v1150
      %v1563 = vand.u32 2147483647, %v837
      %v1564 = vand.u32 2147483647, %v839
      %v1565 = vand.u32 2147483647, %v1153
      %v1566 = vand.u32 2147483647, %v843
      %v1567 = vand.u32 2147483647, %v845
      %v1568 = vand.u32 2147483647, %v1158
      %v1569 = vand.u32 2147483647, %v847
      %v1570 = vand.u32 2147483647, %v849
      %v1571 = vand.u32 2147483647, %v1161
      %v1572 = vand.u32 2147483647, %v853
      %v1573 = vand.u32 2147483647, %v855
      %v1574 = vand.u32 2147483647, %v1166
      %v1575 = vand.u32 2147483647, %v857
      %v1576 = vand.u32 2147483647, %v859
      %v1577 = vand.u32 2147483647, %v1169
      %v1578 = vand.u32 2147483647, %v863
      %v1579 = vand.u32 2147483647, %v865
      %v1580 = vand.u32 2147483647, %v1174
      %v1581 = vand.u32 2147483647, %v867
      %v1582 = vand.u32 2147483647, %v869
      %v1583 = vand.u32 2147483647, %v1177
      %v1584 = vand.u32 2147483647, %v873
      %v1585 = vand.u32 2147483647, %v875
      %v1586 = vand.u32 2147483647, %v1182
      %v1587 = vand.u32 2147483647, %v877
      %v1588 = vand.u32 2147483647, %v879
      %v1589 = vand.u32 2147483647, %v1185
      %v1590 = vand.u32 2147483647, %v883
      %v1591 = vand.u32 2147483647, %v885
      %v1592 = vand.u32 2147483647, %v1190
      %v1593 = vand.u32 2147483647, %v887
      %v1594 = vand.u32 2147483647, %v889
      %v1595 = vand.u32 2147483647, %v1193
      %v1596 = vand.u32 2147483647, %v893
      %v1597 = vand.u32 2147483647, %v895
      %v1598 = vand.u32 2147483647, %v1198
      %v1599 = vand.u32 2147483647, %v897
      %v1600 = vand.u32 2147483647, %v899
      %v1601 = vand.u32 2147483647, %v1201
      %v1602 = vand.u32 2147483647, %v903
      %v1603 = vand.u32 2147483647, %v905
      %v1604 = vand.u32 2147483647, %v1206
      %v1605 = vand.u32 2147483647, %v907
      %v1606 = vand.u32 2147483647, %v909
      %v1607 = vand.u32 2147483647, %v1209
      %v1608 = vand.u32 2147483647, %v913
      %v1609 = vand.u32 2147483647, %v915
      %v1610 = vand.u32 2147483647, %v1214
      %v1611 = vand.u32 2147483647, %v917
      %v1612 = vand.u32 2147483647, %v919
      %v1613 = vand.u32 2147483647, %v1217
      %v1614 = vand.u32 2147483647, %v923
      %v1615 = vand.u32 2147483647, %v925
      %v1616 = vand.u32 2147483647, %v1222
      %v1617 = vand.u32 2147483647, %v927
      %v1618 = vand.u32 2147483647, %v929
      %v1619 = vand.u32 2147483647, %v1225
      %v1620 = vand.u32 2147483647, %v933
      %v1621 = vand.u32 2147483647, %v935
      %v1622 = vand.u32 2147483647, %v1230
      %v1623 = vand.u32 2147483647, %v937
      %v1624 = vand.u32 2147483647, %v939
      %v1625 = vand.u32 2147483647, %v1233
      %v1626 = vand.u32 2147483647, %v943
      %v1627 = vand.u32 2147483647, %v945
      %v1628 = vand.u32 2147483647, %v1238
      %v1629 = vand.u32 2147483647, %v947
      %v1630 = vand.u32 2147483647, %v949
      %v1631 = vand.u32 2147483647, %v1241
      %v1632 = vand.u32 2147483647, %v953
      %v1633 = vand.u32 2147483647, %v955
      %v1634 = vand.u32 2147483647, %v1246
      %v1635 = vand.u32 2147483647, %v957
      %v1636 = vand.u32 2147483647, %v959
      %v1637 = vand.u32 2147483647, %v1249
      %v1638 = vand.u32 2147483647, %v963
      %v1639 = vand.u32 2147483647, %v965
      %v1640 = vand.u32 2147483647, %v1254
      %v1641 = vand.u32 2147483647, %v967
      %v1642 = vand.u32 2147483647, %v969
      %v1643 = vand.u32 2147483647, %v1257
      %v1644 = vsub.f32 0.0, %v1452
      %v1645 = vsub.f32 0.0, %v1453
      %v1646 = vsub.f32 0.0, %v1454
      %v1647 = vsub.f32 0.0, %v1455
      %v1648 = vsub.f32 0.0, %v1456
      %v1649 = vsub.f32 0.0, %v1457
      %v1650 = vsub.f32 0.0, %v1458
      %v1651 = vsub.f32 0.0, %v1459
      %v1652 = vsub.f32 0.0, %v1460
      %v1653 = vsub.f32 0.0, %v1461
      %v1654 = vsub.f32 0.0, %v1462
      %v1655 = vsub.f32 0.0, %v1463
      %v1656 = vsub.f32 0.0, %v1464
      %v1657 = vsub.f32 0.0, %v1465
      %v1658 = vsub.f32 0.0, %v1466
      %v1659 = vsub.f32 0.0, %v1467
      %v1660 = vsub.f32 0.0, %v1468
      %v1661 = vsub.f32 0.0, %v1469
      %v1662 = vsub.f32 0.0, %v1470
      %v1663 = vsub.f32 0.0, %v1471
      %v1664 = vsub.f32 0.0, %v1472
      %v1665 = vsub.f32 0.0, %v1473
      %v1666 = vsub.f32 0.0, %v1474
      %v1667 = vsub.f32 0.0, %v1475
      %v1668 = vsub.f32 0.0, %v1476
      %v1669 = vsub.f32 0.0, %v1477
      %v1670 = vsub.f32 0.0, %v1478
      %v1671 = vsub.f32 0.0, %v1479
      %v1672 = vsub.f32 0.0, %v1480
      %v1673 = vsub.f32 0.0, %v1481
      %v1674 = vsub.f32 0.0, %v1482
      %v1675 = vsub.f32 0.0, %v1483
      %v1676 = vsub.f32 0.0, %v1484
      %v1677 = vsub.f32 0.0, %v1485
      %v1678 = vsub.f32 0.0, %v1486
      %v1679 = vsub.f32 0.0, %v1487
      %v1680 = vsub.f32 0.0, %v1488
      %v1681 = vsub.f32 0.0, %v1489
      %v1682 = vsub.f32 0.0, %v1490
      %v1683 = vsub.f32 0.0, %v1491
      %v1684 = vsub.f32 0.0, %v1492
      %v1685 = vsub.f32 0.0, %v1493
      %v1686 = vsub.f32 0.0, %v1494
      %v1687 = vsub.f32 0.0, %v1495
      %v1688 = vsub.f32 0.0, %v1496
      %v1689 = vsub.f32 0.0, %v1497
      %v1690 = vsub.f32 0.0, %v1498
      %v1691 = vsub.f32 0.0, %v1499
      %v1692 = vsub.f32 0.0, %v1500
      %v1693 = vsub.f32 0.0, %v1501
      %v1694 = vsub.f32 0.0, %v1502
      %v1695 = vsub.f32 0.0, %v1503
      %v1696 = vsub.f32 0.0, %v1504
      %v1697 = vsub.f32 0.0, %v1505
      %v1698 = vsub.f32 0.0, %v1506
      %v1699 = vsub.f32 0.0, %v1507
      %v1700 = vsub.f32 0.0, %v1508
      %v1701 = vsub.f32 0.0, %v1509
      %v1702 = vsub.f32 0.0, %v1510
      %v1703 = vsub.f32 0.0, %v1511
      %v1704 = vsub.f32 0.0, %v1512
      %v1705 = vsub.f32 0.0, %v1513
      %v1706 = vsub.f32 0.0, %v1514
      %v1707 = vsub.f32 0.0, %v1515
      %v1708 = vsub.f32 0.0, %v1516
      %v1709 = vsub.f32 0.0, %v1517
      %v1710 = vsub.f32 0.0, %v1518
      %v1711 = vsub.f32 0.0, %v1519
      %v1712 = vsub.f32 0.0, %v1520
      %v1713 = vsub.f32 0.0, %v1521
      %v1714 = vsub.f32 0.0, %v1522
      %v1715 = vsub.f32 0.0, %v1523
      %v1716 = vsub.f32 0.0, %v1524
      %v1717 = vsub.f32 0.0, %v1525
      %v1718 = vsub.f32 0.0, %v1526
      %v1719 = vsub.f32 0.0, %v1527
      %v1720 = vsub.f32 0.0, %v1528
      %v1721 = vsub.f32 0.0, %v1529
      %v1722 = vsub.f32 0.0, %v1530
      %v1723 = vsub.f32 0.0, %v1531
      %v1724 = vsub.f32 0.0, %v1532
      %v1725 = vsub.f32 0.0, %v1533
      %v1726 = vsub.f32 0.0, %v1534
      %v1727 = vsub.f32 0.0, %v1535
      %v1728 = vsub.f32 0.0, %v1536
      %v1729 = vsub.f32 0.0, %v1537
      %v1730 = vsub.f32 0.0, %v1538
      %v1731 = vsub.f32 0.0, %v1539
      %v1732 = vsub.f32 0.0, %v1540
      %v1733 = vsub.f32 0.0, %v1541
      %v1734 = vsub.f32 0.0, %v1542
      %v1735 = vsub.f32 0.0, %v1543
      %v1736 = vsub.f32 0.0, %v1544
      %v1737 = vsub.f32 0.0, %v1545
      %v1738 = vsub.f32 0.0, %v1546
      %v1739 = vsub.f32 0.0, %v1547
      %v1740 = vsub.f32 0.0, %v1548
      %v1741 = vsub.f32 0.0, %v1549
      %v1742 = vsub.f32 0.0, %v1550
      %v1743 = vsub.f32 0.0, %v1551
      %v1744 = vsub.f32 0.0, %v1552
      %v1745 = vsub.f32 0.0, %v1553
      %v1746 = vsub.f32 0.0, %v1554
      %v1747 = vsub.f32 0.0, %v1555
      %v1748 = vsub.f32 0.0, %v1556
      %v1749 = vsub.f32 0.0, %v1557
      %v1750 = vsub.f32 0.0, %v1558
      %v1751 = vsub.f32 0.0, %v1559
      %v1752 = vsub.f32 0.0, %v1560
      %v1753 = vsub.f32 0.0, %v1561
      %v1754 = vsub.f32 0.0, %v1562
      %v1755 = vsub.f32 0.0, %v1563
      %v1756 = vsub.f32 0.0, %v1564
      %v1757 = vsub.f32 0.0, %v1565
      %v1758 = vsub.f32 0.0, %v1566
      %v1759 = vsub.f32 0.0, %v1567
      %v1760 = vsub.f32 0.0, %v1568
      %v1761 = vsub.f32 0.0, %v1569
      %v1762 = vsub.f32 0.0, %v1570
      %v1763 = vsub.f32 0.0, %v1571
      %v1764 = vsub.f32 0.0, %v1572
      %v1765 = vsub.f32 0.0, %v1573
      %v1766 = vsub.f32 0.0, %v1574
      %v1767 = vsub.f32 0.0, %v1575
      %v1768 = vsub.f32 0.0, %v1576
      %v1769 = vsub.f32 0.0, %v1577
      %v1770 = vsub.f32 0.0, %v1578
      %v1771 = vsub.f32 0.0, %v1579
      %v1772 = vsub.f32 0.0, %v1580
      %v1773 = vsub.f32 0.0, %v1581
      %v1774 = vsub.f32 0.0, %v1582
      %v1775 = vsub.f32 0.0, %v1583
      %v1776 = vsub.f32 0.0, %v1584
      %v1777 = vsub.f32 0.0, %v1585
      %v1778 = vsub.f32 0.0, %v1586
      %v1779 = vsub.f32 0.0, %v1587
      %v1780 = vsub.f32 0.0, %v1588
      %v1781 = vsub.f32 0.0, %v1589
      %v1782 = vsub.f32 0.0, %v1590
      %v1783 = vsub.f32 0.0, %v1591
      %v1784 = vsub.f32 0.0, %v1592
      %v1785 = vsub.f32 0.0, %v1593
      %v1786 = vsub.f32 0.0, %v1594
      %v1787 = vsub.f32 0.0, %v1595
      %v1788 = vsub.f32 0.0, %v1596
      %v1789 = vsub.f32 0.0, %v1597
      %v1790 = vsub.f32 0.0, %v1598
      %v1791 = vsub.f32 0.0, %v1599
      %v1792 = vsub.f32 0.0, %v1600
      %v1793 = vsub.f32 0.0, %v1601
      %v1794 = vsub.f32 0.0, %v1602
      %v1795 = vsub.f32 0.0, %v1603
      %v1796 = vsub.f32 0.0, %v1604
      %v1797 = vsub.f32 0.0, %v1605
      %v1798 = vsub.f32 0.0, %v1606
      %v1799 = vsub.f32 0.0, %v1607
      %v1800 = vsub.f32 0.0, %v1608
      %v1801 = vsub.f32 0.0, %v1609
      %v1802 = vsub.f32 0.0, %v1610
      %v1803 = vsub.f32 0.0, %v1611
      %v1804 = vsub.f32 0.0, %v1612
      %v1805 = vsub.f32 0.0, %v1613
      %v1806 = vsub.f32 0.0, %v1614
      %v1807 = vsub.f32 0.0, %v1615
      %v1808 = vsub.f32 0.0, %v1616
      %v1809 = vsub.f32 0.0, %v1617
      %v1810 = vsub.f32 0.0, %v1618
      %v1811 = vsub.f32 0.0, %v1619
      %v1812 = vsub.f32 0.0, %v1620
      %v1813 = vsub.f32 0.0, %v1621
      %v1814 = vsub.f32 0.0, %v1622
      %v1815 = vsub.f32 0.0, %v1623
      %v1816 = vsub.f32 0.0, %v1624
      %v1817 = vsub.f32 0.0, %v1625
      %v1818 = vsub.f32 0.0, %v1626
      %v1819 = vsub.f32 0.0, %v1627
      %v1820 = vsub.f32 0.0, %v1628
      %v1821 = vsub.f32 0.0, %v1629
      %v1822 = vsub.f32 0.0, %v1630
      %v1823 = vsub.f32 0.0, %v1631
      %v1824 = vsub.f32 0.0, %v1632
      %v1825 = vsub.f32 0.0, %v1633
      %v1826 = vsub.f32 0.0, %v1634
      %v1827 = vsub.f32 0.0, %v1635
      %v1828 = vsub.f32 0.0, %v1636
      %v1829 = vsub.f32 0.0, %v1637
      %v1830 = vsub.f32 0.0, %v1638
      %v1831 = vsub.f32 0.0, %v1639
      %v1832 = vsub.f32 0.0, %v1640
      %v1833 = vsub.f32 0.0, %v1641
      %v1834 = vsub.f32 0.0, %v1642
      %v1835 = vsub.f32 0.0, %v1643
      %v1836 = vmul.f32 %v1644, 1.442695
      %v1837 = vpow.pop %v1836
      %v1838 = vmul.f32 %v1645, 1.442695
      %v1839 = vpow.pop %v1838
      %v1840 = vmul.f32 %v1646, 1.442695
      %v1841 = vpow.pop %v1840
      %v1842 = vmul.f32 %v1647, 1.442695
      %v1843 = vpow.pop %v1842
      %v1844 = vmul.f32 %v1648, 1.442695
      %v1845 = vpow.pop %v1844
      %v1846 = vmul.f32 %v1649, 1.442695
      %v1847 = vpow.pop %v1846
      %v1848 = vmul.f32 %v1650, 1.442695
      %v1849 = vpow.pop %v1848
      %v1850 = vmul.f32 %v1651, 1.442695
      %v1851 = vpow.pop %v1850
      %v1852 = vmul.f32 %v1652, 1.442695
      %v1853 = vpow.pop %v1852
      %v1854 = vmul.f32 %v1653, 1.442695
      %v1855 = vpow.pop %v1854
      %v1856 = vmul.f32 %v1654, 1.442695
      %v1857 = vpow.pop %v1856
      %v1858 = vmul.f32 %v1655, 1.442695
      %v1859 = vpow.pop %v1858
      %v1860 = vmul.f32 %v1656, 1.442695
      %v1861 = vpow.pop %v1860
      %v1862 = vmul.f32 %v1657, 1.442695
      %v1863 = vpow.pop %v1862
      %v1864 = vmul.f32 %v1658, 1.442695
      %v1865 = vpow.pop %v1864
      %v1866 = vmul.f32 %v1659, 1.442695
      %v1867 = vpow.pop %v1866
      %v1868 = vmul.f32 %v1660, 1.442695
      %v1869 = vpow.pop %v1868
      %v1870 = vmul.f32 %v1661, 1.442695
      %v1871 = vpow.pop %v1870
      %v1872 = vmul.f32 %v1662, 1.442695
      %v1873 = vpow.pop %v1872
      %v1874 = vmul.f32 %v1663, 1.442695
      %v1875 = vpow.pop %v1874
      %v1876 = vmul.f32 %v1664, 1.442695
      %v1877 = vpow.pop %v1876
      %v1878 = vmul.f32 %v1665, 1.442695
      %v1879 = vpow.pop %v1878
      %v1880 = vmul.f32 %v1666, 1.442695
      %v1881 = vpow.pop %v1880
      %v1882 = vmul.f32 %v1667, 1.442695
      %v1883 = vpow.pop %v1882
      %v1884 = vmul.f32 %v1668, 1.442695
      %v1885 = vpow.pop %v1884
      %v1886 = vmul.f32 %v1669, 1.442695
      %v1887 = vpow.pop %v1886
      %v1888 = vmul.f32 %v1670, 1.442695
      %v1889 = vpow.pop %v1888
      %v1890 = vmul.f32 %v1671, 1.442695
      %v1891 = vpow.pop %v1890
      %v1892 = vmul.f32 %v1672, 1.442695
      %v1893 = vpow.pop %v1892
      %v1894 = vmul.f32 %v1673, 1.442695
      %v1895 = vpow.pop %v1894
      %v1896 = vmul.f32 %v1674, 1.442695
      %v1897 = vpow.pop %v1896
      %v1898 = vmul.f32 %v1675, 1.442695
      %v1899 = vpow.pop %v1898
      %v1900 = vmul.f32 %v1676, 1.442695
      %v1901 = vpow.pop %v1900
      %v1902 = vmul.f32 %v1677, 1.442695
      %v1903 = vpow.pop %v1902
      %v1904 = vmul.f32 %v1678, 1.442695
      %v1905 = vpow.pop %v1904
      %v1906 = vmul.f32 %v1679, 1.442695
      %v1907 = vpow.pop %v1906
      %v1908 = vmul.f32 %v1680, 1.442695
      %v1909 = vpow.pop %v1908
      %v1910 = vmul.f32 %v1681, 1.442695
      %v1911 = vpow.pop %v1910
      %v1912 = vmul.f32 %v1682, 1.442695
      %v1913 = vpow.pop %v1912
      %v1914 = vmul.f32 %v1683, 1.442695
      %v1915 = vpow.pop %v1914
      %v1916 = vmul.f32 %v1684, 1.442695
      %v1917 = vpow.pop %v1916
      %v1918 = vmul.f32 %v1685, 1.442695
      %v1919 = vpow.pop %v1918
      %v1920 = vmul.f32 %v1686, 1.442695
      %v1921 = vpow.pop %v1920
      %v1922 = vmul.f32 %v1687, 1.442695
      %v1923 = vpow.pop %v1922
      %v1924 = vmul.f32 %v1688, 1.442695
      %v1925 = vpow.pop %v1924
      %v1926 = vmul.f32 %v1689, 1.442695
      %v1927 = vpow.pop %v1926
      %v1928 = vmul.f32 %v1690, 1.442695
      %v1929 = vpow.pop %v1928
      %v1930 = vmul.f32 %v1691, 1.442695
      %v1931 = vpow.pop %v1930
      %v1932 = vmul.f32 %v1692, 1.442695
      %v1933 = vpow.pop %v1932
      %v1934 = vmul.f32 %v1693, 1.442695
      %v1935 = vpow.pop %v1934
      %v1936 = vmul.f32 %v1694, 1.442695
      %v1937 = vpow.pop %v1936
      %v1938 = vmul.f32 %v1695, 1.442695
      %v1939 = vpow.pop %v1938
      %v1940 = vmul.f32 %v1696, 1.442695
      %v1941 = vpow.pop %v1940
      %v1942 = vmul.f32 %v1697, 1.442695
      %v1943 = vpow.pop %v1942
      %v1944 = vmul.f32 %v1698, 1.442695
      %v1945 = vpow.pop %v1944
      %v1946 = vmul.f32 %v1699, 1.442695
      %v1947 = vpow.pop %v1946
      %v1948 = vmul.f32 %v1700, 1.442695
      %v1949 = vpow.pop %v1948
      %v1950 = vmul.f32 %v1701, 1.442695
      %v1951 = vpow.pop %v1950
      %v1952 = vmul.f32 %v1702, 1.442695
      %v1953 = vpow.pop %v1952
      %v1954 = vmul.f32 %v1703, 1.442695
      %v1955 = vpow.pop %v1954
      %v1956 = vmul.f32 %v1704, 1.442695
      %v1957 = vpow.pop %v1956
      %v1958 = vmul.f32 %v1705, 1.442695
      %v1959 = vpow.pop %v1958
      %v1960 = vmul.f32 %v1706, 1.442695
      %v1961 = vpow.pop %v1960
      %v1962 = vmul.f32 %v1707, 1.442695
      %v1963 = vpow.pop %v1962
      %v1964 = vmul.f32 %v1708, 1.442695
      %v1965 = vpow.pop %v1964
      %v1966 = vmul.f32 %v1709, 1.442695
      %v1967 = vpow.pop %v1966
      %v1968 = vmul.f32 %v1710, 1.442695
      %v1969 = vpow.pop %v1968
      %v1970 = vmul.f32 %v1711, 1.442695
      %v1971 = vpow.pop %v1970
      %v1972 = vmul.f32 %v1712, 1.442695
      %v1973 = vpow.pop %v1972
      %v1974 = vmul.f32 %v1713, 1.442695
      %v1975 = vpow.pop %v1974
      %v1976 = vmul.f32 %v1714, 1.442695
      %v1977 = vpow.pop %v1976
      %v1978 = vmul.f32 %v1715, 1.442695
      %v1979 = vpow.pop %v1978
      %v1980 = vmul.f32 %v1716, 1.442695
      %v1981 = vpow.pop %v1980
      %v1982 = vmul.f32 %v1717, 1.442695
      %v1983 = vpow.pop %v1982
      %v1984 = vmul.f32 %v1718, 1.442695
      %v1985 = vpow.pop %v1984
      %v1986 = vmul.f32 %v1719, 1.442695
      %v1987 = vpow.pop %v1986
      %v1988 = vmul.f32 %v1720, 1.442695
      %v1989 = vpow.pop %v1988
      %v1990 = vmul.f32 %v1721, 1.442695
      %v1991 = vpow.pop %v1990
      %v1992 = vmul.f32 %v1722, 1.442695
      %v1993 = vpow.pop %v1992
      %v1994 = vmul.f32 %v1723, 1.442695
      %v1995 = vpow.pop %v1994
      %v1996 = vmul.f32 %v1724, 1.442695
      %v1997 = vpow.pop %v1996
      %v1998 = vmul.f32 %v1725, 1.442695
      %v1999 = vpow.pop %v1998
      %v2000 = vmul.f32 %v1726, 1.442695
      %v2001 = vpow.pop %v2000
      %v2002 = vmul.f32 %v1727, 1.442695
      %v2003 = vpow.pop %v2002
      %v2004 = vmul.f32 %v1728, 1.442695
      %v2005 = vpow.pop %v2004
      %v2006 = vmul.f32 %v1729, 1.442695
      %v2007 = vpow.pop %v2006
      %v2008 = vmul.f32 %v1730, 1.442695
      %v2009 = vpow.pop %v2008
      %v2010 = vmul.f32 %v1731, 1.442695
      %v2011 = vpow.pop %v2010
      %v2012 = vmul.f32 %v1732, 1.442695
      %v2013 = vpow.pop %v2012
      %v2014 = vmul.f32 %v1733, 1.442695
      %v2015 = vpow.pop %v2014
      %v2016 = vmul.f32 %v1734, 1.442695
      %v2017 = vpow.pop %v2016
      %v2018 = vmul.f32 %v1735, 1.442695
      %v2019 = vpow.pop %v2018
      %v2020 = vmul.f32 %v1736, 1.442695
      %v2021 = vpow.pop %v2020
      %v2022 = vmul.f32 %v1737, 1.442695
      %v2023 = vpow.pop %v2022
      %v2024 = vmul.f32 %v1738, 1.442695
      %v2025 = vpow.pop %v2024
      %v2026 = vmul.f32 %v1739, 1.442695
      %v2027 = vpow.pop %v2026
      %v2028 = vmul.f32 %v1740, 1.442695
      %v2029 = vpow.pop %v2028
      %v2030 = vmul.f32 %v1741, 1.442695
      %v2031 = vpow.pop %v2030
      %v2032 = vmul.f32 %v1742, 1.442695
      %v2033 = vpow.pop %v2032
      %v2034 = vmul.f32 %v1743, 1.442695
      %v2035 = vpow.pop %v2034
      %v2036 = vmul.f32 %v1744, 1.442695
      %v2037 = vpow.pop %v2036
      %v2038 = vmul.f32 %v1745, 1.442695
      %v2039 = vpow.pop %v2038
      %v2040 = vmul.f32 %v1746, 1.442695
      %v2041 = vpow.pop %v2040
      %v2042 = vmul.f32 %v1747, 1.442695
      %v2043 = vpow.pop %v2042
      %v2044 = vmul.f32 %v1748, 1.442695
      %v2045 = vpow.pop %v2044
      %v2046 = vmul.f32 %v1749, 1.442695
      %v2047 = vpow.pop %v2046
      %v2048 = vmul.f32 %v1750, 1.442695
      %v2049 = vpow.pop %v2048
      %v2050 = vmul.f32 %v1751, 1.442695
      %v2051 = vpow.pop %v2050
      %v2052 = vmul.f32 %v1752, 1.442695
      %v2053 = vpow.pop %v2052
      %v2054 = vmul.f32 %v1753, 1.442695
      %v2055 = vpow.pop %v2054
      %v2056 = vmul.f32 %v1754, 1.442695
      %v2057 = vpow.pop %v2056
      %v2058 = vmul.f32 %v1755, 1.442695
      %v2059 = vpow.pop %v2058
      %v2060 = vmul.f32 %v1756, 1.442695
      %v2061 = vpow.pop %v2060
      %v2062 = vmul.f32 %v1757, 1.442695
      %v2063 = vpow.pop %v2062
      %v2064 = vmul.f32 %v1758, 1.442695
      %v2065 = vpow.pop %v2064
      %v2066 = vmul.f32 %v1759, 1.442695
      %v2067 = vpow.pop %v2066
      %v2068 = vmul.f32 %v1760, 1.442695
      %v2069 = vpow.pop %v2068
      %v2070 = vmul.f32 %v1761, 1.442695
      %v2071 = vpow.pop %v2070
      %v2072 = vmul.f32 %v1762, 1.442695
      %v2073 = vpow.pop %v2072
      %v2074 = vmul.f32 %v1763, 1.442695
      %v2075 = vpow.pop %v2074
      %v2076 = vmul.f32 %v1764, 1.442695
      %v2077 = vpow.pop %v2076
      %v2078 = vmul.f32 %v1765, 1.442695
      %v2079 = vpow.pop %v2078
      %v2080 = vmul.f32 %v1766, 1.442695
      %v2081 = vpow.pop %v2080
      %v2082 = vmul.f32 %v1767, 1.442695
      %v2083 = vpow.pop %v2082
      %v2084 = vmul.f32 %v1768, 1.442695
      %v2085 = vpow.pop %v2084
      %v2086 = vmul.f32 %v1769, 1.442695
      %v2087 = vpow.pop %v2086
      %v2088 = vmul.f32 %v1770, 1.442695
      %v2089 = vpow.pop %v2088
      %v2090 = vmul.f32 %v1771, 1.442695
      %v2091 = vpow.pop %v2090
      %v2092 = vmul.f32 %v1772, 1.442695
      %v2093 = vpow.pop %v2092
      %v2094 = vmul.f32 %v1773, 1.442695
      %v2095 = vpow.pop %v2094
      %v2096 = vmul.f32 %v1774, 1.442695
      %v2097 = vpow.pop %v2096
      %v2098 = vmul.f32 %v1775, 1.442695
      %v2099 = vpow.pop %v2098
      %v2100 = vmul.f32 %v1776, 1.442695
      %v2101 = vpow.pop %v2100
      %v2102 = vmul.f32 %v1777, 1.442695
      %v2103 = vpow.pop %v2102
      %v2104 = vmul.f32 %v1778, 1.442695
      %v2105 = vpow.pop %v2104
      %v2106 = vmul.f32 %v1779, 1.442695
      %v2107 = vpow.pop %v2106
      %v2108 = vmul.f32 %v1780, 1.442695
      %v2109 = vpow.pop %v2108
      %v2110 = vmul.f32 %v1781, 1.442695
      %v2111 = vpow.pop %v2110
      %v2112 = vmul.f32 %v1782, 1.442695
      %v2113 = vpow.pop %v2112
      %v2114 = vmul.f32 %v1783, 1.442695
      %v2115 = vpow.pop %v2114
      %v2116 = vmul.f32 %v1784, 1.442695
      %v2117 = vpow.pop %v2116
      %v2118 = vmul.f32 %v1785, 1.442695
      %v2119 = vpow.pop %v2118
      %v2120 = vmul.f32 %v1786, 1.442695
      %v2121 = vpow.pop %v2120
      %v2122 = vmul.f32 %v1787, 1.442695
      %v2123 = vpow.pop %v2122
      %v2124 = vmul.f32 %v1788, 1.442695
      %v2125 = vpow.pop %v2124
      %v2126 = vmul.f32 %v1789, 1.442695
      %v2127 = vpow.pop %v2126
      %v2128 = vmul.f32 %v1790, 1.442695
      %v2129 = vpow.pop %v2128
      %v2130 = vmul.f32 %v1791, 1.442695
      %v2131 = vpow.pop %v2130
      %v2132 = vmul.f32 %v1792, 1.442695
      %v2133 = vpow.pop %v2132
      %v2134 = vmul.f32 %v1793, 1.442695
      %v2135 = vpow.pop %v2134
      %v2136 = vmul.f32 %v1794, 1.442695
      %v2137 = vpow.pop %v2136
      %v2138 = vmul.f32 %v1795, 1.442695
      %v2139 = vpow.pop %v2138
      %v2140 = vmul.f32 %v1796, 1.442695
      %v2141 = vpow.pop %v2140
      %v2142 = vmul.f32 %v1797, 1.442695
      %v2143 = vpow.pop %v2142
      %v2144 = vmul.f32 %v1798, 1.442695
      %v2145 = vpow.pop %v2144
      %v2146 = vmul.f32 %v1799, 1.442695
      %v2147 = vpow.pop %v2146
      %v2148 = vmul.f32 %v1800, 1.442695
      %v2149 = vpow.pop %v2148
      %v2150 = vmul.f32 %v1801, 1.442695
      %v2151 = vpow.pop %v2150
      %v2152 = vmul.f32 %v1802, 1.442695
      %v2153 = vpow.pop %v2152
      %v2154 = vmul.f32 %v1803, 1.442695
      %v2155 = vpow.pop %v2154
      %v2156 = vmul.f32 %v1804, 1.442695
      %v2157 = vpow.pop %v2156
      %v2158 = vmul.f32 %v1805, 1.442695
      %v2159 = vpow.pop %v2158
      %v2160 = vmul.f32 %v1806, 1.442695
      %v2161 = vpow.pop %v2160
      %v2162 = vmul.f32 %v1807, 1.442695
      %v2163 = vpow.pop %v2162
      %v2164 = vmul.f32 %v1808, 1.442695
      %v2165 = vpow.pop %v2164
      %v2166 = vmul.f32 %v1809, 1.442695
      %v2167 = vpow.pop %v2166
      %v2168 = vmul.f32 %v1810, 1.442695
      %v2169 = vpow.pop %v2168
      %v2170 = vmul.f32 %v1811, 1.442695
      %v2171 = vpow.pop %v2170
      %v2172 = vmul.f32 %v1812, 1.442695
      %v2173 = vpow.pop %v2172
      %v2174 = vmul.f32 %v1813, 1.442695
      %v2175 = vpow.pop %v2174
      %v2176 = vmul.f32 %v1814, 1.442695
      %v2177 = vpow.pop %v2176
      %v2178 = vmul.f32 %v1815, 1.442695
      %v2179 = vpow.pop %v2178
      %v2180 = vmul.f32 %v1816, 1.442695
      %v2181 = vpow.pop %v2180
      %v2182 = vmul.f32 %v1817, 1.442695
      %v2183 = vpow.pop %v2182
      %v2184 = vmul.f32 %v1818, 1.442695
      %v2185 = vpow.pop %v2184
      %v2186 = vmul.f32 %v1819, 1.442695
      %v2187 = vpow.pop %v2186
      %v2188 = vmul.f32 %v1820, 1.442695
      %v2189 = vpow.pop %v2188
      %v2190 = vmul.f32 %v1821, 1.442695
      %v2191 = vpow.pop %v2190
      %v2192 = vmul.f32 %v1822, 1.442695
      %v2193 = vpow.pop %v2192
      %v2194 = vmul.f32 %v1823, 1.442695
      %v2195 = vpow.pop %v2194
      %v2196 = vmul.f32 %v1824, 1.442695
      %v2197 = vpow.pop %v2196
      %v2198 = vmul.f32 %v1825, 1.442695
      %v2199 = vpow.pop %v2198
      %v2200 = vmul.f32 %v1826, 1.442695
      %v2201 = vpow.pop %v2200
      %v2202 = vmul.f32 %v1827, 1.442695
      %v2203 = vpow.pop %v2202
      %v2204 = vmul.f32 %v1828, 1.442695
      %v2205 = vpow.pop %v2204
      %v2206 = vmul.f32 %v1829, 1.442695
      %v2207 = vpow.pop %v2206
      %v2208 = vmul.f32 %v1830, 1.442695
      %v2209 = vpow.pop %v2208
      %v2210 = vmul.f32 %v1831, 1.442695
      %v2211 = vpow.pop %v2210
      %v2212 = vmul.f32 %v1832, 1.442695
      %v2213 = vpow.pop %v2212
      %v2214 = vmul.f32 %v1833, 1.442695
      %v2215 = vpow.pop %v2214
      %v2216 = vmul.f32 %v1834, 1.442695
      %v2217 = vpow.pop %v2216
      %v2218 = vmul.f32 %v1835, 1.442695
      %v2219 = vpow.pop %v2218
      %v2220 = vadd.f32 %v1837, 1.0
      %v2221 = vlog2.pop %v2220
      %v2222 = vmul.f32 %v2221, 0.6931472
      %v2223 = vmul.f32 -0.5, %v1837
      %v2224 = vadd.f32 %v2223, 1.0
      %v2225 = vmul.f32 %v2224, %v1837
      %v2226 = vand.u32 2147483647, %v1837
      %vm2227 = vcmp.lt.f32.partialorder %v2226, 0.0004427343
      %v2228 = vsel %vm2227, %v2225, %v2222
      %v2229 = vadd.f32 %v1839, 1.0
      %v2230 = vlog2.pop %v2229
      %v2231 = vmul.f32 %v2230, 0.6931472
      %v2232 = vmul.f32 -0.5, %v1839
      %v2233 = vadd.f32 %v2232, 1.0
      %v2234 = vmul.f32 %v2233, %v1839
      %v2235 = vand.u32 2147483647, %v1839
      %vm2236 = vcmp.lt.f32.partialorder %v2235, 0.0004427343
      %v2237 = vsel %vm2236, %v2234, %v2231
      %v2238 = vadd.f32 %v1841, 1.0
      %v2239 = vlog2.pop %v2238
      %v2240 = vmul.f32 %v2239, 0.6931472
      %v2241 = vmul.f32 -0.5, %v1841
      %v2242 = vadd.f32 %v2241, 1.0
      %v2243 = vmul.f32 %v2242, %v1841
      %v2244 = vand.u32 2147483647, %v1841
      %vm2245 = vcmp.lt.f32.partialorder %v2244, 0.0004427343
      %v2246 = vsel %vm2245, %v2243, %v2240
      %v2247 = vadd.f32 %v1843, 1.0
      %v2248 = vlog2.pop %v2247
      %v2249 = vmul.f32 %v2248, 0.6931472
      %v2250 = vmul.f32 -0.5, %v1843
      %v2251 = vadd.f32 %v2250, 1.0
      %v2252 = vmul.f32 %v2251, %v1843
      %v2253 = vand.u32 2147483647, %v1843
      %vm2254 = vcmp.lt.f32.partialorder %v2253, 0.0004427343
      %v2255 = vsel %vm2254, %v2252, %v2249
      %v2256 = vadd.f32 %v1845, 1.0
      %v2257 = vlog2.pop %v2256
      %v2258 = vmul.f32 %v2257, 0.6931472
      %v2259 = vmul.f32 -0.5, %v1845
      %v2260 = vadd.f32 %v2259, 1.0
      %v2261 = vmul.f32 %v2260, %v1845
      %v2262 = vand.u32 2147483647, %v1845
      %vm2263 = vcmp.lt.f32.partialorder %v2262, 0.0004427343
      %v2264 = vsel %vm2263, %v2261, %v2258
      %v2265 = vadd.f32 %v1847, 1.0
      %v2266 = vlog2.pop %v2265
      %v2267 = vmul.f32 %v2266, 0.6931472
      %v2268 = vmul.f32 -0.5, %v1847
      %v2269 = vadd.f32 %v2268, 1.0
      %v2270 = vmul.f32 %v2269, %v1847
      %v2271 = vand.u32 2147483647, %v1847
      %vm2272 = vcmp.lt.f32.partialorder %v2271, 0.0004427343
      %v2273 = vsel %vm2272, %v2270, %v2267
      %v2274 = vadd.f32 %v1849, 1.0
      %v2275 = vlog2.pop %v2274
      %v2276 = vmul.f32 %v2275, 0.6931472
      %v2277 = vmul.f32 -0.5, %v1849
      %v2278 = vadd.f32 %v2277, 1.0
      %v2279 = vmul.f32 %v2278, %v1849
      %v2280 = vand.u32 2147483647, %v1849
      %vm2281 = vcmp.lt.f32.partialorder %v2280, 0.0004427343
      %v2282 = vsel %vm2281, %v2279, %v2276
      %v2283 = vadd.f32 %v1851, 1.0
      %v2284 = vlog2.pop %v2283
      %v2285 = vmul.f32 %v2284, 0.6931472
      %v2286 = vmul.f32 -0.5, %v1851
      %v2287 = vadd.f32 %v2286, 1.0
      %v2288 = vmul.f32 %v2287, %v1851
      %v2289 = vand.u32 2147483647, %v1851
      %vm2290 = vcmp.lt.f32.partialorder %v2289, 0.0004427343
      %v2291 = vsel %vm2290, %v2288, %v2285
      %v2292 = vadd.f32 %v1853, 1.0
      %v2293 = vlog2.pop %v2292
      %v2294 = vmul.f32 %v2293, 0.6931472
      %v2295 = vmul.f32 -0.5, %v1853
      %v2296 = vadd.f32 %v2295, 1.0
      %v2297 = vmul.f32 %v2296, %v1853
      %v2298 = vand.u32 2147483647, %v1853
      %vm2299 = vcmp.lt.f32.partialorder %v2298, 0.0004427343
      %v2300 = vsel %vm2299, %v2297, %v2294
      %v2301 = vadd.f32 %v1855, 1.0
      %v2302 = vlog2.pop %v2301
      %v2303 = vmul.f32 %v2302, 0.6931472
      %v2304 = vmul.f32 -0.5, %v1855
      %v2305 = vadd.f32 %v2304, 1.0
      %v2306 = vmul.f32 %v2305, %v1855
      %v2307 = vand.u32 2147483647, %v1855
      %vm2308 = vcmp.lt.f32.partialorder %v2307, 0.0004427343
      %v2309 = vsel %vm2308, %v2306, %v2303
      %v2310 = vadd.f32 %v1857, 1.0
      %v2311 = vlog2.pop %v2310
      %v2312 = vmul.f32 %v2311, 0.6931472
      %v2313 = vmul.f32 -0.5, %v1857
      %v2314 = vadd.f32 %v2313, 1.0
      %v2315 = vmul.f32 %v2314, %v1857
      %v2316 = vand.u32 2147483647, %v1857
      %vm2317 = vcmp.lt.f32.partialorder %v2316, 0.0004427343
      %v2318 = vsel %vm2317, %v2315, %v2312
      %v2319 = vadd.f32 %v1859, 1.0
      %v2320 = vlog2.pop %v2319
      %v2321 = vmul.f32 %v2320, 0.6931472
      %v2322 = vmul.f32 -0.5, %v1859
      %v2323 = vadd.f32 %v2322, 1.0
      %v2324 = vmul.f32 %v2323, %v1859
      %v2325 = vand.u32 2147483647, %v1859
      %vm2326 = vcmp.lt.f32.partialorder %v2325, 0.0004427343
      %v2327 = vsel %vm2326, %v2324, %v2321
      %v2328 = vadd.f32 %v1861, 1.0
      %v2329 = vlog2.pop %v2328
      %v2330 = vmul.f32 %v2329, 0.6931472
      %v2331 = vmul.f32 -0.5, %v1861
      %v2332 = vadd.f32 %v2331, 1.0
      %v2333 = vmul.f32 %v2332, %v1861
      %v2334 = vand.u32 2147483647, %v1861
      %vm2335 = vcmp.lt.f32.partialorder %v2334, 0.0004427343
      %v2336 = vsel %vm2335, %v2333, %v2330
      %v2337 = vadd.f32 %v1863, 1.0
      %v2338 = vlog2.pop %v2337
      %v2339 = vmul.f32 %v2338, 0.6931472
      %v2340 = vmul.f32 -0.5, %v1863
      %v2341 = vadd.f32 %v2340, 1.0
      %v2342 = vmul.f32 %v2341, %v1863
      %v2343 = vand.u32 2147483647, %v1863
      %vm2344 = vcmp.lt.f32.partialorder %v2343, 0.0004427343
      %v2345 = vsel %vm2344, %v2342, %v2339
      %v2346 = vadd.f32 %v1865, 1.0
      %v2347 = vlog2.pop %v2346
      %v2348 = vmul.f32 %v2347, 0.6931472
      %v2349 = vmul.f32 -0.5, %v1865
      %v2350 = vadd.f32 %v2349, 1.0
      %v2351 = vmul.f32 %v2350, %v1865
      %v2352 = vand.u32 2147483647, %v1865
      %vm2353 = vcmp.lt.f32.partialorder %v2352, 0.0004427343
      %v2354 = vsel %vm2353, %v2351, %v2348
      %v2355 = vadd.f32 %v1867, 1.0
      %v2356 = vlog2.pop %v2355
      %v2357 = vmul.f32 %v2356, 0.6931472
      %v2358 = vmul.f32 -0.5, %v1867
      %v2359 = vadd.f32 %v2358, 1.0
      %v2360 = vmul.f32 %v2359, %v1867
      %v2361 = vand.u32 2147483647, %v1867
      %vm2362 = vcmp.lt.f32.partialorder %v2361, 0.0004427343
      %v2363 = vsel %vm2362, %v2360, %v2357
      %v2364 = vadd.f32 %v1869, 1.0
      %v2365 = vlog2.pop %v2364
      %v2366 = vmul.f32 %v2365, 0.6931472
      %v2367 = vmul.f32 -0.5, %v1869
      %v2368 = vadd.f32 %v2367, 1.0
      %v2369 = vmul.f32 %v2368, %v1869
      %v2370 = vand.u32 2147483647, %v1869
      %vm2371 = vcmp.lt.f32.partialorder %v2370, 0.0004427343
      %v2372 = vsel %vm2371, %v2369, %v2366
      %v2373 = vadd.f32 %v1871, 1.0
      %v2374 = vlog2.pop %v2373
      %v2375 = vmul.f32 %v2374, 0.6931472
      %v2376 = vmul.f32 -0.5, %v1871
      %v2377 = vadd.f32 %v2376, 1.0
      %v2378 = vmul.f32 %v2377, %v1871
      %v2379 = vand.u32 2147483647, %v1871
      %vm2380 = vcmp.lt.f32.partialorder %v2379, 0.0004427343
      %v2381 = vsel %vm2380, %v2378, %v2375
      %v2382 = vadd.f32 %v1873, 1.0
      %v2383 = vlog2.pop %v2382
      %v2384 = vmul.f32 %v2383, 0.6931472
      %v2385 = vmul.f32 -0.5, %v1873
      %v2386 = vadd.f32 %v2385, 1.0
      %v2387 = vmul.f32 %v2386, %v1873
      %v2388 = vand.u32 2147483647, %v1873
      %vm2389 = vcmp.lt.f32.partialorder %v2388, 0.0004427343
      %v2390 = vsel %vm2389, %v2387, %v2384
      %v2391 = vadd.f32 %v1875, 1.0
      %v2392 = vlog2.pop %v2391
      %v2393 = vmul.f32 %v2392, 0.6931472
      %v2394 = vmul.f32 -0.5, %v1875
      %v2395 = vadd.f32 %v2394, 1.0
      %v2396 = vmul.f32 %v2395, %v1875
      %v2397 = vand.u32 2147483647, %v1875
      %vm2398 = vcmp.lt.f32.partialorder %v2397, 0.0004427343
      %v2399 = vsel %vm2398, %v2396, %v2393
      %v2400 = vadd.f32 %v1877, 1.0
      %v2401 = vlog2.pop %v2400
      %v2402 = vmul.f32 %v2401, 0.6931472
      %v2403 = vmul.f32 -0.5, %v1877
      %v2404 = vadd.f32 %v2403, 1.0
      %v2405 = vmul.f32 %v2404, %v1877
      %v2406 = vand.u32 2147483647, %v1877
      %vm2407 = vcmp.lt.f32.partialorder %v2406, 0.0004427343
      %v2408 = vsel %vm2407, %v2405, %v2402
      %v2409 = vadd.f32 %v1879, 1.0
      %v2410 = vlog2.pop %v2409
      %v2411 = vmul.f32 %v2410, 0.6931472
      %v2412 = vmul.f32 -0.5, %v1879
      %v2413 = vadd.f32 %v2412, 1.0
      %v2414 = vmul.f32 %v2413, %v1879
      %v2415 = vand.u32 2147483647, %v1879
      %vm2416 = vcmp.lt.f32.partialorder %v2415, 0.0004427343
      %v2417 = vsel %vm2416, %v2414, %v2411
      %v2418 = vadd.f32 %v1881, 1.0
      %v2419 = vlog2.pop %v2418
      %v2420 = vmul.f32 %v2419, 0.6931472
      %v2421 = vmul.f32 -0.5, %v1881
      %v2422 = vadd.f32 %v2421, 1.0
      %v2423 = vmul.f32 %v2422, %v1881
      %v2424 = vand.u32 2147483647, %v1881
      %vm2425 = vcmp.lt.f32.partialorder %v2424, 0.0004427343
      %v2426 = vsel %vm2425, %v2423, %v2420
      %v2427 = vadd.f32 %v1883, 1.0
      %v2428 = vlog2.pop %v2427
      %v2429 = vmul.f32 %v2428, 0.6931472
      %v2430 = vmul.f32 -0.5, %v1883
      %v2431 = vadd.f32 %v2430, 1.0
      %v2432 = vmul.f32 %v2431, %v1883
      %v2433 = vand.u32 2147483647, %v1883
      %vm2434 = vcmp.lt.f32.partialorder %v2433, 0.0004427343
      %v2435 = vsel %vm2434, %v2432, %v2429
      %v2436 = vadd.f32 %v1885, 1.0
      %v2437 = vlog2.pop %v2436
      %v2438 = vmul.f32 %v2437, 0.6931472
      %v2439 = vmul.f32 -0.5, %v1885
      %v2440 = vadd.f32 %v2439, 1.0
      %v2441 = vmul.f32 %v2440, %v1885
      %v2442 = vand.u32 2147483647, %v1885
      %vm2443 = vcmp.lt.f32.partialorder %v2442, 0.0004427343
      %v2444 = vsel %vm2443, %v2441, %v2438
      %v2445 = vadd.f32 %v1887, 1.0
      %v2446 = vlog2.pop %v2445
      %v2447 = vmul.f32 %v2446, 0.6931472
      %v2448 = vmul.f32 -0.5, %v1887
      %v2449 = vadd.f32 %v2448, 1.0
      %v2450 = vmul.f32 %v2449, %v1887
      %v2451 = vand.u32 2147483647, %v1887
      %vm2452 = vcmp.lt.f32.partialorder %v2451, 0.0004427343
      %v2453 = vsel %vm2452, %v2450, %v2447
      %v2454 = vadd.f32 %v1889, 1.0
      %v2455 = vlog2.pop %v2454
      %v2456 = vmul.f32 %v2455, 0.6931472
      %v2457 = vmul.f32 -0.5, %v1889
      %v2458 = vadd.f32 %v2457, 1.0
      %v2459 = vmul.f32 %v2458, %v1889
      %v2460 = vand.u32 2147483647, %v1889
      %vm2461 = vcmp.lt.f32.partialorder %v2460, 0.0004427343
      %v2462 = vsel %vm2461, %v2459, %v2456
      %v2463 = vadd.f32 %v1891, 1.0
      %v2464 = vlog2.pop %v2463
      %v2465 = vmul.f32 %v2464, 0.6931472
      %v2466 = vmul.f32 -0.5, %v1891
      %v2467 = vadd.f32 %v2466, 1.0
      %v2468 = vmul.f32 %v2467, %v1891
      %v2469 = vand.u32 2147483647, %v1891
      %vm2470 = vcmp.lt.f32.partialorder %v2469, 0.0004427343
      %v2471 = vsel %vm2470, %v2468, %v2465
      %v2472 = vadd.f32 %v1893, 1.0
      %v2473 = vlog2.pop %v2472
      %v2474 = vmul.f32 %v2473, 0.6931472
      %v2475 = vmul.f32 -0.5, %v1893
      %v2476 = vadd.f32 %v2475, 1.0
      %v2477 = vmul.f32 %v2476, %v1893
      %v2478 = vand.u32 2147483647, %v1893
      %vm2479 = vcmp.lt.f32.partialorder %v2478, 0.0004427343
      %v2480 = vsel %vm2479, %v2477, %v2474
      %v2481 = vadd.f32 %v1895, 1.0
      %v2482 = vlog2.pop %v2481
      %v2483 = vmul.f32 %v2482, 0.6931472
      %v2484 = vmul.f32 -0.5, %v1895
      %v2485 = vadd.f32 %v2484, 1.0
      %v2486 = vmul.f32 %v2485, %v1895
      %v2487 = vand.u32 2147483647, %v1895
      %vm2488 = vcmp.lt.f32.partialorder %v2487, 0.0004427343
      %v2489 = vsel %vm2488, %v2486, %v2483
      %v2490 = vadd.f32 %v1897, 1.0
      %v2491 = vlog2.pop %v2490
      %v2492 = vmul.f32 %v2491, 0.6931472
      %v2493 = vmul.f32 -0.5, %v1897
      %v2494 = vadd.f32 %v2493, 1.0
      %v2495 = vmul.f32 %v2494, %v1897
      %v2496 = vand.u32 2147483647, %v1897
      %vm2497 = vcmp.lt.f32.partialorder %v2496, 0.0004427343
      %v2498 = vsel %vm2497, %v2495, %v2492
      %v2499 = vadd.f32 %v1899, 1.0
      %v2500 = vlog2.pop %v2499
      %v2501 = vmul.f32 %v2500, 0.6931472
      %v2502 = vmul.f32 -0.5, %v1899
      %v2503 = vadd.f32 %v2502, 1.0
      %v2504 = vmul.f32 %v2503, %v1899
      %v2505 = vand.u32 2147483647, %v1899
      %vm2506 = vcmp.lt.f32.partialorder %v2505, 0.0004427343
      %v2507 = vsel %vm2506, %v2504, %v2501
      %v2508 = vadd.f32 %v1901, 1.0
      %v2509 = vlog2.pop %v2508
      %v2510 = vmul.f32 %v2509, 0.6931472
      %v2511 = vmul.f32 -0.5, %v1901
      %v2512 = vadd.f32 %v2511, 1.0
      %v2513 = vmul.f32 %v2512, %v1901
      %v2514 = vand.u32 2147483647, %v1901
      %vm2515 = vcmp.lt.f32.partialorder %v2514, 0.0004427343
      %v2516 = vsel %vm2515, %v2513, %v2510
      %v2517 = vadd.f32 %v1903, 1.0
      %v2518 = vlog2.pop %v2517
      %v2519 = vmul.f32 %v2518, 0.6931472
      %v2520 = vmul.f32 -0.5, %v1903
      %v2521 = vadd.f32 %v2520, 1.0
      %v2522 = vmul.f32 %v2521, %v1903
      %v2523 = vand.u32 2147483647, %v1903
      %vm2524 = vcmp.lt.f32.partialorder %v2523, 0.0004427343
      %v2525 = vsel %vm2524, %v2522, %v2519
      %v2526 = vadd.f32 %v1905, 1.0
      %v2527 = vlog2.pop %v2526
      %v2528 = vmul.f32 %v2527, 0.6931472
      %v2529 = vmul.f32 -0.5, %v1905
      %v2530 = vadd.f32 %v2529, 1.0
      %v2531 = vmul.f32 %v2530, %v1905
      %v2532 = vand.u32 2147483647, %v1905
      %vm2533 = vcmp.lt.f32.partialorder %v2532, 0.0004427343
      %v2534 = vsel %vm2533, %v2531, %v2528
      %v2535 = vadd.f32 %v1907, 1.0
      %v2536 = vlog2.pop %v2535
      %v2537 = vmul.f32 %v2536, 0.6931472
      %v2538 = vmul.f32 -0.5, %v1907
      %v2539 = vadd.f32 %v2538, 1.0
      %v2540 = vmul.f32 %v2539, %v1907
      %v2541 = vand.u32 2147483647, %v1907
      %vm2542 = vcmp.lt.f32.partialorder %v2541, 0.0004427343
      %v2543 = vsel %vm2542, %v2540, %v2537
      %v2544 = vadd.f32 %v1909, 1.0
      %v2545 = vlog2.pop %v2544
      %v2546 = vmul.f32 %v2545, 0.6931472
      %v2547 = vmul.f32 -0.5, %v1909
      %v2548 = vadd.f32 %v2547, 1.0
      %v2549 = vmul.f32 %v2548, %v1909
      %v2550 = vand.u32 2147483647, %v1909
      %vm2551 = vcmp.lt.f32.partialorder %v2550, 0.0004427343
      %v2552 = vsel %vm2551, %v2549, %v2546
      %v2553 = vadd.f32 %v1911, 1.0
      %v2554 = vlog2.pop %v2553
      %v2555 = vmul.f32 %v2554, 0.6931472
      %v2556 = vmul.f32 -0.5, %v1911
      %v2557 = vadd.f32 %v2556, 1.0
      %v2558 = vmul.f32 %v2557, %v1911
      %v2559 = vand.u32 2147483647, %v1911
      %vm2560 = vcmp.lt.f32.partialorder %v2559, 0.0004427343
      %v2561 = vsel %vm2560, %v2558, %v2555
      %v2562 = vadd.f32 %v1913, 1.0
      %v2563 = vlog2.pop %v2562
      %v2564 = vmul.f32 %v2563, 0.6931472
      %v2565 = vmul.f32 -0.5, %v1913
      %v2566 = vadd.f32 %v2565, 1.0
      %v2567 = vmul.f32 %v2566, %v1913
      %v2568 = vand.u32 2147483647, %v1913
      %vm2569 = vcmp.lt.f32.partialorder %v2568, 0.0004427343
      %v2570 = vsel %vm2569, %v2567, %v2564
      %v2571 = vadd.f32 %v1915, 1.0
      %v2572 = vlog2.pop %v2571
      %v2573 = vmul.f32 %v2572, 0.6931472
      %v2574 = vmul.f32 -0.5, %v1915
      %v2575 = vadd.f32 %v2574, 1.0
      %v2576 = vmul.f32 %v2575, %v1915
      %v2577 = vand.u32 2147483647, %v1915
      %vm2578 = vcmp.lt.f32.partialorder %v2577, 0.0004427343
      %v2579 = vsel %vm2578, %v2576, %v2573
      %v2580 = vadd.f32 %v1917, 1.0
      %v2581 = vlog2.pop %v2580
      %v2582 = vmul.f32 %v2581, 0.6931472
      %v2583 = vmul.f32 -0.5, %v1917
      %v2584 = vadd.f32 %v2583, 1.0
      %v2585 = vmul.f32 %v2584, %v1917
      %v2586 = vand.u32 2147483647, %v1917
      %vm2587 = vcmp.lt.f32.partialorder %v2586, 0.0004427343
      %v2588 = vsel %vm2587, %v2585, %v2582
      %v2589 = vadd.f32 %v1919, 1.0
      %v2590 = vlog2.pop %v2589
      %v2591 = vmul.f32 %v2590, 0.6931472
      %v2592 = vmul.f32 -0.5, %v1919
      %v2593 = vadd.f32 %v2592, 1.0
      %v2594 = vmul.f32 %v2593, %v1919
      %v2595 = vand.u32 2147483647, %v1919
      %vm2596 = vcmp.lt.f32.partialorder %v2595, 0.0004427343
      %v2597 = vsel %vm2596, %v2594, %v2591
      %v2598 = vadd.f32 %v1921, 1.0
      %v2599 = vlog2.pop %v2598
      %v2600 = vmul.f32 %v2599, 0.6931472
      %v2601 = vmul.f32 -0.5, %v1921
      %v2602 = vadd.f32 %v2601, 1.0
      %v2603 = vmul.f32 %v2602, %v1921
      %v2604 = vand.u32 2147483647, %v1921
      %vm2605 = vcmp.lt.f32.partialorder %v2604, 0.0004427343
      %v2606 = vsel %vm2605, %v2603, %v2600
      %v2607 = vadd.f32 %v1923, 1.0
      %v2608 = vlog2.pop %v2607
      %v2609 = vmul.f32 %v2608, 0.6931472
      %v2610 = vmul.f32 -0.5, %v1923
      %v2611 = vadd.f32 %v2610, 1.0
      %v2612 = vmul.f32 %v2611, %v1923
      %v2613 = vand.u32 2147483647, %v1923
      %vm2614 = vcmp.lt.f32.partialorder %v2613, 0.0004427343
      %v2615 = vsel %vm2614, %v2612, %v2609
      %v2616 = vadd.f32 %v1925, 1.0
      %v2617 = vlog2.pop %v2616
      %v2618 = vmul.f32 %v2617, 0.6931472
      %v2619 = vmul.f32 -0.5, %v1925
      %v2620 = vadd.f32 %v2619, 1.0
      %v2621 = vmul.f32 %v2620, %v1925
      %v2622 = vand.u32 2147483647, %v1925
      %vm2623 = vcmp.lt.f32.partialorder %v2622, 0.0004427343
      %v2624 = vsel %vm2623, %v2621, %v2618
      %v2625 = vadd.f32 %v1927, 1.0
      %v2626 = vlog2.pop %v2625
      %v2627 = vmul.f32 %v2626, 0.6931472
      %v2628 = vmul.f32 -0.5, %v1927
      %v2629 = vadd.f32 %v2628, 1.0
      %v2630 = vmul.f32 %v2629, %v1927
      %v2631 = vand.u32 2147483647, %v1927
      %vm2632 = vcmp.lt.f32.partialorder %v2631, 0.0004427343
      %v2633 = vsel %vm2632, %v2630, %v2627
      %v2634 = vadd.f32 %v1929, 1.0
      %v2635 = vlog2.pop %v2634
      %v2636 = vmul.f32 %v2635, 0.6931472
      %v2637 = vmul.f32 -0.5, %v1929
      %v2638 = vadd.f32 %v2637, 1.0
      %v2639 = vmul.f32 %v2638, %v1929
      %v2640 = vand.u32 2147483647, %v1929
      %vm2641 = vcmp.lt.f32.partialorder %v2640, 0.0004427343
      %v2642 = vsel %vm2641, %v2639, %v2636
      %v2643 = vadd.f32 %v1931, 1.0
      %v2644 = vlog2.pop %v2643
      %v2645 = vmul.f32 %v2644, 0.6931472
      %v2646 = vmul.f32 -0.5, %v1931
      %v2647 = vadd.f32 %v2646, 1.0
      %v2648 = vmul.f32 %v2647, %v1931
      %v2649 = vand.u32 2147483647, %v1931
      %vm2650 = vcmp.lt.f32.partialorder %v2649, 0.0004427343
      %v2651 = vsel %vm2650, %v2648, %v2645
      %v2652 = vadd.f32 %v1933, 1.0
      %v2653 = vlog2.pop %v2652
      %v2654 = vmul.f32 %v2653, 0.6931472
      %v2655 = vmul.f32 -0.5, %v1933
      %v2656 = vadd.f32 %v2655, 1.0
      %v2657 = vmul.f32 %v2656, %v1933
      %v2658 = vand.u32 2147483647, %v1933
      %vm2659 = vcmp.lt.f32.partialorder %v2658, 0.0004427343
      %v2660 = vsel %vm2659, %v2657, %v2654
      %v2661 = vadd.f32 %v1935, 1.0
      %v2662 = vlog2.pop %v2661
      %v2663 = vmul.f32 %v2662, 0.6931472
      %v2664 = vmul.f32 -0.5, %v1935
      %v2665 = vadd.f32 %v2664, 1.0
      %v2666 = vmul.f32 %v2665, %v1935
      %v2667 = vand.u32 2147483647, %v1935
      %vm2668 = vcmp.lt.f32.partialorder %v2667, 0.0004427343
      %v2669 = vsel %vm2668, %v2666, %v2663
      %v2670 = vadd.f32 %v1937, 1.0
      %v2671 = vlog2.pop %v2670
      %v2672 = vmul.f32 %v2671, 0.6931472
      %v2673 = vmul.f32 -0.5, %v1937
      %v2674 = vadd.f32 %v2673, 1.0
      %v2675 = vmul.f32 %v2674, %v1937
      %v2676 = vand.u32 2147483647, %v1937
      %vm2677 = vcmp.lt.f32.partialorder %v2676, 0.0004427343
      %v2678 = vsel %vm2677, %v2675, %v2672
      %v2679 = vadd.f32 %v1939, 1.0
      %v2680 = vlog2.pop %v2679
      %v2681 = vmul.f32 %v2680, 0.6931472
      %v2682 = vmul.f32 -0.5, %v1939
      %v2683 = vadd.f32 %v2682, 1.0
      %v2684 = vmul.f32 %v2683, %v1939
      %v2685 = vand.u32 2147483647, %v1939
      %vm2686 = vcmp.lt.f32.partialorder %v2685, 0.0004427343
      %v2687 = vsel %vm2686, %v2684, %v2681
      %v2688 = vadd.f32 %v1941, 1.0
      %v2689 = vlog2.pop %v2688
      %v2690 = vmul.f32 %v2689, 0.6931472
      %v2691 = vmul.f32 -0.5, %v1941
      %v2692 = vadd.f32 %v2691, 1.0
      %v2693 = vmul.f32 %v2692, %v1941
      %v2694 = vand.u32 2147483647, %v1941
      %vm2695 = vcmp.lt.f32.partialorder %v2694, 0.0004427343
      %v2696 = vsel %vm2695, %v2693, %v2690
      %v2697 = vadd.f32 %v1943, 1.0
      %v2698 = vlog2.pop %v2697
      %v2699 = vmul.f32 %v2698, 0.6931472
      %v2700 = vmul.f32 -0.5, %v1943
      %v2701 = vadd.f32 %v2700, 1.0
      %v2702 = vmul.f32 %v2701, %v1943
      %v2703 = vand.u32 2147483647, %v1943
      %vm2704 = vcmp.lt.f32.partialorder %v2703, 0.0004427343
      %v2705 = vsel %vm2704, %v2702, %v2699
      %v2706 = vadd.f32 %v1945, 1.0
      %v2707 = vlog2.pop %v2706
      %v2708 = vmul.f32 %v2707, 0.6931472
      %v2709 = vmul.f32 -0.5, %v1945
      %v2710 = vadd.f32 %v2709, 1.0
      %v2711 = vmul.f32 %v2710, %v1945
      %v2712 = vand.u32 2147483647, %v1945
      %vm2713 = vcmp.lt.f32.partialorder %v2712, 0.0004427343
      %v2714 = vsel %vm2713, %v2711, %v2708
      %v2715 = vadd.f32 %v1947, 1.0
      %v2716 = vlog2.pop %v2715
      %v2717 = vmul.f32 %v2716, 0.6931472
      %v2718 = vmul.f32 -0.5, %v1947
      %v2719 = vadd.f32 %v2718, 1.0
      %v2720 = vmul.f32 %v2719, %v1947
      %v2721 = vand.u32 2147483647, %v1947
      %vm2722 = vcmp.lt.f32.partialorder %v2721, 0.0004427343
      %v2723 = vsel %vm2722, %v2720, %v2717
      %v2724 = vadd.f32 %v1949, 1.0
      %v2725 = vlog2.pop %v2724
      %v2726 = vmul.f32 %v2725, 0.6931472
      %v2727 = vmul.f32 -0.5, %v1949
      %v2728 = vadd.f32 %v2727, 1.0
      %v2729 = vmul.f32 %v2728, %v1949
      %v2730 = vand.u32 2147483647, %v1949
      %vm2731 = vcmp.lt.f32.partialorder %v2730, 0.0004427343
      %v2732 = vsel %vm2731, %v2729, %v2726
      %v2733 = vadd.f32 %v1951, 1.0
      %v2734 = vlog2.pop %v2733
      %v2735 = vmul.f32 %v2734, 0.6931472
      %v2736 = vmul.f32 -0.5, %v1951
      %v2737 = vadd.f32 %v2736, 1.0
      %v2738 = vmul.f32 %v2737, %v1951
      %v2739 = vand.u32 2147483647, %v1951
      %vm2740 = vcmp.lt.f32.partialorder %v2739, 0.0004427343
      %v2741 = vsel %vm2740, %v2738, %v2735
      %v2742 = vadd.f32 %v1953, 1.0
      %v2743 = vlog2.pop %v2742
      %v2744 = vmul.f32 %v2743, 0.6931472
      %v2745 = vmul.f32 -0.5, %v1953
      %v2746 = vadd.f32 %v2745, 1.0
      %v2747 = vmul.f32 %v2746, %v1953
      %v2748 = vand.u32 2147483647, %v1953
      %vm2749 = vcmp.lt.f32.partialorder %v2748, 0.0004427343
      %v2750 = vsel %vm2749, %v2747, %v2744
      %v2751 = vadd.f32 %v1955, 1.0
      %v2752 = vlog2.pop %v2751
      %v2753 = vmul.f32 %v2752, 0.6931472
      %v2754 = vmul.f32 -0.5, %v1955
      %v2755 = vadd.f32 %v2754, 1.0
      %v2756 = vmul.f32 %v2755, %v1955
      %v2757 = vand.u32 2147483647, %v1955
      %vm2758 = vcmp.lt.f32.partialorder %v2757, 0.0004427343
      %v2759 = vsel %vm2758, %v2756, %v2753
      %v2760 = vadd.f32 %v1957, 1.0
      %v2761 = vlog2.pop %v2760
      %v2762 = vmul.f32 %v2761, 0.6931472
      %v2763 = vmul.f32 -0.5, %v1957
      %v2764 = vadd.f32 %v2763, 1.0
      %v2765 = vmul.f32 %v2764, %v1957
      %v2766 = vand.u32 2147483647, %v1957
      %vm2767 = vcmp.lt.f32.partialorder %v2766, 0.0004427343
      %v2768 = vsel %vm2767, %v2765, %v2762
      %v2769 = vadd.f32 %v1959, 1.0
      %v2770 = vlog2.pop %v2769
      %v2771 = vmul.f32 %v2770, 0.6931472
      %v2772 = vmul.f32 -0.5, %v1959
      %v2773 = vadd.f32 %v2772, 1.0
      %v2774 = vmul.f32 %v2773, %v1959
      %v2775 = vand.u32 2147483647, %v1959
      %vm2776 = vcmp.lt.f32.partialorder %v2775, 0.0004427343
      %v2777 = vsel %vm2776, %v2774, %v2771
      %v2778 = vadd.f32 %v1961, 1.0
      %v2779 = vlog2.pop %v2778
      %v2780 = vmul.f32 %v2779, 0.6931472
      %v2781 = vmul.f32 -0.5, %v1961
      %v2782 = vadd.f32 %v2781, 1.0
      %v2783 = vmul.f32 %v2782, %v1961
      %v2784 = vand.u32 2147483647, %v1961
      %vm2785 = vcmp.lt.f32.partialorder %v2784, 0.0004427343
      %v2786 = vsel %vm2785, %v2783, %v2780
      %v2787 = vadd.f32 %v1963, 1.0
      %v2788 = vlog2.pop %v2787
      %v2789 = vmul.f32 %v2788, 0.6931472
      %v2790 = vmul.f32 -0.5, %v1963
      %v2791 = vadd.f32 %v2790, 1.0
      %v2792 = vmul.f32 %v2791, %v1963
      %v2793 = vand.u32 2147483647, %v1963
      %vm2794 = vcmp.lt.f32.partialorder %v2793, 0.0004427343
      %v2795 = vsel %vm2794, %v2792, %v2789
      %v2796 = vadd.f32 %v1965, 1.0
      %v2797 = vlog2.pop %v2796
      %v2798 = vmul.f32 %v2797, 0.6931472
      %v2799 = vmul.f32 -0.5, %v1965
      %v2800 = vadd.f32 %v2799, 1.0
      %v2801 = vmul.f32 %v2800, %v1965
      %v2802 = vand.u32 2147483647, %v1965
      %vm2803 = vcmp.lt.f32.partialorder %v2802, 0.0004427343
      %v2804 = vsel %vm2803, %v2801, %v2798
      %v2805 = vadd.f32 %v1967, 1.0
      %v2806 = vlog2.pop %v2805
      %v2807 = vmul.f32 %v2806, 0.6931472
      %v2808 = vmul.f32 -0.5, %v1967
      %v2809 = vadd.f32 %v2808, 1.0
      %v2810 = vmul.f32 %v2809, %v1967
      %v2811 = vand.u32 2147483647, %v1967
      %vm2812 = vcmp.lt.f32.partialorder %v2811, 0.0004427343
      %v2813 = vsel %vm2812, %v2810, %v2807
      %v2814 = vadd.f32 %v1969, 1.0
      %v2815 = vlog2.pop %v2814
      %v2816 = vmul.f32 %v2815, 0.6931472
      %v2817 = vmul.f32 -0.5, %v1969
      %v2818 = vadd.f32 %v2817, 1.0
      %v2819 = vmul.f32 %v2818, %v1969
      %v2820 = vand.u32 2147483647, %v1969
      %vm2821 = vcmp.lt.f32.partialorder %v2820, 0.0004427343
      %v2822 = vsel %vm2821, %v2819, %v2816
      %v2823 = vadd.f32 %v1971, 1.0
      %v2824 = vlog2.pop %v2823
      %v2825 = vmul.f32 %v2824, 0.6931472
      %v2826 = vmul.f32 -0.5, %v1971
      %v2827 = vadd.f32 %v2826, 1.0
      %v2828 = vmul.f32 %v2827, %v1971
      %v2829 = vand.u32 2147483647, %v1971
      %vm2830 = vcmp.lt.f32.partialorder %v2829, 0.0004427343
      %v2831 = vsel %vm2830, %v2828, %v2825
      %v2832 = vadd.f32 %v1973, 1.0
      %v2833 = vlog2.pop %v2832
      %v2834 = vmul.f32 %v2833, 0.6931472
      %v2835 = vmul.f32 -0.5, %v1973
      %v2836 = vadd.f32 %v2835, 1.0
      %v2837 = vmul.f32 %v2836, %v1973
      %v2838 = vand.u32 2147483647, %v1973
      %vm2839 = vcmp.lt.f32.partialorder %v2838, 0.0004427343
      %v2840 = vsel %vm2839, %v2837, %v2834
      %v2841 = vadd.f32 %v1975, 1.0
      %v2842 = vlog2.pop %v2841
      %v2843 = vmul.f32 %v2842, 0.6931472
      %v2844 = vmul.f32 -0.5, %v1975
      %v2845 = vadd.f32 %v2844, 1.0
      %v2846 = vmul.f32 %v2845, %v1975
      %v2847 = vand.u32 2147483647, %v1975
      %vm2848 = vcmp.lt.f32.partialorder %v2847, 0.0004427343
      %v2849 = vsel %vm2848, %v2846, %v2843
      %v2850 = vadd.f32 %v1977, 1.0
      %v2851 = vlog2.pop %v2850
      %v2852 = vmul.f32 %v2851, 0.6931472
      %v2853 = vmul.f32 -0.5, %v1977
      %v2854 = vadd.f32 %v2853, 1.0
      %v2855 = vmul.f32 %v2854, %v1977
      %v2856 = vand.u32 2147483647, %v1977
      %vm2857 = vcmp.lt.f32.partialorder %v2856, 0.0004427343
      %v2858 = vsel %vm2857, %v2855, %v2852
      %v2859 = vadd.f32 %v1979, 1.0
      %v2860 = vlog2.pop %v2859
      %v2861 = vmul.f32 %v2860, 0.6931472
      %v2862 = vmul.f32 -0.5, %v1979
      %v2863 = vadd.f32 %v2862, 1.0
      %v2864 = vmul.f32 %v2863, %v1979
      %v2865 = vand.u32 2147483647, %v1979
      %vm2866 = vcmp.lt.f32.partialorder %v2865, 0.0004427343
      %v2867 = vsel %vm2866, %v2864, %v2861
      %v2868 = vadd.f32 %v1981, 1.0
      %v2869 = vlog2.pop %v2868
      %v2870 = vmul.f32 %v2869, 0.6931472
      %v2871 = vmul.f32 -0.5, %v1981
      %v2872 = vadd.f32 %v2871, 1.0
      %v2873 = vmul.f32 %v2872, %v1981
      %v2874 = vand.u32 2147483647, %v1981
      %vm2875 = vcmp.lt.f32.partialorder %v2874, 0.0004427343
      %v2876 = vsel %vm2875, %v2873, %v2870
      %v2877 = vadd.f32 %v1983, 1.0
      %v2878 = vlog2.pop %v2877
      %v2879 = vmul.f32 %v2878, 0.6931472
      %v2880 = vmul.f32 -0.5, %v1983
      %v2881 = vadd.f32 %v2880, 1.0
      %v2882 = vmul.f32 %v2881, %v1983
      %v2883 = vand.u32 2147483647, %v1983
      %vm2884 = vcmp.lt.f32.partialorder %v2883, 0.0004427343
      %v2885 = vsel %vm2884, %v2882, %v2879
      %v2886 = vadd.f32 %v1985, 1.0
      %v2887 = vlog2.pop %v2886
      %v2888 = vmul.f32 %v2887, 0.6931472
      %v2889 = vmul.f32 -0.5, %v1985
      %v2890 = vadd.f32 %v2889, 1.0
      %v2891 = vmul.f32 %v2890, %v1985
      %v2892 = vand.u32 2147483647, %v1985
      %vm2893 = vcmp.lt.f32.partialorder %v2892, 0.0004427343
      %v2894 = vsel %vm2893, %v2891, %v2888
      %v2895 = vadd.f32 %v1987, 1.0
      %v2896 = vlog2.pop %v2895
      %v2897 = vmul.f32 %v2896, 0.6931472
      %v2898 = vmul.f32 -0.5, %v1987
      %v2899 = vadd.f32 %v2898, 1.0
      %v2900 = vmul.f32 %v2899, %v1987
      %v2901 = vand.u32 2147483647, %v1987
      %vm2902 = vcmp.lt.f32.partialorder %v2901, 0.0004427343
      %v2903 = vsel %vm2902, %v2900, %v2897
      %v2904 = vadd.f32 %v1989, 1.0
      %v2905 = vlog2.pop %v2904
      %v2906 = vmul.f32 %v2905, 0.6931472
      %v2907 = vmul.f32 -0.5, %v1989
      %v2908 = vadd.f32 %v2907, 1.0
      %v2909 = vmul.f32 %v2908, %v1989
      %v2910 = vand.u32 2147483647, %v1989
      %vm2911 = vcmp.lt.f32.partialorder %v2910, 0.0004427343
      %v2912 = vsel %vm2911, %v2909, %v2906
      %v2913 = vadd.f32 %v1991, 1.0
      %v2914 = vlog2.pop %v2913
      %v2915 = vmul.f32 %v2914, 0.6931472
      %v2916 = vmul.f32 -0.5, %v1991
      %v2917 = vadd.f32 %v2916, 1.0
      %v2918 = vmul.f32 %v2917, %v1991
      %v2919 = vand.u32 2147483647, %v1991
      %vm2920 = vcmp.lt.f32.partialorder %v2919, 0.0004427343
      %v2921 = vsel %vm2920, %v2918, %v2915
      %v2922 = vadd.f32 %v1993, 1.0
      %v2923 = vlog2.pop %v2922
      %v2924 = vmul.f32 %v2923, 0.6931472
      %v2925 = vmul.f32 -0.5, %v1993
      %v2926 = vadd.f32 %v2925, 1.0
      %v2927 = vmul.f32 %v2926, %v1993
      %v2928 = vand.u32 2147483647, %v1993
      %vm2929 = vcmp.lt.f32.partialorder %v2928, 0.0004427343
      %v2930 = vsel %vm2929, %v2927, %v2924
      %v2931 = vadd.f32 %v1995, 1.0
      %v2932 = vlog2.pop %v2931
      %v2933 = vmul.f32 %v2932, 0.6931472
      %v2934 = vmul.f32 -0.5, %v1995
      %v2935 = vadd.f32 %v2934, 1.0
      %v2936 = vmul.f32 %v2935, %v1995
      %v2937 = vand.u32 2147483647, %v1995
      %vm2938 = vcmp.lt.f32.partialorder %v2937, 0.0004427343
      %v2939 = vsel %vm2938, %v2936, %v2933
      %v2940 = vadd.f32 %v1997, 1.0
      %v2941 = vlog2.pop %v2940
      %v2942 = vmul.f32 %v2941, 0.6931472
      %v2943 = vmul.f32 -0.5, %v1997
      %v2944 = vadd.f32 %v2943, 1.0
      %v2945 = vmul.f32 %v2944, %v1997
      %v2946 = vand.u32 2147483647, %v1997
      %vm2947 = vcmp.lt.f32.partialorder %v2946, 0.0004427343
      %v2948 = vsel %vm2947, %v2945, %v2942
      %v2949 = vadd.f32 %v1999, 1.0
      %v2950 = vlog2.pop %v2949
      %v2951 = vmul.f32 %v2950, 0.6931472
      %v2952 = vmul.f32 -0.5, %v1999
      %v2953 = vadd.f32 %v2952, 1.0
      %v2954 = vmul.f32 %v2953, %v1999
      %v2955 = vand.u32 2147483647, %v1999
      %vm2956 = vcmp.lt.f32.partialorder %v2955, 0.0004427343
      %v2957 = vsel %vm2956, %v2954, %v2951
      %v2958 = vadd.f32 %v2001, 1.0
      %v2959 = vlog2.pop %v2958
      %v2960 = vmul.f32 %v2959, 0.6931472
      %v2961 = vmul.f32 -0.5, %v2001
      %v2962 = vadd.f32 %v2961, 1.0
      %v2963 = vmul.f32 %v2962, %v2001
      %v2964 = vand.u32 2147483647, %v2001
      %vm2965 = vcmp.lt.f32.partialorder %v2964, 0.0004427343
      %v2966 = vsel %vm2965, %v2963, %v2960
      %v2967 = vadd.f32 %v2003, 1.0
      %v2968 = vlog2.pop %v2967
      %v2969 = vmul.f32 %v2968, 0.6931472
      %v2970 = vmul.f32 -0.5, %v2003
      %v2971 = vadd.f32 %v2970, 1.0
      %v2972 = vmul.f32 %v2971, %v2003
      %v2973 = vand.u32 2147483647, %v2003
      %vm2974 = vcmp.lt.f32.partialorder %v2973, 0.0004427343
      %v2975 = vsel %vm2974, %v2972, %v2969
      %v2976 = vadd.f32 %v2005, 1.0
      %v2977 = vlog2.pop %v2976
      %v2978 = vmul.f32 %v2977, 0.6931472
      %v2979 = vmul.f32 -0.5, %v2005
      %v2980 = vadd.f32 %v2979, 1.0
      %v2981 = vmul.f32 %v2980, %v2005
      %v2982 = vand.u32 2147483647, %v2005
      %vm2983 = vcmp.lt.f32.partialorder %v2982, 0.0004427343
      %v2984 = vsel %vm2983, %v2981, %v2978
      %v2985 = vadd.f32 %v2007, 1.0
      %v2986 = vlog2.pop %v2985
      %v2987 = vmul.f32 %v2986, 0.6931472
      %v2988 = vmul.f32 -0.5, %v2007
      %v2989 = vadd.f32 %v2988, 1.0
      %v2990 = vmul.f32 %v2989, %v2007
      %v2991 = vand.u32 2147483647, %v2007
      %vm2992 = vcmp.lt.f32.partialorder %v2991, 0.0004427343
      %v2993 = vsel %vm2992, %v2990, %v2987
      %v2994 = vadd.f32 %v2009, 1.0
      %v2995 = vlog2.pop %v2994
      %v2996 = vmul.f32 %v2995, 0.6931472
      %v2997 = vmul.f32 -0.5, %v2009
      %v2998 = vadd.f32 %v2997, 1.0
      %v2999 = vmul.f32 %v2998, %v2009
      %v3000 = vand.u32 2147483647, %v2009
      %vm3001 = vcmp.lt.f32.partialorder %v3000, 0.0004427343
      %v3002 = vsel %vm3001, %v2999, %v2996
      %v3003 = vadd.f32 %v2011, 1.0
      %v3004 = vlog2.pop %v3003
      %v3005 = vmul.f32 %v3004, 0.6931472
      %v3006 = vmul.f32 -0.5, %v2011
      %v3007 = vadd.f32 %v3006, 1.0
      %v3008 = vmul.f32 %v3007, %v2011
      %v3009 = vand.u32 2147483647, %v2011
      %vm3010 = vcmp.lt.f32.partialorder %v3009, 0.0004427343
      %v3011 = vsel %vm3010, %v3008, %v3005
      %v3012 = vadd.f32 %v2013, 1.0
      %v3013 = vlog2.pop %v3012
      %v3014 = vmul.f32 %v3013, 0.6931472
      %v3015 = vmul.f32 -0.5, %v2013
      %v3016 = vadd.f32 %v3015, 1.0
      %v3017 = vmul.f32 %v3016, %v2013
      %v3018 = vand.u32 2147483647, %v2013
      %vm3019 = vcmp.lt.f32.partialorder %v3018, 0.0004427343
      %v3020 = vsel %vm3019, %v3017, %v3014
      %v3021 = vadd.f32 %v2015, 1.0
      %v3022 = vlog2.pop %v3021
      %v3023 = vmul.f32 %v3022, 0.6931472
      %v3024 = vmul.f32 -0.5, %v2015
      %v3025 = vadd.f32 %v3024, 1.0
      %v3026 = vmul.f32 %v3025, %v2015
      %v3027 = vand.u32 2147483647, %v2015
      %vm3028 = vcmp.lt.f32.partialorder %v3027, 0.0004427343
      %v3029 = vsel %vm3028, %v3026, %v3023
      %v3030 = vadd.f32 %v2017, 1.0
      %v3031 = vlog2.pop %v3030
      %v3032 = vmul.f32 %v3031, 0.6931472
      %v3033 = vmul.f32 -0.5, %v2017
      %v3034 = vadd.f32 %v3033, 1.0
      %v3035 = vmul.f32 %v3034, %v2017
      %v3036 = vand.u32 2147483647, %v2017
      %vm3037 = vcmp.lt.f32.partialorder %v3036, 0.0004427343
      %v3038 = vsel %vm3037, %v3035, %v3032
      %v3039 = vadd.f32 %v2019, 1.0
      %v3040 = vlog2.pop %v3039
      %v3041 = vmul.f32 %v3040, 0.6931472
      %v3042 = vmul.f32 -0.5, %v2019
      %v3043 = vadd.f32 %v3042, 1.0
      %v3044 = vmul.f32 %v3043, %v2019
      %v3045 = vand.u32 2147483647, %v2019
      %vm3046 = vcmp.lt.f32.partialorder %v3045, 0.0004427343
      %v3047 = vsel %vm3046, %v3044, %v3041
      %v3048 = vadd.f32 %v2021, 1.0
      %v3049 = vlog2.pop %v3048
      %v3050 = vmul.f32 %v3049, 0.6931472
      %v3051 = vmul.f32 -0.5, %v2021
      %v3052 = vadd.f32 %v3051, 1.0
      %v3053 = vmul.f32 %v3052, %v2021
      %v3054 = vand.u32 2147483647, %v2021
      %vm3055 = vcmp.lt.f32.partialorder %v3054, 0.0004427343
      %v3056 = vsel %vm3055, %v3053, %v3050
      %v3057 = vadd.f32 %v2023, 1.0
      %v3058 = vlog2.pop %v3057
      %v3059 = vmul.f32 %v3058, 0.6931472
      %v3060 = vmul.f32 -0.5, %v2023
      %v3061 = vadd.f32 %v3060, 1.0
      %v3062 = vmul.f32 %v3061, %v2023
      %v3063 = vand.u32 2147483647, %v2023
      %vm3064 = vcmp.lt.f32.partialorder %v3063, 0.0004427343
      %v3065 = vsel %vm3064, %v3062, %v3059
      %v3066 = vadd.f32 %v2025, 1.0
      %v3067 = vlog2.pop %v3066
      %v3068 = vmul.f32 %v3067, 0.6931472
      %v3069 = vmul.f32 -0.5, %v2025
      %v3070 = vadd.f32 %v3069, 1.0
      %v3071 = vmul.f32 %v3070, %v2025
      %v3072 = vand.u32 2147483647, %v2025
      %vm3073 = vcmp.lt.f32.partialorder %v3072, 0.0004427343
      %v3074 = vsel %vm3073, %v3071, %v3068
      %v3075 = vadd.f32 %v2027, 1.0
      %v3076 = vlog2.pop %v3075
      %v3077 = vmul.f32 %v3076, 0.6931472
      %v3078 = vmul.f32 -0.5, %v2027
      %v3079 = vadd.f32 %v3078, 1.0
      %v3080 = vmul.f32 %v3079, %v2027
      %v3081 = vand.u32 2147483647, %v2027
      %vm3082 = vcmp.lt.f32.partialorder %v3081, 0.0004427343
      %v3083 = vsel %vm3082, %v3080, %v3077
      %v3084 = vadd.f32 %v2029, 1.0
      %v3085 = vlog2.pop %v3084
      %v3086 = vmul.f32 %v3085, 0.6931472
      %v3087 = vmul.f32 -0.5, %v2029
      %v3088 = vadd.f32 %v3087, 1.0
      %v3089 = vmul.f32 %v3088, %v2029
      %v3090 = vand.u32 2147483647, %v2029
      %vm3091 = vcmp.lt.f32.partialorder %v3090, 0.0004427343
      %v3092 = vsel %vm3091, %v3089, %v3086
      %v3093 = vadd.f32 %v2031, 1.0
      %v3094 = vlog2.pop %v3093
      %v3095 = vmul.f32 %v3094, 0.6931472
      %v3096 = vmul.f32 -0.5, %v2031
      %v3097 = vadd.f32 %v3096, 1.0
      %v3098 = vmul.f32 %v3097, %v2031
      %v3099 = vand.u32 2147483647, %v2031
      %vm3100 = vcmp.lt.f32.partialorder %v3099, 0.0004427343
      %v3101 = vsel %vm3100, %v3098, %v3095
      %v3102 = vadd.f32 %v2033, 1.0
      %v3103 = vlog2.pop %v3102
      %v3104 = vmul.f32 %v3103, 0.6931472
      %v3105 = vmul.f32 -0.5, %v2033
      %v3106 = vadd.f32 %v3105, 1.0
      %v3107 = vmul.f32 %v3106, %v2033
      %v3108 = vand.u32 2147483647, %v2033
      %vm3109 = vcmp.lt.f32.partialorder %v3108, 0.0004427343
      %v3110 = vsel %vm3109, %v3107, %v3104
      %v3111 = vadd.f32 %v2035, 1.0
      %v3112 = vlog2.pop %v3111
      %v3113 = vmul.f32 %v3112, 0.6931472
      %v3114 = vmul.f32 -0.5, %v2035
      %v3115 = vadd.f32 %v3114, 1.0
      %v3116 = vmul.f32 %v3115, %v2035
      %v3117 = vand.u32 2147483647, %v2035
      %vm3118 = vcmp.lt.f32.partialorder %v3117, 0.0004427343
      %v3119 = vsel %vm3118, %v3116, %v3113
      %v3120 = vadd.f32 %v2037, 1.0
      %v3121 = vlog2.pop %v3120
      %v3122 = vmul.f32 %v3121, 0.6931472
      %v3123 = vmul.f32 -0.5, %v2037
      %v3124 = vadd.f32 %v3123, 1.0
      %v3125 = vmul.f32 %v3124, %v2037
      %v3126 = vand.u32 2147483647, %v2037
      %vm3127 = vcmp.lt.f32.partialorder %v3126, 0.0004427343
      %v3128 = vsel %vm3127, %v3125, %v3122
      %v3129 = vadd.f32 %v2039, 1.0
      %v3130 = vlog2.pop %v3129
      %v3131 = vmul.f32 %v3130, 0.6931472
      %v3132 = vmul.f32 -0.5, %v2039
      %v3133 = vadd.f32 %v3132, 1.0
      %v3134 = vmul.f32 %v3133, %v2039
      %v3135 = vand.u32 2147483647, %v2039
      %vm3136 = vcmp.lt.f32.partialorder %v3135, 0.0004427343
      %v3137 = vsel %vm3136, %v3134, %v3131
      %v3138 = vadd.f32 %v2041, 1.0
      %v3139 = vlog2.pop %v3138
      %v3140 = vmul.f32 %v3139, 0.6931472
      %v3141 = vmul.f32 -0.5, %v2041
      %v3142 = vadd.f32 %v3141, 1.0
      %v3143 = vmul.f32 %v3142, %v2041
      %v3144 = vand.u32 2147483647, %v2041
      %vm3145 = vcmp.lt.f32.partialorder %v3144, 0.0004427343
      %v3146 = vsel %vm3145, %v3143, %v3140
      %v3147 = vadd.f32 %v2043, 1.0
      %v3148 = vlog2.pop %v3147
      %v3149 = vmul.f32 %v3148, 0.6931472
      %v3150 = vmul.f32 -0.5, %v2043
      %v3151 = vadd.f32 %v3150, 1.0
      %v3152 = vmul.f32 %v3151, %v2043
      %v3153 = vand.u32 2147483647, %v2043
      %vm3154 = vcmp.lt.f32.partialorder %v3153, 0.0004427343
      %v3155 = vsel %vm3154, %v3152, %v3149
      %v3156 = vadd.f32 %v2045, 1.0
      %v3157 = vlog2.pop %v3156
      %v3158 = vmul.f32 %v3157, 0.6931472
      %v3159 = vmul.f32 -0.5, %v2045
      %v3160 = vadd.f32 %v3159, 1.0
      %v3161 = vmul.f32 %v3160, %v2045
      %v3162 = vand.u32 2147483647, %v2045
      %vm3163 = vcmp.lt.f32.partialorder %v3162, 0.0004427343
      %v3164 = vsel %vm3163, %v3161, %v3158
      %v3165 = vadd.f32 %v2047, 1.0
      %v3166 = vlog2.pop %v3165
      %v3167 = vmul.f32 %v3166, 0.6931472
      %v3168 = vmul.f32 -0.5, %v2047
      %v3169 = vadd.f32 %v3168, 1.0
      %v3170 = vmul.f32 %v3169, %v2047
      %v3171 = vand.u32 2147483647, %v2047
      %vm3172 = vcmp.lt.f32.partialorder %v3171, 0.0004427343
      %v3173 = vsel %vm3172, %v3170, %v3167
      %v3174 = vadd.f32 %v2049, 1.0
      %v3175 = vlog2.pop %v3174
      %v3176 = vmul.f32 %v3175, 0.6931472
      %v3177 = vmul.f32 -0.5, %v2049
      %v3178 = vadd.f32 %v3177, 1.0
      %v3179 = vmul.f32 %v3178, %v2049
      %v3180 = vand.u32 2147483647, %v2049
      %vm3181 = vcmp.lt.f32.partialorder %v3180, 0.0004427343
      %v3182 = vsel %vm3181, %v3179, %v3176
      %v3183 = vadd.f32 %v2051, 1.0
      %v3184 = vlog2.pop %v3183
      %v3185 = vmul.f32 %v3184, 0.6931472
      %v3186 = vmul.f32 -0.5, %v2051
      %v3187 = vadd.f32 %v3186, 1.0
      %v3188 = vmul.f32 %v3187, %v2051
      %v3189 = vand.u32 2147483647, %v2051
      %vm3190 = vcmp.lt.f32.partialorder %v3189, 0.0004427343
      %v3191 = vsel %vm3190, %v3188, %v3185
      %v3192 = vadd.f32 %v2053, 1.0
      %v3193 = vlog2.pop %v3192
      %v3194 = vmul.f32 %v3193, 0.6931472
      %v3195 = vmul.f32 -0.5, %v2053
      %v3196 = vadd.f32 %v3195, 1.0
      %v3197 = vmul.f32 %v3196, %v2053
      %v3198 = vand.u32 2147483647, %v2053
      %vm3199 = vcmp.lt.f32.partialorder %v3198, 0.0004427343
      %v3200 = vsel %vm3199, %v3197, %v3194
      %v3201 = vadd.f32 %v2055, 1.0
      %v3202 = vlog2.pop %v3201
      %v3203 = vmul.f32 %v3202, 0.6931472
      %v3204 = vmul.f32 -0.5, %v2055
      %v3205 = vadd.f32 %v3204, 1.0
      %v3206 = vmul.f32 %v3205, %v2055
      %v3207 = vand.u32 2147483647, %v2055
      %vm3208 = vcmp.lt.f32.partialorder %v3207, 0.0004427343
      %v3209 = vsel %vm3208, %v3206, %v3203
      %v3210 = vadd.f32 %v2057, 1.0
      %v3211 = vlog2.pop %v3210
      %v3212 = vmul.f32 %v3211, 0.6931472
      %v3213 = vmul.f32 -0.5, %v2057
      %v3214 = vadd.f32 %v3213, 1.0
      %v3215 = vmul.f32 %v3214, %v2057
      %v3216 = vand.u32 2147483647, %v2057
      %vm3217 = vcmp.lt.f32.partialorder %v3216, 0.0004427343
      %v3218 = vsel %vm3217, %v3215, %v3212
      %v3219 = vadd.f32 %v2059, 1.0
      %v3220 = vlog2.pop %v3219
      %v3221 = vmul.f32 %v3220, 0.6931472
      %v3222 = vmul.f32 -0.5, %v2059
      %v3223 = vadd.f32 %v3222, 1.0
      %v3224 = vmul.f32 %v3223, %v2059
      %v3225 = vand.u32 2147483647, %v2059
      %vm3226 = vcmp.lt.f32.partialorder %v3225, 0.0004427343
      %v3227 = vsel %vm3226, %v3224, %v3221
      %v3228 = vadd.f32 %v2061, 1.0
      %v3229 = vlog2.pop %v3228
      %v3230 = vmul.f32 %v3229, 0.6931472
      %v3231 = vmul.f32 -0.5, %v2061
      %v3232 = vadd.f32 %v3231, 1.0
      %v3233 = vmul.f32 %v3232, %v2061
      %v3234 = vand.u32 2147483647, %v2061
      %vm3235 = vcmp.lt.f32.partialorder %v3234, 0.0004427343
      %v3236 = vsel %vm3235, %v3233, %v3230
      %v3237 = vadd.f32 %v2063, 1.0
      %v3238 = vlog2.pop %v3237
      %v3239 = vmul.f32 %v3238, 0.6931472
      %v3240 = vmul.f32 -0.5, %v2063
      %v3241 = vadd.f32 %v3240, 1.0
      %v3242 = vmul.f32 %v3241, %v2063
      %v3243 = vand.u32 2147483647, %v2063
      %vm3244 = vcmp.lt.f32.partialorder %v3243, 0.0004427343
      %v3245 = vsel %vm3244, %v3242, %v3239
      %v3246 = vadd.f32 %v2065, 1.0
      %v3247 = vlog2.pop %v3246
      %v3248 = vmul.f32 %v3247, 0.6931472
      %v3249 = vmul.f32 -0.5, %v2065
      %v3250 = vadd.f32 %v3249, 1.0
      %v3251 = vmul.f32 %v3250, %v2065
      %v3252 = vand.u32 2147483647, %v2065
      %vm3253 = vcmp.lt.f32.partialorder %v3252, 0.0004427343
      %v3254 = vsel %vm3253, %v3251, %v3248
      %v3255 = vadd.f32 %v2067, 1.0
      %v3256 = vlog2.pop %v3255
      %v3257 = vmul.f32 %v3256, 0.6931472
      %v3258 = vmul.f32 -0.5, %v2067
      %v3259 = vadd.f32 %v3258, 1.0
      %v3260 = vmul.f32 %v3259, %v2067
      %v3261 = vand.u32 2147483647, %v2067
      %vm3262 = vcmp.lt.f32.partialorder %v3261, 0.0004427343
      %v3263 = vsel %vm3262, %v3260, %v3257
      %v3264 = vadd.f32 %v2069, 1.0
      %v3265 = vlog2.pop %v3264
      %v3266 = vmul.f32 %v3265, 0.6931472
      %v3267 = vmul.f32 -0.5, %v2069
      %v3268 = vadd.f32 %v3267, 1.0
      %v3269 = vmul.f32 %v3268, %v2069
      %v3270 = vand.u32 2147483647, %v2069
      %vm3271 = vcmp.lt.f32.partialorder %v3270, 0.0004427343
      %v3272 = vsel %vm3271, %v3269, %v3266
      %v3273 = vadd.f32 %v2071, 1.0
      %v3274 = vlog2.pop %v3273
      %v3275 = vmul.f32 %v3274, 0.6931472
      %v3276 = vmul.f32 -0.5, %v2071
      %v3277 = vadd.f32 %v3276, 1.0
      %v3278 = vmul.f32 %v3277, %v2071
      %v3279 = vand.u32 2147483647, %v2071
      %vm3280 = vcmp.lt.f32.partialorder %v3279, 0.0004427343
      %v3281 = vsel %vm3280, %v3278, %v3275
      %v3282 = vadd.f32 %v2073, 1.0
      %v3283 = vlog2.pop %v3282
      %v3284 = vmul.f32 %v3283, 0.6931472
      %v3285 = vmul.f32 -0.5, %v2073
      %v3286 = vadd.f32 %v3285, 1.0
      %v3287 = vmul.f32 %v3286, %v2073
      %v3288 = vand.u32 2147483647, %v2073
      %vm3289 = vcmp.lt.f32.partialorder %v3288, 0.0004427343
      %v3290 = vsel %vm3289, %v3287, %v3284
      %v3291 = vadd.f32 %v2075, 1.0
      %v3292 = vlog2.pop %v3291
      %v3293 = vmul.f32 %v3292, 0.6931472
      %v3294 = vmul.f32 -0.5, %v2075
      %v3295 = vadd.f32 %v3294, 1.0
      %v3296 = vmul.f32 %v3295, %v2075
      %v3297 = vand.u32 2147483647, %v2075
      %vm3298 = vcmp.lt.f32.partialorder %v3297, 0.0004427343
      %v3299 = vsel %vm3298, %v3296, %v3293
      %v3300 = vadd.f32 %v2077, 1.0
      %v3301 = vlog2.pop %v3300
      %v3302 = vmul.f32 %v3301, 0.6931472
      %v3303 = vmul.f32 -0.5, %v2077
      %v3304 = vadd.f32 %v3303, 1.0
      %v3305 = vmul.f32 %v3304, %v2077
      %v3306 = vand.u32 2147483647, %v2077
      %vm3307 = vcmp.lt.f32.partialorder %v3306, 0.0004427343
      %v3308 = vsel %vm3307, %v3305, %v3302
      %v3309 = vadd.f32 %v2079, 1.0
      %v3310 = vlog2.pop %v3309
      %v3311 = vmul.f32 %v3310, 0.6931472
      %v3312 = vmul.f32 -0.5, %v2079
      %v3313 = vadd.f32 %v3312, 1.0
      %v3314 = vmul.f32 %v3313, %v2079
      %v3315 = vand.u32 2147483647, %v2079
      %vm3316 = vcmp.lt.f32.partialorder %v3315, 0.0004427343
      %v3317 = vsel %vm3316, %v3314, %v3311
      %v3318 = vadd.f32 %v2081, 1.0
      %v3319 = vlog2.pop %v3318
      %v3320 = vmul.f32 %v3319, 0.6931472
      %v3321 = vmul.f32 -0.5, %v2081
      %v3322 = vadd.f32 %v3321, 1.0
      %v3323 = vmul.f32 %v3322, %v2081
      %v3324 = vand.u32 2147483647, %v2081
      %vm3325 = vcmp.lt.f32.partialorder %v3324, 0.0004427343
      %v3326 = vsel %vm3325, %v3323, %v3320
      %v3327 = vadd.f32 %v2083, 1.0
      %v3328 = vlog2.pop %v3327
      %v3329 = vmul.f32 %v3328, 0.6931472
      %v3330 = vmul.f32 -0.5, %v2083
      %v3331 = vadd.f32 %v3330, 1.0
      %v3332 = vmul.f32 %v3331, %v2083
      %v3333 = vand.u32 2147483647, %v2083
      %vm3334 = vcmp.lt.f32.partialorder %v3333, 0.0004427343
      %v3335 = vsel %vm3334, %v3332, %v3329
      %v3336 = vadd.f32 %v2085, 1.0
      %v3337 = vlog2.pop %v3336
      %v3338 = vmul.f32 %v3337, 0.6931472
      %v3339 = vmul.f32 -0.5, %v2085
      %v3340 = vadd.f32 %v3339, 1.0
      %v3341 = vmul.f32 %v3340, %v2085
      %v3342 = vand.u32 2147483647, %v2085
      %vm3343 = vcmp.lt.f32.partialorder %v3342, 0.0004427343
      %v3344 = vsel %vm3343, %v3341, %v3338
      %v3345 = vadd.f32 %v2087, 1.0
      %v3346 = vlog2.pop %v3345
      %v3347 = vmul.f32 %v3346, 0.6931472
      %v3348 = vmul.f32 -0.5, %v2087
      %v3349 = vadd.f32 %v3348, 1.0
      %v3350 = vmul.f32 %v3349, %v2087
      %v3351 = vand.u32 2147483647, %v2087
      %vm3352 = vcmp.lt.f32.partialorder %v3351, 0.0004427343
      %v3353 = vsel %vm3352, %v3350, %v3347
      %v3354 = vadd.f32 %v2089, 1.0
      %v3355 = vlog2.pop %v3354
      %v3356 = vmul.f32 %v3355, 0.6931472
      %v3357 = vmul.f32 -0.5, %v2089
      %v3358 = vadd.f32 %v3357, 1.0
      %v3359 = vmul.f32 %v3358, %v2089
      %v3360 = vand.u32 2147483647, %v2089
      %vm3361 = vcmp.lt.f32.partialorder %v3360, 0.0004427343
      %v3362 = vsel %vm3361, %v3359, %v3356
      %v3363 = vadd.f32 %v2091, 1.0
      %v3364 = vlog2.pop %v3363
      %v3365 = vmul.f32 %v3364, 0.6931472
      %v3366 = vmul.f32 -0.5, %v2091
      %v3367 = vadd.f32 %v3366, 1.0
      %v3368 = vmul.f32 %v3367, %v2091
      %v3369 = vand.u32 2147483647, %v2091
      %vm3370 = vcmp.lt.f32.partialorder %v3369, 0.0004427343
      %v3371 = vsel %vm3370, %v3368, %v3365
      %v3372 = vadd.f32 %v2093, 1.0
      %v3373 = vlog2.pop %v3372
      %v3374 = vmul.f32 %v3373, 0.6931472
      %v3375 = vmul.f32 -0.5, %v2093
      %v3376 = vadd.f32 %v3375, 1.0
      %v3377 = vmul.f32 %v3376, %v2093
      %v3378 = vand.u32 2147483647, %v2093
      %vm3379 = vcmp.lt.f32.partialorder %v3378, 0.0004427343
      %v3380 = vsel %vm3379, %v3377, %v3374
      %v3381 = vadd.f32 %v2095, 1.0
      %v3382 = vlog2.pop %v3381
      %v3383 = vmul.f32 %v3382, 0.6931472
      %v3384 = vmul.f32 -0.5, %v2095
      %v3385 = vadd.f32 %v3384, 1.0
      %v3386 = vmul.f32 %v3385, %v2095
      %v3387 = vand.u32 2147483647, %v2095
      %vm3388 = vcmp.lt.f32.partialorder %v3387, 0.0004427343
      %v3389 = vsel %vm3388, %v3386, %v3383
      %v3390 = vadd.f32 %v2097, 1.0
      %v3391 = vlog2.pop %v3390
      %v3392 = vmul.f32 %v3391, 0.6931472
      %v3393 = vmul.f32 -0.5, %v2097
      %v3394 = vadd.f32 %v3393, 1.0
      %v3395 = vmul.f32 %v3394, %v2097
      %v3396 = vand.u32 2147483647, %v2097
      %vm3397 = vcmp.lt.f32.partialorder %v3396, 0.0004427343
      %v3398 = vsel %vm3397, %v3395, %v3392
      %v3399 = vadd.f32 %v2099, 1.0
      %v3400 = vlog2.pop %v3399
      %v3401 = vmul.f32 %v3400, 0.6931472
      %v3402 = vmul.f32 -0.5, %v2099
      %v3403 = vadd.f32 %v3402, 1.0
      %v3404 = vmul.f32 %v3403, %v2099
      %v3405 = vand.u32 2147483647, %v2099
      %vm3406 = vcmp.lt.f32.partialorder %v3405, 0.0004427343
      %v3407 = vsel %vm3406, %v3404, %v3401
      %v3408 = vadd.f32 %v2101, 1.0
      %v3409 = vlog2.pop %v3408
      %v3410 = vmul.f32 %v3409, 0.6931472
      %v3411 = vmul.f32 -0.5, %v2101
      %v3412 = vadd.f32 %v3411, 1.0
      %v3413 = vmul.f32 %v3412, %v2101
      %v3414 = vand.u32 2147483647, %v2101
      %vm3415 = vcmp.lt.f32.partialorder %v3414, 0.0004427343
      %v3416 = vsel %vm3415, %v3413, %v3410
      %v3417 = vadd.f32 %v2103, 1.0
      %v3418 = vlog2.pop %v3417
      %v3419 = vmul.f32 %v3418, 0.6931472
      %v3420 = vmul.f32 -0.5, %v2103
      %v3421 = vadd.f32 %v3420, 1.0
      %v3422 = vmul.f32 %v3421, %v2103
      %v3423 = vand.u32 2147483647, %v2103
      %vm3424 = vcmp.lt.f32.partialorder %v3423, 0.0004427343
      %v3425 = vsel %vm3424, %v3422, %v3419
      %v3426 = vadd.f32 %v2105, 1.0
      %v3427 = vlog2.pop %v3426
      %v3428 = vmul.f32 %v3427, 0.6931472
      %v3429 = vmul.f32 -0.5, %v2105
      %v3430 = vadd.f32 %v3429, 1.0
      %v3431 = vmul.f32 %v3430, %v2105
      %v3432 = vand.u32 2147483647, %v2105
      %vm3433 = vcmp.lt.f32.partialorder %v3432, 0.0004427343
      %v3434 = vsel %vm3433, %v3431, %v3428
      %v3435 = vadd.f32 %v2107, 1.0
      %v3436 = vlog2.pop %v3435
      %v3437 = vmul.f32 %v3436, 0.6931472
      %v3438 = vmul.f32 -0.5, %v2107
      %v3439 = vadd.f32 %v3438, 1.0
      %v3440 = vmul.f32 %v3439, %v2107
      %v3441 = vand.u32 2147483647, %v2107
      %vm3442 = vcmp.lt.f32.partialorder %v3441, 0.0004427343
      %v3443 = vsel %vm3442, %v3440, %v3437
      %v3444 = vadd.f32 %v2109, 1.0
      %v3445 = vlog2.pop %v3444
      %v3446 = vmul.f32 %v3445, 0.6931472
      %v3447 = vmul.f32 -0.5, %v2109
      %v3448 = vadd.f32 %v3447, 1.0
      %v3449 = vmul.f32 %v3448, %v2109
      %v3450 = vand.u32 2147483647, %v2109
      %vm3451 = vcmp.lt.f32.partialorder %v3450, 0.0004427343
      %v3452 = vsel %vm3451, %v3449, %v3446
      %v3453 = vadd.f32 %v2111, 1.0
      %v3454 = vlog2.pop %v3453
      %v3455 = vmul.f32 %v3454, 0.6931472
      %v3456 = vmul.f32 -0.5, %v2111
      %v3457 = vadd.f32 %v3456, 1.0
      %v3458 = vmul.f32 %v3457, %v2111
      %v3459 = vand.u32 2147483647, %v2111
      %vm3460 = vcmp.lt.f32.partialorder %v3459, 0.0004427343
      %v3461 = vsel %vm3460, %v3458, %v3455
      %v3462 = vadd.f32 %v2113, 1.0
      %v3463 = vlog2.pop %v3462
      %v3464 = vmul.f32 %v3463, 0.6931472
      %v3465 = vmul.f32 -0.5, %v2113
      %v3466 = vadd.f32 %v3465, 1.0
      %v3467 = vmul.f32 %v3466, %v2113
      %v3468 = vand.u32 2147483647, %v2113
      %vm3469 = vcmp.lt.f32.partialorder %v3468, 0.0004427343
      %v3470 = vsel %vm3469, %v3467, %v3464
      %v3471 = vadd.f32 %v2115, 1.0
      %v3472 = vlog2.pop %v3471
      %v3473 = vmul.f32 %v3472, 0.6931472
      %v3474 = vmul.f32 -0.5, %v2115
      %v3475 = vadd.f32 %v3474, 1.0
      %v3476 = vmul.f32 %v3475, %v2115
      %v3477 = vand.u32 2147483647, %v2115
      %vm3478 = vcmp.lt.f32.partialorder %v3477, 0.0004427343
      %v3479 = vsel %vm3478, %v3476, %v3473
      %v3480 = vadd.f32 %v2117, 1.0
      %v3481 = vlog2.pop %v3480
      %v3482 = vmul.f32 %v3481, 0.6931472
      %v3483 = vmul.f32 -0.5, %v2117
      %v3484 = vadd.f32 %v3483, 1.0
      %v3485 = vmul.f32 %v3484, %v2117
      %v3486 = vand.u32 2147483647, %v2117
      %vm3487 = vcmp.lt.f32.partialorder %v3486, 0.0004427343
      %v3488 = vsel %vm3487, %v3485, %v3482
      %v3489 = vadd.f32 %v2119, 1.0
      %v3490 = vlog2.pop %v3489
      %v3491 = vmul.f32 %v3490, 0.6931472
      %v3492 = vmul.f32 -0.5, %v2119
      %v3493 = vadd.f32 %v3492, 1.0
      %v3494 = vmul.f32 %v3493, %v2119
      %v3495 = vand.u32 2147483647, %v2119
      %vm3496 = vcmp.lt.f32.partialorder %v3495, 0.0004427343
      %v3497 = vsel %vm3496, %v3494, %v3491
      %v3498 = vadd.f32 %v2121, 1.0
      %v3499 = vlog2.pop %v3498
      %v3500 = vmul.f32 %v3499, 0.6931472
      %v3501 = vmul.f32 -0.5, %v2121
      %v3502 = vadd.f32 %v3501, 1.0
      %v3503 = vmul.f32 %v3502, %v2121
      %v3504 = vand.u32 2147483647, %v2121
      %vm3505 = vcmp.lt.f32.partialorder %v3504, 0.0004427343
      %v3506 = vsel %vm3505, %v3503, %v3500
      %v3507 = vadd.f32 %v2123, 1.0
      %v3508 = vlog2.pop %v3507
      %v3509 = vmul.f32 %v3508, 0.6931472
      %v3510 = vmul.f32 -0.5, %v2123
      %v3511 = vadd.f32 %v3510, 1.0
      %v3512 = vmul.f32 %v3511, %v2123
      %v3513 = vand.u32 2147483647, %v2123
      %vm3514 = vcmp.lt.f32.partialorder %v3513, 0.0004427343
      %v3515 = vsel %vm3514, %v3512, %v3509
      %v3516 = vadd.f32 %v2125, 1.0
      %v3517 = vlog2.pop %v3516
      %v3518 = vmul.f32 %v3517, 0.6931472
      %v3519 = vmul.f32 -0.5, %v2125
      %v3520 = vadd.f32 %v3519, 1.0
      %v3521 = vmul.f32 %v3520, %v2125
      %v3522 = vand.u32 2147483647, %v2125
      %vm3523 = vcmp.lt.f32.partialorder %v3522, 0.0004427343
      %v3524 = vsel %vm3523, %v3521, %v3518
      %v3525 = vadd.f32 %v2127, 1.0
      %v3526 = vlog2.pop %v3525
      %v3527 = vmul.f32 %v3526, 0.6931472
      %v3528 = vmul.f32 -0.5, %v2127
      %v3529 = vadd.f32 %v3528, 1.0
      %v3530 = vmul.f32 %v3529, %v2127
      %v3531 = vand.u32 2147483647, %v2127
      %vm3532 = vcmp.lt.f32.partialorder %v3531, 0.0004427343
      %v3533 = vsel %vm3532, %v3530, %v3527
      %v3534 = vadd.f32 %v2129, 1.0
      %v3535 = vlog2.pop %v3534
      %v3536 = vmul.f32 %v3535, 0.6931472
      %v3537 = vmul.f32 -0.5, %v2129
      %v3538 = vadd.f32 %v3537, 1.0
      %v3539 = vmul.f32 %v3538, %v2129
      %v3540 = vand.u32 2147483647, %v2129
      %vm3541 = vcmp.lt.f32.partialorder %v3540, 0.0004427343
      %v3542 = vsel %vm3541, %v3539, %v3536
      %v3543 = vadd.f32 %v2131, 1.0
      %v3544 = vlog2.pop %v3543
      %v3545 = vmul.f32 %v3544, 0.6931472
      %v3546 = vmul.f32 -0.5, %v2131
      %v3547 = vadd.f32 %v3546, 1.0
      %v3548 = vmul.f32 %v3547, %v2131
      %v3549 = vand.u32 2147483647, %v2131
      %vm3550 = vcmp.lt.f32.partialorder %v3549, 0.0004427343
      %v3551 = vsel %vm3550, %v3548, %v3545
      %v3552 = vadd.f32 %v2133, 1.0
      %v3553 = vlog2.pop %v3552
      %v3554 = vmul.f32 %v3553, 0.6931472
      %v3555 = vmul.f32 -0.5, %v2133
      %v3556 = vadd.f32 %v3555, 1.0
      %v3557 = vmul.f32 %v3556, %v2133
      %v3558 = vand.u32 2147483647, %v2133
      %vm3559 = vcmp.lt.f32.partialorder %v3558, 0.0004427343
      %v3560 = vsel %vm3559, %v3557, %v3554
      %v3561 = vadd.f32 %v2135, 1.0
      %v3562 = vlog2.pop %v3561
      %v3563 = vmul.f32 %v3562, 0.6931472
      %v3564 = vmul.f32 -0.5, %v2135
      %v3565 = vadd.f32 %v3564, 1.0
      %v3566 = vmul.f32 %v3565, %v2135
      %v3567 = vand.u32 2147483647, %v2135
      %vm3568 = vcmp.lt.f32.partialorder %v3567, 0.0004427343
      %v3569 = vsel %vm3568, %v3566, %v3563
      %v3570 = vadd.f32 %v2137, 1.0
      %v3571 = vlog2.pop %v3570
      %v3572 = vmul.f32 %v3571, 0.6931472
      %v3573 = vmul.f32 -0.5, %v2137
      %v3574 = vadd.f32 %v3573, 1.0
      %v3575 = vmul.f32 %v3574, %v2137
      %v3576 = vand.u32 2147483647, %v2137
      %vm3577 = vcmp.lt.f32.partialorder %v3576, 0.0004427343
      %v3578 = vsel %vm3577, %v3575, %v3572
      %v3579 = vadd.f32 %v2139, 1.0
      %v3580 = vlog2.pop %v3579
      %v3581 = vmul.f32 %v3580, 0.6931472
      %v3582 = vmul.f32 -0.5, %v2139
      %v3583 = vadd.f32 %v3582, 1.0
      %v3584 = vmul.f32 %v3583, %v2139
      %v3585 = vand.u32 2147483647, %v2139
      %vm3586 = vcmp.lt.f32.partialorder %v3585, 0.0004427343
      %v3587 = vsel %vm3586, %v3584, %v3581
      %v3588 = vadd.f32 %v2141, 1.0
      %v3589 = vlog2.pop %v3588
      %v3590 = vmul.f32 %v3589, 0.6931472
      %v3591 = vmul.f32 -0.5, %v2141
      %v3592 = vadd.f32 %v3591, 1.0
      %v3593 = vmul.f32 %v3592, %v2141
      %v3594 = vand.u32 2147483647, %v2141
      %vm3595 = vcmp.lt.f32.partialorder %v3594, 0.0004427343
      %v3596 = vsel %vm3595, %v3593, %v3590
      %v3597 = vadd.f32 %v2143, 1.0
      %v3598 = vlog2.pop %v3597
      %v3599 = vmul.f32 %v3598, 0.6931472
      %v3600 = vmul.f32 -0.5, %v2143
      %v3601 = vadd.f32 %v3600, 1.0
      %v3602 = vmul.f32 %v3601, %v2143
      %v3603 = vand.u32 2147483647, %v2143
      %vm3604 = vcmp.lt.f32.partialorder %v3603, 0.0004427343
      %v3605 = vsel %vm3604, %v3602, %v3599
      %v3606 = vadd.f32 %v2145, 1.0
      %v3607 = vlog2.pop %v3606
      %v3608 = vmul.f32 %v3607, 0.6931472
      %v3609 = vmul.f32 -0.5, %v2145
      %v3610 = vadd.f32 %v3609, 1.0
      %v3611 = vmul.f32 %v3610, %v2145
      %v3612 = vand.u32 2147483647, %v2145
      %vm3613 = vcmp.lt.f32.partialorder %v3612, 0.0004427343
      %v3614 = vsel %vm3613, %v3611, %v3608
      %v3615 = vadd.f32 %v2147, 1.0
      %v3616 = vlog2.pop %v3615
      %v3617 = vmul.f32 %v3616, 0.6931472
      %v3618 = vmul.f32 -0.5, %v2147
      %v3619 = vadd.f32 %v3618, 1.0
      %v3620 = vmul.f32 %v3619, %v2147
      %v3621 = vand.u32 2147483647, %v2147
      %vm3622 = vcmp.lt.f32.partialorder %v3621, 0.0004427343
      %v3623 = vsel %vm3622, %v3620, %v3617
      %v3624 = vadd.f32 %v2149, 1.0
      %v3625 = vlog2.pop %v3624
      %v3626 = vmul.f32 %v3625, 0.6931472
      %v3627 = vmul.f32 -0.5, %v2149
      %v3628 = vadd.f32 %v3627, 1.0
      %v3629 = vmul.f32 %v3628, %v2149
      %v3630 = vand.u32 2147483647, %v2149
      %vm3631 = vcmp.lt.f32.partialorder %v3630, 0.0004427343
      %v3632 = vsel %vm3631, %v3629, %v3626
      %v3633 = vadd.f32 %v2151, 1.0
      %v3634 = vlog2.pop %v3633
      %v3635 = vmul.f32 %v3634, 0.6931472
      %v3636 = vmul.f32 -0.5, %v2151
      %v3637 = vadd.f32 %v3636, 1.0
      %v3638 = vmul.f32 %v3637, %v2151
      %v3639 = vand.u32 2147483647, %v2151
      %vm3640 = vcmp.lt.f32.partialorder %v3639, 0.0004427343
      %v3641 = vsel %vm3640, %v3638, %v3635
      %v3642 = vadd.f32 %v2153, 1.0
      %v3643 = vlog2.pop %v3642
      %v3644 = vmul.f32 %v3643, 0.6931472
      %v3645 = vmul.f32 -0.5, %v2153
      %v3646 = vadd.f32 %v3645, 1.0
      %v3647 = vmul.f32 %v3646, %v2153
      %v3648 = vand.u32 2147483647, %v2153
      %vm3649 = vcmp.lt.f32.partialorder %v3648, 0.0004427343
      %v3650 = vsel %vm3649, %v3647, %v3644
      %v3651 = vadd.f32 %v2155, 1.0
      %v3652 = vlog2.pop %v3651
      %v3653 = vmul.f32 %v3652, 0.6931472
      %v3654 = vmul.f32 -0.5, %v2155
      %v3655 = vadd.f32 %v3654, 1.0
      %v3656 = vmul.f32 %v3655, %v2155
      %v3657 = vand.u32 2147483647, %v2155
      %vm3658 = vcmp.lt.f32.partialorder %v3657, 0.0004427343
      %v3659 = vsel %vm3658, %v3656, %v3653
      %v3660 = vadd.f32 %v2157, 1.0
      %v3661 = vlog2.pop %v3660
      %v3662 = vmul.f32 %v3661, 0.6931472
      %v3663 = vmul.f32 -0.5, %v2157
      %v3664 = vadd.f32 %v3663, 1.0
      %v3665 = vmul.f32 %v3664, %v2157
      %v3666 = vand.u32 2147483647, %v2157
      %vm3667 = vcmp.lt.f32.partialorder %v3666, 0.0004427343
      %v3668 = vsel %vm3667, %v3665, %v3662
      %v3669 = vadd.f32 %v2159, 1.0
      %v3670 = vlog2.pop %v3669
      %v3671 = vmul.f32 %v3670, 0.6931472
      %v3672 = vmul.f32 -0.5, %v2159
      %v3673 = vadd.f32 %v3672, 1.0
      %v3674 = vmul.f32 %v3673, %v2159
      %v3675 = vand.u32 2147483647, %v2159
      %vm3676 = vcmp.lt.f32.partialorder %v3675, 0.0004427343
      %v3677 = vsel %vm3676, %v3674, %v3671
      %v3678 = vadd.f32 %v2161, 1.0
      %v3679 = vlog2.pop %v3678
      %v3680 = vmul.f32 %v3679, 0.6931472
      %v3681 = vmul.f32 -0.5, %v2161
      %v3682 = vadd.f32 %v3681, 1.0
      %v3683 = vmul.f32 %v3682, %v2161
      %v3684 = vand.u32 2147483647, %v2161
      %vm3685 = vcmp.lt.f32.partialorder %v3684, 0.0004427343
      %v3686 = vsel %vm3685, %v3683, %v3680
      %v3687 = vadd.f32 %v2163, 1.0
      %v3688 = vlog2.pop %v3687
      %v3689 = vmul.f32 %v3688, 0.6931472
      %v3690 = vmul.f32 -0.5, %v2163
      %v3691 = vadd.f32 %v3690, 1.0
      %v3692 = vmul.f32 %v3691, %v2163
      %v3693 = vand.u32 2147483647, %v2163
      %vm3694 = vcmp.lt.f32.partialorder %v3693, 0.0004427343
      %v3695 = vsel %vm3694, %v3692, %v3689
      %v3696 = vadd.f32 %v2165, 1.0
      %v3697 = vlog2.pop %v3696
      %v3698 = vmul.f32 %v3697, 0.6931472
      %v3699 = vmul.f32 -0.5, %v2165
      %v3700 = vadd.f32 %v3699, 1.0
      %v3701 = vmul.f32 %v3700, %v2165
      %v3702 = vand.u32 2147483647, %v2165
      %vm3703 = vcmp.lt.f32.partialorder %v3702, 0.0004427343
      %v3704 = vsel %vm3703, %v3701, %v3698
      %v3705 = vadd.f32 %v2167, 1.0
      %v3706 = vlog2.pop %v3705
      %v3707 = vmul.f32 %v3706, 0.6931472
      %v3708 = vmul.f32 -0.5, %v2167
      %v3709 = vadd.f32 %v3708, 1.0
      %v3710 = vmul.f32 %v3709, %v2167
      %v3711 = vand.u32 2147483647, %v2167
      %vm3712 = vcmp.lt.f32.partialorder %v3711, 0.0004427343
      %v3713 = vsel %vm3712, %v3710, %v3707
      %v3714 = vadd.f32 %v2169, 1.0
      %v3715 = vlog2.pop %v3714
      %v3716 = vmul.f32 %v3715, 0.6931472
      %v3717 = vmul.f32 -0.5, %v2169
      %v3718 = vadd.f32 %v3717, 1.0
      %v3719 = vmul.f32 %v3718, %v2169
      %v3720 = vand.u32 2147483647, %v2169
      %vm3721 = vcmp.lt.f32.partialorder %v3720, 0.0004427343
      %v3722 = vsel %vm3721, %v3719, %v3716
      %v3723 = vadd.f32 %v2171, 1.0
      %v3724 = vlog2.pop %v3723
      %v3725 = vmul.f32 %v3724, 0.6931472
      %v3726 = vmul.f32 -0.5, %v2171
      %v3727 = vadd.f32 %v3726, 1.0
      %v3728 = vmul.f32 %v3727, %v2171
      %v3729 = vand.u32 2147483647, %v2171
      %vm3730 = vcmp.lt.f32.partialorder %v3729, 0.0004427343
      %v3731 = vsel %vm3730, %v3728, %v3725
      %v3732 = vadd.f32 %v2173, 1.0
      %v3733 = vlog2.pop %v3732
      %v3734 = vmul.f32 %v3733, 0.6931472
      %v3735 = vmul.f32 -0.5, %v2173
      %v3736 = vadd.f32 %v3735, 1.0
      %v3737 = vmul.f32 %v3736, %v2173
      %v3738 = vand.u32 2147483647, %v2173
      %vm3739 = vcmp.lt.f32.partialorder %v3738, 0.0004427343
      %v3740 = vsel %vm3739, %v3737, %v3734
      %v3741 = vadd.f32 %v2175, 1.0
      %v3742 = vlog2.pop %v3741
      %v3743 = vmul.f32 %v3742, 0.6931472
      %v3744 = vmul.f32 -0.5, %v2175
      %v3745 = vadd.f32 %v3744, 1.0
      %v3746 = vmul.f32 %v3745, %v2175
      %v3747 = vand.u32 2147483647, %v2175
      %vm3748 = vcmp.lt.f32.partialorder %v3747, 0.0004427343
      %v3749 = vsel %vm3748, %v3746, %v3743
      %v3750 = vadd.f32 %v2177, 1.0
      %v3751 = vlog2.pop %v3750
      %v3752 = vmul.f32 %v3751, 0.6931472
      %v3753 = vmul.f32 -0.5, %v2177
      %v3754 = vadd.f32 %v3753, 1.0
      %v3755 = vmul.f32 %v3754, %v2177
      %v3756 = vand.u32 2147483647, %v2177
      %vm3757 = vcmp.lt.f32.partialorder %v3756, 0.0004427343
      %v3758 = vsel %vm3757, %v3755, %v3752
      %v3759 = vadd.f32 %v2179, 1.0
      %v3760 = vlog2.pop %v3759
      %v3761 = vmul.f32 %v3760, 0.6931472
      %v3762 = vmul.f32 -0.5, %v2179
      %v3763 = vadd.f32 %v3762, 1.0
      %v3764 = vmul.f32 %v3763, %v2179
      %v3765 = vand.u32 2147483647, %v2179
      %vm3766 = vcmp.lt.f32.partialorder %v3765, 0.0004427343
      %v3767 = vsel %vm3766, %v3764, %v3761
      %v3768 = vadd.f32 %v2181, 1.0
      %v3769 = vlog2.pop %v3768
      %v3770 = vmul.f32 %v3769, 0.6931472
      %v3771 = vmul.f32 -0.5, %v2181
      %v3772 = vadd.f32 %v3771, 1.0
      %v3773 = vmul.f32 %v3772, %v2181
      %v3774 = vand.u32 2147483647, %v2181
      %vm3775 = vcmp.lt.f32.partialorder %v3774, 0.0004427343
      %v3776 = vsel %vm3775, %v3773, %v3770
      %v3777 = vadd.f32 %v2183, 1.0
      %v3778 = vlog2.pop %v3777
      %v3779 = vmul.f32 %v3778, 0.6931472
      %v3780 = vmul.f32 -0.5, %v2183
      %v3781 = vadd.f32 %v3780, 1.0
      %v3782 = vmul.f32 %v3781, %v2183
      %v3783 = vand.u32 2147483647, %v2183
      %vm3784 = vcmp.lt.f32.partialorder %v3783, 0.0004427343
      %v3785 = vsel %vm3784, %v3782, %v3779
      %v3786 = vadd.f32 %v2185, 1.0
      %v3787 = vlog2.pop %v3786
      %v3788 = vmul.f32 %v3787, 0.6931472
      %v3789 = vmul.f32 -0.5, %v2185
      %v3790 = vadd.f32 %v3789, 1.0
      %v3791 = vmul.f32 %v3790, %v2185
      %v3792 = vand.u32 2147483647, %v2185
      %vm3793 = vcmp.lt.f32.partialorder %v3792, 0.0004427343
      %v3794 = vsel %vm3793, %v3791, %v3788
      %v3795 = vadd.f32 %v2187, 1.0
      %v3796 = vlog2.pop %v3795
      %v3797 = vmul.f32 %v3796, 0.6931472
      %v3798 = vmul.f32 -0.5, %v2187
      %v3799 = vadd.f32 %v3798, 1.0
      %v3800 = vmul.f32 %v3799, %v2187
      %v3801 = vand.u32 2147483647, %v2187
      %vm3802 = vcmp.lt.f32.partialorder %v3801, 0.0004427343
      %v3803 = vsel %vm3802, %v3800, %v3797
      %v3804 = vadd.f32 %v2189, 1.0
      %v3805 = vlog2.pop %v3804
      %v3806 = vmul.f32 %v3805, 0.6931472
      %v3807 = vmul.f32 -0.5, %v2189
      %v3808 = vadd.f32 %v3807, 1.0
      %v3809 = vmul.f32 %v3808, %v2189
      %v3810 = vand.u32 2147483647, %v2189
      %vm3811 = vcmp.lt.f32.partialorder %v3810, 0.0004427343
      %v3812 = vsel %vm3811, %v3809, %v3806
      %v3813 = vadd.f32 %v2191, 1.0
      %v3814 = vlog2.pop %v3813
      %v3815 = vmul.f32 %v3814, 0.6931472
      %v3816 = vmul.f32 -0.5, %v2191
      %v3817 = vadd.f32 %v3816, 1.0
      %v3818 = vmul.f32 %v3817, %v2191
      %v3819 = vand.u32 2147483647, %v2191
      %vm3820 = vcmp.lt.f32.partialorder %v3819, 0.0004427343
      %v3821 = vsel %vm3820, %v3818, %v3815
      %v3822 = vadd.f32 %v2193, 1.0
      %v3823 = vlog2.pop %v3822
      %v3824 = vmul.f32 %v3823, 0.6931472
      %v3825 = vmul.f32 -0.5, %v2193
      %v3826 = vadd.f32 %v3825, 1.0
      %v3827 = vmul.f32 %v3826, %v2193
      %v3828 = vand.u32 2147483647, %v2193
      %vm3829 = vcmp.lt.f32.partialorder %v3828, 0.0004427343
      %v3830 = vsel %vm3829, %v3827, %v3824
      %v3831 = vadd.f32 %v2195, 1.0
      %v3832 = vlog2.pop %v3831
      %v3833 = vmul.f32 %v3832, 0.6931472
      %v3834 = vmul.f32 -0.5, %v2195
      %v3835 = vadd.f32 %v3834, 1.0
      %v3836 = vmul.f32 %v3835, %v2195
      %v3837 = vand.u32 2147483647, %v2195
      %vm3838 = vcmp.lt.f32.partialorder %v3837, 0.0004427343
      %v3839 = vsel %vm3838, %v3836, %v3833
      %v3840 = vadd.f32 %v2197, 1.0
      %v3841 = vlog2.pop %v3840
      %v3842 = vmul.f32 %v3841, 0.6931472
      %v3843 = vmul.f32 -0.5, %v2197
      %v3844 = vadd.f32 %v3843, 1.0
      %v3845 = vmul.f32 %v3844, %v2197
      %v3846 = vand.u32 2147483647, %v2197
      %vm3847 = vcmp.lt.f32.partialorder %v3846, 0.0004427343
      %v3848 = vsel %vm3847, %v3845, %v3842
      %v3849 = vadd.f32 %v2199, 1.0
      %v3850 = vlog2.pop %v3849
      %v3851 = vmul.f32 %v3850, 0.6931472
      %v3852 = vmul.f32 -0.5, %v2199
      %v3853 = vadd.f32 %v3852, 1.0
      %v3854 = vmul.f32 %v3853, %v2199
      %v3855 = vand.u32 2147483647, %v2199
      %vm3856 = vcmp.lt.f32.partialorder %v3855, 0.0004427343
      %v3857 = vsel %vm3856, %v3854, %v3851
      %v3858 = vadd.f32 %v2201, 1.0
      %v3859 = vlog2.pop %v3858
      %v3860 = vmul.f32 %v3859, 0.6931472
      %v3861 = vmul.f32 -0.5, %v2201
      %v3862 = vadd.f32 %v3861, 1.0
      %v3863 = vmul.f32 %v3862, %v2201
      %v3864 = vand.u32 2147483647, %v2201
      %vm3865 = vcmp.lt.f32.partialorder %v3864, 0.0004427343
      %v3866 = vsel %vm3865, %v3863, %v3860
      %v3867 = vadd.f32 %v2203, 1.0
      %v3868 = vlog2.pop %v3867
      %v3869 = vmul.f32 %v3868, 0.6931472
      %v3870 = vmul.f32 -0.5, %v2203
      %v3871 = vadd.f32 %v3870, 1.0
      %v3872 = vmul.f32 %v3871, %v2203
      %v3873 = vand.u32 2147483647, %v2203
      %vm3874 = vcmp.lt.f32.partialorder %v3873, 0.0004427343
      %v3875 = vsel %vm3874, %v3872, %v3869
      %v3876 = vadd.f32 %v2205, 1.0
      %v3877 = vlog2.pop %v3876
      %v3878 = vmul.f32 %v3877, 0.6931472
      %v3879 = vmul.f32 -0.5, %v2205
      %v3880 = vadd.f32 %v3879, 1.0
      %v3881 = vmul.f32 %v3880, %v2205
      %v3882 = vand.u32 2147483647, %v2205
      %vm3883 = vcmp.lt.f32.partialorder %v3882, 0.0004427343
      %v3884 = vsel %vm3883, %v3881, %v3878
      %v3885 = vadd.f32 %v2207, 1.0
      %v3886 = vlog2.pop %v3885
      %v3887 = vmul.f32 %v3886, 0.6931472
      %v3888 = vmul.f32 -0.5, %v2207
      %v3889 = vadd.f32 %v3888, 1.0
      %v3890 = vmul.f32 %v3889, %v2207
      %v3891 = vand.u32 2147483647, %v2207
      %vm3892 = vcmp.lt.f32.partialorder %v3891, 0.0004427343
      %v3893 = vsel %vm3892, %v3890, %v3887
      %v3894 = vadd.f32 %v2209, 1.0
      %v3895 = vlog2.pop %v3894
      %v3896 = vmul.f32 %v3895, 0.6931472
      %v3897 = vmul.f32 -0.5, %v2209
      %v3898 = vadd.f32 %v3897, 1.0
      %v3899 = vmul.f32 %v3898, %v2209
      %v3900 = vand.u32 2147483647, %v2209
      %vm3901 = vcmp.lt.f32.partialorder %v3900, 0.0004427343
      %v3902 = vsel %vm3901, %v3899, %v3896
      %v3903 = vadd.f32 %v2211, 1.0
      %v3904 = vlog2.pop %v3903
      %v3905 = vmul.f32 %v3904, 0.6931472
      %v3906 = vmul.f32 -0.5, %v2211
      %v3907 = vadd.f32 %v3906, 1.0
      %v3908 = vmul.f32 %v3907, %v2211
      %v3909 = vand.u32 2147483647, %v2211
      %vm3910 = vcmp.lt.f32.partialorder %v3909, 0.0004427343
      %v3911 = vsel %vm3910, %v3908, %v3905
      %v3912 = vadd.f32 %v2213, 1.0
      %v3913 = vlog2.pop %v3912
      %v3914 = vmul.f32 %v3913, 0.6931472
      %v3915 = vmul.f32 -0.5, %v2213
      %v3916 = vadd.f32 %v3915, 1.0
      %v3917 = vmul.f32 %v3916, %v2213
      %v3918 = vand.u32 2147483647, %v2213
      %vm3919 = vcmp.lt.f32.partialorder %v3918, 0.0004427343
      %v3920 = vsel %vm3919, %v3917, %v3914
      %v3921 = vadd.f32 %v2215, 1.0
      %v3922 = vlog2.pop %v3921
      %v3923 = vmul.f32 %v3922, 0.6931472
      %v3924 = vmul.f32 -0.5, %v2215
      %v3925 = vadd.f32 %v3924, 1.0
      %v3926 = vmul.f32 %v3925, %v2215
      %v3927 = vand.u32 2147483647, %v2215
      %vm3928 = vcmp.lt.f32.partialorder %v3927, 0.0004427343
      %v3929 = vsel %vm3928, %v3926, %v3923
      %v3930 = vadd.f32 %v2217, 1.0
      %v3931 = vlog2.pop %v3930
      %v3932 = vmul.f32 %v3931, 0.6931472
      %v3933 = vmul.f32 -0.5, %v2217
      %v3934 = vadd.f32 %v3933, 1.0
      %v3935 = vmul.f32 %v3934, %v2217
      %v3936 = vand.u32 2147483647, %v2217
      %vm3937 = vcmp.lt.f32.partialorder %v3936, 0.0004427343
      %v3938 = vsel %vm3937, %v3935, %v3932
      %v3939 = vadd.f32 %v2219, 1.0
      %v3940 = vlog2.pop %v3939
      %v3941 = vmul.f32 %v3940, 0.6931472
      %v3942 = vmul.f32 -0.5, %v2219
      %v3943 = vadd.f32 %v3942, 1.0
      %v3944 = vmul.f32 %v3943, %v2219
      %v3945 = vand.u32 2147483647, %v2219
      %vm3946 = vcmp.lt.f32.partialorder %v3945, 0.0004427343
      %v3947 = vsel %vm3946, %v3944, %v3941
      %v3948 = vadd.f32 %v1260, %v2228
      %v3949 = vadd.f32 %v1261, %v2237
      %v3950 = vadd.f32 %v1262, %v2246
      %v3951 = vadd.f32 %v1263, %v2255
      %v3952 = vadd.f32 %v1264, %v2264
      %v3953 = vadd.f32 %v1265, %v2273
      %v3954 = vadd.f32 %v1266, %v2282
      %v3955 = vadd.f32 %v1267, %v2291
      %v3956 = vadd.f32 %v1268, %v2300
      %v3957 = vadd.f32 %v1269, %v2309
      %v3958 = vadd.f32 %v1270, %v2318
      %v3959 = vadd.f32 %v1271, %v2327
      %v3960 = vadd.f32 %v1272, %v2336
      %v3961 = vadd.f32 %v1273, %v2345
      %v3962 = vadd.f32 %v1274, %v2354
      %v3963 = vadd.f32 %v1275, %v2363
      %v3964 = vadd.f32 %v1276, %v2372
      %v3965 = vadd.f32 %v1277, %v2381
      %v3966 = vadd.f32 %v1278, %v2390
      %v3967 = vadd.f32 %v1279, %v2399
      %v3968 = vadd.f32 %v1280, %v2408
      %v3969 = vadd.f32 %v1281, %v2417
      %v3970 = vadd.f32 %v1282, %v2426
      %v3971 = vadd.f32 %v1283, %v2435
      %v3972 = vadd.f32 %v1284, %v2444
      %v3973 = vadd.f32 %v1285, %v2453
      %v3974 = vadd.f32 %v1286, %v2462
      %v3975 = vadd.f32 %v1287, %v2471
      %v3976 = vadd.f32 %v1288, %v2480
      %v3977 = vadd.f32 %v1289, %v2489
      %v3978 = vadd.f32 %v1290, %v2498
      %v3979 = vadd.f32 %v1291, %v2507
      %v3980 = vadd.f32 %v1292, %v2516
      %v3981 = vadd.f32 %v1293, %v2525
      %v3982 = vadd.f32 %v1294, %v2534
      %v3983 = vadd.f32 %v1295, %v2543
      %v3984 = vadd.f32 %v1296, %v2552
      %v3985 = vadd.f32 %v1297, %v2561
      %v3986 = vadd.f32 %v1298, %v2570
      %v3987 = vadd.f32 %v1299, %v2579
      %v3988 = vadd.f32 %v1300, %v2588
      %v3989 = vadd.f32 %v1301, %v2597
      %v3990 = vadd.f32 %v1302, %v2606
      %v3991 = vadd.f32 %v1303, %v2615
      %v3992 = vadd.f32 %v1304, %v2624
      %v3993 = vadd.f32 %v1305, %v2633
      %v3994 = vadd.f32 %v1306, %v2642
      %v3995 = vadd.f32 %v1307, %v2651
      %v3996 = vadd.f32 %v1308, %v2660
      %v3997 = vadd.f32 %v1309, %v2669
      %v3998 = vadd.f32 %v1310, %v2678
      %v3999 = vadd.f32 %v1311, %v2687
      %v4000 = vadd.f32 %v1312, %v2696
      %v4001 = vadd.f32 %v1313, %v2705
      %v4002 = vadd.f32 %v1314, %v2714
      %v4003 = vadd.f32 %v1315, %v2723
      %v4004 = vadd.f32 %v1316, %v2732
      %v4005 = vadd.f32 %v1317, %v2741
      %v4006 = vadd.f32 %v1318, %v2750
      %v4007 = vadd.f32 %v1319, %v2759
      %v4008 = vadd.f32 %v1320, %v2768
      %v4009 = vadd.f32 %v1321, %v2777
      %v4010 = vadd.f32 %v1322, %v2786
      %v4011 = vadd.f32 %v1323, %v2795
      %v4012 = vadd.f32 %v1324, %v2804
      %v4013 = vadd.f32 %v1325, %v2813
      %v4014 = vadd.f32 %v1326, %v2822
      %v4015 = vadd.f32 %v1327, %v2831
      %v4016 = vadd.f32 %v1328, %v2840
      %v4017 = vadd.f32 %v1329, %v2849
      %v4018 = vadd.f32 %v1330, %v2858
      %v4019 = vadd.f32 %v1331, %v2867
      %v4020 = vadd.f32 %v1332, %v2876
      %v4021 = vadd.f32 %v1333, %v2885
      %v4022 = vadd.f32 %v1334, %v2894
      %v4023 = vadd.f32 %v1335, %v2903
      %v4024 = vadd.f32 %v1336, %v2912
      %v4025 = vadd.f32 %v1337, %v2921
      %v4026 = vadd.f32 %v1338, %v2930
      %v4027 = vadd.f32 %v1339, %v2939
      %v4028 = vadd.f32 %v1340, %v2948
      %v4029 = vadd.f32 %v1341, %v2957
      %v4030 = vadd.f32 %v1342, %v2966
      %v4031 = vadd.f32 %v1343, %v2975
      %v4032 = vadd.f32 %v1344, %v2984
      %v4033 = vadd.f32 %v1345, %v2993
      %v4034 = vadd.f32 %v1346, %v3002
      %v4035 = vadd.f32 %v1347, %v3011
      %v4036 = vadd.f32 %v1348, %v3020
      %v4037 = vadd.f32 %v1349, %v3029
      %v4038 = vadd.f32 %v1350, %v3038
      %v4039 = vadd.f32 %v1351, %v3047
      %v4040 = vadd.f32 %v1352, %v3056
      %v4041 = vadd.f32 %v1353, %v3065
      %v4042 = vadd.f32 %v1354, %v3074
      %v4043 = vadd.f32 %v1355, %v3083
      %v4044 = vadd.f32 %v1356, %v3092
      %v4045 = vadd.f32 %v1357, %v3101
      %v4046 = vadd.f32 %v1358, %v3110
      %v4047 = vadd.f32 %v1359, %v3119
      %v4048 = vadd.f32 %v1360, %v3128
      %v4049 = vadd.f32 %v1361, %v3137
      %v4050 = vadd.f32 %v1362, %v3146
      %v4051 = vadd.f32 %v1363, %v3155
      %v4052 = vadd.f32 %v1364, %v3164
      %v4053 = vadd.f32 %v1365, %v3173
      %v4054 = vadd.f32 %v1366, %v3182
      %v4055 = vadd.f32 %v1367, %v3191
      %v4056 = vadd.f32 %v1368, %v3200
      %v4057 = vadd.f32 %v1369, %v3209
      %v4058 = vadd.f32 %v1370, %v3218
      %v4059 = vadd.f32 %v1371, %v3227
      %v4060 = vadd.f32 %v1372, %v3236
      %v4061 = vadd.f32 %v1373, %v3245
      %v4062 = vadd.f32 %v1374, %v3254
      %v4063 = vadd.f32 %v1375, %v3263
      %v4064 = vadd.f32 %v1376, %v3272
      %v4065 = vadd.f32 %v1377, %v3281
      %v4066 = vadd.f32 %v1378, %v3290
      %v4067 = vadd.f32 %v1379, %v3299
      %v4068 = vadd.f32 %v1380, %v3308
      %v4069 = vadd.f32 %v1381, %v3317
      %v4070 = vadd.f32 %v1382, %v3326
      %v4071 = vadd.f32 %v1383, %v3335
      %v4072 = vadd.f32 %v1384, %v3344
      %v4073 = vadd.f32 %v1385, %v3353
      %v4074 = vadd.f32 %v1386, %v3362
      %v4075 = vadd.f32 %v1387, %v3371
      %v4076 = vadd.f32 %v1388, %v3380
      %v4077 = vadd.f32 %v1389, %v3389
      %v4078 = vadd.f32 %v1390, %v3398
      %v4079 = vadd.f32 %v1391, %v3407
      %v4080 = vadd.f32 %v1392, %v3416
      %v4081 = vadd.f32 %v1393, %v3425
      %v4082 = vadd.f32 %v1394, %v3434
      %v4083 = vadd.f32 %v1395, %v3443
      %v4084 = vadd.f32 %v1396, %v3452
      %v4085 = vadd.f32 %v1397, %v3461
      %v4086 = vadd.f32 %v1398, %v3470
      %v4087 = vadd.f32 %v1399, %v3479
      %v4088 = vadd.f32 %v1400, %v3488
      %v4089 = vadd.f32 %v1401, %v3497
      %v4090 = vadd.f32 %v1402, %v3506
      %v4091 = vadd.f32 %v1403, %v3515
      %v4092 = vadd.f32 %v1404, %v3524
      %v4093 = vadd.f32 %v1405, %v3533
      %v4094 = vadd.f32 %v1406, %v3542
      %v4095 = vadd.f32 %v1407, %v3551
      %v4096 = vadd.f32 %v1408, %v3560
      %v4097 = vadd.f32 %v1409, %v3569
      %v4098 = vadd.f32 %v1410, %v3578
      %v4099 = vadd.f32 %v1411, %v3587
      %v4100 = vadd.f32 %v1412, %v3596
      %v4101 = vadd.f32 %v1413, %v3605
      %v4102 = vadd.f32 %v1414, %v3614
      %v4103 = vadd.f32 %v1415, %v3623
      %v4104 = vadd.f32 %v1416, %v3632
      %v4105 = vadd.f32 %v1417, %v3641
      %v4106 = vadd.f32 %v1418, %v3650
      %v4107 = vadd.f32 %v1419, %v3659
      %v4108 = vadd.f32 %v1420, %v3668
      %v4109 = vadd.f32 %v1421, %v3677
      %v4110 = vadd.f32 %v1422, %v3686
      %v4111 = vadd.f32 %v1423, %v3695
      %v4112 = vadd.f32 %v1424, %v3704
      %v4113 = vadd.f32 %v1425, %v3713
      %v4114 = vadd.f32 %v1426, %v3722
      %v4115 = vadd.f32 %v1427, %v3731
      %v4116 = vadd.f32 %v1428, %v3740
      %v4117 = vadd.f32 %v1429, %v3749
      %v4118 = vadd.f32 %v1430, %v3758
      %v4119 = vadd.f32 %v1431, %v3767
      %v4120 = vadd.f32 %v1432, %v3776
      %v4121 = vadd.f32 %v1433, %v3785
      %v4122 = vadd.f32 %v1434, %v3794
      %v4123 = vadd.f32 %v1435, %v3803
      %v4124 = vadd.f32 %v1436, %v3812
      %v4125 = vadd.f32 %v1437, %v3821
      %v4126 = vadd.f32 %v1438, %v3830
      %v4127 = vadd.f32 %v1439, %v3839
      %v4128 = vadd.f32 %v1440, %v3848
      %v4129 = vadd.f32 %v1441, %v3857
      %v4130 = vadd.f32 %v1442, %v3866
      %v4131 = vadd.f32 %v1443, %v3875
      %v4132 = vadd.f32 %v1444, %v3884
      %v4133 = vadd.f32 %v1445, %v3893
      %v4134 = vadd.f32 %v1446, %v3902
      %v4135 = vadd.f32 %v1447, %v3911
      %v4136 = vadd.f32 %v1448, %v3920
      %v4137 = vadd.f32 %v1449, %v3929
      %v4138 = vadd.f32 %v1450, %v3938
      %v4139 = vadd.f32 %v1451, %v3947
      %v4140 = vsub.f32 0.0, %v3948
      %v4141 = vsub.f32 0.0, %v3949
      %v4142 = vsub.f32 0.0, %v3950
      %v4143 = vsub.f32 0.0, %v3951
      %v4144 = vsub.f32 0.0, %v3952
      %v4145 = vsub.f32 0.0, %v3953
      %v4146 = vsub.f32 0.0, %v3954
      %v4147 = vsub.f32 0.0, %v3955
      %v4148 = vsub.f32 0.0, %v3956
      %v4149 = vsub.f32 0.0, %v3957
      %v4150 = vsub.f32 0.0, %v3958
      %v4151 = vsub.f32 0.0, %v3959
      %v4152 = vsub.f32 0.0, %v3960
      %v4153 = vsub.f32 0.0, %v3961
      %v4154 = vsub.f32 0.0, %v3962
      %v4155 = vsub.f32 0.0, %v3963
      %v4156 = vsub.f32 0.0, %v3964
      %v4157 = vsub.f32 0.0, %v3965
      %v4158 = vsub.f32 0.0, %v3966
      %v4159 = vsub.f32 0.0, %v3967
      %v4160 = vsub.f32 0.0, %v3968
      %v4161 = vsub.f32 0.0, %v3969
      %v4162 = vsub.f32 0.0, %v3970
      %v4163 = vsub.f32 0.0, %v3971
      %v4164 = vsub.f32 0.0, %v3972
      %v4165 = vsub.f32 0.0, %v3973
      %v4166 = vsub.f32 0.0, %v3974
      %v4167 = vsub.f32 0.0, %v3975
      %v4168 = vsub.f32 0.0, %v3976
      %v4169 = vsub.f32 0.0, %v3977
      %v4170 = vsub.f32 0.0, %v3978
      %v4171 = vsub.f32 0.0, %v3979
      %v4172 = vsub.f32 0.0, %v3980
      %v4173 = vsub.f32 0.0, %v3981
      %v4174 = vsub.f32 0.0, %v3982
      %v4175 = vsub.f32 0.0, %v3983
      %v4176 = vsub.f32 0.0, %v3984
      %v4177 = vsub.f32 0.0, %v3985
      %v4178 = vsub.f32 0.0, %v3986
      %v4179 = vsub.f32 0.0, %v3987
      %v4180 = vsub.f32 0.0, %v3988
      %v4181 = vsub.f32 0.0, %v3989
      %v4182 = vsub.f32 0.0, %v3990
      %v4183 = vsub.f32 0.0, %v3991
      %v4184 = vsub.f32 0.0, %v3992
      %v4185 = vsub.f32 0.0, %v3993
      %v4186 = vsub.f32 0.0, %v3994
      %v4187 = vsub.f32 0.0, %v3995
      %v4188 = vsub.f32 0.0, %v3996
      %v4189 = vsub.f32 0.0, %v3997
      %v4190 = vsub.f32 0.0, %v3998
      %v4191 = vsub.f32 0.0, %v3999
      %v4192 = vsub.f32 0.0, %v4000
      %v4193 = vsub.f32 0.0, %v4001
      %v4194 = vsub.f32 0.0, %v4002
      %v4195 = vsub.f32 0.0, %v4003
      %v4196 = vsub.f32 0.0, %v4004
      %v4197 = vsub.f32 0.0, %v4005
      %v4198 = vsub.f32 0.0, %v4006
      %v4199 = vsub.f32 0.0, %v4007
      %v4200 = vsub.f32 0.0, %v4008
      %v4201 = vsub.f32 0.0, %v4009
      %v4202 = vsub.f32 0.0, %v4010
      %v4203 = vsub.f32 0.0, %v4011
      %v4204 = vsub.f32 0.0, %v4012
      %v4205 = vsub.f32 0.0, %v4013
      %v4206 = vsub.f32 0.0, %v4014
      %v4207 = vsub.f32 0.0, %v4015
      %v4208 = vsub.f32 0.0, %v4016
      %v4209 = vsub.f32 0.0, %v4017
      %v4210 = vsub.f32 0.0, %v4018
      %v4211 = vsub.f32 0.0, %v4019
      %v4212 = vsub.f32 0.0, %v4020
      %v4213 = vsub.f32 0.0, %v4021
      %v4214 = vsub.f32 0.0, %v4022
      %v4215 = vsub.f32 0.0, %v4023
      %v4216 = vsub.f32 0.0, %v4024
      %v4217 = vsub.f32 0.0, %v4025
      %v4218 = vsub.f32 0.0, %v4026
      %v4219 = vsub.f32 0.0, %v4027
      %v4220 = vsub.f32 0.0, %v4028
      %v4221 = vsub.f32 0.0, %v4029
      %v4222 = vsub.f32 0.0, %v4030
      %v4223 = vsub.f32 0.0, %v4031
      %v4224 = vsub.f32 0.0, %v4032
      %v4225 = vsub.f32 0.0, %v4033
      %v4226 = vsub.f32 0.0, %v4034
      %v4227 = vsub.f32 0.0, %v4035
      %v4228 = vsub.f32 0.0, %v4036
      %v4229 = vsub.f32 0.0, %v4037
      %v4230 = vsub.f32 0.0, %v4038
      %v4231 = vsub.f32 0.0, %v4039
      %v4232 = vsub.f32 0.0, %v4040
      %v4233 = vsub.f32 0.0, %v4041
      %v4234 = vsub.f32 0.0, %v4042
      %v4235 = vsub.f32 0.0, %v4043
      %v4236 = vsub.f32 0.0, %v4044
      %v4237 = vsub.f32 0.0, %v4045
      %v4238 = vsub.f32 0.0, %v4046
      %v4239 = vsub.f32 0.0, %v4047
      %v4240 = vsub.f32 0.0, %v4048
      %v4241 = vsub.f32 0.0, %v4049
      %v4242 = vsub.f32 0.0, %v4050
      %v4243 = vsub.f32 0.0, %v4051
      %v4244 = vsub.f32 0.0, %v4052
      %v4245 = vsub.f32 0.0, %v4053
      %v4246 = vsub.f32 0.0, %v4054
      %v4247 = vsub.f32 0.0, %v4055
      %v4248 = vsub.f32 0.0, %v4056
      %v4249 = vsub.f32 0.0, %v4057
      %v4250 = vsub.f32 0.0, %v4058
      %v4251 = vsub.f32 0.0, %v4059
      %v4252 = vsub.f32 0.0, %v4060
      %v4253 = vsub.f32 0.0, %v4061
      %v4254 = vsub.f32 0.0, %v4062
      %v4255 = vsub.f32 0.0, %v4063
      %v4256 = vsub.f32 0.0, %v4064
      %v4257 = vsub.f32 0.0, %v4065
      %v4258 = vsub.f32 0.0, %v4066
      %v4259 = vsub.f32 0.0, %v4067
      %v4260 = vsub.f32 0.0, %v4068
      %v4261 = vsub.f32 0.0, %v4069
      %v4262 = vsub.f32 0.0, %v4070
      %v4263 = vsub.f32 0.0, %v4071
      %v4264 = vsub.f32 0.0, %v4072
      %v4265 = vsub.f32 0.0, %v4073
      %v4266 = vsub.f32 0.0, %v4074
      %v4267 = vsub.f32 0.0, %v4075
      %v4268 = vsub.f32 0.0, %v4076
      %v4269 = vsub.f32 0.0, %v4077
      %v4270 = vsub.f32 0.0, %v4078
      %v4271 = vsub.f32 0.0, %v4079
      %v4272 = vsub.f32 0.0, %v4080
      %v4273 = vsub.f32 0.0, %v4081
      %v4274 = vsub.f32 0.0, %v4082
      %v4275 = vsub.f32 0.0, %v4083
      %v4276 = vsub.f32 0.0, %v4084
      %v4277 = vsub.f32 0.0, %v4085
      %v4278 = vsub.f32 0.0, %v4086
      %v4279 = vsub.f32 0.0, %v4087
      %v4280 = vsub.f32 0.0, %v4088
      %v4281 = vsub.f32 0.0, %v4089
      %v4282 = vsub.f32 0.0, %v4090
      %v4283 = vsub.f32 0.0, %v4091
      %v4284 = vsub.f32 0.0, %v4092
      %v4285 = vsub.f32 0.0, %v4093
      %v4286 = vsub.f32 0.0, %v4094
      %v4287 = vsub.f32 0.0, %v4095
      %v4288 = vsub.f32 0.0, %v4096
      %v4289 = vsub.f32 0.0, %v4097
      %v4290 = vsub.f32 0.0, %v4098
      %v4291 = vsub.f32 0.0, %v4099
      %v4292 = vsub.f32 0.0, %v4100
      %v4293 = vsub.f32 0.0, %v4101
      %v4294 = vsub.f32 0.0, %v4102
      %v4295 = vsub.f32 0.0, %v4103
      %v4296 = vsub.f32 0.0, %v4104
      %v4297 = vsub.f32 0.0, %v4105
      %v4298 = vsub.f32 0.0, %v4106
      %v4299 = vsub.f32 0.0, %v4107
      %v4300 = vsub.f32 0.0, %v4108
      %v4301 = vsub.f32 0.0, %v4109
      %v4302 = vsub.f32 0.0, %v4110
      %v4303 = vsub.f32 0.0, %v4111
      %v4304 = vsub.f32 0.0, %v4112
      %v4305 = vsub.f32 0.0, %v4113
      %v4306 = vsub.f32 0.0, %v4114
      %v4307 = vsub.f32 0.0, %v4115
      %v4308 = vsub.f32 0.0, %v4116
      %v4309 = vsub.f32 0.0, %v4117
      %v4310 = vsub.f32 0.0, %v4118
      %v4311 = vsub.f32 0.0, %v4119
      %v4312 = vsub.f32 0.0, %v4120
      %v4313 = vsub.f32 0.0, %v4121
      %v4314 = vsub.f32 0.0, %v4122
      %v4315 = vsub.f32 0.0, %v4123
      %v4316 = vsub.f32 0.0, %v4124
      %v4317 = vsub.f32 0.0, %v4125
      %v4318 = vsub.f32 0.0, %v4126
      %v4319 = vsub.f32 0.0, %v4127
      %v4320 = vsub.f32 0.0, %v4128
      %v4321 = vsub.f32 0.0, %v4129
      %v4322 = vsub.f32 0.0, %v4130
      %v4323 = vsub.f32 0.0, %v4131
      %v4324 = vsub.f32 0.0, %v4132
      %v4325 = vsub.f32 0.0, %v4133
      %v4326 = vsub.f32 0.0, %v4134
      %v4327 = vsub.f32 0.0, %v4135
      %v4328 = vsub.f32 0.0, %v4136
      %v4329 = vsub.f32 0.0, %v4137
      %v4330 = vsub.f32 0.0, %v4138
      %v4331 = vsub.f32 0.0, %v4139
      %v4332 = vpack.c.bf16 %v4143, %v4140
      %v4333 = vpack.c.bf16 %v4144, %v4141
      %v4334 = vpack.c.bf16 %v4145, %v4142
      %v4335 = vpack.c.bf16 %v4149, %v4146
      %v4336 = vpack.c.bf16 %v4150, %v4147
      %v4337 = vpack.c.bf16 %v4151, %v4148
      %v4338 = vpack.c.bf16 %v4155, %v4152
      %v4339 = vpack.c.bf16 %v4156, %v4153
      %v4340 = vpack.c.bf16 %v4157, %v4154
      %v4341 = vpack.c.bf16 %v4161, %v4158
      %v4342 = vpack.c.bf16 %v4162, %v4159
      %v4343 = vpack.c.bf16 %v4163, %v4160
      %v4344 = vpack.c.bf16 %v4167, %v4164
      %v4345 = vpack.c.bf16 %v4168, %v4165
      %v4346 = vpack.c.bf16 %v4169, %v4166
      %v4347 = vpack.c.bf16 %v4173, %v4170
      %v4348 = vpack.c.bf16 %v4174, %v4171
      %v4349 = vpack.c.bf16 %v4175, %v4172
      %v4350 = vpack.c.bf16 %v4179, %v4176
      %v4351 = vpack.c.bf16 %v4180, %v4177
      %v4352 = vpack.c.bf16 %v4181, %v4178
      %v4353 = vpack.c.bf16 %v4185, %v4182
      %v4354 = vpack.c.bf16 %v4186, %v4183
      %v4355 = vpack.c.bf16 %v4187, %v4184
      %v4356 = vpack.c.bf16 %v4191, %v4188
      %v4357 = vpack.c.bf16 %v4192, %v4189
      %v4358 = vpack.c.bf16 %v4193, %v4190
      %v4359 = vpack.c.bf16 %v4197, %v4194
      %v4360 = vpack.c.bf16 %v4198, %v4195
      %v4361 = vpack.c.bf16 %v4199, %v4196
      %v4362 = vpack.c.bf16 %v4203, %v4200
      %v4363 = vpack.c.bf16 %v4204, %v4201
      %v4364 = vpack.c.bf16 %v4205, %v4202
      %v4365 = vpack.c.bf16 %v4209, %v4206
      %v4366 = vpack.c.bf16 %v4210, %v4207
      %v4367 = vpack.c.bf16 %v4211, %v4208
      %v4368 = vpack.c.bf16 %v4215, %v4212
      %v4369 = vpack.c.bf16 %v4216, %v4213
      %v4370 = vpack.c.bf16 %v4217, %v4214
      %v4371 = vpack.c.bf16 %v4221, %v4218
      %v4372 = vpack.c.bf16 %v4222, %v4219
      %v4373 = vpack.c.bf16 %v4223, %v4220
      %v4374 = vpack.c.bf16 %v4227, %v4224
      %v4375 = vpack.c.bf16 %v4228, %v4225
      %v4376 = vpack.c.bf16 %v4229, %v4226
      %v4377 = vpack.c.bf16 %v4233, %v4230
      %v4378 = vpack.c.bf16 %v4234, %v4231
      %v4379 = vpack.c.bf16 %v4235, %v4232
      %v4380 = vpack.c.bf16 %v4239, %v4236
      %v4381 = vpack.c.bf16 %v4240, %v4237
      %v4382 = vpack.c.bf16 %v4241, %v4238
      %v4383 = vpack.c.bf16 %v4245, %v4242
      %v4384 = vpack.c.bf16 %v4246, %v4243
      %v4385 = vpack.c.bf16 %v4247, %v4244
      %v4386 = vpack.c.bf16 %v4251, %v4248
      %v4387 = vpack.c.bf16 %v4252, %v4249
      %v4388 = vpack.c.bf16 %v4253, %v4250
      %v4389 = vpack.c.bf16 %v4257, %v4254
      %v4390 = vpack.c.bf16 %v4258, %v4255
      %v4391 = vpack.c.bf16 %v4259, %v4256
      %v4392 = vpack.c.bf16 %v4263, %v4260
      %v4393 = vpack.c.bf16 %v4264, %v4261
      %v4394 = vpack.c.bf16 %v4265, %v4262
      %v4395 = vpack.c.bf16 %v4269, %v4266
      %v4396 = vpack.c.bf16 %v4270, %v4267
      %v4397 = vpack.c.bf16 %v4271, %v4268
      %v4398 = vpack.c.bf16 %v4275, %v4272
      %v4399 = vpack.c.bf16 %v4276, %v4273
      %v4400 = vpack.c.bf16 %v4277, %v4274
      %v4401 = vpack.c.bf16 %v4281, %v4278
      %v4402 = vpack.c.bf16 %v4282, %v4279
      %v4403 = vpack.c.bf16 %v4283, %v4280
      %v4404 = vpack.c.bf16 %v4287, %v4284
      %v4405 = vpack.c.bf16 %v4288, %v4285
      %v4406 = vpack.c.bf16 %v4289, %v4286
      %v4407 = vpack.c.bf16 %v4293, %v4290
      %v4408 = vpack.c.bf16 %v4294, %v4291
      %v4409 = vpack.c.bf16 %v4295, %v4292
      %v4410 = vpack.c.bf16 %v4299, %v4296
      %v4411 = vpack.c.bf16 %v4300, %v4297
      %v4412 = vpack.c.bf16 %v4301, %v4298
      %v4413 = vpack.c.bf16 %v4305, %v4302
      %v4414 = vpack.c.bf16 %v4306, %v4303
      %v4415 = vpack.c.bf16 %v4307, %v4304
      %v4416 = vpack.c.bf16 %v4311, %v4308
      %v4417 = vpack.c.bf16 %v4312, %v4309
      %v4418 = vpack.c.bf16 %v4313, %v4310
      %v4419 = vpack.c.bf16 %v4317, %v4314
      %v4420 = vpack.c.bf16 %v4318, %v4315
      %v4421 = vpack.c.bf16 %v4319, %v4316
      %v4422 = vpack.c.bf16 %v4323, %v4320
      %v4423 = vpack.c.bf16 %v4324, %v4321
      %v4424 = vpack.c.bf16 %v4325, %v4322
      %v4425 = vpack.c.bf16 %v4329, %v4326
      %v4426 = vpack.c.bf16 %v4330, %v4327
      %v4427 = vpack.c.bf16 %v4331, %v4328
      %v4428 = vld [vmem:[%s2] sm:$0xf]
      %v4429 = vld [vmem:[%s2 + $0x4] sm:$0xf]
      %v4430 = vld [vmem:[%s2 + $0x8] sm:$0xf]
      %v4431 = vld [vmem:[%s2 + $0xc] sm:$0xf]
      %v4432 = vld [vmem:[%s2 + $0x10] sm:$0xf]
      %v4433 = vld [vmem:[%s2 + $0x14] sm:$0xf]
      %v4434 = vld [vmem:[%s2 + $0x18] sm:$0xf]
      %v4435 = vld [vmem:[%s2 + $0x1c] sm:$0xf]
      %v4436 = vld [vmem:[%s2 + $0x20] sm:$0xf]
      %v4437 = vld [vmem:[%s2 + $0x24] sm:$0xf]
      %v4438 = vld [vmem:[%s2 + $0x28] sm:$0xf]
      %v4439 = vld [vmem:[%s2 + $0x2c] sm:$0xf]
      %v4440 = vld [vmem:[%s2 + $0x30] sm:$0xf]
      %v4441 = vld [vmem:[%s2 + $0x34] sm:$0xf]
      %v4442 = vld [vmem:[%s2 + $0x38] sm:$0xf]
      %v4443 = vld [vmem:[%s2 + $0x3c] sm:$0xf]
      %v4444 = vld [vmem:[%s2 + $0x40] sm:$0xf]
      %v4445 = vld [vmem:[%s2 + $0x44] sm:$0xf]
      %v4446 = vld [vmem:[%s2 + $0x48] sm:$0xf]
      %v4447 = vld [vmem:[%s2 + $0x4c] sm:$0xf]
      %v4448 = vld [vmem:[%s2 + $0x50] sm:$0xf]
      %v4449 = vld [vmem:[%s2 + $0x54] sm:$0xf]
      %v4450 = vld [vmem:[%s2 + $0x58] sm:$0xf]
      %v4451 = vld [vmem:[%s2 + $0x5c] sm:$0xf]
      %v4452 = vld [vmem:[%s2 + $0x60] sm:$0xf]
      %v4453 = vld [vmem:[%s2 + $0x64] sm:$0xf]
      %v4454 = vld [vmem:[%s2 + $0x68] sm:$0xf]
      %v4455 = vld [vmem:[%s2 + $0x6c] sm:$0xf]
      %v4456 = vld [vmem:[%s2 + $0x70] sm:$0xf]
      %v4457 = vld [vmem:[%s2 + $0x74] sm:$0xf]
      %v4458 = vld [vmem:[%s2 + $0x78] sm:$0xf]
      %v4459 = vld [vmem:[%s2 + $0x7c] sm:$0xf]
      %v4460 = vld [vmem:[%s2 + $0x80] sm:$0xf]
      %v4461 = vld [vmem:[%s2 + $0x84] sm:$0xf]
      %v4462 = vld [vmem:[%s2 + $0x88] sm:$0xf]
      %v4463 = vld [vmem:[%s2 + $0x8c] sm:$0xf]
      %v4464 = vld [vmem:[%s2 + $0x90] sm:$0xf]
      %v4465 = vld [vmem:[%s2 + $0x94] sm:$0xf]
      %v4466 = vld [vmem:[%s2 + $0x98] sm:$0xf]
      %v4467 = vld [vmem:[%s2 + $0x9c] sm:$0xf]
      %v4468 = vld [vmem:[%s2 + $0xa0] sm:$0xf]
      %v4469 = vld [vmem:[%s2 + $0xa4] sm:$0xf]
      %v4470 = vld [vmem:[%s2 + $0xa8] sm:$0xf]
      %v4471 = vld [vmem:[%s2 + $0xac] sm:$0xf]
      %v4472 = vld [vmem:[%s2 + $0xb0] sm:$0xf]
      %v4473 = vld [vmem:[%s2 + $0xb4] sm:$0xf]
      %v4474 = vld [vmem:[%s2 + $0xb8] sm:$0xf]
      %v4475 = vld [vmem:[%s2 + $0xbc] sm:$0xf]
      %v4476 = vld [vmem:[%s2 + $0xc0] sm:$0xf]
      %v4477 = vld [vmem:[%s2 + $0xc4] sm:$0xf]
      %v4478 = vld [vmem:[%s2 + $0xc8] sm:$0xf]
      %v4479 = vld [vmem:[%s2 + $0xcc] sm:$0xf]
      %v4480 = vld [vmem:[%s2 + $0xd0] sm:$0xf]
      %v4481 = vld [vmem:[%s2 + $0xd4] sm:$0xf]
      %v4482 = vld [vmem:[%s2 + $0xd8] sm:$0xf]
      %v4483 = vld [vmem:[%s2 + $0xdc] sm:$0xf]
      %v4484 = vld [vmem:[%s2 + $0xe0] sm:$0xf]
      %v4485 = vld [vmem:[%s2 + $0xe4] sm:$0xf]
      %v4486 = vld [vmem:[%s2 + $0xe8] sm:$0xf]
      %v4487 = vld [vmem:[%s2 + $0xec] sm:$0xf]
      %v4488 = vld [vmem:[%s2 + $0xf0] sm:$0xf]
      %v4489 = vld [vmem:[%s2 + $0xf4] sm:$0xf]
      %v4490 = vld [vmem:[%s2 + $0xf8] sm:$0xf]
      %v4491 = vld [vmem:[%s2 + $0xfc] sm:$0xf]
      %v4556 = vunpack.c.l.b16 %v4428
      %v4557 = vunpack.c.l.b16 %v4429
      %v4558 = vunpack.c.l.b16 %v4430
      %v4559 = vunpack.c.l.b16 %v4431
      %v4560 = vunpack.c.l.b16 %v4432
      %v4561 = vunpack.c.l.b16 %v4433
      %v4562 = vunpack.c.l.b16 %v4434
      %v4563 = vunpack.c.l.b16 %v4435
      %v4564 = vunpack.c.l.b16 %v4436
      %v4565 = vunpack.c.l.b16 %v4437
      %v4566 = vunpack.c.l.b16 %v4438
      %v4567 = vunpack.c.l.b16 %v4439
      %v4568 = vunpack.c.l.b16 %v4440
      %v4569 = vunpack.c.l.b16 %v4441
      %v4570 = vunpack.c.l.b16 %v4442
      %v4571 = vunpack.c.l.b16 %v4443
      %v4572 = vunpack.c.l.b16 %v4444
      %v4573 = vunpack.c.l.b16 %v4445
      %v4574 = vunpack.c.l.b16 %v4446
      %v4575 = vunpack.c.l.b16 %v4447
      %v4576 = vunpack.c.l.b16 %v4448
      %v4577 = vunpack.c.l.b16 %v4449
      %v4578 = vunpack.c.l.b16 %v4450
      %v4579 = vunpack.c.l.b16 %v4451
      %v4580 = vunpack.c.l.b16 %v4452
      %v4581 = vunpack.c.l.b16 %v4453
      %v4582 = vunpack.c.l.b16 %v4454
      %v4583 = vunpack.c.l.b16 %v4455
      %v4584 = vunpack.c.l.b16 %v4456
      %v4585 = vunpack.c.l.b16 %v4457
      %v4586 = vunpack.c.l.b16 %v4458
      %v4587 = vunpack.c.l.b16 %v4459
      %v4588 = vunpack.c.l.b16 %v4460
      %v4589 = vunpack.c.l.b16 %v4461
      %v4590 = vunpack.c.l.b16 %v4462
      %v4591 = vunpack.c.l.b16 %v4463
      %v4592 = vunpack.c.l.b16 %v4464
      %v4593 = vunpack.c.l.b16 %v4465
      %v4594 = vunpack.c.l.b16 %v4466
      %v4595 = vunpack.c.l.b16 %v4467
      %v4596 = vunpack.c.l.b16 %v4468
      %v4597 = vunpack.c.l.b16 %v4469
      %v4598 = vunpack.c.l.b16 %v4470
      %v4599 = vunpack.c.l.b16 %v4471
      %v4600 = vunpack.c.l.b16 %v4472
      %v4601 = vunpack.c.l.b16 %v4473
      %v4602 = vunpack.c.l.b16 %v4474
      %v4603 = vunpack.c.l.b16 %v4475
      %v4604 = vunpack.c.l.b16 %v4476
      %v4605 = vunpack.c.l.b16 %v4477
      %v4606 = vunpack.c.l.b16 %v4478
      %v4607 = vunpack.c.l.b16 %v4479
      %v4608 = vunpack.c.l.b16 %v4480
      %v4609 = vunpack.c.l.b16 %v4481
      %v4610 = vunpack.c.l.b16 %v4482
      %v4611 = vunpack.c.l.b16 %v4483
      %v4612 = vunpack.c.l.b16 %v4484
      %v4613 = vunpack.c.l.b16 %v4485
      %v4614 = vunpack.c.l.b16 %v4486
      %v4615 = vunpack.c.l.b16 %v4487
      %v4616 = vunpack.c.l.b16 %v4488
      %v4617 = vunpack.c.l.b16 %v4489
      %v4618 = vunpack.c.l.b16 %v4490
      %v4619 = vunpack.c.l.b16 %v4491
      %v4620 = vpack.c.b16 %v4557, %v4556
      %v4621 = vpack.c.b16 %v4559, %v4558
      %v4622 = vpack.c.b16 %v4561, %v4560
      %v4623 = vpack.c.b16 %v4563, %v4562
      %v4624 = vpack.c.b16 %v4565, %v4564
      %v4625 = vpack.c.b16 %v4567, %v4566
      %v4626 = vpack.c.b16 %v4569, %v4568
      %v4627 = vpack.c.b16 %v4571, %v4570
      %v4628 = vpack.c.b16 %v4573, %v4572
      %v4629 = vpack.c.b16 %v4575, %v4574
      %v4630 = vpack.c.b16 %v4577, %v4576
      %v4631 = vpack.c.b16 %v4579, %v4578
      %v4632 = vpack.c.b16 %v4581, %v4580
      %v4633 = vpack.c.b16 %v4583, %v4582
      %v4634 = vpack.c.b16 %v4585, %v4584
      %v4635 = vpack.c.b16 %v4587, %v4586
      %v4636 = vpack.c.b16 %v4589, %v4588
      %v4637 = vpack.c.b16 %v4591, %v4590
      %v4638 = vpack.c.b16 %v4593, %v4592
      %v4639 = vpack.c.b16 %v4595, %v4594
      %v4640 = vpack.c.b16 %v4597, %v4596
      %v4641 = vpack.c.b16 %v4599, %v4598
      %v4642 = vpack.c.b16 %v4601, %v4600
      %v4643 = vpack.c.b16 %v4603, %v4602
      %v4644 = vpack.c.b16 %v4605, %v4604
      %v4645 = vpack.c.b16 %v4607, %v4606
      %v4646 = vpack.c.b16 %v4609, %v4608
      %v4647 = vpack.c.b16 %v4611, %v4610
      %v4648 = vpack.c.b16 %v4613, %v4612
      %v4649 = vpack.c.b16 %v4615, %v4614
      %v4650 = vpack.c.b16 %v4617, %v4616
      %v4651 = vpack.c.b16 %v4619, %v4618
      %4684 = vmatprep.subr.bf16.mxu0 0
      %4685 = vmatpush1.bf16.msra.mxu0 %v4620
      %4686 = vmatprep.subr.bf16.mxu0 0
      %4687 = vmatpush1.bf16.msra.mxu0 %v4621
      %4688 = vmatprep.subr.bf16.mxu0 0
      %4689 = vmatpush1.bf16.msra.mxu0 %v4622
      %4690 = vmatprep.subr.bf16.mxu0 0
      %4691 = vmatpush1.bf16.msra.mxu0 %v4623
      %4692 = vmatprep.subr.bf16.mxu0 0
      %4693 = vmatpush1.bf16.msra.mxu0 %v4624
      %4694 = vmatprep.subr.bf16.mxu0 0
      %4695 = vmatpush1.bf16.msra.mxu0 %v4625
      %4696 = vmatprep.subr.bf16.mxu0 0
      %4697 = vmatpush1.bf16.msra.mxu0 %v4626
      %4698 = vmatprep.subr.bf16.mxu0 0
      %4699 = vmatpush1.bf16.msra.mxu0 %v4627
      %4700 = vmatprep.subr.bf16.mxu0 0
      %4701 = vmatpush1.bf16.msra.mxu0 %v4628
      %4702 = vmatprep.subr.bf16.mxu0 0
      %4703 = vmatpush1.bf16.msra.mxu0 %v4629
      %4704 = vmatprep.subr.bf16.mxu0 0
      %4705 = vmatpush1.bf16.msra.mxu0 %v4630
      %4706 = vmatprep.subr.bf16.mxu0 0
      %4707 = vmatpush1.bf16.msra.mxu0 %v4631
      %4708 = vmatprep.subr.bf16.mxu0 0
      %4709 = vmatpush1.bf16.msra.mxu0 %v4632
      %4710 = vmatprep.subr.bf16.mxu0 0
      %4711 = vmatpush1.bf16.msra.mxu0 %v4633
      %4712 = vmatprep.subr.bf16.mxu0 0
      %4713 = vmatpush1.bf16.msra.mxu0 %v4634
      %4714 = vmatprep.subr.bf16.mxu0 0
      %4715 = vmatpush1.bf16.msra.mxu0 %v4635
      %4716 = vmatprep.mubr.bf16.mxu0 %v4333
      %4717 = vmatmul.mubr.bf16.gmra.mrb[0].mxu0 %v4332
      %v4718 = vpop.f32.mrb[0].mxu0
      %v4719 = vadd.f32 0.0, %v4718
      %v4720 = vpop.f32.mrb[0].mxu0
      %v4721 = vpop.f32.mrb[0].mxu0
      %v4722 = vadd.f32 0.0, %v4721
      %v4723 = vpop.f32.mrb[0].mxu0
      %4724 = vmatprep.mubr.bf16.mxu0 %v4336
      %4725 = vmatmul.mubr.bf16.gmra.mrb[0].mxu0 %v4335
      %v4726 = vpop.f32.mrb[0].mxu0
      %v4727 = vadd.f32 0.0, %v4726
      %v4728 = vpop.f32.mrb[0].mxu0
      %v4729 = vpop.f32.mrb[0].mxu0
      %v4730 = vadd.f32 0.0, %v4729
      %v4731 = vpop.f32.mrb[0].mxu0
      %4732 = vmatprep.mubr.bf16.mxu0 %v4339
      %4733 = vmatmul.mubr.bf16.gmra.mrb[0].mxu0 %v4338
      %v4734 = vpop.f32.mrb[0].mxu0
      %v4735 = vadd.f32 0.0, %v4734
      %v4736 = vpop.f32.mrb[0].mxu0
      %v4737 = vpop.f32.mrb[0].mxu0
      %v4738 = vadd.f32 0.0, %v4737
      %v4739 = vpop.f32.mrb[0].mxu0
      %4740 = vmatprep.mubr.bf16.mxu0 %v4342
      %4741 = vmatmul.mubr.bf16.gmra.mrb[0].mxu0 %v4341
      %v4742 = vpop.f32.mrb[0].mxu0
      %v4743 = vadd.f32 0.0, %v4742
      %v4744 = vpop.f32.mrb[0].mxu0
      %v4745 = vpop.f32.mrb[0].mxu0
      %v4746 = vadd.f32 0.0, %v4745
      %v4747 = vpop.f32.mrb[0].mxu0
      %4748 = vmatprep.mubr.bf16.mxu0 %v4345
      %4749 = vmatmul.mubr.bf16.gmra.mrb[0].mxu0 %v4344
      %v4750 = vpop.f32.mrb[0].mxu0
      %v4751 = vadd.f32 0.0, %v4750
      %v4752 = vpop.f32.mrb[0].mxu0
      %v4753 = vpop.f32.mrb[0].mxu0
      %v4754 = vadd.f32 0.0, %v4753
      %v4755 = vpop.f32.mrb[0].mxu0
      %4756 = vmatprep.mubr.bf16.mxu0 %v4348
      %4757 = vmatmul.mubr.bf16.gmra.mrb[0].mxu0 %v4347
      %v4758 = vpop.f32.mrb[0].mxu0
      %v4759 = vadd.f32 0.0, %v4758
      %v4760 = vpop.f32.mrb[0].mxu0
      %v4761 = vpop.f32.mrb[0].mxu0
      %v4762 = vadd.f32 0.0, %v4761
      %v4763 = vpop.f32.mrb[0].mxu0
      %4764 = vmatprep.mubr.bf16.mxu0 %v4351
      %4765 = vmatmul.mubr.bf16.gmra.mrb[0].mxu0 %v4350
      %v4766 = vpop.f32.mrb[0].mxu0
      %v4767 = vadd.f32 0.0, %v4766
      %v4768 = vpop.f32.mrb[0].mxu0
      %v4769 = vpop.f32.mrb[0].mxu0
      %v4770 = vadd.f32 0.0, %v4769
      %v4771 = vpop.f32.mrb[0].mxu0
      %4772 = vmatprep.mubr.bf16.mxu0 %v4354
      %4773 = vmatmul.mubr.bf16.gmra.mrb[0].mxu0 %v4353
      %v4774 = vpop.f32.mrb[0].mxu0
      %v4775 = vadd.f32 0.0, %v4774
      %v4776 = vpop.f32.mrb[0].mxu0
      %v4777 = vpop.f32.mrb[0].mxu0
      %v4778 = vadd.f32 0.0, %v4777
      %v4779 = vpop.f32.mrb[0].mxu0
      %4780 = vmatprep.mubr.bf16.mxu0 %v4357
      %4781 = vmatmul.mubr.bf16.gmra.mrb[0].mxu0 %v4356
      %v4782 = vpop.f32.mrb[0].mxu0
      %v4783 = vadd.f32 0.0, %v4782
      %v4784 = vpop.f32.mrb[0].mxu0
      %v4785 = vpop.f32.mrb[0].mxu0
      %v4786 = vadd.f32 0.0, %v4785
      %v4787 = vpop.f32.mrb[0].mxu0
      %4788 = vmatprep.mubr.bf16.mxu0 %v4360
      %4789 = vmatmul.mubr.bf16.gmra.mrb[0].mxu0 %v4359
      %v4790 = vpop.f32.mrb[0].mxu0
      %v4791 = vadd.f32 0.0, %v4790
      %v4792 = vpop.f32.mrb[0].mxu0
      %v4793 = vpop.f32.mrb[0].mxu0
      %v4794 = vadd.f32 0.0, %v4793
      %v4795 = vpop.f32.mrb[0].mxu0
      %4796 = vmatprep.mubr.bf16.mxu0 %v4363
      %4797 = vmatmul.mubr.bf16.gmra.mrb[0].mxu0 %v4362
      %v4798 = vpop.f32.mrb[0].mxu0
      %v4799 = vadd.f32 0.0, %v4798
      %v4800 = vpop.f32.mrb[0].mxu0
      %v4801 = vpop.f32.mrb[0].mxu0
      %v4802 = vadd.f32 0.0, %v4801
      %v4803 = vpop.f32.mrb[0].mxu0
      %4804 = vmatprep.mubr.bf16.mxu0 %v4366
      %4805 = vmatmul.mubr.bf16.gmra.mrb[0].mxu0 %v4365
      %v4806 = vpop.f32.mrb[0].mxu0
      %v4807 = vadd.f32 0.0, %v4806
      %v4808 = vpop.f32.mrb[0].mxu0
      %v4809 = vpop.f32.mrb[0].mxu0
      %v4810 = vadd.f32 0.0, %v4809
      %v4811 = vpop.f32.mrb[0].mxu0
      %4812 = vmatprep.mubr.bf16.mxu0 %v4369
      %4813 = vmatmul.mubr.bf16.gmra.mrb[0].mxu0 %v4368
      %v4814 = vpop.f32.mrb[0].mxu0
      %v4815 = vadd.f32 0.0, %v4814
      %v4816 = vpop.f32.mrb[0].mxu0
      %v4817 = vpop.f32.mrb[0].mxu0
      %v4818 = vadd.f32 0.0, %v4817
      %v4819 = vpop.f32.mrb[0].mxu0
      %4820 = vmatprep.mubr.bf16.mxu0 %v4372
      %4821 = vmatmul.mubr.bf16.gmra.mrb[0].mxu0 %v4371
      %v4822 = vpop.f32.mrb[0].mxu0
      %v4823 = vadd.f32 0.0, %v4822
      %v4824 = vpop.f32.mrb[0].mxu0
      %v4825 = vpop.f32.mrb[0].mxu0
      %v4826 = vadd.f32 0.0, %v4825
      %v4827 = vpop.f32.mrb[0].mxu0
      %4828 = vmatprep.mubr.bf16.mxu0 %v4375
      %4829 = vmatmul.mubr.bf16.gmra.mrb[0].mxu0 %v4374
      %v4830 = vpop.f32.mrb[0].mxu0
      %v4831 = vadd.f32 0.0, %v4830
      %v4832 = vpop.f32.mrb[0].mxu0
      %v4833 = vpop.f32.mrb[0].mxu0
      %v4834 = vadd.f32 0.0, %v4833
      %v4835 = vpop.f32.mrb[0].mxu0
      %4836 = vmatprep.mubr.bf16.mxu0 %v4378
      %4837 = vmatmul.mubr.bf16.gmra.mrb[0].mxu0 %v4377
      %v4838 = vpop.f32.mrb[0].mxu0
      %v4839 = vadd.f32 0.0, %v4838
      %v4840 = vpop.f32.mrb[0].mxu0
      %v4841 = vpop.f32.mrb[0].mxu0
      %v4842 = vadd.f32 0.0, %v4841
      %v4843 = vpop.f32.mrb[0].mxu0
      %4844 = vmatprep.mubr.bf16.mxu0 %v4381
      %4845 = vmatmul.mubr.bf16.gmra.mrb[0].mxu0 %v4380
      %v4846 = vpop.f32.mrb[0].mxu0
      %v4847 = vadd.f32 0.0, %v4846
      %v4848 = vpop.f32.mrb[0].mxu0
      %v4849 = vpop.f32.mrb[0].mxu0
      %v4850 = vadd.f32 0.0, %v4849
      %v4851 = vpop.f32.mrb[0].mxu0
      %4852 = vmatprep.mubr.bf16.mxu0 %v4384
      %4853 = vmatmul.mubr.bf16.gmra.mrb[0].mxu0 %v4383
      %v4854 = vpop.f32.mrb[0].mxu0
      %v4855 = vadd.f32 0.0, %v4854
      %v4856 = vpop.f32.mrb[0].mxu0
      %v4857 = vpop.f32.mrb[0].mxu0
      %v4858 = vadd.f32 0.0, %v4857
      %v4859 = vpop.f32.mrb[0].mxu0
      %4860 = vmatprep.mubr.bf16.mxu0 %v4387
      %4861 = vmatmul.mubr.bf16.gmra.mrb[0].mxu0 %v4386
      %v4862 = vpop.f32.mrb[0].mxu0
      %v4863 = vadd.f32 0.0, %v4862
      %v4864 = vpop.f32.mrb[0].mxu0
      %v4865 = vpop.f32.mrb[0].mxu0
      %v4866 = vadd.f32 0.0, %v4865
      %v4867 = vpop.f32.mrb[0].mxu0
      %4868 = vmatprep.mubr.bf16.mxu0 %v4390
      %4869 = vmatmul.mubr.bf16.gmra.mrb[0].mxu0 %v4389
      %v4870 = vpop.f32.mrb[0].mxu0
      %v4871 = vadd.f32 0.0, %v4870
      %v4872 = vpop.f32.mrb[0].mxu0
      %v4873 = vpop.f32.mrb[0].mxu0
      %v4874 = vadd.f32 0.0, %v4873
      %v4875 = vpop.f32.mrb[0].mxu0
      %4876 = vmatprep.mubr.bf16.mxu0 %v4393
      %4877 = vmatmul.mubr.bf16.gmra.mrb[0].mxu0 %v4392
      %v4878 = vpop.f32.mrb[0].mxu0
      %v4879 = vadd.f32 0.0, %v4878
      %v4880 = vpop.f32.mrb[0].mxu0
      %v4881 = vpop.f32.mrb[0].mxu0
      %v4882 = vadd.f32 0.0, %v4881
      %v4883 = vpop.f32.mrb[0].mxu0
      %4884 = vmatprep.mubr.bf16.mxu0 %v4396
      %4885 = vmatmul.mubr.bf16.gmra.mrb[0].mxu0 %v4395
      %v4886 = vpop.f32.mrb[0].mxu0
      %v4887 = vadd.f32 0.0, %v4886
      %v4888 = vpop.f32.mrb[0].mxu0
      %v4889 = vpop.f32.mrb[0].mxu0
      %v4890 = vadd.f32 0.0, %v4889
      %v4891 = vpop.f32.mrb[0].mxu0
      %4892 = vmatprep.mubr.bf16.mxu0 %v4399
      %4893 = vmatmul.mubr.bf16.gmra.mrb[0].mxu0 %v4398
      %v4894 = vpop.f32.mrb[0].mxu0
      %v4895 = vadd.f32 0.0, %v4894
      %v4896 = vpop.f32.mrb[0].mxu0
      %v4897 = vpop.f32.mrb[0].mxu0
      %v4898 = vadd.f32 0.0, %v4897
      %v4899 = vpop.f32.mrb[0].mxu0
      %4900 = vmatprep.mubr.bf16.mxu0 %v4402
      %4901 = vmatmul.mubr.bf16.gmra.mrb[0].mxu0 %v4401
      %v4902 = vpop.f32.mrb[0].mxu0
      %v4903 = vadd.f32 0.0, %v4902
      %v4904 = vpop.f32.mrb[0].mxu0
      %v4905 = vpop.f32.mrb[0].mxu0
      %v4906 = vadd.f32 0.0, %v4905
      %v4907 = vpop.f32.mrb[0].mxu0
      %4908 = vmatprep.mubr.bf16.mxu0 %v4405
      %4909 = vmatmul.mubr.bf16.gmra.mrb[0].mxu0 %v4404
      %v4910 = vpop.f32.mrb[0].mxu0
      %v4911 = vadd.f32 0.0, %v4910
      %v4912 = vpop.f32.mrb[0].mxu0
      %v4913 = vpop.f32.mrb[0].mxu0
      %v4914 = vadd.f32 0.0, %v4913
      %v4915 = vpop.f32.mrb[0].mxu0
      %4916 = vmatprep.mubr.bf16.mxu0 %v4408
      %4917 = vmatmul.mubr.bf16.gmra.mrb[0].mxu0 %v4407
      %v4918 = vpop.f32.mrb[0].mxu0
      %v4919 = vadd.f32 0.0, %v4918
      %v4920 = vpop.f32.mrb[0].mxu0
      %v4921 = vpop.f32.mrb[0].mxu0
      %v4922 = vadd.f32 0.0, %v4921
      %v4923 = vpop.f32.mrb[0].mxu0
      %4924 = vmatprep.mubr.bf16.mxu0 %v4411
      %4925 = vmatmul.mubr.bf16.gmra.mrb[0].mxu0 %v4410
      %v4926 = vpop.f32.mrb[0].mxu0
      %v4927 = vadd.f32 0.0, %v4926
      %v4928 = vpop.f32.mrb[0].mxu0
      %v4929 = vpop.f32.mrb[0].mxu0
      %v4930 = vadd.f32 0.0, %v4929
      %v4931 = vpop.f32.mrb[0].mxu0
      %4932 = vmatprep.mubr.bf16.mxu0 %v4414
      %4933 = vmatmul.mubr.bf16.gmra.mrb[0].mxu0 %v4413
      %v4934 = vpop.f32.mrb[0].mxu0
      %v4935 = vadd.f32 0.0, %v4934
      %v4936 = vpop.f32.mrb[0].mxu0
      %v4937 = vpop.f32.mrb[0].mxu0
      %v4938 = vadd.f32 0.0, %v4937
      %v4939 = vpop.f32.mrb[0].mxu0
      %4940 = vmatprep.mubr.bf16.mxu0 %v4417
      %4941 = vmatmul.mubr.bf16.gmra.mrb[0].mxu0 %v4416
      %v4942 = vpop.f32.mrb[0].mxu0
      %v4943 = vadd.f32 0.0, %v4942
      %v4944 = vpop.f32.mrb[0].mxu0
      %v4945 = vpop.f32.mrb[0].mxu0
      %v4946 = vadd.f32 0.0, %v4945
      %v4947 = vpop.f32.mrb[0].mxu0
      %4948 = vmatprep.mubr.bf16.mxu0 %v4420
      %4949 = vmatmul.mubr.bf16.gmra.mrb[0].mxu0 %v4419
      %v4950 = vpop.f32.mrb[0].mxu0
      %v4951 = vadd.f32 0.0, %v4950
      %v4952 = vpop.f32.mrb[0].mxu0
      %v4953 = vpop.f32.mrb[0].mxu0
      %v4954 = vadd.f32 0.0, %v4953
      %v4955 = vpop.f32.mrb[0].mxu0
      %4956 = vmatprep.mubr.bf16.mxu0 %v4423
      %4957 = vmatmul.mubr.bf16.gmra.mrb[0].mxu0 %v4422
      %v4958 = vpop.f32.mrb[0].mxu0
      %v4959 = vadd.f32 0.0, %v4958
      %v4960 = vpop.f32.mrb[0].mxu0
      %v4961 = vpop.f32.mrb[0].mxu0
      %v4962 = vadd.f32 0.0, %v4961
      %v4963 = vpop.f32.mrb[0].mxu0
      %4964 = vmatprep.mubr.bf16.mxu0 %v4426
      %4965 = vmatmul.mubr.bf16.gmra.mrb[0].mxu0 %v4425
      %v4966 = vpop.f32.mrb[0].mxu0
      %v4967 = vadd.f32 0.0, %v4966
      %v4968 = vpop.f32.mrb[0].mxu0
      %v4969 = vpop.f32.mrb[0].mxu0
      %v4970 = vadd.f32 0.0, %v4969
      %v4971 = vpop.f32.mrb[0].mxu0
      %4972 = vdwg.mxu0
      %4973 = vmatprep.subr.bf16.mxu0 0
      %4974 = vmatpush1.bf16.msra.mxu0 %v4636
      %4975 = vmatprep.subr.bf16.mxu0 0
      %4976 = vmatpush1.bf16.msra.mxu0 %v4637
      %4977 = vmatprep.subr.bf16.mxu0 0
      %4978 = vmatpush1.bf16.msra.mxu0 %v4638
      %4979 = vmatprep.subr.bf16.mxu0 0
      %4980 = vmatpush1.bf16.msra.mxu0 %v4639
      %4981 = vmatprep.subr.bf16.mxu0 0
      %4982 = vmatpush1.bf16.msra.mxu0 %v4640
      %4983 = vmatprep.subr.bf16.mxu0 0
      %4984 = vmatpush1.bf16.msra.mxu0 %v4641
      %4985 = vmatprep.subr.bf16.mxu0 0
      %4986 = vmatpush1.bf16.msra.mxu0 %v4642
      %4987 = vmatprep.subr.bf16.mxu0 0
      %4988 = vmatpush1.bf16.msra.mxu0 %v4643
      %4989 = vmatprep.subr.bf16.mxu0 0
      %4990 = vmatpush1.bf16.msra.mxu0 %v4644
      %4991 = vmatprep.subr.bf16.mxu0 0
      %4992 = vmatpush1.bf16.msra.mxu0 %v4645
      %4993 = vmatprep.subr.bf16.mxu0 0
      %4994 = vmatpush1.bf16.msra.mxu0 %v4646
      %4995 = vmatprep.subr.bf16.mxu0 0
      %4996 = vmatpush1.bf16.msra.mxu0 %v4647
      %4997 = vmatprep.subr.bf16.mxu0 0
      %4998 = vmatpush1.bf16.msra.mxu0 %v4648
      %4999 = vmatprep.subr.bf16.mxu0 0
      %5000 = vmatpush1.bf16.msra.mxu0 %v4649
      %5001 = vmatprep.subr.bf16.mxu0 0
      %5002 = vmatpush1.bf16.msra.mxu0 %v4650
      %5003 = vmatprep.subr.bf16.mxu0 0
      %5004 = vmatpush1.bf16.msra.mxu0 %v4651
      %5005 = vmatprep.mubr.bf16.mxu0 %v426
      %5006 = vmatmul.mubr.bf16.gmra.mrb[0].mxu0 %v4334
      %v5007 = vpop.f32.mrb[0].mxu0
      %v5008 = vadd.f32 %v4719, %v5007
      %v5009 = vpop.f32.mrb[0].mxu0
      %v5010 = vpop.f32.mrb[0].mxu0
      %v5011 = vadd.f32 %v4722, %v5010
      %v5012 = vpop.f32.mrb[0].mxu0
      %5013 = vmatprep.mubr.bf16.mxu0 %v427
      %5014 = vmatmul.mubr.bf16.gmra.mrb[0].mxu0 %v4337
      %v5015 = vpop.f32.mrb[0].mxu0
      %v5016 = vadd.f32 %v4727, %v5015
      %v5017 = vpop.f32.mrb[0].mxu0
      %v5018 = vpop.f32.mrb[0].mxu0
      %v5019 = vadd.f32 %v4730, %v5018
      %v5020 = vpop.f32.mrb[0].mxu0
      %5021 = vmatprep.mubr.bf16.mxu0 %v428
      %5022 = vmatmul.mubr.bf16.gmra.mrb[0].mxu0 %v4340
      %v5023 = vpop.f32.mrb[0].mxu0
      %v5024 = vadd.f32 %v4735, %v5023
      %v5025 = vpop.f32.mrb[0].mxu0
      %v5026 = vpop.f32.mrb[0].mxu0
      %v5027 = vadd.f32 %v4738, %v5026
      %v5028 = vpop.f32.mrb[0].mxu0
      %5029 = vmatprep.mubr.bf16.mxu0 %v429
      %5030 = vmatmul.mubr.bf16.gmra.mrb[0].mxu0 %v4343
      %v5031 = vpop.f32.mrb[0].mxu0
      %v5032 = vadd.f32 %v4743, %v5031
      %v5033 = vpop.f32.mrb[0].mxu0
      %v5034 = vpop.f32.mrb[0].mxu0
      %v5035 = vadd.f32 %v4746, %v5034
      %v5036 = vpop.f32.mrb[0].mxu0
      %5037 = vmatprep.mubr.bf16.mxu0 %v430
      %5038 = vmatmul.mubr.bf16.gmra.mrb[0].mxu0 %v4346
      %v5039 = vpop.f32.mrb[0].mxu0
      %v5040 = vadd.f32 %v4751, %v5039
      %v5041 = vpop.f32.mrb[0].mxu0
      %v5042 = vpop.f32.mrb[0].mxu0
      %v5043 = vadd.f32 %v4754, %v5042
      %v5044 = vpop.f32.mrb[0].mxu0
      %5045 = vmatprep.mubr.bf16.mxu0 %v431
      %5046 = vmatmul.mubr.bf16.gmra.mrb[0].mxu0 %v4349
      %v5047 = vpop.f32.mrb[0].mxu0
      %v5048 = vadd.f32 %v4759, %v5047
      %v5049 = vpop.f32.mrb[0].mxu0
      %v5050 = vpop.f32.mrb[0].mxu0
      %v5051 = vadd.f32 %v4762, %v5050
      %v5052 = vpop.f32.mrb[0].mxu0
      %5053 = vmatprep.mubr.bf16.mxu0 %v432
      %5054 = vmatmul.mubr.bf16.gmra.mrb[0].mxu0 %v4352
      %v5055 = vpop.f32.mrb[0].mxu0
      %v5056 = vadd.f32 %v4767, %v5055
      %v5057 = vpop.f32.mrb[0].mxu0
      %v5058 = vpop.f32.mrb[0].mxu0
      %v5059 = vadd.f32 %v4770, %v5058
      %v5060 = vpop.f32.mrb[0].mxu0
      %5061 = vmatprep.mubr.bf16.mxu0 %v433
      %5062 = vmatmul.mubr.bf16.gmra.mrb[0].mxu0 %v4355
      %v5063 = vpop.f32.mrb[0].mxu0
      %v5064 = vadd.f32 %v4775, %v5063
      %v5065 = vpop.f32.mrb[0].mxu0
      %v5066 = vpop.f32.mrb[0].mxu0
      %v5067 = vadd.f32 %v4778, %v5066
      %v5068 = vpop.f32.mrb[0].mxu0
      %5069 = vmatprep.mubr.bf16.mxu0 %v434
      %5070 = vmatmul.mubr.bf16.gmra.mrb[0].mxu0 %v4358
      %v5071 = vpop.f32.mrb[0].mxu0
      %v5072 = vadd.f32 %v4783, %v5071
      %v5073 = vpop.f32.mrb[0].mxu0
      %v5074 = vpop.f32.mrb[0].mxu0
      %v5075 = vadd.f32 %v4786, %v5074
      %v5076 = vpop.f32.mrb[0].mxu0
      %5077 = vmatprep.mubr.bf16.mxu0 %v435
      %5078 = vmatmul.mubr.bf16.gmra.mrb[0].mxu0 %v4361
      %v5079 = vpop.f32.mrb[0].mxu0
      %v5080 = vadd.f32 %v4791, %v5079
      %v5081 = vpop.f32.mrb[0].mxu0
      %v5082 = vpop.f32.mrb[0].mxu0
      %v5083 = vadd.f32 %v4794, %v5082
      %v5084 = vpop.f32.mrb[0].mxu0
      %5085 = vmatprep.mubr.bf16.mxu0 %v436
      %5086 = vmatmul.mubr.bf16.gmra.mrb[0].mxu0 %v4364
      %v5087 = vpop.f32.mrb[0].mxu0
      %v5088 = vadd.f32 %v4799, %v5087
      %v5089 = vpop.f32.mrb[0].mxu0
      %v5090 = vpop.f32.mrb[0].mxu0
      %v5091 = vadd.f32 %v4802, %v5090
      %v5092 = vpop.f32.mrb[0].mxu0
      %5093 = vmatprep.mubr.bf16.mxu0 %v437
      %5094 = vmatmul.mubr.bf16.gmra.mrb[0].mxu0 %v4367
      %v5095 = vpop.f32.mrb[0].mxu0
      %v5096 = vadd.f32 %v4807, %v5095
      %v5097 = vpop.f32.mrb[0].mxu0
      %v5098 = vpop.f32.mrb[0].mxu0
      %v5099 = vadd.f32 %v4810, %v5098
      %v5100 = vpop.f32.mrb[0].mxu0
      %5101 = vmatprep.mubr.bf16.mxu0 %v438
      %5102 = vmatmul.mubr.bf16.gmra.mrb[0].mxu0 %v4370
      %v5103 = vpop.f32.mrb[0].mxu0
      %v5104 = vadd.f32 %v4815, %v5103
      %v5105 = vpop.f32.mrb[0].mxu0
      %v5106 = vpop.f32.mrb[0].mxu0
      %v5107 = vadd.f32 %v4818, %v5106
      %v5108 = vpop.f32.mrb[0].mxu0
      %5109 = vmatprep.mubr.bf16.mxu0 %v439
      %5110 = vmatmul.mubr.bf16.gmra.mrb[0].mxu0 %v4373
      %v5111 = vpop.f32.mrb[0].mxu0
      %v5112 = vadd.f32 %v4823, %v5111
      %v5113 = vpop.f32.mrb[0].mxu0
      %v5114 = vpop.f32.mrb[0].mxu0
      %v5115 = vadd.f32 %v4826, %v5114
      %v5116 = vpop.f32.mrb[0].mxu0
      %5117 = vmatprep.mubr.bf16.mxu0 %v440
      %5118 = vmatmul.mubr.bf16.gmra.mrb[0].mxu0 %v4376
      %v5119 = vpop.f32.mrb[0].mxu0
      %v5120 = vadd.f32 %v4831, %v5119
      %v5121 = vpop.f32.mrb[0].mxu0
      %v5122 = vpop.f32.mrb[0].mxu0
      %v5123 = vadd.f32 %v4834, %v5122
      %v5124 = vpop.f32.mrb[0].mxu0
      %5125 = vmatprep.mubr.bf16.mxu0 %v441
      %5126 = vmatmul.mubr.bf16.gmra.mrb[0].mxu0 %v4379
      %v5127 = vpop.f32.mrb[0].mxu0
      %v5128 = vadd.f32 %v4839, %v5127
      %v5129 = vpop.f32.mrb[0].mxu0
      %v5130 = vpop.f32.mrb[0].mxu0
      %v5131 = vadd.f32 %v4842, %v5130
      %v5132 = vpop.f32.mrb[0].mxu0
      %5133 = vmatprep.mubr.bf16.mxu0 %v442
      %5134 = vmatmul.mubr.bf16.gmra.mrb[0].mxu0 %v4382
      %v5135 = vpop.f32.mrb[0].mxu0
      %v5136 = vadd.f32 %v4847, %v5135
      %v5137 = vpop.f32.mrb[0].mxu0
      %v5138 = vpop.f32.mrb[0].mxu0
      %v5139 = vadd.f32 %v4850, %v5138
      %v5140 = vpop.f32.mrb[0].mxu0
      %5141 = vmatprep.mubr.bf16.mxu0 %v443
      %5142 = vmatmul.mubr.bf16.gmra.mrb[0].mxu0 %v4385
      %v5143 = vpop.f32.mrb[0].mxu0
      %v5144 = vadd.f32 %v4855, %v5143
      %v5145 = vpop.f32.mrb[0].mxu0
      %v5146 = vpop.f32.mrb[0].mxu0
      %v5147 = vadd.f32 %v4858, %v5146
      %v5148 = vpop.f32.mrb[0].mxu0
      %5149 = vmatprep.mubr.bf16.mxu0 %v444
      %5150 = vmatmul.mubr.bf16.gmra.mrb[0].mxu0 %v4388
      %v5151 = vpop.f32.mrb[0].mxu0
      %v5152 = vadd.f32 %v4863, %v5151
      %v5153 = vpop.f32.mrb[0].mxu0
      %v5154 = vpop.f32.mrb[0].mxu0
      %v5155 = vadd.f32 %v4866, %v5154
      %v5156 = vpop.f32.mrb[0].mxu0
      %5157 = vmatprep.mubr.bf16.mxu0 %v445
      %5158 = vmatmul.mubr.bf16.gmra.mrb[0].mxu0 %v4391
      %v5159 = vpop.f32.mrb[0].mxu0
      %v5160 = vadd.f32 %v4871, %v5159
      %v5161 = vpop.f32.mrb[0].mxu0
      %v5162 = vpop.f32.mrb[0].mxu0
      %v5163 = vadd.f32 %v4874, %v5162
      %v5164 = vpop.f32.mrb[0].mxu0
      %5165 = vmatprep.mubr.bf16.mxu0 %v446
      %5166 = vmatmul.mubr.bf16.gmra.mrb[0].mxu0 %v4394
      %v5167 = vpop.f32.mrb[0].mxu0
      %v5168 = vadd.f32 %v4879, %v5167
      %v5169 = vpop.f32.mrb[0].mxu0
      %v5170 = vpop.f32.mrb[0].mxu0
      %v5171 = vadd.f32 %v4882, %v5170
      %v5172 = vpop.f32.mrb[0].mxu0
      %5173 = vmatprep.mubr.bf16.mxu0 %v447
      %5174 = vmatmul.mubr.bf16.gmra.mrb[0].mxu0 %v4397
      %v5175 = vpop.f32.mrb[0].mxu0
      %v5176 = vadd.f32 %v4887, %v5175
      %v5177 = vpop.f32.mrb[0].mxu0
      %v5178 = vpop.f32.mrb[0].mxu0
      %v5179 = vadd.f32 %v4890, %v5178
      %v5180 = vpop.f32.mrb[0].mxu0
      %5181 = vmatprep.mubr.bf16.mxu0 %v448
      %5182 = vmatmul.mubr.bf16.gmra.mrb[0].mxu0 %v4400
      %v5183 = vpop.f32.mrb[0].mxu0
      %v5184 = vadd.f32 %v4895, %v5183
      %v5185 = vpop.f32.mrb[0].mxu0
      %v5186 = vpop.f32.mrb[0].mxu0
      %v5187 = vadd.f32 %v4898, %v5186
      %v5188 = vpop.f32.mrb[0].mxu0
      %5189 = vmatprep.mubr.bf16.mxu0 %v449
      %5190 = vmatmul.mubr.bf16.gmra.mrb[0].mxu0 %v4403
      %v5191 = vpop.f32.mrb[0].mxu0
      %v5192 = vadd.f32 %v4903, %v5191
      %v5193 = vpop.f32.mrb[0].mxu0
      %v5194 = vpop.f32.mrb[0].mxu0
      %v5195 = vadd.f32 %v4906, %v5194
      %v5196 = vpop.f32.mrb[0].mxu0
      %5197 = vmatprep.mubr.bf16.mxu0 %v450
      %5198 = vmatmul.mubr.bf16.gmra.mrb[0].mxu0 %v4406
      %v5199 = vpop.f32.mrb[0].mxu0
      %v5200 = vadd.f32 %v4911, %v5199
      %v5201 = vpop.f32.mrb[0].mxu0
      %v5202 = vpop.f32.mrb[0].mxu0
      %v5203 = vadd.f32 %v4914, %v5202
      %v5204 = vpop.f32.mrb[0].mxu0
      %5205 = vmatprep.mubr.bf16.mxu0 %v451
      %5206 = vmatmul.mubr.bf16.gmra.mrb[0].mxu0 %v4409
      %v5207 = vpop.f32.mrb[0].mxu0
      %v5208 = vadd.f32 %v4919, %v5207
      %v5209 = vpop.f32.mrb[0].mxu0
      %v5210 = vpop.f32.mrb[0].mxu0
      %v5211 = vadd.f32 %v4922, %v5210
      %v5212 = vpop.f32.mrb[0].mxu0
      %5213 = vmatprep.mubr.bf16.mxu0 %v452
      %5214 = vmatmul.mubr.bf16.gmra.mrb[0].mxu0 %v4412
      %v5215 = vpop.f32.mrb[0].mxu0
      %v5216 = vadd.f32 %v4927, %v5215
      %v5217 = vpop.f32.mrb[0].mxu0
      %v5218 = vpop.f32.mrb[0].mxu0
      %v5219 = vadd.f32 %v4930, %v5218
      %v5220 = vpop.f32.mrb[0].mxu0
      %5221 = vmatprep.mubr.bf16.mxu0 %v453
      %5222 = vmatmul.mubr.bf16.gmra.mrb[0].mxu0 %v4415
      %v5223 = vpop.f32.mrb[0].mxu0
      %v5224 = vadd.f32 %v4935, %v5223
      %v5225 = vpop.f32.mrb[0].mxu0
      %v5226 = vpop.f32.mrb[0].mxu0
      %v5227 = vadd.f32 %v4938, %v5226
      %v5228 = vpop.f32.mrb[0].mxu0
      %5229 = vmatprep.mubr.bf16.mxu0 %v454
      %5230 = vmatmul.mubr.bf16.gmra.mrb[0].mxu0 %v4418
      %v5231 = vpop.f32.mrb[0].mxu0
      %v5232 = vadd.f32 %v4943, %v5231
      %v5233 = vpop.f32.mrb[0].mxu0
      %v5234 = vpop.f32.mrb[0].mxu0
      %v5235 = vadd.f32 %v4946, %v5234
      %v5236 = vpop.f32.mrb[0].mxu0
      %5237 = vmatprep.mubr.bf16.mxu0 %v455
      %5238 = vmatmul.mubr.bf16.gmra.mrb[0].mxu0 %v4421
      %v5239 = vpop.f32.mrb[0].mxu0
      %v5240 = vadd.f32 %v4951, %v5239
      %v5241 = vpop.f32.mrb[0].mxu0
      %v5242 = vpop.f32.mrb[0].mxu0
      %v5243 = vadd.f32 %v4954, %v5242
      %v5244 = vpop.f32.mrb[0].mxu0
      %5245 = vmatprep.mubr.bf16.mxu0 %v456
      %5246 = vmatmul.mubr.bf16.gmra.mrb[0].mxu0 %v4424
      %v5247 = vpop.f32.mrb[0].mxu0
      %v5248 = vadd.f32 %v4959, %v5247
      %v5249 = vpop.f32.mrb[0].mxu0
      %v5250 = vpop.f32.mrb[0].mxu0
      %v5251 = vadd.f32 %v4962, %v5250
      %v5252 = vpop.f32.mrb[0].mxu0
      %5253 = vmatprep.mubr.bf16.mxu0 %v457
      %5254 = vmatmul.mubr.bf16.gmra.mrb[0].mxu0 %v4427
      %v5255 = vpop.f32.mrb[0].mxu0
      %v5256 = vadd.f32 %v4967, %v5255
      %v5257 = vpop.f32.mrb[0].mxu0
      %v5258 = vpop.f32.mrb[0].mxu0
      %v5259 = vadd.f32 %v4970, %v5258
      %v5260 = vpop.f32.mrb[0].mxu0
      %5261 = vdwg.mxu0
      %v5262 = vmax.f32 %v5008, 0.0
      %v5263 = vmax.f32 %v5011, 0.0
      %v5264 = vmax.f32 %v5016, 0.0
      %v5265 = vmax.f32 %v5019, 0.0
      %v5266 = vmax.f32 %v5024, 0.0
      %v5267 = vmax.f32 %v5027, 0.0
      %v5268 = vmax.f32 %v5032, 0.0
      %v5269 = vmax.f32 %v5035, 0.0
      %v5270 = vmax.f32 %v5040, 0.0
      %v5271 = vmax.f32 %v5043, 0.0
      %v5272 = vmax.f32 %v5048, 0.0
      %v5273 = vmax.f32 %v5051, 0.0
      %v5274 = vmax.f32 %v5056, 0.0
      %v5275 = vmax.f32 %v5059, 0.0
      %v5276 = vmax.f32 %v5064, 0.0
      %v5277 = vmax.f32 %v5067, 0.0
      %v5278 = vmax.f32 %v5072, 0.0
      %v5279 = vmax.f32 %v5075, 0.0
      %v5280 = vmax.f32 %v5080, 0.0
      %v5281 = vmax.f32 %v5083, 0.0
      %v5282 = vmax.f32 %v5088, 0.0
      %v5283 = vmax.f32 %v5091, 0.0
      %v5284 = vmax.f32 %v5096, 0.0
      %v5285 = vmax.f32 %v5099, 0.0
      %v5286 = vmax.f32 %v5104, 0.0
      %v5287 = vmax.f32 %v5107, 0.0
      %v5288 = vmax.f32 %v5112, 0.0
      %v5289 = vmax.f32 %v5115, 0.0
      %v5290 = vmax.f32 %v5120, 0.0
      %v5291 = vmax.f32 %v5123, 0.0
      %v5292 = vmax.f32 %v5128, 0.0
      %v5293 = vmax.f32 %v5131, 0.0
      %v5294 = vmax.f32 %v5136, 0.0
      %v5295 = vmax.f32 %v5139, 0.0
      %v5296 = vmax.f32 %v5144, 0.0
      %v5297 = vmax.f32 %v5147, 0.0
      %v5298 = vmax.f32 %v5152, 0.0
      %v5299 = vmax.f32 %v5155, 0.0
      %v5300 = vmax.f32 %v5160, 0.0
      %v5301 = vmax.f32 %v5163, 0.0
      %v5302 = vmax.f32 %v5168, 0.0
      %v5303 = vmax.f32 %v5171, 0.0
      %v5304 = vmax.f32 %v5176, 0.0
      %v5305 = vmax.f32 %v5179, 0.0
      %v5306 = vmax.f32 %v5184, 0.0
      %v5307 = vmax.f32 %v5187, 0.0
      %v5308 = vmax.f32 %v5192, 0.0
      %v5309 = vmax.f32 %v5195, 0.0
      %v5310 = vmax.f32 %v5200, 0.0
      %v5311 = vmax.f32 %v5203, 0.0
      %v5312 = vmax.f32 %v5208, 0.0
      %v5313 = vmax.f32 %v5211, 0.0
      %v5314 = vmax.f32 %v5216, 0.0
      %v5315 = vmax.f32 %v5219, 0.0
      %v5316 = vmax.f32 %v5224, 0.0
      %v5317 = vmax.f32 %v5227, 0.0
      %v5318 = vmax.f32 %v5232, 0.0
      %v5319 = vmax.f32 %v5235, 0.0
      %v5320 = vmax.f32 %v5240, 0.0
      %v5321 = vmax.f32 %v5243, 0.0
      %v5322 = vmax.f32 %v5248, 0.0
      %v5323 = vmax.f32 %v5251, 0.0
      %v5324 = vmax.f32 %v5256, 0.0
      %v5325 = vmax.f32 %v5259, 0.0
      %v5326 = vand.u32 2147483647, %v5008
      %v5327 = vand.u32 2147483647, %v5011
      %v5328 = vand.u32 2147483647, %v5016
      %v5329 = vand.u32 2147483647, %v5019
      %v5330 = vand.u32 2147483647, %v5024
      %v5331 = vand.u32 2147483647, %v5027
      %v5332 = vand.u32 2147483647, %v5032
      %v5333 = vand.u32 2147483647, %v5035
      %v5334 = vand.u32 2147483647, %v5040
      %v5335 = vand.u32 2147483647, %v5043
      %v5336 = vand.u32 2147483647, %v5048
      %v5337 = vand.u32 2147483647, %v5051
      %v5338 = vand.u32 2147483647, %v5056
      %v5339 = vand.u32 2147483647, %v5059
      %v5340 = vand.u32 2147483647, %v5064
      %v5341 = vand.u32 2147483647, %v5067
      %v5342 = vand.u32 2147483647, %v5072
      %v5343 = vand.u32 2147483647, %v5075
      %v5344 = vand.u32 2147483647, %v5080
      %v5345 = vand.u32 2147483647, %v5083
      %v5346 = vand.u32 2147483647, %v5088
      %v5347 = vand.u32 2147483647, %v5091
      %v5348 = vand.u32 2147483647, %v5096
      %v5349 = vand.u32 2147483647, %v5099
      %v5350 = vand.u32 2147483647, %v5104
      %v5351 = vand.u32 2147483647, %v5107
      %v5352 = vand.u32 2147483647, %v5112
      %v5353 = vand.u32 2147483647, %v5115
      %v5354 = vand.u32 2147483647, %v5120
      %v5355 = vand.u32 2147483647, %v5123
      %v5356 = vand.u32 2147483647, %v5128
      %v5357 = vand.u32 2147483647, %v5131
      %v5358 = vand.u32 2147483647, %v5136
      %v5359 = vand.u32 2147483647, %v5139
      %v5360 = vand.u32 2147483647, %v5144
      %v5361 = vand.u32 2147483647, %v5147
      %v5362 = vand.u32 2147483647, %v5152
      %v5363 = vand.u32 2147483647, %v5155
      %v5364 = vand.u32 2147483647, %v5160
      %v5365 = vand.u32 2147483647, %v5163
      %v5366 = vand.u32 2147483647, %v5168
      %v5367 = vand.u32 2147483647, %v5171
      %v5368 = vand.u32 2147483647, %v5176
      %v5369 = vand.u32 2147483647, %v5179
      %v5370 = vand.u32 2147483647, %v5184
      %v5371 = vand.u32 2147483647, %v5187
      %v5372 = vand.u32 2147483647, %v5192
      %v5373 = vand.u32 2147483647, %v5195
      %v5374 = vand.u32 2147483647, %v5200
      %v5375 = vand.u32 2147483647, %v5203
      %v5376 = vand.u32 2147483647, %v5208
      %v5377 = vand.u32 2147483647, %v5211
      %v5378 = vand.u32 2147483647, %v5216
      %v5379 = vand.u32 2147483647, %v5219
      %v5380 = vand.u32 2147483647, %v5224
      %v5381 = vand.u32 2147483647, %v5227
      %v5382 = vand.u32 2147483647, %v5232
      %v5383 = vand.u32 2147483647, %v5235
      %v5384 = vand.u32 2147483647, %v5240
      %v5385 = vand.u32 2147483647, %v5243
      %v5386 = vand.u32 2147483647, %v5248
      %v5387 = vand.u32 2147483647, %v5251
      %v5388 = vand.u32 2147483647, %v5256
      %v5389 = vand.u32 2147483647, %v5259
      %v5390 = vsub.f32 0.0, %v5326
      %v5391 = vsub.f32 0.0, %v5327
      %v5392 = vsub.f32 0.0, %v5328
      %v5393 = vsub.f32 0.0, %v5329
      %v5394 = vsub.f32 0.0, %v5330
      %v5395 = vsub.f32 0.0, %v5331
      %v5396 = vsub.f32 0.0, %v5332
      %v5397 = vsub.f32 0.0, %v5333
      %v5398 = vsub.f32 0.0, %v5334
      %v5399 = vsub.f32 0.0, %v5335
      %v5400 = vsub.f32 0.0, %v5336
      %v5401 = vsub.f32 0.0, %v5337
      %v5402 = vsub.f32 0.0, %v5338
      %v5403 = vsub.f32 0.0, %v5339
      %v5404 = vsub.f32 0.0, %v5340
      %v5405 = vsub.f32 0.0, %v5341
      %v5406 = vsub.f32 0.0, %v5342
      %v5407 = vsub.f32 0.0, %v5343
      %v5408 = vsub.f32 0.0, %v5344
      %v5409 = vsub.f32 0.0, %v5345
      %v5410 = vsub.f32 0.0, %v5346
      %v5411 = vsub.f32 0.0, %v5347
      %v5412 = vsub.f32 0.0, %v5348
      %v5413 = vsub.f32 0.0, %v5349
      %v5414 = vsub.f32 0.0, %v5350
      %v5415 = vsub.f32 0.0, %v5351
      %v5416 = vsub.f32 0.0, %v5352
      %v5417 = vsub.f32 0.0, %v5353
      %v5418 = vsub.f32 0.0, %v5354
      %v5419 = vsub.f32 0.0, %v5355
      %v5420 = vsub.f32 0.0, %v5356
      %v5421 = vsub.f32 0.0, %v5357
      %v5422 = vsub.f32 0.0, %v5358
      %v5423 = vsub.f32 0.0, %v5359
      %v5424 = vsub.f32 0.0, %v5360
      %v5425 = vsub.f32 0.0, %v5361
      %v5426 = vsub.f32 0.0, %v5362
      %v5427 = vsub.f32 0.0, %v5363
      %v5428 = vsub.f32 0.0, %v5364
      %v5429 = vsub.f32 0.0, %v5365
      %v5430 = vsub.f32 0.0, %v5366
      %v5431 = vsub.f32 0.0, %v5367
      %v5432 = vsub.f32 0.0, %v5368
      %v5433 = vsub.f32 0.0, %v5369
      %v5434 = vsub.f32 0.0, %v5370
      %v5435 = vsub.f32 0.0, %v5371
      %v5436 = vsub.f32 0.0, %v5372
      %v5437 = vsub.f32 0.0, %v5373
      %v5438 = vsub.f32 0.0, %v5374
      %v5439 = vsub.f32 0.0, %v5375
      %v5440 = vsub.f32 0.0, %v5376
      %v5441 = vsub.f32 0.0, %v5377
      %v5442 = vsub.f32 0.0, %v5378
      %v5443 = vsub.f32 0.0, %v5379
      %v5444 = vsub.f32 0.0, %v5380
      %v5445 = vsub.f32 0.0, %v5381
      %v5446 = vsub.f32 0.0, %v5382
      %v5447 = vsub.f32 0.0, %v5383
      %v5448 = vsub.f32 0.0, %v5384
      %v5449 = vsub.f32 0.0, %v5385
      %v5450 = vsub.f32 0.0, %v5386
      %v5451 = vsub.f32 0.0, %v5387
      %v5452 = vsub.f32 0.0, %v5388
      %v5453 = vsub.f32 0.0, %v5389
      %v5454 = vmul.f32 %v5390, 1.442695
      %v5455 = vpow.pop %v5454
      %v5456 = vmul.f32 %v5391, 1.442695
      %v5457 = vpow.pop %v5456
      %v5458 = vmul.f32 %v5392, 1.442695
      %v5459 = vpow.pop %v5458
      %v5460 = vmul.f32 %v5393, 1.442695
      %v5461 = vpow.pop %v5460
      %v5462 = vmul.f32 %v5394, 1.442695
      %v5463 = vpow.pop %v5462
      %v5464 = vmul.f32 %v5395, 1.442695
      %v5465 = vpow.pop %v5464
      %v5466 = vmul.f32 %v5396, 1.442695
      %v5467 = vpow.pop %v5466
      %v5468 = vmul.f32 %v5397, 1.442695
      %v5469 = vpow.pop %v5468
      %v5470 = vmul.f32 %v5398, 1.442695
      %v5471 = vpow.pop %v5470
      %v5472 = vmul.f32 %v5399, 1.442695
      %v5473 = vpow.pop %v5472
      %v5474 = vmul.f32 %v5400, 1.442695
      %v5475 = vpow.pop %v5474
      %v5476 = vmul.f32 %v5401, 1.442695
      %v5477 = vpow.pop %v5476
      %v5478 = vmul.f32 %v5402, 1.442695
      %v5479 = vpow.pop %v5478
      %v5480 = vmul.f32 %v5403, 1.442695
      %v5481 = vpow.pop %v5480
      %v5482 = vmul.f32 %v5404, 1.442695
      %v5483 = vpow.pop %v5482
      %v5484 = vmul.f32 %v5405, 1.442695
      %v5485 = vpow.pop %v5484
      %v5486 = vmul.f32 %v5406, 1.442695
      %v5487 = vpow.pop %v5486
      %v5488 = vmul.f32 %v5407, 1.442695
      %v5489 = vpow.pop %v5488
      %v5490 = vmul.f32 %v5408, 1.442695
      %v5491 = vpow.pop %v5490
      %v5492 = vmul.f32 %v5409, 1.442695
      %v5493 = vpow.pop %v5492
      %v5494 = vmul.f32 %v5410, 1.442695
      %v5495 = vpow.pop %v5494
      %v5496 = vmul.f32 %v5411, 1.442695
      %v5497 = vpow.pop %v5496
      %v5498 = vmul.f32 %v5412, 1.442695
      %v5499 = vpow.pop %v5498
      %v5500 = vmul.f32 %v5413, 1.442695
      %v5501 = vpow.pop %v5500
      %v5502 = vmul.f32 %v5414, 1.442695
      %v5503 = vpow.pop %v5502
      %v5504 = vmul.f32 %v5415, 1.442695
      %v5505 = vpow.pop %v5504
      %v5506 = vmul.f32 %v5416, 1.442695
      %v5507 = vpow.pop %v5506
      %v5508 = vmul.f32 %v5417, 1.442695
      %v5509 = vpow.pop %v5508
      %v5510 = vmul.f32 %v5418, 1.442695
      %v5511 = vpow.pop %v5510
      %v5512 = vmul.f32 %v5419, 1.442695
      %v5513 = vpow.pop %v5512
      %v5514 = vmul.f32 %v5420, 1.442695
      %v5515 = vpow.pop %v5514
      %v5516 = vmul.f32 %v5421, 1.442695
      %v5517 = vpow.pop %v5516
      %v5518 = vmul.f32 %v5422, 1.442695
      %v5519 = vpow.pop %v5518
      %v5520 = vmul.f32 %v5423, 1.442695
      %v5521 = vpow.pop %v5520
      %v5522 = vmul.f32 %v5424, 1.442695
      %v5523 = vpow.pop %v5522
      %v5524 = vmul.f32 %v5425, 1.442695
      %v5525 = vpow.pop %v5524
      %v5526 = vmul.f32 %v5426, 1.442695
      %v5527 = vpow.pop %v5526
      %v5528 = vmul.f32 %v5427, 1.442695
      %v5529 = vpow.pop %v5528
      %v5530 = vmul.f32 %v5428, 1.442695
      %v5531 = vpow.pop %v5530
      %v5532 = vmul.f32 %v5429, 1.442695
      %v5533 = vpow.pop %v5532
      %v5534 = vmul.f32 %v5430, 1.442695
      %v5535 = vpow.pop %v5534
      %v5536 = vmul.f32 %v5431, 1.442695
      %v5537 = vpow.pop %v5536
      %v5538 = vmul.f32 %v5432, 1.442695
      %v5539 = vpow.pop %v5538
      %v5540 = vmul.f32 %v5433, 1.442695
      %v5541 = vpow.pop %v5540
      %v5542 = vmul.f32 %v5434, 1.442695
      %v5543 = vpow.pop %v5542
      %v5544 = vmul.f32 %v5435, 1.442695
      %v5545 = vpow.pop %v5544
      %v5546 = vmul.f32 %v5436, 1.442695
      %v5547 = vpow.pop %v5546
      %v5548 = vmul.f32 %v5437, 1.442695
      %v5549 = vpow.pop %v5548
      %v5550 = vmul.f32 %v5438, 1.442695
      %v5551 = vpow.pop %v5550
      %v5552 = vmul.f32 %v5439, 1.442695
      %v5553 = vpow.pop %v5552
      %v5554 = vmul.f32 %v5440, 1.442695
      %v5555 = vpow.pop %v5554
      %v5556 = vmul.f32 %v5441, 1.442695
      %v5557 = vpow.pop %v5556
      %v5558 = vmul.f32 %v5442, 1.442695
      %v5559 = vpow.pop %v5558
      %v5560 = vmul.f32 %v5443, 1.442695
      %v5561 = vpow.pop %v5560
      %v5562 = vmul.f32 %v5444, 1.442695
      %v5563 = vpow.pop %v5562
      %v5564 = vmul.f32 %v5445, 1.442695
      %v5565 = vpow.pop %v5564
      %v5566 = vmul.f32 %v5446, 1.442695
      %v5567 = vpow.pop %v5566
      %v5568 = vmul.f32 %v5447, 1.442695
      %v5569 = vpow.pop %v5568
      %v5570 = vmul.f32 %v5448, 1.442695
      %v5571 = vpow.pop %v5570
      %v5572 = vmul.f32 %v5449, 1.442695
      %v5573 = vpow.pop %v5572
      %v5574 = vmul.f32 %v5450, 1.442695
      %v5575 = vpow.pop %v5574
      %v5576 = vmul.f32 %v5451, 1.442695
      %v5577 = vpow.pop %v5576
      %v5578 = vmul.f32 %v5452, 1.442695
      %v5579 = vpow.pop %v5578
      %v5580 = vmul.f32 %v5453, 1.442695
      %v5581 = vpow.pop %v5580
      %v5582 = vadd.f32 %v5455, 1.0
      %v5583 = vlog2.pop %v5582
      %v5584 = vmul.f32 %v5583, 0.6931472
      %v5585 = vmul.f32 -0.5, %v5455
      %v5586 = vadd.f32 %v5585, 1.0
      %v5587 = vmul.f32 %v5586, %v5455
      %v5588 = vand.u32 2147483647, %v5455
      %vm5589 = vcmp.lt.f32.partialorder %v5588, 0.0004427343
      %v5590 = vsel %vm5589, %v5587, %v5584
      %v5591 = vadd.f32 %v5457, 1.0
      %v5592 = vlog2.pop %v5591
      %v5593 = vmul.f32 %v5592, 0.6931472
      %v5594 = vmul.f32 -0.5, %v5457
      %v5595 = vadd.f32 %v5594, 1.0
      %v5596 = vmul.f32 %v5595, %v5457
      %v5597 = vand.u32 2147483647, %v5457
      %vm5598 = vcmp.lt.f32.partialorder %v5597, 0.0004427343
      %v5599 = vsel %vm5598, %v5596, %v5593
      %v5600 = vadd.f32 %v5459, 1.0
      %v5601 = vlog2.pop %v5600
      %v5602 = vmul.f32 %v5601, 0.6931472
      %v5603 = vmul.f32 -0.5, %v5459
      %v5604 = vadd.f32 %v5603, 1.0
      %v5605 = vmul.f32 %v5604, %v5459
      %v5606 = vand.u32 2147483647, %v5459
      %vm5607 = vcmp.lt.f32.partialorder %v5606, 0.0004427343
      %v5608 = vsel %vm5607, %v5605, %v5602
      %v5609 = vadd.f32 %v5461, 1.0
      %v5610 = vlog2.pop %v5609
      %v5611 = vmul.f32 %v5610, 0.6931472
      %v5612 = vmul.f32 -0.5, %v5461
      %v5613 = vadd.f32 %v5612, 1.0
      %v5614 = vmul.f32 %v5613, %v5461
      %v5615 = vand.u32 2147483647, %v5461
      %vm5616 = vcmp.lt.f32.partialorder %v5615, 0.0004427343
      %v5617 = vsel %vm5616, %v5614, %v5611
      %v5618 = vadd.f32 %v5463, 1.0
      %v5619 = vlog2.pop %v5618
      %v5620 = vmul.f32 %v5619, 0.6931472
      %v5621 = vmul.f32 -0.5, %v5463
      %v5622 = vadd.f32 %v5621, 1.0
      %v5623 = vmul.f32 %v5622, %v5463
      %v5624 = vand.u32 2147483647, %v5463
      %vm5625 = vcmp.lt.f32.partialorder %v5624, 0.0004427343
      %v5626 = vsel %vm5625, %v5623, %v5620
      %v5627 = vadd.f32 %v5465, 1.0
      %v5628 = vlog2.pop %v5627
      %v5629 = vmul.f32 %v5628, 0.6931472
      %v5630 = vmul.f32 -0.5, %v5465
      %v5631 = vadd.f32 %v5630, 1.0
      %v5632 = vmul.f32 %v5631, %v5465
      %v5633 = vand.u32 2147483647, %v5465
      %vm5634 = vcmp.lt.f32.partialorder %v5633, 0.0004427343
      %v5635 = vsel %vm5634, %v5632, %v5629
      %v5636 = vadd.f32 %v5467, 1.0
      %v5637 = vlog2.pop %v5636
      %v5638 = vmul.f32 %v5637, 0.6931472
      %v5639 = vmul.f32 -0.5, %v5467
      %v5640 = vadd.f32 %v5639, 1.0
      %v5641 = vmul.f32 %v5640, %v5467
      %v5642 = vand.u32 2147483647, %v5467
      %vm5643 = vcmp.lt.f32.partialorder %v5642, 0.0004427343
      %v5644 = vsel %vm5643, %v5641, %v5638
      %v5645 = vadd.f32 %v5469, 1.0
      %v5646 = vlog2.pop %v5645
      %v5647 = vmul.f32 %v5646, 0.6931472
      %v5648 = vmul.f32 -0.5, %v5469
      %v5649 = vadd.f32 %v5648, 1.0
      %v5650 = vmul.f32 %v5649, %v5469
      %v5651 = vand.u32 2147483647, %v5469
      %vm5652 = vcmp.lt.f32.partialorder %v5651, 0.0004427343
      %v5653 = vsel %vm5652, %v5650, %v5647
      %v5654 = vadd.f32 %v5471, 1.0
      %v5655 = vlog2.pop %v5654
      %v5656 = vmul.f32 %v5655, 0.6931472
      %v5657 = vmul.f32 -0.5, %v5471
      %v5658 = vadd.f32 %v5657, 1.0
      %v5659 = vmul.f32 %v5658, %v5471
      %v5660 = vand.u32 2147483647, %v5471
      %vm5661 = vcmp.lt.f32.partialorder %v5660, 0.0004427343
      %v5662 = vsel %vm5661, %v5659, %v5656
      %v5663 = vadd.f32 %v5473, 1.0
      %v5664 = vlog2.pop %v5663
      %v5665 = vmul.f32 %v5664, 0.6931472
      %v5666 = vmul.f32 -0.5, %v5473
      %v5667 = vadd.f32 %v5666, 1.0
      %v5668 = vmul.f32 %v5667, %v5473
      %v5669 = vand.u32 2147483647, %v5473
      %vm5670 = vcmp.lt.f32.partialorder %v5669, 0.0004427343
      %v5671 = vsel %vm5670, %v5668, %v5665
      %v5672 = vadd.f32 %v5475, 1.0
      %v5673 = vlog2.pop %v5672
      %v5674 = vmul.f32 %v5673, 0.6931472
      %v5675 = vmul.f32 -0.5, %v5475
      %v5676 = vadd.f32 %v5675, 1.0
      %v5677 = vmul.f32 %v5676, %v5475
      %v5678 = vand.u32 2147483647, %v5475
      %vm5679 = vcmp.lt.f32.partialorder %v5678, 0.0004427343
      %v5680 = vsel %vm5679, %v5677, %v5674
      %v5681 = vadd.f32 %v5477, 1.0
      %v5682 = vlog2.pop %v5681
      %v5683 = vmul.f32 %v5682, 0.6931472
      %v5684 = vmul.f32 -0.5, %v5477
      %v5685 = vadd.f32 %v5684, 1.0
      %v5686 = vmul.f32 %v5685, %v5477
      %v5687 = vand.u32 2147483647, %v5477
      %vm5688 = vcmp.lt.f32.partialorder %v5687, 0.0004427343
      %v5689 = vsel %vm5688, %v5686, %v5683
      %v5690 = vadd.f32 %v5479, 1.0
      %v5691 = vlog2.pop %v5690
      %v5692 = vmul.f32 %v5691, 0.6931472
      %v5693 = vmul.f32 -0.5, %v5479
      %v5694 = vadd.f32 %v5693, 1.0
      %v5695 = vmul.f32 %v5694, %v5479
      %v5696 = vand.u32 2147483647, %v5479
      %vm5697 = vcmp.lt.f32.partialorder %v5696, 0.0004427343
      %v5698 = vsel %vm5697, %v5695, %v5692
      %v5699 = vadd.f32 %v5481, 1.0
      %v5700 = vlog2.pop %v5699
      %v5701 = vmul.f32 %v5700, 0.6931472
      %v5702 = vmul.f32 -0.5, %v5481
      %v5703 = vadd.f32 %v5702, 1.0
      %v5704 = vmul.f32 %v5703, %v5481
      %v5705 = vand.u32 2147483647, %v5481
      %vm5706 = vcmp.lt.f32.partialorder %v5705, 0.0004427343
      %v5707 = vsel %vm5706, %v5704, %v5701
      %v5708 = vadd.f32 %v5483, 1.0
      %v5709 = vlog2.pop %v5708
      %v5710 = vmul.f32 %v5709, 0.6931472
      %v5711 = vmul.f32 -0.5, %v5483
      %v5712 = vadd.f32 %v5711, 1.0
      %v5713 = vmul.f32 %v5712, %v5483
      %v5714 = vand.u32 2147483647, %v5483
      %vm5715 = vcmp.lt.f32.partialorder %v5714, 0.0004427343
      %v5716 = vsel %vm5715, %v5713, %v5710
      %v5717 = vadd.f32 %v5485, 1.0
      %v5718 = vlog2.pop %v5717
      %v5719 = vmul.f32 %v5718, 0.6931472
      %v5720 = vmul.f32 -0.5, %v5485
      %v5721 = vadd.f32 %v5720, 1.0
      %v5722 = vmul.f32 %v5721, %v5485
      %v5723 = vand.u32 2147483647, %v5485
      %vm5724 = vcmp.lt.f32.partialorder %v5723, 0.0004427343
      %v5725 = vsel %vm5724, %v5722, %v5719
      %v5726 = vadd.f32 %v5487, 1.0
      %v5727 = vlog2.pop %v5726
      %v5728 = vmul.f32 %v5727, 0.6931472
      %v5729 = vmul.f32 -0.5, %v5487
      %v5730 = vadd.f32 %v5729, 1.0
      %v5731 = vmul.f32 %v5730, %v5487
      %v5732 = vand.u32 2147483647, %v5487
      %vm5733 = vcmp.lt.f32.partialorder %v5732, 0.0004427343
      %v5734 = vsel %vm5733, %v5731, %v5728
      %v5735 = vadd.f32 %v5489, 1.0
      %v5736 = vlog2.pop %v5735
      %v5737 = vmul.f32 %v5736, 0.6931472
      %v5738 = vmul.f32 -0.5, %v5489
      %v5739 = vadd.f32 %v5738, 1.0
      %v5740 = vmul.f32 %v5739, %v5489
      %v5741 = vand.u32 2147483647, %v5489
      %vm5742 = vcmp.lt.f32.partialorder %v5741, 0.0004427343
      %v5743 = vsel %vm5742, %v5740, %v5737
      %v5744 = vadd.f32 %v5491, 1.0
      %v5745 = vlog2.pop %v5744
      %v5746 = vmul.f32 %v5745, 0.6931472
      %v5747 = vmul.f32 -0.5, %v5491
      %v5748 = vadd.f32 %v5747, 1.0
      %v5749 = vmul.f32 %v5748, %v5491
      %v5750 = vand.u32 2147483647, %v5491
      %vm5751 = vcmp.lt.f32.partialorder %v5750, 0.0004427343
      %v5752 = vsel %vm5751, %v5749, %v5746
      %v5753 = vadd.f32 %v5493, 1.0
      %v5754 = vlog2.pop %v5753
      %v5755 = vmul.f32 %v5754, 0.6931472
      %v5756 = vmul.f32 -0.5, %v5493
      %v5757 = vadd.f32 %v5756, 1.0
      %v5758 = vmul.f32 %v5757, %v5493
      %v5759 = vand.u32 2147483647, %v5493
      %vm5760 = vcmp.lt.f32.partialorder %v5759, 0.0004427343
      %v5761 = vsel %vm5760, %v5758, %v5755
      %v5762 = vadd.f32 %v5495, 1.0
      %v5763 = vlog2.pop %v5762
      %v5764 = vmul.f32 %v5763, 0.6931472
      %v5765 = vmul.f32 -0.5, %v5495
      %v5766 = vadd.f32 %v5765, 1.0
      %v5767 = vmul.f32 %v5766, %v5495
      %v5768 = vand.u32 2147483647, %v5495
      %vm5769 = vcmp.lt.f32.partialorder %v5768, 0.0004427343
      %v5770 = vsel %vm5769, %v5767, %v5764
      %v5771 = vadd.f32 %v5497, 1.0
      %v5772 = vlog2.pop %v5771
      %v5773 = vmul.f32 %v5772, 0.6931472
      %v5774 = vmul.f32 -0.5, %v5497
      %v5775 = vadd.f32 %v5774, 1.0
      %v5776 = vmul.f32 %v5775, %v5497
      %v5777 = vand.u32 2147483647, %v5497
      %vm5778 = vcmp.lt.f32.partialorder %v5777, 0.0004427343
      %v5779 = vsel %vm5778, %v5776, %v5773
      %v5780 = vadd.f32 %v5499, 1.0
      %v5781 = vlog2.pop %v5780
      %v5782 = vmul.f32 %v5781, 0.6931472
      %v5783 = vmul.f32 -0.5, %v5499
      %v5784 = vadd.f32 %v5783, 1.0
      %v5785 = vmul.f32 %v5784, %v5499
      %v5786 = vand.u32 2147483647, %v5499
      %vm5787 = vcmp.lt.f32.partialorder %v5786, 0.0004427343
      %v5788 = vsel %vm5787, %v5785, %v5782
      %v5789 = vadd.f32 %v5501, 1.0
      %v5790 = vlog2.pop %v5789
      %v5791 = vmul.f32 %v5790, 0.6931472
      %v5792 = vmul.f32 -0.5, %v5501
      %v5793 = vadd.f32 %v5792, 1.0
      %v5794 = vmul.f32 %v5793, %v5501
      %v5795 = vand.u32 2147483647, %v5501
      %vm5796 = vcmp.lt.f32.partialorder %v5795, 0.0004427343
      %v5797 = vsel %vm5796, %v5794, %v5791
      %v5798 = vadd.f32 %v5503, 1.0
      %v5799 = vlog2.pop %v5798
      %v5800 = vmul.f32 %v5799, 0.6931472
      %v5801 = vmul.f32 -0.5, %v5503
      %v5802 = vadd.f32 %v5801, 1.0
      %v5803 = vmul.f32 %v5802, %v5503
      %v5804 = vand.u32 2147483647, %v5503
      %vm5805 = vcmp.lt.f32.partialorder %v5804, 0.0004427343
      %v5806 = vsel %vm5805, %v5803, %v5800
      %v5807 = vadd.f32 %v5505, 1.0
      %v5808 = vlog2.pop %v5807
      %v5809 = vmul.f32 %v5808, 0.6931472
      %v5810 = vmul.f32 -0.5, %v5505
      %v5811 = vadd.f32 %v5810, 1.0
      %v5812 = vmul.f32 %v5811, %v5505
      %v5813 = vand.u32 2147483647, %v5505
      %vm5814 = vcmp.lt.f32.partialorder %v5813, 0.0004427343
      %v5815 = vsel %vm5814, %v5812, %v5809
      %v5816 = vadd.f32 %v5507, 1.0
      %v5817 = vlog2.pop %v5816
      %v5818 = vmul.f32 %v5817, 0.6931472
      %v5819 = vmul.f32 -0.5, %v5507
      %v5820 = vadd.f32 %v5819, 1.0
      %v5821 = vmul.f32 %v5820, %v5507
      %v5822 = vand.u32 2147483647, %v5507
      %vm5823 = vcmp.lt.f32.partialorder %v5822, 0.0004427343
      %v5824 = vsel %vm5823, %v5821, %v5818
      %v5825 = vadd.f32 %v5509, 1.0
      %v5826 = vlog2.pop %v5825
      %v5827 = vmul.f32 %v5826, 0.6931472
      %v5828 = vmul.f32 -0.5, %v5509
      %v5829 = vadd.f32 %v5828, 1.0
      %v5830 = vmul.f32 %v5829, %v5509
      %v5831 = vand.u32 2147483647, %v5509
      %vm5832 = vcmp.lt.f32.partialorder %v5831, 0.0004427343
      %v5833 = vsel %vm5832, %v5830, %v5827
      %v5834 = vadd.f32 %v5511, 1.0
      %v5835 = vlog2.pop %v5834
      %v5836 = vmul.f32 %v5835, 0.6931472
      %v5837 = vmul.f32 -0.5, %v5511
      %v5838 = vadd.f32 %v5837, 1.0
      %v5839 = vmul.f32 %v5838, %v5511
      %v5840 = vand.u32 2147483647, %v5511
      %vm5841 = vcmp.lt.f32.partialorder %v5840, 0.0004427343
      %v5842 = vsel %vm5841, %v5839, %v5836
      %v5843 = vadd.f32 %v5513, 1.0
      %v5844 = vlog2.pop %v5843
      %v5845 = vmul.f32 %v5844, 0.6931472
      %v5846 = vmul.f32 -0.5, %v5513
      %v5847 = vadd.f32 %v5846, 1.0
      %v5848 = vmul.f32 %v5847, %v5513
      %v5849 = vand.u32 2147483647, %v5513
      %vm5850 = vcmp.lt.f32.partialorder %v5849, 0.0004427343
      %v5851 = vsel %vm5850, %v5848, %v5845
      %v5852 = vadd.f32 %v5515, 1.0
      %v5853 = vlog2.pop %v5852
      %v5854 = vmul.f32 %v5853, 0.6931472
      %v5855 = vmul.f32 -0.5, %v5515
      %v5856 = vadd.f32 %v5855, 1.0
      %v5857 = vmul.f32 %v5856, %v5515
      %v5858 = vand.u32 2147483647, %v5515
      %vm5859 = vcmp.lt.f32.partialorder %v5858, 0.0004427343
      %v5860 = vsel %vm5859, %v5857, %v5854
      %v5861 = vadd.f32 %v5517, 1.0
      %v5862 = vlog2.pop %v5861
      %v5863 = vmul.f32 %v5862, 0.6931472
      %v5864 = vmul.f32 -0.5, %v5517
      %v5865 = vadd.f32 %v5864, 1.0
      %v5866 = vmul.f32 %v5865, %v5517
      %v5867 = vand.u32 2147483647, %v5517
      %vm5868 = vcmp.lt.f32.partialorder %v5867, 0.0004427343
      %v5869 = vsel %vm5868, %v5866, %v5863
      %v5870 = vadd.f32 %v5519, 1.0
      %v5871 = vlog2.pop %v5870
      %v5872 = vmul.f32 %v5871, 0.6931472
      %v5873 = vmul.f32 -0.5, %v5519
      %v5874 = vadd.f32 %v5873, 1.0
      %v5875 = vmul.f32 %v5874, %v5519
      %v5876 = vand.u32 2147483647, %v5519
      %vm5877 = vcmp.lt.f32.partialorder %v5876, 0.0004427343
      %v5878 = vsel %vm5877, %v5875, %v5872
      %v5879 = vadd.f32 %v5521, 1.0
      %v5880 = vlog2.pop %v5879
      %v5881 = vmul.f32 %v5880, 0.6931472
      %v5882 = vmul.f32 -0.5, %v5521
      %v5883 = vadd.f32 %v5882, 1.0
      %v5884 = vmul.f32 %v5883, %v5521
      %v5885 = vand.u32 2147483647, %v5521
      %vm5886 = vcmp.lt.f32.partialorder %v5885, 0.0004427343
      %v5887 = vsel %vm5886, %v5884, %v5881
      %v5888 = vadd.f32 %v5523, 1.0
      %v5889 = vlog2.pop %v5888
      %v5890 = vmul.f32 %v5889, 0.6931472
      %v5891 = vmul.f32 -0.5, %v5523
      %v5892 = vadd.f32 %v5891, 1.0
      %v5893 = vmul.f32 %v5892, %v5523
      %v5894 = vand.u32 2147483647, %v5523
      %vm5895 = vcmp.lt.f32.partialorder %v5894, 0.0004427343
      %v5896 = vsel %vm5895, %v5893, %v5890
      %v5897 = vadd.f32 %v5525, 1.0
      %v5898 = vlog2.pop %v5897
      %v5899 = vmul.f32 %v5898, 0.6931472
      %v5900 = vmul.f32 -0.5, %v5525
      %v5901 = vadd.f32 %v5900, 1.0
      %v5902 = vmul.f32 %v5901, %v5525
      %v5903 = vand.u32 2147483647, %v5525
      %vm5904 = vcmp.lt.f32.partialorder %v5903, 0.0004427343
      %v5905 = vsel %vm5904, %v5902, %v5899
      %v5906 = vadd.f32 %v5527, 1.0
      %v5907 = vlog2.pop %v5906
      %v5908 = vmul.f32 %v5907, 0.6931472
      %v5909 = vmul.f32 -0.5, %v5527
      %v5910 = vadd.f32 %v5909, 1.0
      %v5911 = vmul.f32 %v5910, %v5527
      %v5912 = vand.u32 2147483647, %v5527
      %vm5913 = vcmp.lt.f32.partialorder %v5912, 0.0004427343
      %v5914 = vsel %vm5913, %v5911, %v5908
      %v5915 = vadd.f32 %v5529, 1.0
      %v5916 = vlog2.pop %v5915
      %v5917 = vmul.f32 %v5916, 0.6931472
      %v5918 = vmul.f32 -0.5, %v5529
      %v5919 = vadd.f32 %v5918, 1.0
      %v5920 = vmul.f32 %v5919, %v5529
      %v5921 = vand.u32 2147483647, %v5529
      %vm5922 = vcmp.lt.f32.partialorder %v5921, 0.0004427343
      %v5923 = vsel %vm5922, %v5920, %v5917
      %v5924 = vadd.f32 %v5531, 1.0
      %v5925 = vlog2.pop %v5924
      %v5926 = vmul.f32 %v5925, 0.6931472
      %v5927 = vmul.f32 -0.5, %v5531
      %v5928 = vadd.f32 %v5927, 1.0
      %v5929 = vmul.f32 %v5928, %v5531
      %v5930 = vand.u32 2147483647, %v5531
      %vm5931 = vcmp.lt.f32.partialorder %v5930, 0.0004427343
      %v5932 = vsel %vm5931, %v5929, %v5926
      %v5933 = vadd.f32 %v5533, 1.0
      %v5934 = vlog2.pop %v5933
      %v5935 = vmul.f32 %v5934, 0.6931472
      %v5936 = vmul.f32 -0.5, %v5533
      %v5937 = vadd.f32 %v5936, 1.0
      %v5938 = vmul.f32 %v5937, %v5533
      %v5939 = vand.u32 2147483647, %v5533
      %vm5940 = vcmp.lt.f32.partialorder %v5939, 0.0004427343
      %v5941 = vsel %vm5940, %v5938, %v5935
      %v5942 = vadd.f32 %v5535, 1.0
      %v5943 = vlog2.pop %v5942
      %v5944 = vmul.f32 %v5943, 0.6931472
      %v5945 = vmul.f32 -0.5, %v5535
      %v5946 = vadd.f32 %v5945, 1.0
      %v5947 = vmul.f32 %v5946, %v5535
      %v5948 = vand.u32 2147483647, %v5535
      %vm5949 = vcmp.lt.f32.partialorder %v5948, 0.0004427343
      %v5950 = vsel %vm5949, %v5947, %v5944
      %v5951 = vadd.f32 %v5537, 1.0
      %v5952 = vlog2.pop %v5951
      %v5953 = vmul.f32 %v5952, 0.6931472
      %v5954 = vmul.f32 -0.5, %v5537
      %v5955 = vadd.f32 %v5954, 1.0
      %v5956 = vmul.f32 %v5955, %v5537
      %v5957 = vand.u32 2147483647, %v5537
      %vm5958 = vcmp.lt.f32.partialorder %v5957, 0.0004427343
      %v5959 = vsel %vm5958, %v5956, %v5953
      %v5960 = vadd.f32 %v5539, 1.0
      %v5961 = vlog2.pop %v5960
      %v5962 = vmul.f32 %v5961, 0.6931472
      %v5963 = vmul.f32 -0.5, %v5539
      %v5964 = vadd.f32 %v5963, 1.0
      %v5965 = vmul.f32 %v5964, %v5539
      %v5966 = vand.u32 2147483647, %v5539
      %vm5967 = vcmp.lt.f32.partialorder %v5966, 0.0004427343
      %v5968 = vsel %vm5967, %v5965, %v5962
      %v5969 = vadd.f32 %v5541, 1.0
      %v5970 = vlog2.pop %v5969
      %v5971 = vmul.f32 %v5970, 0.6931472
      %v5972 = vmul.f32 -0.5, %v5541
      %v5973 = vadd.f32 %v5972, 1.0
      %v5974 = vmul.f32 %v5973, %v5541
      %v5975 = vand.u32 2147483647, %v5541
      %vm5976 = vcmp.lt.f32.partialorder %v5975, 0.0004427343
      %v5977 = vsel %vm5976, %v5974, %v5971
      %v5978 = vadd.f32 %v5543, 1.0
      %v5979 = vlog2.pop %v5978
      %v5980 = vmul.f32 %v5979, 0.6931472
      %v5981 = vmul.f32 -0.5, %v5543
      %v5982 = vadd.f32 %v5981, 1.0
      %v5983 = vmul.f32 %v5982, %v5543
      %v5984 = vand.u32 2147483647, %v5543
      %vm5985 = vcmp.lt.f32.partialorder %v5984, 0.0004427343
      %v5986 = vsel %vm5985, %v5983, %v5980
      %v5987 = vadd.f32 %v5545, 1.0
      %v5988 = vlog2.pop %v5987
      %v5989 = vmul.f32 %v5988, 0.6931472
      %v5990 = vmul.f32 -0.5, %v5545
      %v5991 = vadd.f32 %v5990, 1.0
      %v5992 = vmul.f32 %v5991, %v5545
      %v5993 = vand.u32 2147483647, %v5545
      %vm5994 = vcmp.lt.f32.partialorder %v5993, 0.0004427343
      %v5995 = vsel %vm5994, %v5992, %v5989
      %v5996 = vadd.f32 %v5547, 1.0
      %v5997 = vlog2.pop %v5996
      %v5998 = vmul.f32 %v5997, 0.6931472
      %v5999 = vmul.f32 -0.5, %v5547
      %v6000 = vadd.f32 %v5999, 1.0
      %v6001 = vmul.f32 %v6000, %v5547
      %v6002 = vand.u32 2147483647, %v5547
      %vm6003 = vcmp.lt.f32.partialorder %v6002, 0.0004427343
      %v6004 = vsel %vm6003, %v6001, %v5998
      %v6005 = vadd.f32 %v5549, 1.0
      %v6006 = vlog2.pop %v6005
      %v6007 = vmul.f32 %v6006, 0.6931472
      %v6008 = vmul.f32 -0.5, %v5549
      %v6009 = vadd.f32 %v6008, 1.0
      %v6010 = vmul.f32 %v6009, %v5549
      %v6011 = vand.u32 2147483647, %v5549
      %vm6012 = vcmp.lt.f32.partialorder %v6011, 0.0004427343
      %v6013 = vsel %vm6012, %v6010, %v6007
      %v6014 = vadd.f32 %v5551, 1.0
      %v6015 = vlog2.pop %v6014
      %v6016 = vmul.f32 %v6015, 0.6931472
      %v6017 = vmul.f32 -0.5, %v5551
      %v6018 = vadd.f32 %v6017, 1.0
      %v6019 = vmul.f32 %v6018, %v5551
      %v6020 = vand.u32 2147483647, %v5551
      %vm6021 = vcmp.lt.f32.partialorder %v6020, 0.0004427343
      %v6022 = vsel %vm6021, %v6019, %v6016
      %v6023 = vadd.f32 %v5553, 1.0
      %v6024 = vlog2.pop %v6023
      %v6025 = vmul.f32 %v6024, 0.6931472
      %v6026 = vmul.f32 -0.5, %v5553
      %v6027 = vadd.f32 %v6026, 1.0
      %v6028 = vmul.f32 %v6027, %v5553
      %v6029 = vand.u32 2147483647, %v5553
      %vm6030 = vcmp.lt.f32.partialorder %v6029, 0.0004427343
      %v6031 = vsel %vm6030, %v6028, %v6025
      %v6032 = vadd.f32 %v5555, 1.0
      %v6033 = vlog2.pop %v6032
      %v6034 = vmul.f32 %v6033, 0.6931472
      %v6035 = vmul.f32 -0.5, %v5555
      %v6036 = vadd.f32 %v6035, 1.0
      %v6037 = vmul.f32 %v6036, %v5555
      %v6038 = vand.u32 2147483647, %v5555
      %vm6039 = vcmp.lt.f32.partialorder %v6038, 0.0004427343
      %v6040 = vsel %vm6039, %v6037, %v6034
      %v6041 = vadd.f32 %v5557, 1.0
      %v6042 = vlog2.pop %v6041
      %v6043 = vmul.f32 %v6042, 0.6931472
      %v6044 = vmul.f32 -0.5, %v5557
      %v6045 = vadd.f32 %v6044, 1.0
      %v6046 = vmul.f32 %v6045, %v5557
      %v6047 = vand.u32 2147483647, %v5557
      %vm6048 = vcmp.lt.f32.partialorder %v6047, 0.0004427343
      %v6049 = vsel %vm6048, %v6046, %v6043
      %v6050 = vadd.f32 %v5559, 1.0
      %v6051 = vlog2.pop %v6050
      %v6052 = vmul.f32 %v6051, 0.6931472
      %v6053 = vmul.f32 -0.5, %v5559
      %v6054 = vadd.f32 %v6053, 1.0
      %v6055 = vmul.f32 %v6054, %v5559
      %v6056 = vand.u32 2147483647, %v5559
      %vm6057 = vcmp.lt.f32.partialorder %v6056, 0.0004427343
      %v6058 = vsel %vm6057, %v6055, %v6052
      %v6059 = vadd.f32 %v5561, 1.0
      %v6060 = vlog2.pop %v6059
      %v6061 = vmul.f32 %v6060, 0.6931472
      %v6062 = vmul.f32 -0.5, %v5561
      %v6063 = vadd.f32 %v6062, 1.0
      %v6064 = vmul.f32 %v6063, %v5561
      %v6065 = vand.u32 2147483647, %v5561
      %vm6066 = vcmp.lt.f32.partialorder %v6065, 0.0004427343
      %v6067 = vsel %vm6066, %v6064, %v6061
      %v6068 = vadd.f32 %v5563, 1.0
      %v6069 = vlog2.pop %v6068
      %v6070 = vmul.f32 %v6069, 0.6931472
      %v6071 = vmul.f32 -0.5, %v5563
      %v6072 = vadd.f32 %v6071, 1.0
      %v6073 = vmul.f32 %v6072, %v5563
      %v6074 = vand.u32 2147483647, %v5563
      %vm6075 = vcmp.lt.f32.partialorder %v6074, 0.0004427343
      %v6076 = vsel %vm6075, %v6073, %v6070
      %v6077 = vadd.f32 %v5565, 1.0
      %v6078 = vlog2.pop %v6077
      %v6079 = vmul.f32 %v6078, 0.6931472
      %v6080 = vmul.f32 -0.5, %v5565
      %v6081 = vadd.f32 %v6080, 1.0
      %v6082 = vmul.f32 %v6081, %v5565
      %v6083 = vand.u32 2147483647, %v5565
      %vm6084 = vcmp.lt.f32.partialorder %v6083, 0.0004427343
      %v6085 = vsel %vm6084, %v6082, %v6079
      %v6086 = vadd.f32 %v5567, 1.0
      %v6087 = vlog2.pop %v6086
      %v6088 = vmul.f32 %v6087, 0.6931472
      %v6089 = vmul.f32 -0.5, %v5567
      %v6090 = vadd.f32 %v6089, 1.0
      %v6091 = vmul.f32 %v6090, %v5567
      %v6092 = vand.u32 2147483647, %v5567
      %vm6093 = vcmp.lt.f32.partialorder %v6092, 0.0004427343
      %v6094 = vsel %vm6093, %v6091, %v6088
      %v6095 = vadd.f32 %v5569, 1.0
      %v6096 = vlog2.pop %v6095
      %v6097 = vmul.f32 %v6096, 0.6931472
      %v6098 = vmul.f32 -0.5, %v5569
      %v6099 = vadd.f32 %v6098, 1.0
      %v6100 = vmul.f32 %v6099, %v5569
      %v6101 = vand.u32 2147483647, %v5569
      %vm6102 = vcmp.lt.f32.partialorder %v6101, 0.0004427343
      %v6103 = vsel %vm6102, %v6100, %v6097
      %v6104 = vadd.f32 %v5571, 1.0
      %v6105 = vlog2.pop %v6104
      %v6106 = vmul.f32 %v6105, 0.6931472
      %v6107 = vmul.f32 -0.5, %v5571
      %v6108 = vadd.f32 %v6107, 1.0
      %v6109 = vmul.f32 %v6108, %v5571
      %v6110 = vand.u32 2147483647, %v5571
      %vm6111 = vcmp.lt.f32.partialorder %v6110, 0.0004427343
      %v6112 = vsel %vm6111, %v6109, %v6106
      %v6113 = vadd.f32 %v5573, 1.0
      %v6114 = vlog2.pop %v6113
      %v6115 = vmul.f32 %v6114, 0.6931472
      %v6116 = vmul.f32 -0.5, %v5573
      %v6117 = vadd.f32 %v6116, 1.0
      %v6118 = vmul.f32 %v6117, %v5573
      %v6119 = vand.u32 2147483647, %v5573
      %vm6120 = vcmp.lt.f32.partialorder %v6119, 0.0004427343
      %v6121 = vsel %vm6120, %v6118, %v6115
      %v6122 = vadd.f32 %v5575, 1.0
      %v6123 = vlog2.pop %v6122
      %v6124 = vmul.f32 %v6123, 0.6931472
      %v6125 = vmul.f32 -0.5, %v5575
      %v6126 = vadd.f32 %v6125, 1.0
      %v6127 = vmul.f32 %v6126, %v5575
      %v6128 = vand.u32 2147483647, %v5575
      %vm6129 = vcmp.lt.f32.partialorder %v6128, 0.0004427343
      %v6130 = vsel %vm6129, %v6127, %v6124
      %v6131 = vadd.f32 %v5577, 1.0
      %v6132 = vlog2.pop %v6131
      %v6133 = vmul.f32 %v6132, 0.6931472
      %v6134 = vmul.f32 -0.5, %v5577
      %v6135 = vadd.f32 %v6134, 1.0
      %v6136 = vmul.f32 %v6135, %v5577
      %v6137 = vand.u32 2147483647, %v5577
      %vm6138 = vcmp.lt.f32.partialorder %v6137, 0.0004427343
      %v6139 = vsel %vm6138, %v6136, %v6133
      %v6140 = vadd.f32 %v5579, 1.0
      %v6141 = vlog2.pop %v6140
      %v6142 = vmul.f32 %v6141, 0.6931472
      %v6143 = vmul.f32 -0.5, %v5579
      %v6144 = vadd.f32 %v6143, 1.0
      %v6145 = vmul.f32 %v6144, %v5579
      %v6146 = vand.u32 2147483647, %v5579
      %vm6147 = vcmp.lt.f32.partialorder %v6146, 0.0004427343
      %v6148 = vsel %vm6147, %v6145, %v6142
      %v6149 = vadd.f32 %v5581, 1.0
      %v6150 = vlog2.pop %v6149
      %v6151 = vmul.f32 %v6150, 0.6931472
      %v6152 = vmul.f32 -0.5, %v5581
      %v6153 = vadd.f32 %v6152, 1.0
      %v6154 = vmul.f32 %v6153, %v5581
      %v6155 = vand.u32 2147483647, %v5581
      %vm6156 = vcmp.lt.f32.partialorder %v6155, 0.0004427343
      %v6157 = vsel %vm6156, %v6154, %v6151
      %v6158 = vadd.f32 %v5262, %v5590
      %v6159 = vadd.f32 %v5263, %v5599
      %v6160 = vadd.f32 %v5264, %v5608
      %v6161 = vadd.f32 %v5265, %v5617
      %v6162 = vadd.f32 %v5266, %v5626
      %v6163 = vadd.f32 %v5267, %v5635
      %v6164 = vadd.f32 %v5268, %v5644
      %v6165 = vadd.f32 %v5269, %v5653
      %v6166 = vadd.f32 %v5270, %v5662
      %v6167 = vadd.f32 %v5271, %v5671
      %v6168 = vadd.f32 %v5272, %v5680
      %v6169 = vadd.f32 %v5273, %v5689
      %v6170 = vadd.f32 %v5274, %v5698
      %v6171 = vadd.f32 %v5275, %v5707
      %v6172 = vadd.f32 %v5276, %v5716
      %v6173 = vadd.f32 %v5277, %v5725
      %v6174 = vadd.f32 %v5278, %v5734
      %v6175 = vadd.f32 %v5279, %v5743
      %v6176 = vadd.f32 %v5280, %v5752
      %v6177 = vadd.f32 %v5281, %v5761
      %v6178 = vadd.f32 %v5282, %v5770
      %v6179 = vadd.f32 %v5283, %v5779
      %v6180 = vadd.f32 %v5284, %v5788
      %v6181 = vadd.f32 %v5285, %v5797
      %v6182 = vadd.f32 %v5286, %v5806
      %v6183 = vadd.f32 %v5287, %v5815
      %v6184 = vadd.f32 %v5288, %v5824
      %v6185 = vadd.f32 %v5289, %v5833
      %v6186 = vadd.f32 %v5290, %v5842
      %v6187 = vadd.f32 %v5291, %v5851
      %v6188 = vadd.f32 %v5292, %v5860
      %v6189 = vadd.f32 %v5293, %v5869
      %v6190 = vadd.f32 %v5294, %v5878
      %v6191 = vadd.f32 %v5295, %v5887
      %v6192 = vadd.f32 %v5296, %v5896
      %v6193 = vadd.f32 %v5297, %v5905
      %v6194 = vadd.f32 %v5298, %v5914
      %v6195 = vadd.f32 %v5299, %v5923
      %v6196 = vadd.f32 %v5300, %v5932
      %v6197 = vadd.f32 %v5301, %v5941
      %v6198 = vadd.f32 %v5302, %v5950
      %v6199 = vadd.f32 %v5303, %v5959
      %v6200 = vadd.f32 %v5304, %v5968
      %v6201 = vadd.f32 %v5305, %v5977
      %v6202 = vadd.f32 %v5306, %v5986
      %v6203 = vadd.f32 %v5307, %v5995
      %v6204 = vadd.f32 %v5308, %v6004
      %v6205 = vadd.f32 %v5309, %v6013
      %v6206 = vadd.f32 %v5310, %v6022
      %v6207 = vadd.f32 %v5311, %v6031
      %v6208 = vadd.f32 %v5312, %v6040
      %v6209 = vadd.f32 %v5313, %v6049
      %v6210 = vadd.f32 %v5314, %v6058
      %v6211 = vadd.f32 %v5315, %v6067
      %v6212 = vadd.f32 %v5316, %v6076
      %v6213 = vadd.f32 %v5317, %v6085
      %v6214 = vadd.f32 %v5318, %v6094
      %v6215 = vadd.f32 %v5319, %v6103
      %v6216 = vadd.f32 %v5320, %v6112
      %v6217 = vadd.f32 %v5321, %v6121
      %v6218 = vadd.f32 %v5322, %v6130
      %v6219 = vadd.f32 %v5323, %v6139
      %v6220 = vadd.f32 %v5324, %v6148
      %v6221 = vadd.f32 %v5325, %v6157
      %v6222 = vsub.f32 0.0, %v6158
      %v6223 = vsub.f32 0.0, %v6159
      %v6224 = vsub.f32 0.0, %v6160
      %v6225 = vsub.f32 0.0, %v6161
      %v6226 = vsub.f32 0.0, %v6162
      %v6227 = vsub.f32 0.0, %v6163
      %v6228 = vsub.f32 0.0, %v6164
      %v6229 = vsub.f32 0.0, %v6165
      %v6230 = vsub.f32 0.0, %v6166
      %v6231 = vsub.f32 0.0, %v6167
      %v6232 = vsub.f32 0.0, %v6168
      %v6233 = vsub.f32 0.0, %v6169
      %v6234 = vsub.f32 0.0, %v6170
      %v6235 = vsub.f32 0.0, %v6171
      %v6236 = vsub.f32 0.0, %v6172
      %v6237 = vsub.f32 0.0, %v6173
      %v6238 = vsub.f32 0.0, %v6174
      %v6239 = vsub.f32 0.0, %v6175
      %v6240 = vsub.f32 0.0, %v6176
      %v6241 = vsub.f32 0.0, %v6177
      %v6242 = vsub.f32 0.0, %v6178
      %v6243 = vsub.f32 0.0, %v6179
      %v6244 = vsub.f32 0.0, %v6180
      %v6245 = vsub.f32 0.0, %v6181
      %v6246 = vsub.f32 0.0, %v6182
      %v6247 = vsub.f32 0.0, %v6183
      %v6248 = vsub.f32 0.0, %v6184
      %v6249 = vsub.f32 0.0, %v6185
      %v6250 = vsub.f32 0.0, %v6186
      %v6251 = vsub.f32 0.0, %v6187
      %v6252 = vsub.f32 0.0, %v6188
      %v6253 = vsub.f32 0.0, %v6189
      %v6254 = vsub.f32 0.0, %v6190
      %v6255 = vsub.f32 0.0, %v6191
      %v6256 = vsub.f32 0.0, %v6192
      %v6257 = vsub.f32 0.0, %v6193
      %v6258 = vsub.f32 0.0, %v6194
      %v6259 = vsub.f32 0.0, %v6195
      %v6260 = vsub.f32 0.0, %v6196
      %v6261 = vsub.f32 0.0, %v6197
      %v6262 = vsub.f32 0.0, %v6198
      %v6263 = vsub.f32 0.0, %v6199
      %v6264 = vsub.f32 0.0, %v6200
      %v6265 = vsub.f32 0.0, %v6201
      %v6266 = vsub.f32 0.0, %v6202
      %v6267 = vsub.f32 0.0, %v6203
      %v6268 = vsub.f32 0.0, %v6204
      %v6269 = vsub.f32 0.0, %v6205
      %v6270 = vsub.f32 0.0, %v6206
      %v6271 = vsub.f32 0.0, %v6207
      %v6272 = vsub.f32 0.0, %v6208
      %v6273 = vsub.f32 0.0, %v6209
      %v6274 = vsub.f32 0.0, %v6210
      %v6275 = vsub.f32 0.0, %v6211
      %v6276 = vsub.f32 0.0, %v6212
      %v6277 = vsub.f32 0.0, %v6213
      %v6278 = vsub.f32 0.0, %v6214
      %v6279 = vsub.f32 0.0, %v6215
      %v6280 = vsub.f32 0.0, %v6216
      %v6281 = vsub.f32 0.0, %v6217
      %v6282 = vsub.f32 0.0, %v6218
      %v6283 = vsub.f32 0.0, %v6219
      %v6284 = vsub.f32 0.0, %v6220
      %v6285 = vsub.f32 0.0, %v6221
      %v6286 = vpack.c.bf16 %v6223, %v6222
      %v6287 = vpack.c.bf16 %v6225, %v6224
      %v6288 = vpack.c.bf16 %v6227, %v6226
      %v6289 = vpack.c.bf16 %v6229, %v6228
      %v6290 = vpack.c.bf16 %v6231, %v6230
      %v6291 = vpack.c.bf16 %v6233, %v6232
      %v6292 = vpack.c.bf16 %v6235, %v6234
      %v6293 = vpack.c.bf16 %v6237, %v6236
      %v6294 = vpack.c.bf16 %v6239, %v6238
      %v6295 = vpack.c.bf16 %v6241, %v6240
      %v6296 = vpack.c.bf16 %v6243, %v6242
      %v6297 = vpack.c.bf16 %v6245, %v6244
      %v6298 = vpack.c.bf16 %v6247, %v6246
      %v6299 = vpack.c.bf16 %v6249, %v6248
      %v6300 = vpack.c.bf16 %v6251, %v6250
      %v6301 = vpack.c.bf16 %v6253, %v6252
      %v6302 = vpack.c.bf16 %v6255, %v6254
      %v6303 = vpack.c.bf16 %v6257, %v6256
      %v6304 = vpack.c.bf16 %v6259, %v6258
      %v6305 = vpack.c.bf16 %v6261, %v6260
      %v6306 = vpack.c.bf16 %v6263, %v6262
      %v6307 = vpack.c.bf16 %v6265, %v6264
      %v6308 = vpack.c.bf16 %v6267, %v6266
      %v6309 = vpack.c.bf16 %v6269, %v6268
      %v6310 = vpack.c.bf16 %v6271, %v6270
      %v6311 = vpack.c.bf16 %v6273, %v6272
      %v6312 = vpack.c.bf16 %v6275, %v6274
      %v6313 = vpack.c.bf16 %v6277, %v6276
      %v6314 = vpack.c.bf16 %v6279, %v6278
      %v6315 = vpack.c.bf16 %v6281, %v6280
      %v6316 = vpack.c.bf16 %v6283, %v6282
      %v6317 = vpack.c.bf16 %v6285, %v6284
      %v6318 = vld [vmem:[%s3] sm:$0xf]
      %v6319 = vld [vmem:[%s3 + $0x4] sm:$0xf]
      %v6320 = vld [vmem:[%s3 + $0x8] sm:$0xf]
      %v6321 = vld [vmem:[%s3 + $0xc] sm:$0xf]
      %v6322 = vld [vmem:[%s3 + $0x10] sm:$0xf]
      %v6323 = vld [vmem:[%s3 + $0x14] sm:$0xf]
      %v6324 = vld [vmem:[%s3 + $0x18] sm:$0xf]
      %v6325 = vld [vmem:[%s3 + $0x1c] sm:$0xf]
      %v6326 = vld [vmem:[%s3 + $0x20] sm:$0xf]
      %v6327 = vld [vmem:[%s3 + $0x24] sm:$0xf]
      %v6328 = vld [vmem:[%s3 + $0x28] sm:$0xf]
      %v6329 = vld [vmem:[%s3 + $0x2c] sm:$0xf]
      %v6330 = vld [vmem:[%s3 + $0x30] sm:$0xf]
      %v6331 = vld [vmem:[%s3 + $0x34] sm:$0xf]
      %v6332 = vld [vmem:[%s3 + $0x38] sm:$0xf]
      %v6333 = vld [vmem:[%s3 + $0x3c] sm:$0xf]
      %v6350 = vunpack.c.l.b16 %v6318
      %v6351 = vunpack.c.l.b16 %v6319
      %v6352 = vunpack.c.l.b16 %v6320
      %v6353 = vunpack.c.l.b16 %v6321
      %v6354 = vunpack.c.l.b16 %v6322
      %v6355 = vunpack.c.l.b16 %v6323
      %v6356 = vunpack.c.l.b16 %v6324
      %v6357 = vunpack.c.l.b16 %v6325
      %v6358 = vunpack.c.l.b16 %v6326
      %v6359 = vunpack.c.l.b16 %v6327
      %v6360 = vunpack.c.l.b16 %v6328
      %v6361 = vunpack.c.l.b16 %v6329
      %v6362 = vunpack.c.l.b16 %v6330
      %v6363 = vunpack.c.l.b16 %v6331
      %v6364 = vunpack.c.l.b16 %v6332
      %v6365 = vunpack.c.l.b16 %v6333
      %v6366 = vpack.c.b16 %v6351, %v6350
      %v6367 = vpack.c.b16 %v6353, %v6352
      %v6368 = vpack.c.b16 %v6355, %v6354
      %v6369 = vpack.c.b16 %v6357, %v6356
      %v6370 = vpack.c.b16 %v6359, %v6358
      %v6371 = vpack.c.b16 %v6361, %v6360
      %v6372 = vpack.c.b16 %v6363, %v6362
      %v6373 = vpack.c.b16 %v6365, %v6364
      %6382 = vmatprep.subr.bf16.mxu0 0
      %6383 = vmatpush1.bf16.msra.mxu0 %v6366
      %6384 = vmatprep.subr.bf16.mxu0 0
      %6385 = vmatpush1.bf16.msra.mxu0 %v6367
      %6386 = vmatprep.subr.bf16.mxu0 0
      %6387 = vmatpush1.bf16.msra.mxu0 %v6368
      %6388 = vmatprep.subr.bf16.mxu0 0
      %6389 = vmatpush1.bf16.msra.mxu0 %v6369
      %6390 = vmatprep.subr.bf16.mxu0 0
      %6391 = vmatpush1.bf16.msra.mxu0 %v6370
      %6392 = vmatprep.subr.bf16.mxu0 0
      %6393 = vmatpush1.bf16.msra.mxu0 %v6371
      %6394 = vmatprep.subr.bf16.mxu0 0
      %6395 = vmatpush1.bf16.msra.mxu0 %v6372
      %6396 = vmatprep.subr.bf16.mxu0 0
      %6397 = vmatpush1.bf16.msra.mxu0 %v6373
      %6398 = vmatprep.subr.bf16.mxu0 0
      %6399 = vmatpush1.bf16.msra.mxu0 0
      %6400 = vmatprep.subr.bf16.mxu0 0
      %6401 = vmatpush1.bf16.msra.mxu0 0
      %6402 = vmatprep.subr.bf16.mxu0 0
      %6403 = vmatpush1.bf16.msra.mxu0 0
      %6404 = vmatprep.subr.bf16.mxu0 0
      %6405 = vmatpush1.bf16.msra.mxu0 0
      %6406 = vmatprep.subr.bf16.mxu0 0
      %6407 = vmatpush1.bf16.msra.mxu0 0
      %6408 = vmatprep.subr.bf16.mxu0 0
      %6409 = vmatpush1.bf16.msra.mxu0 0
      %6410 = vmatprep.subr.bf16.mxu0 0
      %6411 = vmatpush1.bf16.msra.mxu0 0
      %6412 = vmatprep.subr.bf16.mxu0 0
      %6413 = vmatpush1.bf16.msra.mxu0 0
      %6414 = vmatprep.mubr.bf16.mxu0 0
      %6415 = vmatmul.mubr.bf16.gmra.mrb[0].mxu0 %v6286
      %v6416 = vpop.f32.mrb[0].mxu0
      %v6417 = vadd.f32 0.0, %v6416
      %v6418 = vpop.f32.mrb[0].mxu0
      %v6419 = vpop.f32.mrb[0].mxu0
      %v6420 = vadd.f32 0.0, %v6419
      %v6421 = vpop.f32.mrb[0].mxu0
      %6422 = vmatprep.mubr.bf16.mxu0 0
      %6423 = vmatmul.mubr.bf16.gmra.mrb[0].mxu0 %v6287
      %v6424 = vpop.f32.mrb[0].mxu0
      %v6425 = vadd.f32 0.0, %v6424
      %v6426 = vpop.f32.mrb[0].mxu0
      %v6427 = vpop.f32.mrb[0].mxu0
      %v6428 = vadd.f32 0.0, %v6427
      %v6429 = vpop.f32.mrb[0].mxu0
      %6430 = vmatprep.mubr.bf16.mxu0 0
      %6431 = vmatmul.mubr.bf16.gmra.mrb[0].mxu0 %v6288
      %v6432 = vpop.f32.mrb[0].mxu0
      %v6433 = vadd.f32 0.0, %v6432
      %v6434 = vpop.f32.mrb[0].mxu0
      %v6435 = vpop.f32.mrb[0].mxu0
      %v6436 = vadd.f32 0.0, %v6435
      %v6437 = vpop.f32.mrb[0].mxu0
      %6438 = vmatprep.mubr.bf16.mxu0 0
      %6439 = vmatmul.mubr.bf16.gmra.mrb[0].mxu0 %v6289
      %v6440 = vpop.f32.mrb[0].mxu0
      %v6441 = vadd.f32 0.0, %v6440
      %v6442 = vpop.f32.mrb[0].mxu0
      %v6443 = vpop.f32.mrb[0].mxu0
      %v6444 = vadd.f32 0.0, %v6443
      %v6445 = vpop.f32.mrb[0].mxu0
      %6446 = vmatprep.mubr.bf16.mxu0 0
      %6447 = vmatmul.mubr.bf16.gmra.mrb[0].mxu0 %v6290
      %v6448 = vpop.f32.mrb[0].mxu0
      %v6449 = vadd.f32 0.0, %v6448
      %v6450 = vpop.f32.mrb[0].mxu0
      %v6451 = vpop.f32.mrb[0].mxu0
      %v6452 = vadd.f32 0.0, %v6451
      %v6453 = vpop.f32.mrb[0].mxu0
      %6454 = vmatprep.mubr.bf16.mxu0 0
      %6455 = vmatmul.mubr.bf16.gmra.mrb[0].mxu0 %v6291
      %v6456 = vpop.f32.mrb[0].mxu0
      %v6457 = vadd.f32 0.0, %v6456
      %v6458 = vpop.f32.mrb[0].mxu0
      %v6459 = vpop.f32.mrb[0].mxu0
      %v6460 = vadd.f32 0.0, %v6459
      %v6461 = vpop.f32.mrb[0].mxu0
      %6462 = vmatprep.mubr.bf16.mxu0 0
      %6463 = vmatmul.mubr.bf16.gmra.mrb[0].mxu0 %v6292
      %v6464 = vpop.f32.mrb[0].mxu0
      %v6465 = vadd.f32 0.0, %v6464
      %v6466 = vpop.f32.mrb[0].mxu0
      %v6467 = vpop.f32.mrb[0].mxu0
      %v6468 = vadd.f32 0.0, %v6467
      %v6469 = vpop.f32.mrb[0].mxu0
      %6470 = vmatprep.mubr.bf16.mxu0 0
      %6471 = vmatmul.mubr.bf16.gmra.mrb[0].mxu0 %v6293
      %v6472 = vpop.f32.mrb[0].mxu0
      %v6473 = vadd.f32 0.0, %v6472
      %v6474 = vpop.f32.mrb[0].mxu0
      %v6475 = vpop.f32.mrb[0].mxu0
      %v6476 = vadd.f32 0.0, %v6475
      %v6477 = vpop.f32.mrb[0].mxu0
      %6478 = vmatprep.mubr.bf16.mxu0 0
      %6479 = vmatmul.mubr.bf16.gmra.mrb[0].mxu0 %v6294
      %v6480 = vpop.f32.mrb[0].mxu0
      %v6481 = vadd.f32 0.0, %v6480
      %v6482 = vpop.f32.mrb[0].mxu0
      %v6483 = vpop.f32.mrb[0].mxu0
      %v6484 = vadd.f32 0.0, %v6483
      %v6485 = vpop.f32.mrb[0].mxu0
      %6486 = vmatprep.mubr.bf16.mxu0 0
      %6487 = vmatmul.mubr.bf16.gmra.mrb[0].mxu0 %v6295
      %v6488 = vpop.f32.mrb[0].mxu0
      %v6489 = vadd.f32 0.0, %v6488
      %v6490 = vpop.f32.mrb[0].mxu0
      %v6491 = vpop.f32.mrb[0].mxu0
      %v6492 = vadd.f32 0.0, %v6491
      %v6493 = vpop.f32.mrb[0].mxu0
      %6494 = vmatprep.mubr.bf16.mxu0 0
      %6495 = vmatmul.mubr.bf16.gmra.mrb[0].mxu0 %v6296
      %v6496 = vpop.f32.mrb[0].mxu0
      %v6497 = vadd.f32 0.0, %v6496
      %v6498 = vpop.f32.mrb[0].mxu0
      %v6499 = vpop.f32.mrb[0].mxu0
      %v6500 = vadd.f32 0.0, %v6499
      %v6501 = vpop.f32.mrb[0].mxu0
      %6502 = vmatprep.mubr.bf16.mxu0 0
      %6503 = vmatmul.mubr.bf16.gmra.mrb[0].mxu0 %v6297
      %v6504 = vpop.f32.mrb[0].mxu0
      %v6505 = vadd.f32 0.0, %v6504
      %v6506 = vpop.f32.mrb[0].mxu0
      %v6507 = vpop.f32.mrb[0].mxu0
      %v6508 = vadd.f32 0.0, %v6507
      %v6509 = vpop.f32.mrb[0].mxu0
      %6510 = vmatprep.mubr.bf16.mxu0 0
      %6511 = vmatmul.mubr.bf16.gmra.mrb[0].mxu0 %v6298
      %v6512 = vpop.f32.mrb[0].mxu0
      %v6513 = vadd.f32 0.0, %v6512
      %v6514 = vpop.f32.mrb[0].mxu0
      %v6515 = vpop.f32.mrb[0].mxu0
      %v6516 = vadd.f32 0.0, %v6515
      %v6517 = vpop.f32.mrb[0].mxu0
      %6518 = vmatprep.mubr.bf16.mxu0 0
      %6519 = vmatmul.mubr.bf16.gmra.mrb[0].mxu0 %v6299
      %v6520 = vpop.f32.mrb[0].mxu0
      %v6521 = vadd.f32 0.0, %v6520
      %v6522 = vpop.f32.mrb[0].mxu0
      %v6523 = vpop.f32.mrb[0].mxu0
      %v6524 = vadd.f32 0.0, %v6523
      %v6525 = vpop.f32.mrb[0].mxu0
      %6526 = vmatprep.mubr.bf16.mxu0 0
      %6527 = vmatmul.mubr.bf16.gmra.mrb[0].mxu0 %v6300
      %v6528 = vpop.f32.mrb[0].mxu0
      %v6529 = vadd.f32 0.0, %v6528
      %v6530 = vpop.f32.mrb[0].mxu0
      %v6531 = vpop.f32.mrb[0].mxu0
      %v6532 = vadd.f32 0.0, %v6531
      %v6533 = vpop.f32.mrb[0].mxu0
      %6534 = vmatprep.mubr.bf16.mxu0 0
      %6535 = vmatmul.mubr.bf16.gmra.mrb[0].mxu0 %v6301
      %v6536 = vpop.f32.mrb[0].mxu0
      %v6537 = vadd.f32 0.0, %v6536
      %v6538 = vpop.f32.mrb[0].mxu0
      %v6539 = vpop.f32.mrb[0].mxu0
      %v6540 = vadd.f32 0.0, %v6539
      %v6541 = vpop.f32.mrb[0].mxu0
      %6542 = vmatprep.mubr.bf16.mxu0 0
      %6543 = vmatmul.mubr.bf16.gmra.mrb[0].mxu0 %v6302
      %v6544 = vpop.f32.mrb[0].mxu0
      %v6545 = vadd.f32 0.0, %v6544
      %v6546 = vpop.f32.mrb[0].mxu0
      %v6547 = vpop.f32.mrb[0].mxu0
      %v6548 = vadd.f32 0.0, %v6547
      %v6549 = vpop.f32.mrb[0].mxu0
      %6550 = vmatprep.mubr.bf16.mxu0 0
      %6551 = vmatmul.mubr.bf16.gmra.mrb[0].mxu0 %v6303
      %v6552 = vpop.f32.mrb[0].mxu0
      %v6553 = vadd.f32 0.0, %v6552
      %v6554 = vpop.f32.mrb[0].mxu0
      %v6555 = vpop.f32.mrb[0].mxu0
      %v6556 = vadd.f32 0.0, %v6555
      %v6557 = vpop.f32.mrb[0].mxu0
      %6558 = vmatprep.mubr.bf16.mxu0 0
      %6559 = vmatmul.mubr.bf16.gmra.mrb[0].mxu0 %v6304
      %v6560 = vpop.f32.mrb[0].mxu0
      %v6561 = vadd.f32 0.0, %v6560
      %v6562 = vpop.f32.mrb[0].mxu0
      %v6563 = vpop.f32.mrb[0].mxu0
      %v6564 = vadd.f32 0.0, %v6563
      %v6565 = vpop.f32.mrb[0].mxu0
      %6566 = vmatprep.mubr.bf16.mxu0 0
      %6567 = vmatmul.mubr.bf16.gmra.mrb[0].mxu0 %v6305
      %v6568 = vpop.f32.mrb[0].mxu0
      %v6569 = vadd.f32 0.0, %v6568
      %v6570 = vpop.f32.mrb[0].mxu0
      %v6571 = vpop.f32.mrb[0].mxu0
      %v6572 = vadd.f32 0.0, %v6571
      %v6573 = vpop.f32.mrb[0].mxu0
      %6574 = vmatprep.mubr.bf16.mxu0 0
      %6575 = vmatmul.mubr.bf16.gmra.mrb[0].mxu0 %v6306
      %v6576 = vpop.f32.mrb[0].mxu0
      %v6577 = vadd.f32 0.0, %v6576
      %v6578 = vpop.f32.mrb[0].mxu0
      %v6579 = vpop.f32.mrb[0].mxu0
      %v6580 = vadd.f32 0.0, %v6579
      %v6581 = vpop.f32.mrb[0].mxu0
      %6582 = vmatprep.mubr.bf16.mxu0 0
      %6583 = vmatmul.mubr.bf16.gmra.mrb[0].mxu0 %v6307
      %v6584 = vpop.f32.mrb[0].mxu0
      %v6585 = vadd.f32 0.0, %v6584
      %v6586 = vpop.f32.mrb[0].mxu0
      %v6587 = vpop.f32.mrb[0].mxu0
      %v6588 = vadd.f32 0.0, %v6587
      %v6589 = vpop.f32.mrb[0].mxu0
      %6590 = vmatprep.mubr.bf16.mxu0 0
      %6591 = vmatmul.mubr.bf16.gmra.mrb[0].mxu0 %v6308
      %v6592 = vpop.f32.mrb[0].mxu0
      %v6593 = vadd.f32 0.0, %v6592
      %v6594 = vpop.f32.mrb[0].mxu0
      %v6595 = vpop.f32.mrb[0].mxu0
      %v6596 = vadd.f32 0.0, %v6595
      %v6597 = vpop.f32.mrb[0].mxu0
      %6598 = vmatprep.mubr.bf16.mxu0 0
      %6599 = vmatmul.mubr.bf16.gmra.mrb[0].mxu0 %v6309
      %v6600 = vpop.f32.mrb[0].mxu0
      %v6601 = vadd.f32 0.0, %v6600
      %v6602 = vpop.f32.mrb[0].mxu0
      %v6603 = vpop.f32.mrb[0].mxu0
      %v6604 = vadd.f32 0.0, %v6603
      %v6605 = vpop.f32.mrb[0].mxu0
      %6606 = vmatprep.mubr.bf16.mxu0 0
      %6607 = vmatmul.mubr.bf16.gmra.mrb[0].mxu0 %v6310
      %v6608 = vpop.f32.mrb[0].mxu0
      %v6609 = vadd.f32 0.0, %v6608
      %v6610 = vpop.f32.mrb[0].mxu0
      %v6611 = vpop.f32.mrb[0].mxu0
      %v6612 = vadd.f32 0.0, %v6611
      %v6613 = vpop.f32.mrb[0].mxu0
      %6614 = vmatprep.mubr.bf16.mxu0 0
      %6615 = vmatmul.mubr.bf16.gmra.mrb[0].mxu0 %v6311
      %v6616 = vpop.f32.mrb[0].mxu0
      %v6617 = vadd.f32 0.0, %v6616
      %v6618 = vpop.f32.mrb[0].mxu0
      %v6619 = vpop.f32.mrb[0].mxu0
      %v6620 = vadd.f32 0.0, %v6619
      %v6621 = vpop.f32.mrb[0].mxu0
      %6622 = vmatprep.mubr.bf16.mxu0 0
      %6623 = vmatmul.mubr.bf16.gmra.mrb[0].mxu0 %v6312
      %v6624 = vpop.f32.mrb[0].mxu0
      %v6625 = vadd.f32 0.0, %v6624
      %v6626 = vpop.f32.mrb[0].mxu0
      %v6627 = vpop.f32.mrb[0].mxu0
      %v6628 = vadd.f32 0.0, %v6627
      %v6629 = vpop.f32.mrb[0].mxu0
      %6630 = vmatprep.mubr.bf16.mxu0 0
      %6631 = vmatmul.mubr.bf16.gmra.mrb[0].mxu0 %v6313
      %v6632 = vpop.f32.mrb[0].mxu0
      %v6633 = vadd.f32 0.0, %v6632
      %v6634 = vpop.f32.mrb[0].mxu0
      %v6635 = vpop.f32.mrb[0].mxu0
      %v6636 = vadd.f32 0.0, %v6635
      %v6637 = vpop.f32.mrb[0].mxu0
      %6638 = vmatprep.mubr.bf16.mxu0 0
      %6639 = vmatmul.mubr.bf16.gmra.mrb[0].mxu0 %v6314
      %v6640 = vpop.f32.mrb[0].mxu0
      %v6641 = vadd.f32 0.0, %v6640
      %v6642 = vpop.f32.mrb[0].mxu0
      %v6643 = vpop.f32.mrb[0].mxu0
      %v6644 = vadd.f32 0.0, %v6643
      %v6645 = vpop.f32.mrb[0].mxu0
      %6646 = vmatprep.mubr.bf16.mxu0 0
      %6647 = vmatmul.mubr.bf16.gmra.mrb[0].mxu0 %v6315
      %v6648 = vpop.f32.mrb[0].mxu0
      %v6649 = vadd.f32 0.0, %v6648
      %v6650 = vpop.f32.mrb[0].mxu0
      %v6651 = vpop.f32.mrb[0].mxu0
      %v6652 = vadd.f32 0.0, %v6651
      %v6653 = vpop.f32.mrb[0].mxu0
      %6654 = vmatprep.mubr.bf16.mxu0 0
      %6655 = vmatmul.mubr.bf16.gmra.mrb[0].mxu0 %v6316
      %v6656 = vpop.f32.mrb[0].mxu0
      %v6657 = vadd.f32 0.0, %v6656
      %v6658 = vpop.f32.mrb[0].mxu0
      %v6659 = vpop.f32.mrb[0].mxu0
      %v6660 = vadd.f32 0.0, %v6659
      %v6661 = vpop.f32.mrb[0].mxu0
      %6662 = vmatprep.mubr.bf16.mxu0 0
      %6663 = vmatmul.mubr.bf16.gmra.mrb[0].mxu0 %v6317
      %v6664 = vpop.f32.mrb[0].mxu0
      %v6665 = vadd.f32 0.0, %v6664
      %v6666 = vpop.f32.mrb[0].mxu0
      %v6667 = vpop.f32.mrb[0].mxu0
      %v6668 = vadd.f32 0.0, %v6667
      %v6669 = vpop.f32.mrb[0].mxu0
      %6670 = vdwg.mxu0
      %6671 = vst [vmem:[%s199] sm:$0xff] %v6417
      %6672 = vst [vmem:[%s199 + $0x8] sm:$0xff] %v6420
      %6673 = vst [vmem:[%s199 + $0x10] sm:$0xff] %v6425
      %6674 = vst [vmem:[%s199 + $0x18] sm:$0xff] %v6428
      %6675 = vst [vmem:[%s199 + $0x20] sm:$0xff] %v6433
      %6676 = vst [vmem:[%s199 + $0x28] sm:$0xff] %v6436
      %6677 = vst [vmem:[%s199 + $0x30] sm:$0xff] %v6441
      %6678 = vst [vmem:[%s199 + $0x38] sm:$0xff] %v6444
      %6679 = vst [vmem:[%s199 + $0x40] sm:$0xff] %v6449
      %6680 = vst [vmem:[%s199 + $0x48] sm:$0xff] %v6452
      %6681 = vst [vmem:[%s199 + $0x50] sm:$0xff] %v6457
      %6682 = vst [vmem:[%s199 + $0x58] sm:$0xff] %v6460
      %6683 = vst [vmem:[%s199 + $0x60] sm:$0xff] %v6465
      %6684 = vst [vmem:[%s199 + $0x68] sm:$0xff] %v6468
      %6685 = vst [vmem:[%s199 + $0x70] sm:$0xff] %v6473
      %6686 = vst [vmem:[%s199 + $0x78] sm:$0xff] %v6476
      %6687 = vst [vmem:[%s199 + $0x80] sm:$0xff] %v6481
      %6688 = vst [vmem:[%s199 + $0x88] sm:$0xff] %v6484
      %6689 = vst [vmem:[%s199 + $0x90] sm:$0xff] %v6489
      %6690 = vst [vmem:[%s199 + $0x98] sm:$0xff] %v6492
      %6691 = vst [vmem:[%s199 + $0xa0] sm:$0xff] %v6497
      %6692 = vst [vmem:[%s199 + $0xa8] sm:$0xff] %v6500
      %6693 = vst [vmem:[%s199 + $0xb0] sm:$0xff] %v6505
      %6694 = vst [vmem:[%s199 + $0xb8] sm:$0xff] %v6508
      %6695 = vst [vmem:[%s199 + $0xc0] sm:$0xff] %v6513
      %6696 = vst [vmem:[%s199 + $0xc8] sm:$0xff] %v6516
      %6697 = vst [vmem:[%s199 + $0xd0] sm:$0xff] %v6521
      %6698 = vst [vmem:[%s199 + $0xd8] sm:$0xff] %v6524
      %6699 = vst [vmem:[%s199 + $0xe0] sm:$0xff] %v6529
      %6700 = vst [vmem:[%s199 + $0xe8] sm:$0xff] %v6532
      %6701 = vst [vmem:[%s199 + $0xf0] sm:$0xff] %v6537
      %6702 = vst [vmem:[%s199 + $0xf8] sm:$0xff] %v6540
      %6703 = vst [vmem:[%s199 + $0x100] sm:$0xff] %v6545
      %6704 = vst [vmem:[%s199 + $0x108] sm:$0xff] %v6548
      %6705 = vst [vmem:[%s199 + $0x110] sm:$0xff] %v6553
      %6706 = vst [vmem:[%s199 + $0x118] sm:$0xff] %v6556
      %6707 = vst [vmem:[%s199 + $0x120] sm:$0xff] %v6561
      %6708 = vst [vmem:[%s199 + $0x128] sm:$0xff] %v6564
      %6709 = vst [vmem:[%s199 + $0x130] sm:$0xff] %v6569
      %6710 = vst [vmem:[%s199 + $0x138] sm:$0xff] %v6572
      %6711 = vst [vmem:[%s199 + $0x140] sm:$0xff] %v6577
      %6712 = vst [vmem:[%s199 + $0x148] sm:$0xff] %v6580
      %6713 = vst [vmem:[%s199 + $0x150] sm:$0xff] %v6585
      %6714 = vst [vmem:[%s199 + $0x158] sm:$0xff] %v6588
      %6715 = vst [vmem:[%s199 + $0x160] sm:$0xff] %v6593
      %6716 = vst [vmem:[%s199 + $0x168] sm:$0xff] %v6596
      %6717 = vst [vmem:[%s199 + $0x170] sm:$0xff] %v6601
      %6718 = vst [vmem:[%s199 + $0x178] sm:$0xff] %v6604
      %6719 = vst [vmem:[%s199 + $0x180] sm:$0xff] %v6609
      %6720 = vst [vmem:[%s199 + $0x188] sm:$0xff] %v6612
      %6721 = vst [vmem:[%s199 + $0x190] sm:$0xff] %v6617
      %6722 = vst [vmem:[%s199 + $0x198] sm:$0xff] %v6620
      %6723 = vst [vmem:[%s199 + $0x1a0] sm:$0xff] %v6625
      %6724 = vst [vmem:[%s199 + $0x1a8] sm:$0xff] %v6628
      %6725 = vst [vmem:[%s199 + $0x1b0] sm:$0xff] %v6633
      %6726 = vst [vmem:[%s199 + $0x1b8] sm:$0xff] %v6636
      %6727 = vst [vmem:[%s199 + $0x1c0] sm:$0xff] %v6641
      %6728 = vst [vmem:[%s199 + $0x1c8] sm:$0xff] %v6644
      %6729 = vst [vmem:[%s199 + $0x1d0] sm:$0xff] %v6649
      %6730 = vst [vmem:[%s199 + $0x1d8] sm:$0xff] %v6652
      %6731 = vst [vmem:[%s199 + $0x1e0] sm:$0xff] %v6657
      %6732 = vst [vmem:[%s199 + $0x1e8] sm:$0xff] %v6660
      %6733 = vst [vmem:[%s199 + $0x1f0] sm:$0xff] %v6665
      %6734 = vst [vmem:[%s199 + $0x1f8] sm:$0xff] %v6668
      %s6735 = smul.u32 64, %s15
      %p6736 = scmp.lt.s32.totalorder %s6735, 127
      %s6737 = scalar_select %p6736, %s6735, 127
      %s6738 = smul.addr %s6737, 8
      %s6739 = scalar_lea.vmem %s4, %s6738
      // Predicated region
      $region37: #{cnndis_forward_pallas.1} parent=35 // pred_check
        %p6740 = pneg %p122
      $region38: #{cnndis_forward_pallas.1} parent=35 // pred_check_branch
        %6742 = sbr.rel (%p6740) target = $region40
      $region39: #{cnndis_forward_pallas.1} parent=35 // pred_region
        %s6743 = smul.u32 64, %s15
      $region40: #{cnndis_forward_pallas.1} parent=35 // pred_fallthru
        _
    $region36: #{cnndis_forward_pallas.1} parent=5 // pred_fallthru
      _
    %p6744 = scmp.le.s32.totalorder 2, %s10
    // Predicated region
    $region41: #{cnndis_forward_pallas.1} parent=5 // pred_check
      %p6745 = pneg %p6744
    $region42: #{cnndis_forward_pallas.1} parent=5 // pred_check_branch
      %6747 = sbr.rel (%p6745) target = $region44
    $region43: #{cnndis_forward_pallas.1} parent=5 // pred_region
      %s6748 = ssub.s32 %s10, 2
      // Predicated region
      $region45: #{cnndis_forward_pallas.1} parent=43 // pred_check
        %p6749 = pneg %p128
      $region46: #{cnndis_forward_pallas.1} parent=43 // pred_check_branch
        %6751 = sbr.rel (%p6749) target = $region48
      $region47: #{cnndis_forward_pallas.1} parent=43 // pred_region
        %s6752 = smul.u32 64, %s16
        %p6753 = scmp.lt.s32.totalorder %s6752, 127
        %s6754 = scalar_select %p6753, %s6752, 127
        %s6755 = smul.addr %s6754, 8
        %s6756 = scalar_lea.vmem %s4, %s6755
      $region48: #{cnndis_forward_pallas.1} parent=43 // pred_fallthru
        _
    $region44: #{cnndis_forward_pallas.1} parent=5 // pred_fallthru
      _
  $region6: #{cnndis_forward_pallas.1} parent=0 // loop_footer
    %s14 = sadd.s32 1, %s10
  $region7: #{cnndis_forward_pallas.1} parent=0 // loop_footer_branch
    %9 = sbr.rel target = $region3
  $region8: #{cnndis_forward_pallas.1} parent=0 // loop_exit
    _

</llo_original>
